<compile_context>
chip_gen: v7x
topology: tpu7x:2x2x1
jax: 0.10.0
libtpu: 0.0.40
codegen_flags: <defaults>
</compile_context>

<pallas_src>
import math
import functools

import jax
import jax.numpy as jnp
from jax import lax
from jax.experimental import pallas as pl
from jax.experimental.pallas import tpu as pltpu

_EPS = 1e-5
_NEG = -1e9


def _vmem_limit_bytes():
    """Per-generation scoped-VMEM limit: ~3/4 of physical, capped at 100 MiB.
    v5e/v6e (128 MiB physical) -> ~96 MiB, v7x (64 MiB physical) -> 48 MiB."""
    cap = 64 * 1024 * 1024
    try:
        cap = int(pltpu.get_tpu_info().vmem_capacity_bytes)
    except Exception:
        pass
    return int(min(cap * 3 // 4, 100 * 1024 * 1024))


_VMEM_LIMIT = _vmem_limit_bytes()
_BIG_VMEM = _VMEM_LIMIT >= 64 * 1024 * 1024
_TILE_Q = 256 if _BIG_VMEM else 128        # attention query-tile rows
_TILE_M = 512 if _BIG_VMEM else 256        # FFN / LayerNorm row tile
_TILE_M_OUT = 1024 if _BIG_VMEM else 512   # fc_out row tile
_TILE_V = 2048 if _BIG_VMEM else 1024      # fc_out vocab tile (lane-dense)


def _cparams(*sem):
    return pltpu.CompilerParams(dimension_semantics=sem, vmem_limit_bytes=_VMEM_LIMIT)


def _layer_norm(y, g, b):
    mean = jnp.mean(y, axis=-1, keepdims=True)
    var = jnp.mean(jnp.square(y - mean), axis=-1, keepdims=True)
    return (y - mean) * lax.rsqrt(var + _EPS) * g + b


# ----------------------------------------------------------------------------
# Pallas kernels
# ----------------------------------------------------------------------------

def _attention_body(xq_ref, mem_ref, bias_ref, wq_ref, bq_ref, wkv_ref, bkv_ref,
                    wo_ref, bo_ref, g_ref, beta_ref, o_ref,
                    num_heads, scale, causal, q_tile):
    """Fused attention block for one (batch, query-tile) grid point:
       bf16 QKV proj -> per-head softmax attention -> out proj -> residual -> LayerNorm."""
    xq = xq_ref[...]                       # (tq, E) f32 — query rows + residual
    mem = mem_ref[...]                     # (S,  E) f32 — key/value rows
    tq, E = xq.shape
    S = mem.shape[0]
    Dh = E // num_heads

    # Full-width bf16 projections (K = E, N = E / 2E), f32 accumulation.
    q_all = (jnp.dot(xq.astype(jnp.bfloat16), wq_ref[...],
                     preferred_element_type=jnp.float32) + bq_ref[...]) * scale   # (tq, E)
    kv = jnp.dot(mem.astype(jnp.bfloat16), wkv_ref[...],
                 preferred_element_type=jnp.float32) + bkv_ref[...]               # (S, 2E)

    if causal:
        q0 = pl.program_id(1) * q_tile
        row = lax.broadcasted_iota(jnp.int32, (tq, S), 0) + q0
        col = lax.broadcasted_iota(jnp.int32, (tq, S), 1)
        causal_bias = jnp.where(col > row, jnp.float32(_NEG), jnp.float32(0.0))

    key_bias = bias_ref[...] if bias_ref is not None else None                    # (1, S)

    # Per-head attention. Head outputs are folded straight into the output projection
    # (equivalent to concat(heads) @ Wo).  wo is stored head-major (H, Dh, E) so the
    # per-head weight slice is a free leading-dim slice (no lane relayout).
    proj = jnp.zeros((tq, E), jnp.float32)
    for h in range(num_heads):
        q = q_all[:, h * Dh:(h + 1) * Dh]
        k = kv[:, h * Dh:(h + 1) * Dh]
        v = kv[:, E + h * Dh:E + (h + 1) * Dh]
        s = lax.dot_general(q.astype(jnp.bfloat16), k.astype(jnp.bfloat16),
                            (((1,), (1,)), ((), ())),
                            preferred_element_type=jnp.float32)                   # (tq, S)
        if key_bias is not None:
            s = s + key_bias
        if causal:
            s = s + causal_bias
        m = jnp.max(s, axis=-1, keepdims=True)
        p = jnp.exp(s - m)
        denom = jnp.sum(p, axis=-1, keepdims=True)
        o_h = jnp.dot(p.astype(jnp.bfloat16), v.astype(jnp.bfloat16),
                      preferred_element_type=jnp.float32)                         # (tq, Dh)
        o_h = o_h * pl.reciprocal(denom, approx=True)                             # EUP, ~free
        proj = proj + jnp.dot(o_h.astype(jnp.bfloat16), wo_ref[h],
                              preferred_element_type=jnp.float32)

    y = xq + proj + bo_ref[...]
    o_ref[...] = _layer_norm(y, g_ref[...], beta_ref[...])


def _attn_ln_bias_kernel(xq_ref, mem_ref, bias_ref, wq_ref, bq_ref, wkv_ref, bkv_ref,
                         wo_ref, bo_ref, g_ref, beta_ref, o_ref, *,
                         num_heads, scale, causal, q_tile):
    _attention_body(xq_ref, mem_ref, bias_ref, wq_ref, bq_ref, wkv_ref, bkv_ref,
                    wo_ref, bo_ref, g_ref, beta_ref, o_ref,
                    num_heads, scale, causal, q_tile)


def _attn_ln_kernel(xq_ref, mem_ref, wq_ref, bq_ref, wkv_ref, bkv_ref,
                    wo_ref, bo_ref, g_ref, beta_ref, o_ref, *,
                    num_heads, scale, causal, q_tile):
    _attention_body(xq_ref, mem_ref, None, wq_ref, bq_ref, wkv_ref, bkv_ref,
                    wo_ref, bo_ref, g_ref, beta_ref, o_ref,
                    num_heads, scale, causal, q_tile)


def _ffn_ln_kernel(x_ref, w1_ref, b1_ref, w2_ref, b2_ref, g_ref, beta_ref, o_ref):
    """Fused FFN: relu(x@w1+b1)@w2+b2, residual, LayerNorm. Intermediate stays in VMEM."""
    x = x_ref[...]
    h = jnp.dot(x.astype(jnp.bfloat16), w1_ref[...],
                preferred_element_type=jnp.float32) + b1_ref[...]
    h = jnp.maximum(h, 0.0)
    y = x + jnp.dot(h.astype(jnp.bfloat16), w2_ref[...],
                    preferred_element_type=jnp.float32) + b2_ref[...]
    o_ref[...] = _layer_norm(y, g_ref[...], beta_ref[...])


def _layernorm_kernel(x_ref, g_ref, b_ref, o_ref):
    o_ref[...] = _layer_norm(x_ref[...], g_ref[...], b_ref[...])


def _linear_kernel(x_ref, w_ref, b_ref, o_ref):
    o_ref[...] = jnp.dot(x_ref[...].astype(jnp.bfloat16), w_ref[...],
                         preferred_element_type=jnp.float32) + b_ref[...]


# ----------------------------------------------------------------------------
# Kernel wrappers
# ----------------------------------------------------------------------------

def attn_block(xq, mem, p, gamma, beta, num_heads, *, causal, key_bias=None):
    """LayerNorm(xq + MHA(xq, mem, mem)).  xq: (N, L, E), mem: (N, S, E).
       key_bias: optional (N, 1, S) additive key-padding bias (0 / -1e9)."""
    N, L, E = xq.shape
    S = mem.shape[1]
    H = num_heads
    Dh = E // H
    tq = L if L <= _TILE_Q else _TILE_Q
    scale = 1.0 / math.sqrt(Dh)
    has_bias = key_bias is not None

    kern = _attn_ln_bias_kernel if has_bias else _attn_ln_kernel
    kernel = functools.partial(kern, num_heads=H, scale=scale, causal=causal, q_tile=tq)

    in_specs = [
        pl.BlockSpec((None, tq, E), lambda n, qi: (n, qi, 0)),   # query tile (+ residual)
        pl.BlockSpec((None, S, E), lambda n, qi: (n, 0, 0)),     # full key/value rows
    ]
    inputs = [xq, mem]
    if has_bias:
        in_specs.append(pl.BlockSpec((None, 1, S), lambda n, qi: (n, 0, 0)))
        inputs.append(key_bias)
    in_specs += [
        pl.BlockSpec((E, E), lambda n, qi: (0, 0)),              # wq (bf16)
        pl.BlockSpec((1, E), lambda n, qi: (0, 0)),              # bq
        pl.BlockSpec((E, 2 * E), lambda n, qi: (0, 0)),          # wkv (bf16)
        pl.BlockSpec((1, 2 * E), lambda n, qi: (0, 0)),          # bkv
        pl.BlockSpec((H, Dh, E), lambda n, qi: (0, 0, 0)),       # wo (bf16, head-major)
        pl.BlockSpec((1, E), lambda n, qi: (0, 0)),              # bo
        pl.BlockSpec((1, E), lambda n, qi: (0, 0)),              # ln gamma
        pl.BlockSpec((1, E), lambda n, qi: (0, 0)),              # ln beta
    ]
    inputs += [p["wq"], p["bq"], p["wkv"], p["bkv"], p["wo"], p["bo"], gamma, beta]

    return pl.pallas_call(
        kernel,
        out_shape=jax.ShapeDtypeStruct((N, L, E), jnp.float32),
        grid=(N, pl.cdiv(L, tq)),
        in_specs=in_specs,
        out_specs=pl.BlockSpec((None, tq, E), lambda n, qi: (n, qi, 0)),
        compiler_params=_cparams("parallel", "parallel"),
    )(*inputs)


def ffn_block(x, p, gamma, beta):
    """LayerNorm(x + FFN(x)); (M, ff) intermediate never leaves VMEM. x: (N, L, E)."""
    N, L, E = x.shape
    M = N * L
    F = p["w1"].shape[1]
    tm = M if M <= _TILE_M else _TILE_M
    y = pl.pallas_call(
        _ffn_ln_kernel,
        out_shape=jax.ShapeDtypeStruct((M, E), jnp.float32),
        grid=(pl.cdiv(M, tm),),
        in_specs=[
            pl.BlockSpec((tm, E), lambda i: (i, 0)),
            pl.BlockSpec((E, F), lambda i: (0, 0)),
            pl.BlockSpec((1, F), lambda i: (0, 0)),
            pl.BlockSpec((F, E), lambda i: (0, 0)),
            pl.BlockSpec((1, E), lambda i: (0, 0)),
            pl.BlockSpec((1, E), lambda i: (0, 0)),
            pl.BlockSpec((1, E), lambda i: (0, 0)),
        ],
        out_specs=pl.BlockSpec((tm, E), lambda i: (i, 0)),
        compiler_params=_cparams("parallel"),
    )(x.reshape(M, E), p["w1"], p["b1"], p["w2"], p["b2"], gamma, beta)
    return y.reshape(N, L, E)


def layernorm(x, gamma, beta):
    """Plain LayerNorm over the last axis. x: (N, L, E)."""
    N, L, E = x.shape
    M = N * L
    tm = M if M <= _TILE_M else _TILE_M
    y = pl.pallas_call(
        _layernorm_kernel,
        out_shape=jax.ShapeDtypeStruct((M, E), jnp.float32),
        grid=(pl.cdiv(M, tm),),
        in_specs=[
            pl.BlockSpec((tm, E), lambda i: (i, 0)),
            pl.BlockSpec((1, E), lambda i: (0, 0)),
            pl.BlockSpec((1, E), lambda i: (0, 0)),
        ],
        out_specs=pl.BlockSpec((tm, E), lambda i: (i, 0)),
        compiler_params=_cparams("parallel"),
    )(x.reshape(M, E), gamma, beta)
    return y.reshape(N, L, E)


def linear(x, w, b):
    """y = x @ w + b.  Grid ordered (vocab-tile, row-tile) so the big vocab weight tile is
       resident across the inner row axis and streams from HBM exactly once."""
    M, K = x.shape
    V = w.shape[1]
    tm = M if M <= _TILE_M_OUT else _TILE_M_OUT
    tv = V if V <= _TILE_V else _TILE_V
    return pl.pallas_call(
        _linear_kernel,
        out_shape=jax.ShapeDtypeStruct((M, V), jnp.float32),
        grid=(pl.cdiv(V, tv), pl.cdiv(M, tm)),
        in_specs=[
            pl.BlockSpec((tm, K), lambda vj, mi: (mi, 0)),
            pl.BlockSpec((K, tv), lambda vj, mi: (0, vj)),
            pl.BlockSpec((1, tv), lambda vj, mi: (0, vj)),
        ],
        out_specs=pl.BlockSpec((tm, tv), lambda vj, mi: (mi, vj)),
        compiler_params=_cparams("parallel", "parallel"),
    )(x, w, b)


# ----------------------------------------------------------------------------
# Transformer built from the fused kernels
# ----------------------------------------------------------------------------

def encoder_layer(x, lp, enc_key_bias, num_heads):
    x = attn_block(x, x, lp["self_attn"], lp["norm1_g"], lp["norm1_b"], num_heads,
                   causal=False, key_bias=enc_key_bias)
    x = ffn_block(x, lp, lp["norm2_g"], lp["norm2_b"])
    return x


def decoder_layer(x, mem, lp, num_heads):
    # decoder self-attention: causal mask built in-kernel, no key-padding bias input at all
    x = attn_block(x, x, lp["self_attn"], lp["norm1_g"], lp["norm1_b"], num_heads,
                   causal=True, key_bias=None)
    # cross-attention: no memory mask (memory_key_padding_mask=None in the reference)
    x = attn_block(x, mem, lp["cross_attn"], lp["norm2_g"], lp["norm2_b"], num_heads,
                   causal=False, key_bias=None)
    x = ffn_block(x, lp, lp["norm3_g"], lp["norm3_b"])
    return x


def transformer_forward(params, src, trg, src_pad_idx, num_heads):
    """src: (S, N) int, trg: (T, N) int (PyTorch seq-first). Returns (T, N, trg_vocab)."""
    S, N = src.shape
    T, _ = trg.shape
    E = params["src_word_emb"].shape[1]

    # Batch-first layout internally to avoid transposes around the attention kernels.
    src_b = src.T                                   # (N, S)
    trg_b = trg.T                                   # (N, T)

    # --- embeddings (token gather stays in plain JAX; dropout = identity / eval) ---
    embed_src = params["src_word_emb"][src_b] + params["src_pos_emb"][:S][None]   # (N, S, E)
    embed_trg = params["trg_word_emb"][trg_b] + params["trg_pos_emb"][:T][None]   # (N, T, E)

    # --- tiny per-row additive key bias for the encoder padding mask ---
    enc_key_bias = jnp.where(src_b == src_pad_idx, _NEG, 0.0).astype(jnp.float32).reshape(N, 1, S)

    # --- encoder ---
    mem = embed_src
    for lp in params["enc_layers"]:
        mem = encoder_layer(mem, lp, enc_key_bias, num_heads)
    mem = layernorm(mem, params["enc_norm_g"], params["enc_norm_b"])

    # --- decoder ---
    out = embed_trg
    for lp in params["dec_layers"]:
        out = decoder_layer(out, mem, lp, num_heads)
    out = layernorm(out, params["dec_norm_g"], params["dec_norm_b"])

    # --- output projection.  Transpose the SMALL (N, T, E) activation (not the big logits)
    #     so fc_out directly produces the PyTorch (T, N, V) layout. ---
    V = params["fc_out_w"].shape[1]
    out_tn = out.transpose(1, 0, 2).reshape(T * N, E)
    logits = linear(out_tn, params["fc_out_w"], params["fc_out_b"])
    return logits.reshape(T, N, V)


# ----------------------------------------------------------------------------
# Deterministic parameter init (synthetic; shapes follow the module's __init__)
# ----------------------------------------------------------------------------

def _key_iter(key):
    while True:
        key, sub = jax.random.split(key)
        yield sub


def _nrm(k, shape, scale=0.02, dtype=jnp.float32):
    return (scale * jax.random.normal(k, shape, jnp.float32)).astype(dtype)


def _init_attn(keys, E, H):
    Dh = E // H
    return {
        "wq": _nrm(next(keys), (E, E), dtype=jnp.bfloat16),
        "bq": _nrm(next(keys), (1, E)),
        "wkv": _nrm(next(keys), (E, 2 * E), dtype=jnp.bfloat16),
        "bkv": _nrm(next(keys), (1, 2 * E)),
        "wo": _nrm(next(keys), (H, Dh, E), dtype=jnp.bfloat16),   # head-major out-proj
        "bo": _nrm(next(keys), (1, E)),
    }


def init_params(key, E, src_vocab, trg_vocab, max_len, ff, n_enc, n_dec, num_heads):
    keys = _key_iter(key)
    ones = lambda: jnp.ones((1, E), jnp.float32)
    zeros = lambda: jnp.zeros((1, E), jnp.float32)

    def ffn():
        return {
            "w1": _nrm(next(keys), (E, ff), dtype=jnp.bfloat16),
            "b1": _nrm(next(keys), (1, ff)),
            "w2": _nrm(next(keys), (ff, E), dtype=jnp.bfloat16),
            "b2": _nrm(next(keys), (1, E)),
        }

    def enc_layer():
        d = {"self_attn": _init_attn(keys, E, num_heads)}
        d.update(ffn())
        d.update({"norm1_g": ones(), "norm1_b": zeros(),
                  "norm2_g": ones(), "norm2_b": zeros()})
        return d

    def dec_layer():
        d = {"self_attn": _init_attn(keys, E, num_heads),
             "cross_attn": _init_attn(keys, E, num_heads)}
        d.update(ffn())
        d.update({"norm1_g": ones(), "norm1_b": zeros(),
                  "norm2_g": ones(), "norm2_b": zeros(),
                  "norm3_g": ones(), "norm3_b": zeros()})
        return d

    return {
        "src_word_emb": _nrm(next(keys), (src_vocab, E)),
        "src_pos_emb": _nrm(next(keys), (max_len, E)),
        "trg_word_emb": _nrm(next(keys), (trg_vocab, E)),
        "trg_pos_emb": _nrm(next(keys), (max_len, E)),
        "enc_layers": [enc_layer() for _ in range(n_enc)],
        "dec_layers": [dec_layer() for _ in range(n_dec)],
        "enc_norm_g": ones(), "enc_norm_b": zeros(),
        "dec_norm_g": ones(), "dec_norm_b": zeros(),
        "fc_out_w": _nrm(next(keys), (E, trg_vocab), dtype=jnp.bfloat16),
        "fc_out_b": _nrm(next(keys), (1, trg_vocab)),
    }


# ----------------------------------------------------------------------------
# Demo
# ----------------------------------------------------------------------------

if __name__ == "__main__":
    # Small shapes consistent with the module's constructor arguments.
    embedding_size = 32
    num_heads = 4                 # head_dim = 8
    num_encoder_layers = 2
    num_decoder_layers = 2
    forward_expansion = 64        # passed as nn.Transformer dim_feedforward
    src_vocab_size = 50
    trg_vocab_size = 60
    max_len = 20
    src_pad_idx = 1

    S, T, N = 10, 8, 2            # src_seq_len, trg_seq_len, batch

    params = init_params(jax.random.PRNGKey(0), embedding_size, src_vocab_size,
                         trg_vocab_size, max_len, forward_expansion,
                         num_encoder_layers, num_decoder_layers, num_heads)

    k_src, k_trg = jax.random.split(jax.random.PRNGKey(0), 2)
    src = jax.random.randint(k_src, (S, N), 0, src_vocab_size, dtype=jnp.int32)
    src = src.at[-2:, 0].set(src_pad_idx)   # exercise the src padding mask
    trg = jax.random.randint(k_trg, (T, N), 0, trg_vocab_size, dtype=jnp.int32)

    fwd = jax.jit(functools.partial(transformer_forward,
                                    src_pad_idx=src_pad_idx, num_heads=num_heads))
    out = fwd(params, src, trg)
    out = jax.block_until_ready(out)

    assert out.shape == (T, N, trg_vocab_size), out.shape
    assert bool(jnp.all(jnp.isfinite(out)))
    print("KERNEL_OK")
</pallas_src>

<mosaic_0001>
module attributes {stable_mosaic.version = 11 : i64} {
  func.func @_attn_ln_kernel(%arg0: i32, %arg1: i32, %arg2: memref<1x8x32xf32, #tpu.memory_space<vmem>>, %arg3: memref<1x8x32xf32, #tpu.memory_space<vmem>>, %arg4: memref<32x32xbf16, #tpu.memory_space<vmem>>, %arg5: memref<1x32xf32, #tpu.memory_space<vmem>>, %arg6: memref<32x64xbf16, #tpu.memory_space<vmem>>, %arg7: memref<1x64xf32, #tpu.memory_space<vmem>>, %arg8: memref<4x8x32xbf16, #tpu.memory_space<vmem>>, %arg9: memref<1x32xf32, #tpu.memory_space<vmem>>, %arg10: memref<1x32xf32, #tpu.memory_space<vmem>>, %arg11: memref<1x32xf32, #tpu.memory_space<vmem>>, %arg12: memref<1x8x32xf32, #tpu.memory_space<vmem>>) attributes {dimension_semantics = [#tpu.dimension_semantics<parallel>, #tpu.dimension_semantics<parallel>], iteration_bounds = array<i64: 2, 1>, scalar_prefetch = 0 : i64, scratch_operands = 0 : i64, tpu.core_type = #tpu.core_type<tc>, window_params = [{transform_indices = @transform_0, window_bounds = array<i64: 1, 8, 32>}, {transform_indices = @transform_1, window_bounds = array<i64: 1, 8, 32>}, {pipeline_mode = #tpu.pipeline_mode<synchronous>, transform_indices = @transform_2, window_bounds = array<i64: 32, 32>}, {pipeline_mode = #tpu.pipeline_mode<synchronous>, transform_indices = @transform_3, window_bounds = array<i64: 1, 32>}, {pipeline_mode = #tpu.pipeline_mode<synchronous>, transform_indices = @transform_4, window_bounds = array<i64: 32, 64>}, {pipeline_mode = #tpu.pipeline_mode<synchronous>, transform_indices = @transform_5, window_bounds = array<i64: 1, 64>}, {pipeline_mode = #tpu.pipeline_mode<synchronous>, transform_indices = @transform_6, window_bounds = array<i64: 4, 8, 32>}, {pipeline_mode = #tpu.pipeline_mode<synchronous>, transform_indices = @transform_7, window_bounds = array<i64: 1, 32>}, {pipeline_mode = #tpu.pipeline_mode<synchronous>, transform_indices = @transform_8, window_bounds = array<i64: 1, 32>}, {pipeline_mode = #tpu.pipeline_mode<synchronous>, transform_indices = @transform_9, window_bounds = array<i64: 1, 32>}, {transform_indices = @transform_10, window_bounds = array<i64: 1, 8, 32>}]} {
    %c0 = arith.constant 0 : index
    %c0_0 = arith.constant 0 : index
    %c0_1 = arith.constant 0 : index
    %0 = vector.load %arg2[%c0, %c0_0, %c0_1] : memref<1x8x32xf32, #tpu.memory_space<vmem>>, vector<1x8x32xf32>
    %1 = vector.shape_cast %0 : vector<1x8x32xf32> to vector<8x32xf32>
    %c0_2 = arith.constant 0 : index
    %c0_3 = arith.constant 0 : index
    %c0_4 = arith.constant 0 : index
    %2 = vector.load %arg3[%c0_2, %c0_3, %c0_4] : memref<1x8x32xf32, #tpu.memory_space<vmem>>, vector<1x8x32xf32>
    %3 = vector.shape_cast %2 : vector<1x8x32xf32> to vector<8x32xf32>
    %4 = arith.truncf %1 : vector<8x32xf32> to vector<8x32xbf16>
    %c0_5 = arith.constant 0 : index
    %c0_6 = arith.constant 0 : index
    %5 = vector.load %arg4[%c0_5, %c0_6] : memref<32x32xbf16, #tpu.memory_space<vmem>>, vector<32x32xbf16>
    %cst = arith.constant dense<0.000000e+00> : vector<8x32xf32>
    %6 = tpu.matmul %4, %5, %cst {dimension_numbers = #tpu.dot_dimension_numbers<[1], [0], [0], [1], [0, 0, 1, 1], [], []>} : vector<8x32xbf16>, vector<32x32xbf16>, vector<8x32xf32> -> vector<8x32xf32>
    %c0_7 = arith.constant 0 : index
    %c0_8 = arith.constant 0 : index
    %7 = vector.load %arg5[%c0_7, %c0_8] : memref<1x32xf32, #tpu.memory_space<vmem>>, vector<1x32xf32>
    %8 = vector.broadcast %7 : vector<1x32xf32> to vector<8x32xf32>
    %9 = arith.addf %6, %8 : vector<8x32xf32>
    %cst_9 = arith.constant 0.353553385 : f32
    %10 = vector.broadcast %cst_9 : f32 to vector<8x32xf32>
    %11 = arith.mulf %9, %10 : vector<8x32xf32>
    %12 = arith.truncf %3 : vector<8x32xf32> to vector<8x32xbf16>
    %c0_10 = arith.constant 0 : index
    %c0_11 = arith.constant 0 : index
    %13 = vector.load %arg6[%c0_10, %c0_11] : memref<32x64xbf16, #tpu.memory_space<vmem>>, vector<32x64xbf16>
    %cst_12 = arith.constant dense<0.000000e+00> : vector<8x64xf32>
    %14 = tpu.matmul %12, %13, %cst_12 {dimension_numbers = #tpu.dot_dimension_numbers<[1], [0], [0], [1], [0, 0, 1, 1], [], []>} : vector<8x32xbf16>, vector<32x64xbf16>, vector<8x64xf32> -> vector<8x64xf32>
    %c0_13 = arith.constant 0 : index
    %c0_14 = arith.constant 0 : index
    %15 = vector.load %arg7[%c0_13, %c0_14] : memref<1x64xf32, #tpu.memory_space<vmem>>, vector<1x64xf32>
    %16 = vector.broadcast %15 : vector<1x64xf32> to vector<8x64xf32>
    %17 = arith.addf %14, %16 : vector<8x64xf32>
    %c8_i32 = arith.constant 8 : i32
    %18 = arith.muli %arg1, %c8_i32 : i32
    %19 = tpu.iota {dimensions = array<i32: 0>} : vector<8x8xi32>
    %20 = vector.broadcast %18 : i32 to vector<8x8xi32>
    %21 = arith.addi %19, %20 : vector<8x8xi32>
    %22 = tpu.iota {dimensions = array<i32: 1>} : vector<8x8xi32>
    %23 = arith.cmpi sgt, %22, %21 : vector<8x8xi32>
    %cst_15 = arith.constant -1.000000e+09 : f32
    %cst_16 = arith.constant 0.000000e+00 : f32
    %24 = vector.broadcast %cst_15 : f32 to vector<8x8xf32>
    %25 = vector.broadcast %cst_16 : f32 to vector<8x8xf32>
    %26 = arith.select %23, %24, %25 : vector<8x8xi1>, vector<8x8xf32>
    %cst_17 = arith.constant 0.000000e+00 : f32
    %27 = vector.broadcast %cst_17 : f32 to vector<8x32xf32>
    %28 = vector.extract_strided_slice %11 {offsets = [0, 0], sizes = [8, 8], strides = [1, 1]} : vector<8x32xf32> to vector<8x8xf32>
    %29 = vector.extract_strided_slice %17 {offsets = [0, 0], sizes = [8, 8], strides = [1, 1]} : vector<8x64xf32> to vector<8x8xf32>
    %30 = vector.extract_strided_slice %17 {offsets = [0, 32], sizes = [8, 8], strides = [1, 1]} : vector<8x64xf32> to vector<8x8xf32>
    %31 = arith.truncf %28 : vector<8x8xf32> to vector<8x8xbf16>
    %32 = arith.truncf %29 : vector<8x8xf32> to vector<8x8xbf16>
    %cst_18 = arith.constant dense<0.000000e+00> : vector<8x8xf32>
    %33 = tpu.matmul %31, %32, %cst_18 {dimension_numbers = #tpu.dot_dimension_numbers<[1], [1], [0], [0], [0, 0, 1, 0], [], []>} : vector<8x8xbf16>, vector<8x8xbf16>, vector<8x8xf32> -> vector<8x8xf32>
    %34 = arith.addf %33, %26 : vector<8x8xf32>
    %cst_19 = arith.constant dense<0xFF800000> : vector<8xf32>
    %35 = vector.multi_reduction <maximumf>, %34, %cst_19 [1] : vector<8x8xf32> to vector<8xf32>
    %36 = vector.shape_cast %35 : vector<8xf32> to vector<8x1xf32>
    %37 = vector.broadcast %36 : vector<8x1xf32> to vector<8x8xf32>
    %38 = arith.subf %34, %37 : vector<8x8xf32>
    %39 = math.exp %38 : vector<8x8xf32>
    %cst_20 = arith.constant dense<0.000000e+00> : vector<8xf32>
    %40 = vector.multi_reduction <add>, %39, %cst_20 [1] : vector<8x8xf32> to vector<8xf32>
    %41 = vector.shape_cast %40 : vector<8xf32> to vector<8x1xf32>
    %42 = arith.truncf %39 : vector<8x8xf32> to vector<8x8xbf16>
    %43 = arith.truncf %30 : vector<8x8xf32> to vector<8x8xbf16>
    %cst_21 = arith.constant dense<0.000000e+00> : vector<8x8xf32>
    %44 = tpu.matmul %42, %43, %cst_21 {dimension_numbers = #tpu.dot_dimension_numbers<[1], [0], [0], [1], [0, 0, 1, 1], [], []>} : vector<8x8xbf16>, vector<8x8xbf16>, vector<8x8xf32> -> vector<8x8xf32>
    %45 = tpu.reciprocal %41 {approx = true} : vector<8x1xf32> -> vector<8x1xf32>
    %46 = vector.broadcast %45 : vector<8x1xf32> to vector<8x8xf32>
    %47 = arith.mulf %44, %46 : vector<8x8xf32>
    %48 = arith.truncf %47 : vector<8x8xf32> to vector<8x8xbf16>
    %c0_22 = arith.constant 0 : index
    %c0_23 = arith.constant 0 : index
    %c0_24 = arith.constant 0 : index
    %49 = vector.load %arg8[%c0_22, %c0_23, %c0_24] : memref<4x8x32xbf16, #tpu.memory_space<vmem>>, vector<1x8x32xbf16>
    %50 = vector.shape_cast %49 : vector<1x8x32xbf16> to vector<8x32xbf16>
    %cst_25 = arith.constant dense<0.000000e+00> : vector<8x32xf32>
    %51 = tpu.matmul %48, %50, %cst_25 {dimension_numbers = #tpu.dot_dimension_numbers<[1], [0], [0], [1], [0, 0, 1, 1], [], []>} : vector<8x8xbf16>, vector<8x32xbf16>, vector<8x32xf32> -> vector<8x32xf32>
    %52 = arith.addf %27, %51 : vector<8x32xf32>
    %53 = vector.extract_strided_slice %11 {offsets = [0, 8], sizes = [8, 8], strides = [1, 1]} : vector<8x32xf32> to vector<8x8xf32>
    %54 = vector.extract_strided_slice %17 {offsets = [0, 8], sizes = [8, 8], strides = [1, 1]} : vector<8x64xf32> to vector<8x8xf32>
    %55 = vector.extract_strided_slice %17 {offsets = [0, 40], sizes = [8, 8], strides = [1, 1]} : vector<8x64xf32> to vector<8x8xf32>
    %56 = arith.truncf %53 : vector<8x8xf32> to vector<8x8xbf16>
    %57 = arith.truncf %54 : vector<8x8xf32> to vector<8x8xbf16>
    %cst_26 = arith.constant dense<0.000000e+00> : vector<8x8xf32>
    %58 = tpu.matmul %56, %57, %cst_26 {dimension_numbers = #tpu.dot_dimension_numbers<[1], [1], [0], [0], [0, 0, 1, 0], [], []>} : vector<8x8xbf16>, vector<8x8xbf16>, vector<8x8xf32> -> vector<8x8xf32>
    %59 = arith.addf %58, %26 : vector<8x8xf32>
    %cst_27 = arith.constant dense<0xFF800000> : vector<8xf32>
    %60 = vector.multi_reduction <maximumf>, %59, %cst_27 [1] : vector<8x8xf32> to vector<8xf32>
    %61 = vector.shape_cast %60 : vector<8xf32> to vector<8x1xf32>
    %62 = vector.broadcast %61 : vector<8x1xf32> to vector<8x8xf32>
    %63 = arith.subf %59, %62 : vector<8x8xf32>
    %64 = math.exp %63 : vector<8x8xf32>
    %cst_28 = arith.constant dense<0.000000e+00> : vector<8xf32>
    %65 = vector.multi_reduction <add>, %64, %cst_28 [1] : vector<8x8xf32> to vector<8xf32>
    %66 = vector.shape_cast %65 : vector<8xf32> to vector<8x1xf32>
    %67 = arith.truncf %64 : vector<8x8xf32> to vector<8x8xbf16>
    %68 = arith.truncf %55 : vector<8x8xf32> to vector<8x8xbf16>
    %cst_29 = arith.constant dense<0.000000e+00> : vector<8x8xf32>
    %69 = tpu.matmul %67, %68, %cst_29 {dimension_numbers = #tpu.dot_dimension_numbers<[1], [0], [0], [1], [0, 0, 1, 1], [], []>} : vector<8x8xbf16>, vector<8x8xbf16>, vector<8x8xf32> -> vector<8x8xf32>
    %70 = tpu.reciprocal %66 {approx = true} : vector<8x1xf32> -> vector<8x1xf32>
    %71 = vector.broadcast %70 : vector<8x1xf32> to vector<8x8xf32>
    %72 = arith.mulf %69, %71 : vector<8x8xf32>
    %73 = arith.truncf %72 : vector<8x8xf32> to vector<8x8xbf16>
    %c1 = arith.constant 1 : index
    %c0_30 = arith.constant 0 : index
    %c0_31 = arith.constant 0 : index
    %74 = vector.load %arg8[%c1, %c0_30, %c0_31] : memref<4x8x32xbf16, #tpu.memory_space<vmem>>, vector<1x8x32xbf16>
    %75 = vector.shape_cast %74 : vector<1x8x32xbf16> to vector<8x32xbf16>
    %cst_32 = arith.constant dense<0.000000e+00> : vector<8x32xf32>
    %76 = tpu.matmul %73, %75, %cst_32 {dimension_numbers = #tpu.dot_dimension_numbers<[1], [0], [0], [1], [0, 0, 1, 1], [], []>} : vector<8x8xbf16>, vector<8x32xbf16>, vector<8x32xf32> -> vector<8x32xf32>
    %77 = arith.addf %52, %76 : vector<8x32xf32>
    %78 = vector.extract_strided_slice %11 {offsets = [0, 16], sizes = [8, 8], strides = [1, 1]} : vector<8x32xf32> to vector<8x8xf32>
    %79 = vector.extract_strided_slice %17 {offsets = [0, 16], sizes = [8, 8], strides = [1, 1]} : vector<8x64xf32> to vector<8x8xf32>
    %80 = vector.extract_strided_slice %17 {offsets = [0, 48], sizes = [8, 8], strides = [1, 1]} : vector<8x64xf32> to vector<8x8xf32>
    %81 = arith.truncf %78 : vector<8x8xf32> to vector<8x8xbf16>
    %82 = arith.truncf %79 : vector<8x8xf32> to vector<8x8xbf16>
    %cst_33 = arith.constant dense<0.000000e+00> : vector<8x8xf32>
    %83 = tpu.matmul %81, %82, %cst_33 {dimension_numbers = #tpu.dot_dimension_numbers<[1], [1], [0], [0], [0, 0, 1, 0], [], []>} : vector<8x8xbf16>, vector<8x8xbf16>, vector<8x8xf32> -> vector<8x8xf32>
    %84 = arith.addf %83, %26 : vector<8x8xf32>
    %cst_34 = arith.constant dense<0xFF800000> : vector<8xf32>
    %85 = vector.multi_reduction <maximumf>, %84, %cst_34 [1] : vector<8x8xf32> to vector<8xf32>
    %86 = vector.shape_cast %85 : vector<8xf32> to vector<8x1xf32>
    %87 = vector.broadcast %86 : vector<8x1xf32> to vector<8x8xf32>
    %88 = arith.subf %84, %87 : vector<8x8xf32>
    %89 = math.exp %88 : vector<8x8xf32>
    %cst_35 = arith.constant dense<0.000000e+00> : vector<8xf32>
    %90 = vector.multi_reduction <add>, %89, %cst_35 [1] : vector<8x8xf32> to vector<8xf32>
    %91 = vector.shape_cast %90 : vector<8xf32> to vector<8x1xf32>
    %92 = arith.truncf %89 : vector<8x8xf32> to vector<8x8xbf16>
    %93 = arith.truncf %80 : vector<8x8xf32> to vector<8x8xbf16>
    %cst_36 = arith.constant dense<0.000000e+00> : vector<8x8xf32>
    %94 = tpu.matmul %92, %93, %cst_36 {dimension_numbers = #tpu.dot_dimension_numbers<[1], [0], [0], [1], [0, 0, 1, 1], [], []>} : vector<8x8xbf16>, vector<8x8xbf16>, vector<8x8xf32> -> vector<8x8xf32>
    %95 = tpu.reciprocal %91 {approx = true} : vector<8x1xf32> -> vector<8x1xf32>
    %96 = vector.broadcast %95 : vector<8x1xf32> to vector<8x8xf32>
    %97 = arith.mulf %94, %96 : vector<8x8xf32>
    %98 = arith.truncf %97 : vector<8x8xf32> to vector<8x8xbf16>
    %c2 = arith.constant 2 : index
    %c0_37 = arith.constant 0 : index
    %c0_38 = arith.constant 0 : index
    %99 = vector.load %arg8[%c2, %c0_37, %c0_38] : memref<4x8x32xbf16, #tpu.memory_space<vmem>>, vector<1x8x32xbf16>
    %100 = vector.shape_cast %99 : vector<1x8x32xbf16> to vector<8x32xbf16>
    %cst_39 = arith.constant dense<0.000000e+00> : vector<8x32xf32>
    %101 = tpu.matmul %98, %100, %cst_39 {dimension_numbers = #tpu.dot_dimension_numbers<[1], [0], [0], [1], [0, 0, 1, 1], [], []>} : vector<8x8xbf16>, vector<8x32xbf16>, vector<8x32xf32> -> vector<8x32xf32>
    %102 = arith.addf %77, %101 : vector<8x32xf32>
    %103 = vector.extract_strided_slice %11 {offsets = [0, 24], sizes = [8, 8], strides = [1, 1]} : vector<8x32xf32> to vector<8x8xf32>
    %104 = vector.extract_strided_slice %17 {offsets = [0, 24], sizes = [8, 8], strides = [1, 1]} : vector<8x64xf32> to vector<8x8xf32>
    %105 = vector.extract_strided_slice %17 {offsets = [0, 56], sizes = [8, 8], strides = [1, 1]} : vector<8x64xf32> to vector<8x8xf32>
    %106 = arith.truncf %103 : vector<8x8xf32> to vector<8x8xbf16>
    %107 = arith.truncf %104 : vector<8x8xf32> to vector<8x8xbf16>
    %cst_40 = arith.constant dense<0.000000e+00> : vector<8x8xf32>
    %108 = tpu.matmul %106, %107, %cst_40 {dimension_numbers = #tpu.dot_dimension_numbers<[1], [1], [0], [0], [0, 0, 1, 0], [], []>} : vector<8x8xbf16>, vector<8x8xbf16>, vector<8x8xf32> -> vector<8x8xf32>
    %109 = arith.addf %108, %26 : vector<8x8xf32>
    %cst_41 = arith.constant dense<0xFF800000> : vector<8xf32>
    %110 = vector.multi_reduction <maximumf>, %109, %cst_41 [1] : vector<8x8xf32> to vector<8xf32>
    %111 = vector.shape_cast %110 : vector<8xf32> to vector<8x1xf32>
    %112 = vector.broadcast %111 : vector<8x1xf32> to vector<8x8xf32>
    %113 = arith.subf %109, %112 : vector<8x8xf32>
    %114 = math.exp %113 : vector<8x8xf32>
    %cst_42 = arith.constant dense<0.000000e+00> : vector<8xf32>
    %115 = vector.multi_reduction <add>, %114, %cst_42 [1] : vector<8x8xf32> to vector<8xf32>
    %116 = vector.shape_cast %115 : vector<8xf32> to vector<8x1xf32>
    %117 = arith.truncf %114 : vector<8x8xf32> to vector<8x8xbf16>
    %118 = arith.truncf %105 : vector<8x8xf32> to vector<8x8xbf16>
    %cst_43 = arith.constant dense<0.000000e+00> : vector<8x8xf32>
    %119 = tpu.matmul %117, %118, %cst_43 {dimension_numbers = #tpu.dot_dimension_numbers<[1], [0], [0], [1], [0, 0, 1, 1], [], []>} : vector<8x8xbf16>, vector<8x8xbf16>, vector<8x8xf32> -> vector<8x8xf32>
    %120 = tpu.reciprocal %116 {approx = true} : vector<8x1xf32> -> vector<8x1xf32>
    %121 = vector.broadcast %120 : vector<8x1xf32> to vector<8x8xf32>
    %122 = arith.mulf %119, %121 : vector<8x8xf32>
    %123 = arith.truncf %122 : vector<8x8xf32> to vector<8x8xbf16>
    %c3 = arith.constant 3 : index
    %c0_44 = arith.constant 0 : index
    %c0_45 = arith.constant 0 : index
    %124 = vector.load %arg8[%c3, %c0_44, %c0_45] : memref<4x8x32xbf16, #tpu.memory_space<vmem>>, vector<1x8x32xbf16>
    %125 = vector.shape_cast %124 : vector<1x8x32xbf16> to vector<8x32xbf16>
    %cst_46 = arith.constant dense<0.000000e+00> : vector<8x32xf32>
    %126 = tpu.matmul %123, %125, %cst_46 {dimension_numbers = #tpu.dot_dimension_numbers<[1], [0], [0], [1], [0, 0, 1, 1], [], []>} : vector<8x8xbf16>, vector<8x32xbf16>, vector<8x32xf32> -> vector<8x32xf32>
    %127 = arith.addf %102, %126 : vector<8x32xf32>
    %128 = arith.addf %1, %127 : vector<8x32xf32>
    %c0_47 = arith.constant 0 : index
    %c0_48 = arith.constant 0 : index
    %129 = vector.load %arg9[%c0_47, %c0_48] : memref<1x32xf32, #tpu.memory_space<vmem>>, vector<1x32xf32>
    %130 = vector.broadcast %129 : vector<1x32xf32> to vector<8x32xf32>
    %131 = arith.addf %128, %130 : vector<8x32xf32>
    %c0_49 = arith.constant 0 : index
    %c0_50 = arith.constant 0 : index
    %132 = vector.load %arg10[%c0_49, %c0_50] : memref<1x32xf32, #tpu.memory_space<vmem>>, vector<1x32xf32>
    %c0_51 = arith.constant 0 : index
    %c0_52 = arith.constant 0 : index
    %133 = vector.load %arg11[%c0_51, %c0_52] : memref<1x32xf32, #tpu.memory_space<vmem>>, vector<1x32xf32>
    %cst_53 = arith.constant dense<0.000000e+00> : vector<8xf32>
    %134 = vector.multi_reduction <add>, %131, %cst_53 [1] : vector<8x32xf32> to vector<8xf32>
    %135 = vector.shape_cast %134 : vector<8xf32> to vector<8x1xf32>
    %cst_54 = arith.constant 3.200000e+01 : f32
    %136 = vector.broadcast %cst_54 : f32 to vector<8x1xf32>
    %137 = arith.divf %135, %136 : vector<8x1xf32>
    %138 = vector.broadcast %137 : vector<8x1xf32> to vector<8x32xf32>
    %139 = arith.subf %131, %138 : vector<8x32xf32>
    %140 = arith.mulf %139, %139 : vector<8x32xf32>
    %cst_55 = arith.constant dense<0.000000e+00> : vector<8xf32>
    %141 = vector.multi_reduction <add>, %140, %cst_55 [1] : vector<8x32xf32> to vector<8xf32>
    %142 = vector.shape_cast %141 : vector<8xf32> to vector<8x1xf32>
    %cst_56 = arith.constant 3.200000e+01 : f32
    %143 = vector.broadcast %cst_56 : f32 to vector<8x1xf32>
    %144 = arith.divf %142, %143 : vector<8x1xf32>
    %145 = vector.broadcast %137 : vector<8x1xf32> to vector<8x32xf32>
    %146 = arith.subf %131, %145 : vector<8x32xf32>
    %cst_57 = arith.constant 9.99999974E-6 : f32
    %147 = vector.broadcast %cst_57 : f32 to vector<8x1xf32>
    %148 = arith.addf %144, %147 : vector<8x1xf32>
    %149 = math.rsqrt %148 : vector<8x1xf32>
    %150 = vector.broadcast %149 : vector<8x1xf32> to vector<8x32xf32>
    %151 = arith.mulf %146, %150 : vector<8x32xf32>
    %152 = vector.broadcast %132 : vector<1x32xf32> to vector<8x32xf32>
    %153 = arith.mulf %151, %152 : vector<8x32xf32>
    %154 = vector.broadcast %133 : vector<1x32xf32> to vector<8x32xf32>
    %155 = arith.addf %153, %154 : vector<8x32xf32>
    %c0_58 = arith.constant 0 : index
    %c0_59 = arith.constant 0 : index
    %c0_60 = arith.constant 0 : index
    %156 = vector.load %arg12[%c0_58, %c0_59, %c0_60] : memref<1x8x32xf32, #tpu.memory_space<vmem>>, vector<1x8x32xf32>
    %157 = vector.shape_cast %156 : vector<1x8x32xf32> to vector<8x32xf32>
    %158 = vector.shape_cast %155 : vector<8x32xf32> to vector<1x8x32xf32>
    tpu.vector_store %arg12[%c0_58, %c0_59, %c0_60], %158 {strides = array<i32>} : memref<1x8x32xf32, #tpu.memory_space<vmem>>, vector<1x8x32xf32>,
    return
  }
  func.func @transform_0(%arg0: i32, %arg1: i32) -> (i32, i32, i32) {
    %c0_i32 = arith.constant 0 : i32
    %c0_i32_0 = arith.constant 0 : i32
    return %arg0, %arg1, %c0_i32 : i32, i32, i32
  }
  func.func @transform_1(%arg0: i32, %arg1: i32) -> (i32, i32, i32) {
    %c0_i32 = arith.constant 0 : i32
    %c0_i32_0 = arith.constant 0 : i32
    %c0_i32_1 = arith.constant 0 : i32
    return %arg0, %c0_i32, %c0_i32_0 : i32, i32, i32
  }
  func.func @transform_2(%arg0: i32, %arg1: i32) -> (i32, i32) {
    %c0_i32 = arith.constant 0 : i32
    %c0_i32_0 = arith.constant 0 : i32
    %c0_i32_1 = arith.constant 0 : i32
    return %c0_i32, %c0_i32_0 : i32, i32
  }
  func.func @transform_3(%arg0: i32, %arg1: i32) -> (i32, i32) {
    %c0_i32 = arith.constant 0 : i32
    %c0_i32_0 = arith.constant 0 : i32
    %c0_i32_1 = arith.constant 0 : i32
    return %c0_i32, %c0_i32_0 : i32, i32
  }
  func.func @transform_4(%arg0: i32, %arg1: i32) -> (i32, i32) {
    %c0_i32 = arith.constant 0 : i32
    %c0_i32_0 = arith.constant 0 : i32
    %c0_i32_1 = arith.constant 0 : i32
    return %c0_i32, %c0_i32_0 : i32, i32
  }
  func.func @transform_5(%arg0: i32, %arg1: i32) -> (i32, i32) {
    %c0_i32 = arith.constant 0 : i32
    %c0_i32_0 = arith.constant 0 : i32
    %c0_i32_1 = arith.constant 0 : i32
    return %c0_i32, %c0_i32_0 : i32, i32
  }
  func.func @transform_6(%arg0: i32, %arg1: i32) -> (i32, i32, i32) {
    %c0_i32 = arith.constant 0 : i32
    %c0_i32_0 = arith.constant 0 : i32
    %c0_i32_1 = arith.constant 0 : i32
    %c0_i32_2 = arith.constant 0 : i32
    return %c0_i32, %c0_i32_0, %c0_i32_1 : i32, i32, i32
  }
  func.func @transform_7(%arg0: i32, %arg1: i32) -> (i32, i32) {
    %c0_i32 = arith.constant 0 : i32
    %c0_i32_0 = arith.constant 0 : i32
    %c0_i32_1 = arith.constant 0 : i32
    return %c0_i32, %c0_i32_0 : i32, i32
  }
  func.func @transform_8(%arg0: i32, %arg1: i32) -> (i32, i32) {
    %c0_i32 = arith.constant 0 : i32
    %c0_i32_0 = arith.constant 0 : i32
    %c0_i32_1 = arith.constant 0 : i32
    return %c0_i32, %c0_i32_0 : i32, i32
  }
  func.func @transform_9(%arg0: i32, %arg1: i32) -> (i32, i32) {
    %c0_i32 = arith.constant 0 : i32
    %c0_i32_0 = arith.constant 0 : i32
    %c0_i32_1 = arith.constant 0 : i32
    return %c0_i32, %c0_i32_0 : i32, i32
  }
  func.func @transform_10(%arg0: i32, %arg1: i32) -> (i32, i32, i32) {
    %c0_i32 = arith.constant 0 : i32
    %c0_i32_0 = arith.constant 0 : i32
    return %arg0, %arg1, %c0_i32 : i32, i32, i32
  }
}

module attributes {stable_mosaic.version = 11 : i64} {
  func.func @_ffn_ln_kernel(%arg0: i32, %arg1: memref<20x32xf32, #tpu.memory_space<vmem>>, %arg2: memref<32x64xbf16, #tpu.memory_space<vmem>>, %arg3: memref<1x64xf32, #tpu.memory_space<vmem>>, %arg4: memref<64x32xbf16, #tpu.memory_space<vmem>>, %arg5: memref<1x32xf32, #tpu.memory_space<vmem>>, %arg6: memref<1x32xf32, #tpu.memory_space<vmem>>, %arg7: memref<1x32xf32, #tpu.memory_space<vmem>>, %arg8: memref<20x32xf32, #tpu.memory_space<vmem>>) attributes {dimension_semantics = [#tpu.dimension_semantics<parallel>], iteration_bounds = array<i64: 1>, scalar_prefetch = 0 : i64, scratch_operands = 0 : i64, tpu.core_type = #tpu.core_type<tc>, window_params = [{transform_indices = @transform_0, window_bounds = array<i64: 20, 32>}, {pipeline_mode = #tpu.pipeline_mode<synchronous>, transform_indices = @transform_1, window_bounds = array<i64: 32, 64>}, {pipeline_mode = #tpu.pipeline_mode<synchronous>, transform_indices = @transform_2, window_bounds = array<i64: 1, 64>}, {pipeline_mode = #tpu.pipeline_mode<synchronous>, transform_indices = @transform_3, window_bounds = array<i64: 64, 32>}, {pipeline_mode = #tpu.pipeline_mode<synchronous>, transform_indices = @transform_4, window_bounds = array<i64: 1, 32>}, {pipeline_mode = #tpu.pipeline_mode<synchronous>, transform_indices = @transform_5, window_bounds = array<i64: 1, 32>}, {pipeline_mode = #tpu.pipeline_mode<synchronous>, transform_indices = @transform_6, window_bounds = array<i64: 1, 32>}, {transform_indices = @transform_7, window_bounds = array<i64: 20, 32>}]} {
    %c0 = arith.constant 0 : index
    %c0_0 = arith.constant 0 : index
    %0 = vector.load %arg1[%c0, %c0_0] : memref<20x32xf32, #tpu.memory_space<vmem>>, vector<20x32xf32>
    %1 = arith.truncf %0 : vector<20x32xf32> to vector<20x32xbf16>
    %c0_1 = arith.constant 0 : index
    %c0_2 = arith.constant 0 : index
    %2 = vector.load %arg2[%c0_1, %c0_2] : memref<32x64xbf16, #tpu.memory_space<vmem>>, vector<32x64xbf16>
    %cst = arith.constant dense<0.000000e+00> : vector<20x64xf32>
    %3 = tpu.matmul %1, %2, %cst {dimension_numbers = #tpu.dot_dimension_numbers<[1], [0], [0], [1], [0, 0, 1, 1], [], []>} : vector<20x32xbf16>, vector<32x64xbf16>, vector<20x64xf32> -> vector<20x64xf32>
    %c0_3 = arith.constant 0 : index
    %c0_4 = arith.constant 0 : index
    %4 = vector.load %arg3[%c0_3, %c0_4] : memref<1x64xf32, #tpu.memory_space<vmem>>, vector<1x64xf32>
    %5 = vector.broadcast %4 : vector<1x64xf32> to vector<20x64xf32>
    %6 = arith.addf %3, %5 : vector<20x64xf32>
    %cst_5 = arith.constant 0.000000e+00 : f32
    %7 = vector.broadcast %cst_5 : f32 to vector<20x64xf32>
    %8 = arith.maximumf %6, %7 : vector<20x64xf32>
    %9 = arith.truncf %8 : vector<20x64xf32> to vector<20x64xbf16>
    %c0_6 = arith.constant 0 : index
    %c0_7 = arith.constant 0 : index
    %10 = vector.load %arg4[%c0_6, %c0_7] : memref<64x32xbf16, #tpu.memory_space<vmem>>, vector<64x32xbf16>
    %cst_8 = arith.constant dense<0.000000e+00> : vector<20x32xf32>
    %11 = tpu.matmul %9, %10, %cst_8 {dimension_numbers = #tpu.dot_dimension_numbers<[1], [0], [0], [1], [0, 0, 1, 1], [], []>} : vector<20x64xbf16>, vector<64x32xbf16>, vector<20x32xf32> -> vector<20x32xf32>
    %12 = arith.addf %0, %11 : vector<20x32xf32>
    %c0_9 = arith.constant 0 : index
    %c0_10 = arith.constant 0 : index
    %13 = vector.load %arg5[%c0_9, %c0_10] : memref<1x32xf32, #tpu.memory_space<vmem>>, vector<1x32xf32>
    %14 = vector.broadcast %13 : vector<1x32xf32> to vector<20x32xf32>
    %15 = arith.addf %12, %14 : vector<20x32xf32>
    %c0_11 = arith.constant 0 : index
    %c0_12 = arith.constant 0 : index
    %16 = vector.load %arg6[%c0_11, %c0_12] : memref<1x32xf32, #tpu.memory_space<vmem>>, vector<1x32xf32>
    %c0_13 = arith.constant 0 : index
    %c0_14 = arith.constant 0 : index
    %17 = vector.load %arg7[%c0_13, %c0_14] : memref<1x32xf32, #tpu.memory_space<vmem>>, vector<1x32xf32>
    %cst_15 = arith.constant dense<0.000000e+00> : vector<20xf32>
    %18 = vector.multi_reduction <add>, %15, %cst_15 [1] : vector<20x32xf32> to vector<20xf32>
    %19 = vector.shape_cast %18 : vector<20xf32> to vector<20x1xf32>
    %cst_16 = arith.constant 3.200000e+01 : f32
    %20 = vector.broadcast %cst_16 : f32 to vector<20x1xf32>
    %21 = arith.divf %19, %20 : vector<20x1xf32>
    %22 = vector.broadcast %21 : vector<20x1xf32> to vector<20x32xf32>
    %23 = arith.subf %15, %22 : vector<20x32xf32>
    %24 = arith.mulf %23, %23 : vector<20x32xf32>
    %cst_17 = arith.constant dense<0.000000e+00> : vector<20xf32>
    %25 = vector.multi_reduction <add>, %24, %cst_17 [1] : vector<20x32xf32> to vector<20xf32>
    %26 = vector.shape_cast %25 : vector<20xf32> to vector<20x1xf32>
    %cst_18 = arith.constant 3.200000e+01 : f32
    %27 = vector.broadcast %cst_18 : f32 to vector<20x1xf32>
    %28 = arith.divf %26, %27 : vector<20x1xf32>
    %29 = vector.broadcast %21 : vector<20x1xf32> to vector<20x32xf32>
    %30 = arith.subf %15, %29 : vector<20x32xf32>
    %cst_19 = arith.constant 9.99999974E-6 : f32
    %31 = vector.broadcast %cst_19 : f32 to vector<20x1xf32>
    %32 = arith.addf %28, %31 : vector<20x1xf32>
    %33 = math.rsqrt %32 : vector<20x1xf32>
    %34 = vector.broadcast %33 : vector<20x1xf32> to vector<20x32xf32>
    %35 = arith.mulf %30, %34 : vector<20x32xf32>
    %36 = vector.broadcast %16 : vector<1x32xf32> to vector<20x32xf32>
    %37 = arith.mulf %35, %36 : vector<20x32xf32>
    %38 = vector.broadcast %17 : vector<1x32xf32> to vector<20x32xf32>
    %39 = arith.addf %37, %38 : vector<20x32xf32>
    %c0_20 = arith.constant 0 : index
    %c0_21 = arith.constant 0 : index
    %40 = vector.load %arg8[%c0_20, %c0_21] : memref<20x32xf32, #tpu.memory_space<vmem>>, vector<20x32xf32>
    tpu.vector_store %arg8[%c0_20, %c0_21], %39 {strides = array<i32>} : memref<20x32xf32, #tpu.memory_space<vmem>>, vector<20x32xf32>,
    return
  }
  func.func @transform_0(%arg0: i32) -> (i32, i32) {
    %c0_i32 = arith.constant 0 : i32
    %c0_i32_0 = arith.constant 0 : i32
    return %arg0, %c0_i32 : i32, i32
  }
  func.func @transform_1(%arg0: i32) -> (i32, i32) {
    %c0_i32 = arith.constant 0 : i32
    %c0_i32_0 = arith.constant 0 : i32
    %c0_i32_1 = arith.constant 0 : i32
    return %c0_i32, %c0_i32_0 : i32, i32
  }
  func.func @transform_2(%arg0: i32) -> (i32, i32) {
    %c0_i32 = arith.constant 0 : i32
    %c0_i32_0 = arith.constant 0 : i32
    %c0_i32_1 = arith.constant 0 : i32
    return %c0_i32, %c0_i32_0 : i32, i32
  }
  func.func @transform_3(%arg0: i32) -> (i32, i32) {
    %c0_i32 = arith.constant 0 : i32
    %c0_i32_0 = arith.constant 0 : i32
    %c0_i32_1 = arith.constant 0 : i32
    return %c0_i32, %c0_i32_0 : i32, i32
  }
  func.func @transform_4(%arg0: i32) -> (i32, i32) {
    %c0_i32 = arith.constant 0 : i32
    %c0_i32_0 = arith.constant 0 : i32
    %c0_i32_1 = arith.constant 0 : i32
    return %c0_i32, %c0_i32_0 : i32, i32
  }
  func.func @transform_5(%arg0: i32) -> (i32, i32) {
    %c0_i32 = arith.constant 0 : i32
    %c0_i32_0 = arith.constant 0 : i32
    %c0_i32_1 = arith.constant 0 : i32
    return %c0_i32, %c0_i32_0 : i32, i32
  }
  func.func @transform_6(%arg0: i32) -> (i32, i32) {
    %c0_i32 = arith.constant 0 : i32
    %c0_i32_0 = arith.constant 0 : i32
    %c0_i32_1 = arith.constant 0 : i32
    return %c0_i32, %c0_i32_0 : i32, i32
  }
  func.func @transform_7(%arg0: i32) -> (i32, i32) {
    %c0_i32 = arith.constant 0 : i32
    %c0_i32_0 = arith.constant 0 : i32
    return %arg0, %c0_i32 : i32, i32
  }
}

module attributes {stable_mosaic.version = 11 : i64} {
  func.func @_attn_ln_bias_kernel(%arg0: i32, %arg1: i32, %arg2: memref<1x10x32xf32, #tpu.memory_space<vmem>>, %arg3: memref<1x10x32xf32, #tpu.memory_space<vmem>>, %arg4: memref<1x1x10xf32, #tpu.memory_space<vmem>>, %arg5: memref<32x32xbf16, #tpu.memory_space<vmem>>, %arg6: memref<1x32xf32, #tpu.memory_space<vmem>>, %arg7: memref<32x64xbf16, #tpu.memory_space<vmem>>, %arg8: memref<1x64xf32, #tpu.memory_space<vmem>>, %arg9: memref<4x8x32xbf16, #tpu.memory_space<vmem>>, %arg10: memref<1x32xf32, #tpu.memory_space<vmem>>, %arg11: memref<1x32xf32, #tpu.memory_space<vmem>>, %arg12: memref<1x32xf32, #tpu.memory_space<vmem>>, %arg13: memref<1x10x32xf32, #tpu.memory_space<vmem>>) attributes {dimension_semantics = [#tpu.dimension_semantics<parallel>, #tpu.dimension_semantics<parallel>], iteration_bounds = array<i64: 2, 1>, scalar_prefetch = 0 : i64, scratch_operands = 0 : i64, tpu.core_type = #tpu.core_type<tc>, window_params = [{transform_indices = @transform_0, window_bounds = array<i64: 1, 10, 32>}, {transform_indices = @transform_1, window_bounds = array<i64: 1, 10, 32>}, {transform_indices = @transform_2, window_bounds = array<i64: 1, 1, 10>}, {pipeline_mode = #tpu.pipeline_mode<synchronous>, transform_indices = @transform_3, window_bounds = array<i64: 32, 32>}, {pipeline_mode = #tpu.pipeline_mode<synchronous>, transform_indices = @transform_4, window_bounds = array<i64: 1, 32>}, {pipeline_mode = #tpu.pipeline_mode<synchronous>, transform_indices = @transform_5, window_bounds = array<i64: 32, 64>}, {pipeline_mode = #tpu.pipeline_mode<synchronous>, transform_indices = @transform_6, window_bounds = array<i64: 1, 64>}, {pipeline_mode = #tpu.pipeline_mode<synchronous>, transform_indices = @transform_7, window_bounds = array<i64: 4, 8, 32>}, {pipeline_mode = #tpu.pipeline_mode<synchronous>, transform_indices = @transform_8, window_bounds = array<i64: 1, 32>}, {pipeline_mode = #tpu.pipeline_mode<synchronous>, transform_indices = @transform_9, window_bounds = array<i64: 1, 32>}, {pipeline_mode = #tpu.pipeline_mode<synchronous>, transform_indices = @transform_10, window_bounds = array<i64: 1, 32>}, {transform_indices = @transform_11, window_bounds = array<i64: 1, 10, 32>}]} {
    %c0 = arith.constant 0 : index
    %c0_0 = arith.constant 0 : index
    %c0_1 = arith.constant 0 : index
    %0 = vector.load %arg2[%c0, %c0_0, %c0_1] : memref<1x10x32xf32, #tpu.memory_space<vmem>>, vector<1x10x32xf32>
    %1 = vector.shape_cast %0 : vector<1x10x32xf32> to vector<10x32xf32>
    %c0_2 = arith.constant 0 : index
    %c0_3 = arith.constant 0 : index
    %c0_4 = arith.constant 0 : index
    %2 = vector.load %arg3[%c0_2, %c0_3, %c0_4] : memref<1x10x32xf32, #tpu.memory_space<vmem>>, vector<1x10x32xf32>
    %3 = vector.shape_cast %2 : vector<1x10x32xf32> to vector<10x32xf32>
    %4 = arith.truncf %1 : vector<10x32xf32> to vector<10x32xbf16>
    %c0_5 = arith.constant 0 : index
    %c0_6 = arith.constant 0 : index
    %5 = vector.load %arg5[%c0_5, %c0_6] : memref<32x32xbf16, #tpu.memory_space<vmem>>, vector<32x32xbf16>
    %cst = arith.constant dense<0.000000e+00> : vector<10x32xf32>
    %6 = tpu.matmul %4, %5, %cst {dimension_numbers = #tpu.dot_dimension_numbers<[1], [0], [0], [1], [0, 0, 1, 1], [], []>} : vector<10x32xbf16>, vector<32x32xbf16>, vector<10x32xf32> -> vector<10x32xf32>
    %c0_7 = arith.constant 0 : index
    %c0_8 = arith.constant 0 : index
    %7 = vector.load %arg6[%c0_7, %c0_8] : memref<1x32xf32, #tpu.memory_space<vmem>>, vector<1x32xf32>
    %8 = vector.broadcast %7 : vector<1x32xf32> to vector<10x32xf32>
    %9 = arith.addf %6, %8 : vector<10x32xf32>
    %cst_9 = arith.constant 0.353553385 : f32
    %10 = vector.broadcast %cst_9 : f32 to vector<10x32xf32>
    %11 = arith.mulf %9, %10 : vector<10x32xf32>
    %12 = arith.truncf %3 : vector<10x32xf32> to vector<10x32xbf16>
    %c0_10 = arith.constant 0 : index
    %c0_11 = arith.constant 0 : index
    %13 = vector.load %arg7[%c0_10, %c0_11] : memref<32x64xbf16, #tpu.memory_space<vmem>>, vector<32x64xbf16>
    %cst_12 = arith.constant dense<0.000000e+00> : vector<10x64xf32>
    %14 = tpu.matmul %12, %13, %cst_12 {dimension_numbers = #tpu.dot_dimension_numbers<[1], [0], [0], [1], [0, 0, 1, 1], [], []>} : vector<10x32xbf16>, vector<32x64xbf16>, vector<10x64xf32> -> vector<10x64xf32>
    %c0_13 = arith.constant 0 : index
    %c0_14 = arith.constant 0 : index
    %15 = vector.load %arg8[%c0_13, %c0_14] : memref<1x64xf32, #tpu.memory_space<vmem>>, vector<1x64xf32>
    %16 = vector.broadcast %15 : vector<1x64xf32> to vector<10x64xf32>
    %17 = arith.addf %14, %16 : vector<10x64xf32>
    %c0_15 = arith.constant 0 : index
    %c0_16 = arith.constant 0 : index
    %c0_17 = arith.constant 0 : index
    %18 = vector.load %arg4[%c0_15, %c0_16, %c0_17] : memref<1x1x10xf32, #tpu.memory_space<vmem>>, vector<1x1x10xf32>
    %19 = vector.shape_cast %18 : vector<1x1x10xf32> to vector<1x10xf32>
    %cst_18 = arith.constant 0.000000e+00 : f32
    %20 = vector.broadcast %cst_18 : f32 to vector<10x32xf32>
    %21 = vector.extract_strided_slice %11 {offsets = [0, 0], sizes = [10, 8], strides = [1, 1]} : vector<10x32xf32> to vector<10x8xf32>
    %22 = vector.extract_strided_slice %17 {offsets = [0, 0], sizes = [10, 8], strides = [1, 1]} : vector<10x64xf32> to vector<10x8xf32>
    %23 = vector.extract_strided_slice %17 {offsets = [0, 32], sizes = [10, 8], strides = [1, 1]} : vector<10x64xf32> to vector<10x8xf32>
    %24 = arith.truncf %21 : vector<10x8xf32> to vector<10x8xbf16>
    %25 = arith.truncf %22 : vector<10x8xf32> to vector<10x8xbf16>
    %cst_19 = arith.constant dense<0.000000e+00> : vector<10x10xf32>
    %26 = tpu.matmul %24, %25, %cst_19 {dimension_numbers = #tpu.dot_dimension_numbers<[1], [1], [0], [0], [0, 0, 1, 0], [], []>} : vector<10x8xbf16>, vector<10x8xbf16>, vector<10x10xf32> -> vector<10x10xf32>
    %27 = vector.broadcast %19 : vector<1x10xf32> to vector<10x10xf32>
    %28 = arith.addf %26, %27 : vector<10x10xf32>
    %cst_20 = arith.constant dense<0xFF800000> : vector<10xf32>
    %29 = vector.multi_reduction <maximumf>, %28, %cst_20 [1] : vector<10x10xf32> to vector<10xf32>
    %30 = vector.shape_cast %29 : vector<10xf32> to vector<10x1xf32>
    %31 = vector.broadcast %30 : vector<10x1xf32> to vector<10x10xf32>
    %32 = arith.subf %28, %31 : vector<10x10xf32>
    %33 = math.exp %32 : vector<10x10xf32>
    %cst_21 = arith.constant dense<0.000000e+00> : vector<10xf32>
    %34 = vector.multi_reduction <add>, %33, %cst_21 [1] : vector<10x10xf32> to vector<10xf32>
    %35 = vector.shape_cast %34 : vector<10xf32> to vector<10x1xf32>
    %36 = arith.truncf %33 : vector<10x10xf32> to vector<10x10xbf16>
    %37 = arith.truncf %23 : vector<10x8xf32> to vector<10x8xbf16>
    %cst_22 = arith.constant dense<0.000000e+00> : vector<10x8xf32>
    %38 = tpu.matmul %36, %37, %cst_22 {dimension_numbers = #tpu.dot_dimension_numbers<[1], [0], [0], [1], [0, 0, 1, 1], [], []>} : vector<10x10xbf16>, vector<10x8xbf16>, vector<10x8xf32> -> vector<10x8xf32>
    %39 = tpu.reciprocal %35 {approx = true} : vector<10x1xf32> -> vector<10x1xf32>
    %40 = vector.broadcast %39 : vector<10x1xf32> to vector<10x8xf32>
    %41 = arith.mulf %38, %40 : vector<10x8xf32>
    %42 = arith.truncf %41 : vector<10x8xf32> to vector<10x8xbf16>
    %c0_23 = arith.constant 0 : index
    %c0_24 = arith.constant 0 : index
    %c0_25 = arith.constant 0 : index
    %43 = vector.load %arg9[%c0_23, %c0_24, %c0_25] : memref<4x8x32xbf16, #tpu.memory_space<vmem>>, vector<1x8x32xbf16>
    %44 = vector.shape_cast %43 : vector<1x8x32xbf16> to vector<8x32xbf16>
    %cst_26 = arith.constant dense<0.000000e+00> : vector<10x32xf32>
    %45 = tpu.matmul %42, %44, %cst_26 {dimension_numbers = #tpu.dot_dimension_numbers<[1], [0], [0], [1], [0, 0, 1, 1], [], []>} : vector<10x8xbf16>, vector<8x32xbf16>, vector<10x32xf32> -> vector<10x32xf32>
    %46 = arith.addf %20, %45 : vector<10x32xf32>
    %47 = vector.extract_strided_slice %11 {offsets = [0, 8], sizes = [10, 8], strides = [1, 1]} : vector<10x32xf32> to vector<10x8xf32>
    %48 = vector.extract_strided_slice %17 {offsets = [0, 8], sizes = [10, 8], strides = [1, 1]} : vector<10x64xf32> to vector<10x8xf32>
    %49 = vector.extract_strided_slice %17 {offsets = [0, 40], sizes = [10, 8], strides = [1, 1]} : vector<10x64xf32> to vector<10x8xf32>
    %50 = arith.truncf %47 : vector<10x8xf32> to vector<10x8xbf16>
    %51 = arith.truncf %48 : vector<10x8xf32> to vector<10x8xbf16>
    %cst_27 = arith.constant dense<0.000000e+00> : vector<10x10xf32>
    %52 = tpu.matmul %50, %51, %cst_27 {dimension_numbers = #tpu.dot_dimension_numbers<[1], [1], [0], [0], [0, 0, 1, 0], [], []>} : vector<10x8xbf16>, vector<10x8xbf16>, vector<10x10xf32> -> vector<10x10xf32>
    %53 = vector.broadcast %19 : vector<1x10xf32> to vector<10x10xf32>
    %54 = arith.addf %52, %53 : vector<10x10xf32>
    %cst_28 = arith.constant dense<0xFF800000> : vector<10xf32>
    %55 = vector.multi_reduction <maximumf>, %54, %cst_28 [1] : vector<10x10xf32> to vector<10xf32>
    %56 = vector.shape_cast %55 : vector<10xf32> to vector<10x1xf32>
    %57 = vector.broadcast %56 : vector<10x1xf32> to vector<10x10xf32>
    %58 = arith.subf %54, %57 : vector<10x10xf32>
    %59 = math.exp %58 : vector<10x10xf32>
    %cst_29 = arith.constant dense<0.000000e+00> : vector<10xf32>
    %60 = vector.multi_reduction <add>, %59, %cst_29 [1] : vector<10x10xf32> to vector<10xf32>
    %61 = vector.shape_cast %60 : vector<10xf32> to vector<10x1xf32>
    %62 = arith.truncf %59 : vector<10x10xf32> to vector<10x10xbf16>
    %63 = arith.truncf %49 : vector<10x8xf32> to vector<10x8xbf16>
    %cst_30 = arith.constant dense<0.000000e+00> : vector<10x8xf32>
    %64 = tpu.matmul %62, %63, %cst_30 {dimension_numbers = #tpu.dot_dimension_numbers<[1], [0], [0], [1], [0, 0, 1, 1], [], []>} : vector<10x10xbf16>, vector<10x8xbf16>, vector<10x8xf32> -> vector<10x8xf32>
    %65 = tpu.reciprocal %61 {approx = true} : vector<10x1xf32> -> vector<10x1xf32>
    %66 = vector.broadcast %65 : vector<10x1xf32> to vector<10x8xf32>
    %67 = arith.mulf %64, %66 : vector<10x8xf32>
    %68 = arith.truncf %67 : vector<10x8xf32> to vector<10x8xbf16>
    %c1 = arith.constant 1 : index
    %c0_31 = arith.constant 0 : index
    %c0_32 = arith.constant 0 : index
    %69 = vector.load %arg9[%c1, %c0_31, %c0_32] : memref<4x8x32xbf16, #tpu.memory_space<vmem>>, vector<1x8x32xbf16>
    %70 = vector.shape_cast %69 : vector<1x8x32xbf16> to vector<8x32xbf16>
    %cst_33 = arith.constant dense<0.000000e+00> : vector<10x32xf32>
    %71 = tpu.matmul %68, %70, %cst_33 {dimension_numbers = #tpu.dot_dimension_numbers<[1], [0], [0], [1], [0, 0, 1, 1], [], []>} : vector<10x8xbf16>, vector<8x32xbf16>, vector<10x32xf32> -> vector<10x32xf32>
    %72 = arith.addf %46, %71 : vector<10x32xf32>
    %73 = vector.extract_strided_slice %11 {offsets = [0, 16], sizes = [10, 8], strides = [1, 1]} : vector<10x32xf32> to vector<10x8xf32>
    %74 = vector.extract_strided_slice %17 {offsets = [0, 16], sizes = [10, 8], strides = [1, 1]} : vector<10x64xf32> to vector<10x8xf32>
    %75 = vector.extract_strided_slice %17 {offsets = [0, 48], sizes = [10, 8], strides = [1, 1]} : vector<10x64xf32> to vector<10x8xf32>
    %76 = arith.truncf %73 : vector<10x8xf32> to vector<10x8xbf16>
    %77 = arith.truncf %74 : vector<10x8xf32> to vector<10x8xbf16>
    %cst_34 = arith.constant dense<0.000000e+00> : vector<10x10xf32>
    %78 = tpu.matmul %76, %77, %cst_34 {dimension_numbers = #tpu.dot_dimension_numbers<[1], [1], [0], [0], [0, 0, 1, 0], [], []>} : vector<10x8xbf16>, vector<10x8xbf16>, vector<10x10xf32> -> vector<10x10xf32>
    %79 = vector.broadcast %19 : vector<1x10xf32> to vector<10x10xf32>
    %80 = arith.addf %78, %79 : vector<10x10xf32>
    %cst_35 = arith.constant dense<0xFF800000> : vector<10xf32>
    %81 = vector.multi_reduction <maximumf>, %80, %cst_35 [1] : vector<10x10xf32> to vector<10xf32>
    %82 = vector.shape_cast %81 : vector<10xf32> to vector<10x1xf32>
    %83 = vector.broadcast %82 : vector<10x1xf32> to vector<10x10xf32>
    %84 = arith.subf %80, %83 : vector<10x10xf32>
    %85 = math.exp %84 : vector<10x10xf32>
    %cst_36 = arith.constant dense<0.000000e+00> : vector<10xf32>
    %86 = vector.multi_reduction <add>, %85, %cst_36 [1] : vector<10x10xf32> to vector<10xf32>
    %87 = vector.shape_cast %86 : vector<10xf32> to vector<10x1xf32>
    %88 = arith.truncf %85 : vector<10x10xf32> to vector<10x10xbf16>
    %89 = arith.truncf %75 : vector<10x8xf32> to vector<10x8xbf16>
    %cst_37 = arith.constant dense<0.000000e+00> : vector<10x8xf32>
    %90 = tpu.matmul %88, %89, %cst_37 {dimension_numbers = #tpu.dot_dimension_numbers<[1], [0], [0], [1], [0, 0, 1, 1], [], []>} : vector<10x10xbf16>, vector<10x8xbf16>, vector<10x8xf32> -> vector<10x8xf32>
    %91 = tpu.reciprocal %87 {approx = true} : vector<10x1xf32> -> vector<10x1xf32>
    %92 = vector.broadcast %91 : vector<10x1xf32> to vector<10x8xf32>
    %93 = arith.mulf %90, %92 : vector<10x8xf32>
    %94 = arith.truncf %93 : vector<10x8xf32> to vector<10x8xbf16>
    %c2 = arith.constant 2 : index
    %c0_38 = arith.constant 0 : index
    %c0_39 = arith.constant 0 : index
    %95 = vector.load %arg9[%c2, %c0_38, %c0_39] : memref<4x8x32xbf16, #tpu.memory_space<vmem>>, vector<1x8x32xbf16>
    %96 = vector.shape_cast %95 : vector<1x8x32xbf16> to vector<8x32xbf16>
    %cst_40 = arith.constant dense<0.000000e+00> : vector<10x32xf32>
    %97 = tpu.matmul %94, %96, %cst_40 {dimension_numbers = #tpu.dot_dimension_numbers<[1], [0], [0], [1], [0, 0, 1, 1], [], []>} : vector<10x8xbf16>, vector<8x32xbf16>, vector<10x32xf32> -> vector<10x32xf32>
    %98 = arith.addf %72, %97 : vector<10x32xf32>
    %99 = vector.extract_strided_slice %11 {offsets = [0, 24], sizes = [10, 8], strides = [1, 1]} : vector<10x32xf32> to vector<10x8xf32>
    %100 = vector.extract_strided_slice %17 {offsets = [0, 24], sizes = [10, 8], strides = [1, 1]} : vector<10x64xf32> to vector<10x8xf32>
    %101 = vector.extract_strided_slice %17 {offsets = [0, 56], sizes = [10, 8], strides = [1, 1]} : vector<10x64xf32> to vector<10x8xf32>
    %102 = arith.truncf %99 : vector<10x8xf32> to vector<10x8xbf16>
    %103 = arith.truncf %100 : vector<10x8xf32> to vector<10x8xbf16>
    %cst_41 = arith.constant dense<0.000000e+00> : vector<10x10xf32>
    %104 = tpu.matmul %102, %103, %cst_41 {dimension_numbers = #tpu.dot_dimension_numbers<[1], [1], [0], [0], [0, 0, 1, 0], [], []>} : vector<10x8xbf16>, vector<10x8xbf16>, vector<10x10xf32> -> vector<10x10xf32>
    %105 = vector.broadcast %19 : vector<1x10xf32> to vector<10x10xf32>
    %106 = arith.addf %104, %105 : vector<10x10xf32>
    %cst_42 = arith.constant dense<0xFF800000> : vector<10xf32>
    %107 = vector.multi_reduction <maximumf>, %106, %cst_42 [1] : vector<10x10xf32> to vector<10xf32>
    %108 = vector.shape_cast %107 : vector<10xf32> to vector<10x1xf32>
    %109 = vector.broadcast %108 : vector<10x1xf32> to vector<10x10xf32>
    %110 = arith.subf %106, %109 : vector<10x10xf32>
    %111 = math.exp %110 : vector<10x10xf32>
    %cst_43 = arith.constant dense<0.000000e+00> : vector<10xf32>
    %112 = vector.multi_reduction <add>, %111, %cst_43 [1] : vector<10x10xf32> to vector<10xf32>
    %113 = vector.shape_cast %112 : vector<10xf32> to vector<10x1xf32>
    %114 = arith.truncf %111 : vector<10x10xf32> to vector<10x10xbf16>
    %115 = arith.truncf %101 : vector<10x8xf32> to vector<10x8xbf16>
    %cst_44 = arith.constant dense<0.000000e+00> : vector<10x8xf32>
    %116 = tpu.matmul %114, %115, %cst_44 {dimension_numbers = #tpu.dot_dimension_numbers<[1], [0], [0], [1], [0, 0, 1, 1], [], []>} : vector<10x10xbf16>, vector<10x8xbf16>, vector<10x8xf32> -> vector<10x8xf32>
    %117 = tpu.reciprocal %113 {approx = true} : vector<10x1xf32> -> vector<10x1xf32>
    %118 = vector.broadcast %117 : vector<10x1xf32> to vector<10x8xf32>
    %119 = arith.mulf %116, %118 : vector<10x8xf32>
    %120 = arith.truncf %119 : vector<10x8xf32> to vector<10x8xbf16>
    %c3 = arith.constant 3 : index
    %c0_45 = arith.constant 0 : index
    %c0_46 = arith.constant 0 : index
    %121 = vector.load %arg9[%c3, %c0_45, %c0_46] : memref<4x8x32xbf16, #tpu.memory_space<vmem>>, vector<1x8x32xbf16>
    %122 = vector.shape_cast %121 : vector<1x8x32xbf16> to vector<8x32xbf16>
    %cst_47 = arith.constant dense<0.000000e+00> : vector<10x32xf32>
    %123 = tpu.matmul %120, %122, %cst_47 {dimension_numbers = #tpu.dot_dimension_numbers<[1], [0], [0], [1], [0, 0, 1, 1], [], []>} : vector<10x8xbf16>, vector<8x32xbf16>, vector<10x32xf32> -> vector<10x32xf32>
    %124 = arith.addf %98, %123 : vector<10x32xf32>
    %125 = arith.addf %1, %124 : vector<10x32xf32>
    %c0_48 = arith.constant 0 : index
    %c0_49 = arith.constant 0 : index
    %126 = vector.load %arg10[%c0_48, %c0_49] : memref<1x32xf32, #tpu.memory_space<vmem>>, vector<1x32xf32>
    %127 = vector.broadcast %126 : vector<1x32xf32> to vector<10x32xf32>
    %128 = arith.addf %125, %127 : vector<10x32xf32>
    %c0_50 = arith.constant 0 : index
    %c0_51 = arith.constant 0 : index
    %129 = vector.load %arg11[%c0_50, %c0_51] : memref<1x32xf32, #tpu.memory_space<vmem>>, vector<1x32xf32>
    %c0_52 = arith.constant 0 : index
    %c0_53 = arith.constant 0 : index
    %130 = vector.load %arg12[%c0_52, %c0_53] : memref<1x32xf32, #tpu.memory_space<vmem>>, vector<1x32xf32>
    %cst_54 = arith.constant dense<0.000000e+00> : vector<10xf32>
    %131 = vector.multi_reduction <add>, %128, %cst_54 [1] : vector<10x32xf32> to vector<10xf32>
    %132 = vector.shape_cast %131 : vector<10xf32> to vector<10x1xf32>
    %cst_55 = arith.constant 3.200000e+01 : f32
    %133 = vector.broadcast %cst_55 : f32 to vector<10x1xf32>
    %134 = arith.divf %132, %133 : vector<10x1xf32>
    %135 = vector.broadcast %134 : vector<10x1xf32> to vector<10x32xf32>
    %136 = arith.subf %128, %135 : vector<10x32xf32>
    %137 = arith.mulf %136, %136 : vector<10x32xf32>
    %cst_56 = arith.constant dense<0.000000e+00> : vector<10xf32>
    %138 = vector.multi_reduction <add>, %137, %cst_56 [1] : vector<10x32xf32> to vector<10xf32>
    %139 = vector.shape_cast %138 : vector<10xf32> to vector<10x1xf32>
    %cst_57 = arith.constant 3.200000e+01 : f32
    %140 = vector.broadcast %cst_57 : f32 to vector<10x1xf32>
    %141 = arith.divf %139, %140 : vector<10x1xf32>
    %142 = vector.broadcast %134 : vector<10x1xf32> to vector<10x32xf32>
    %143 = arith.subf %128, %142 : vector<10x32xf32>
    %cst_58 = arith.constant 9.99999974E-6 : f32
    %144 = vector.broadcast %cst_58 : f32 to vector<10x1xf32>
    %145 = arith.addf %141, %144 : vector<10x1xf32>
    %146 = math.rsqrt %145 : vector<10x1xf32>
    %147 = vector.broadcast %146 : vector<10x1xf32> to vector<10x32xf32>
    %148 = arith.mulf %143, %147 : vector<10x32xf32>
    %149 = vector.broadcast %129 : vector<1x32xf32> to vector<10x32xf32>
    %150 = arith.mulf %148, %149 : vector<10x32xf32>
    %151 = vector.broadcast %130 : vector<1x32xf32> to vector<10x32xf32>
    %152 = arith.addf %150, %151 : vector<10x32xf32>
    %c0_59 = arith.constant 0 : index
    %c0_60 = arith.constant 0 : index
    %c0_61 = arith.constant 0 : index
    %153 = vector.load %arg13[%c0_59, %c0_60, %c0_61] : memref<1x10x32xf32, #tpu.memory_space<vmem>>, vector<1x10x32xf32>
    %154 = vector.shape_cast %153 : vector<1x10x32xf32> to vector<10x32xf32>
    %155 = vector.shape_cast %152 : vector<10x32xf32> to vector<1x10x32xf32>
    tpu.vector_store %arg13[%c0_59, %c0_60, %c0_61], %155 {strides = array<i32>} : memref<1x10x32xf32, #tpu.memory_space<vmem>>, vector<1x10x32xf32>,
    return
  }
  func.func @transform_0(%arg0: i32, %arg1: i32) -> (i32, i32, i32) {
    %c0_i32 = arith.constant 0 : i32
    %c0_i32_0 = arith.constant 0 : i32
    return %arg0, %arg1, %c0_i32 : i32, i32, i32
  }
  func.func @transform_1(%arg0: i32, %arg1: i32) -> (i32, i32, i32) {
    %c0_i32 = arith.constant 0 : i32
    %c0_i32_0 = arith.constant 0 : i32
    %c0_i32_1 = arith.constant 0 : i32
    return %arg0, %c0_i32, %c0_i32_0 : i32, i32, i32
  }
  func.func @transform_2(%arg0: i32, %arg1: i32) -> (i32, i32, i32) {
    %c0_i32 = arith.constant 0 : i32
    %c0_i32_0 = arith.constant 0 : i32
    %c0_i32_1 = arith.constant 0 : i32
    return %arg0, %c0_i32, %c0_i32_0 : i32, i32, i32
  }
  func.func @transform_3(%arg0: i32, %arg1: i32) -> (i32, i32) {
    %c0_i32 = arith.constant 0 : i32
    %c0_i32_0 = arith.constant 0 : i32
    %c0_i32_1 = arith.constant 0 : i32
    return %c0_i32, %c0_i32_0 : i32, i32
  }
  func.func @transform_4(%arg0: i32, %arg1: i32) -> (i32, i32) {
    %c0_i32 = arith.constant 0 : i32
    %c0_i32_0 = arith.constant 0 : i32
    %c0_i32_1 = arith.constant 0 : i32
    return %c0_i32, %c0_i32_0 : i32, i32
  }
  func.func @transform_5(%arg0: i32, %arg1: i32) -> (i32, i32) {
    %c0_i32 = arith.constant 0 : i32
    %c0_i32_0 = arith.constant 0 : i32
    %c0_i32_1 = arith.constant 0 : i32
    return %c0_i32, %c0_i32_0 : i32, i32
  }
  func.func @transform_6(%arg0: i32, %arg1: i32) -> (i32, i32) {
    %c0_i32 = arith.constant 0 : i32
    %c0_i32_0 = arith.constant 0 : i32
    %c0_i32_1 = arith.constant 0 : i32
    return %c0_i32, %c0_i32_0 : i32, i32
  }
  func.func @transform_7(%arg0: i32, %arg1: i32) -> (i32, i32, i32) {
    %c0_i32 = arith.constant 0 : i32
    %c0_i32_0 = arith.constant 0 : i32
    %c0_i32_1 = arith.constant 0 : i32
    %c0_i32_2 = arith.constant 0 : i32
    return %c0_i32, %c0_i32_0, %c0_i32_1 : i32, i32, i32
  }
  func.func @transform_8(%arg0: i32, %arg1: i32) -> (i32, i32) {
    %c0_i32 = arith.constant 0 : i32
    %c0_i32_0 = arith.constant 0 : i32
    %c0_i32_1 = arith.constant 0 : i32
    return %c0_i32, %c0_i32_0 : i32, i32
  }
  func.func @transform_9(%arg0: i32, %arg1: i32) -> (i32, i32) {
    %c0_i32 = arith.constant 0 : i32
    %c0_i32_0 = arith.constant 0 : i32
    %c0_i32_1 = arith.constant 0 : i32
    return %c0_i32, %c0_i32_0 : i32, i32
  }
  func.func @transform_10(%arg0: i32, %arg1: i32) -> (i32, i32) {
    %c0_i32 = arith.constant 0 : i32
    %c0_i32_0 = arith.constant 0 : i32
    %c0_i32_1 = arith.constant 0 : i32
    return %c0_i32, %c0_i32_0 : i32, i32
  }
  func.func @transform_11(%arg0: i32, %arg1: i32) -> (i32, i32, i32) {
    %c0_i32 = arith.constant 0 : i32
    %c0_i32_0 = arith.constant 0 : i32
    return %arg0, %arg1, %c0_i32 : i32, i32, i32
  }
}

module attributes {stable_mosaic.version = 11 : i64} {
  func.func @_layernorm_kernel(%arg0: i32, %arg1: memref<20x32xf32, #tpu.memory_space<vmem>>, %arg2: memref<1x32xf32, #tpu.memory_space<vmem>>, %arg3: memref<1x32xf32, #tpu.memory_space<vmem>>, %arg4: memref<20x32xf32, #tpu.memory_space<vmem>>) attributes {dimension_semantics = [#tpu.dimension_semantics<parallel>], iteration_bounds = array<i64: 1>, scalar_prefetch = 0 : i64, scratch_operands = 0 : i64, tpu.core_type = #tpu.core_type<tc>, window_params = [{transform_indices = @transform_0, window_bounds = array<i64: 20, 32>}, {pipeline_mode = #tpu.pipeline_mode<synchronous>, transform_indices = @transform_1, window_bounds = array<i64: 1, 32>}, {pipeline_mode = #tpu.pipeline_mode<synchronous>, transform_indices = @transform_2, window_bounds = array<i64: 1, 32>}, {transform_indices = @transform_3, window_bounds = array<i64: 20, 32>}]} {
    %c0 = arith.constant 0 : index
    %c0_0 = arith.constant 0 : index
    %0 = vector.load %arg1[%c0, %c0_0] : memref<20x32xf32, #tpu.memory_space<vmem>>, vector<20x32xf32>
    %c0_1 = arith.constant 0 : index
    %c0_2 = arith.constant 0 : index
    %1 = vector.load %arg2[%c0_1, %c0_2] : memref<1x32xf32, #tpu.memory_space<vmem>>, vector<1x32xf32>
    %c0_3 = arith.constant 0 : index
    %c0_4 = arith.constant 0 : index
    %2 = vector.load %arg3[%c0_3, %c0_4] : memref<1x32xf32, #tpu.memory_space<vmem>>, vector<1x32xf32>
    %cst = arith.constant dense<0.000000e+00> : vector<20xf32>
    %3 = vector.multi_reduction <add>, %0, %cst [1] : vector<20x32xf32> to vector<20xf32>
    %4 = vector.shape_cast %3 : vector<20xf32> to vector<20x1xf32>
    %cst_5 = arith.constant 3.200000e+01 : f32
    %5 = vector.broadcast %cst_5 : f32 to vector<20x1xf32>
    %6 = arith.divf %4, %5 : vector<20x1xf32>
    %7 = vector.broadcast %6 : vector<20x1xf32> to vector<20x32xf32>
    %8 = arith.subf %0, %7 : vector<20x32xf32>
    %9 = arith.mulf %8, %8 : vector<20x32xf32>
    %cst_6 = arith.constant dense<0.000000e+00> : vector<20xf32>
    %10 = vector.multi_reduction <add>, %9, %cst_6 [1] : vector<20x32xf32> to vector<20xf32>
    %11 = vector.shape_cast %10 : vector<20xf32> to vector<20x1xf32>
    %cst_7 = arith.constant 3.200000e+01 : f32
    %12 = vector.broadcast %cst_7 : f32 to vector<20x1xf32>
    %13 = arith.divf %11, %12 : vector<20x1xf32>
    %14 = vector.broadcast %6 : vector<20x1xf32> to vector<20x32xf32>
    %15 = arith.subf %0, %14 : vector<20x32xf32>
    %cst_8 = arith.constant 9.99999974E-6 : f32
    %16 = vector.broadcast %cst_8 : f32 to vector<20x1xf32>
    %17 = arith.addf %13, %16 : vector<20x1xf32>
    %18 = math.rsqrt %17 : vector<20x1xf32>
    %19 = vector.broadcast %18 : vector<20x1xf32> to vector<20x32xf32>
    %20 = arith.mulf %15, %19 : vector<20x32xf32>
    %21 = vector.broadcast %1 : vector<1x32xf32> to vector<20x32xf32>
    %22 = arith.mulf %20, %21 : vector<20x32xf32>
    %23 = vector.broadcast %2 : vector<1x32xf32> to vector<20x32xf32>
    %24 = arith.addf %22, %23 : vector<20x32xf32>
    %c0_9 = arith.constant 0 : index
    %c0_10 = arith.constant 0 : index
    %25 = vector.load %arg4[%c0_9, %c0_10] : memref<20x32xf32, #tpu.memory_space<vmem>>, vector<20x32xf32>
    tpu.vector_store %arg4[%c0_9, %c0_10], %24 {strides = array<i32>} : memref<20x32xf32, #tpu.memory_space<vmem>>, vector<20x32xf32>,
    return
  }
  func.func @transform_0(%arg0: i32) -> (i32, i32) {
    %c0_i32 = arith.constant 0 : i32
    %c0_i32_0 = arith.constant 0 : i32
    return %arg0, %c0_i32 : i32, i32
  }
  func.func @transform_1(%arg0: i32) -> (i32, i32) {
    %c0_i32 = arith.constant 0 : i32
    %c0_i32_0 = arith.constant 0 : i32
    %c0_i32_1 = arith.constant 0 : i32
    return %c0_i32, %c0_i32_0 : i32, i32
  }
  func.func @transform_2(%arg0: i32) -> (i32, i32) {
    %c0_i32 = arith.constant 0 : i32
    %c0_i32_0 = arith.constant 0 : i32
    %c0_i32_1 = arith.constant 0 : i32
    return %c0_i32, %c0_i32_0 : i32, i32
  }
  func.func @transform_3(%arg0: i32) -> (i32, i32) {
    %c0_i32 = arith.constant 0 : i32
    %c0_i32_0 = arith.constant 0 : i32
    return %arg0, %c0_i32 : i32, i32
  }
}

module attributes {stable_mosaic.version = 11 : i64} {
  func.func @_attn_ln_kernel(%arg0: i32, %arg1: i32, %arg2: memref<1x8x32xf32, #tpu.memory_space<vmem>>, %arg3: memref<1x10x32xf32, #tpu.memory_space<vmem>>, %arg4: memref<32x32xbf16, #tpu.memory_space<vmem>>, %arg5: memref<1x32xf32, #tpu.memory_space<vmem>>, %arg6: memref<32x64xbf16, #tpu.memory_space<vmem>>, %arg7: memref<1x64xf32, #tpu.memory_space<vmem>>, %arg8: memref<4x8x32xbf16, #tpu.memory_space<vmem>>, %arg9: memref<1x32xf32, #tpu.memory_space<vmem>>, %arg10: memref<1x32xf32, #tpu.memory_space<vmem>>, %arg11: memref<1x32xf32, #tpu.memory_space<vmem>>, %arg12: memref<1x8x32xf32, #tpu.memory_space<vmem>>) attributes {dimension_semantics = [#tpu.dimension_semantics<parallel>, #tpu.dimension_semantics<parallel>], iteration_bounds = array<i64: 2, 1>, scalar_prefetch = 0 : i64, scratch_operands = 0 : i64, tpu.core_type = #tpu.core_type<tc>, window_params = [{transform_indices = @transform_0, window_bounds = array<i64: 1, 8, 32>}, {transform_indices = @transform_1, window_bounds = array<i64: 1, 10, 32>}, {pipeline_mode = #tpu.pipeline_mode<synchronous>, transform_indices = @transform_2, window_bounds = array<i64: 32, 32>}, {pipeline_mode = #tpu.pipeline_mode<synchronous>, transform_indices = @transform_3, window_bounds = array<i64: 1, 32>}, {pipeline_mode = #tpu.pipeline_mode<synchronous>, transform_indices = @transform_4, window_bounds = array<i64: 32, 64>}, {pipeline_mode = #tpu.pipeline_mode<synchronous>, transform_indices = @transform_5, window_bounds = array<i64: 1, 64>}, {pipeline_mode = #tpu.pipeline_mode<synchronous>, transform_indices = @transform_6, window_bounds = array<i64: 4, 8, 32>}, {pipeline_mode = #tpu.pipeline_mode<synchronous>, transform_indices = @transform_7, window_bounds = array<i64: 1, 32>}, {pipeline_mode = #tpu.pipeline_mode<synchronous>, transform_indices = @transform_8, window_bounds = array<i64: 1, 32>}, {pipeline_mode = #tpu.pipeline_mode<synchronous>, transform_indices = @transform_9, window_bounds = array<i64: 1, 32>}, {transform_indices = @transform_10, window_bounds = array<i64: 1, 8, 32>}]} {
    %c0 = arith.constant 0 : index
    %c0_0 = arith.constant 0 : index
    %c0_1 = arith.constant 0 : index
    %0 = vector.load %arg2[%c0, %c0_0, %c0_1] : memref<1x8x32xf32, #tpu.memory_space<vmem>>, vector<1x8x32xf32>
    %1 = vector.shape_cast %0 : vector<1x8x32xf32> to vector<8x32xf32>
    %c0_2 = arith.constant 0 : index
    %c0_3 = arith.constant 0 : index
    %c0_4 = arith.constant 0 : index
    %2 = vector.load %arg3[%c0_2, %c0_3, %c0_4] : memref<1x10x32xf32, #tpu.memory_space<vmem>>, vector<1x10x32xf32>
    %3 = vector.shape_cast %2 : vector<1x10x32xf32> to vector<10x32xf32>
    %4 = arith.truncf %1 : vector<8x32xf32> to vector<8x32xbf16>
    %c0_5 = arith.constant 0 : index
    %c0_6 = arith.constant 0 : index
    %5 = vector.load %arg4[%c0_5, %c0_6] : memref<32x32xbf16, #tpu.memory_space<vmem>>, vector<32x32xbf16>
    %cst = arith.constant dense<0.000000e+00> : vector<8x32xf32>
    %6 = tpu.matmul %4, %5, %cst {dimension_numbers = #tpu.dot_dimension_numbers<[1], [0], [0], [1], [0, 0, 1, 1], [], []>} : vector<8x32xbf16>, vector<32x32xbf16>, vector<8x32xf32> -> vector<8x32xf32>
    %c0_7 = arith.constant 0 : index
    %c0_8 = arith.constant 0 : index
    %7 = vector.load %arg5[%c0_7, %c0_8] : memref<1x32xf32, #tpu.memory_space<vmem>>, vector<1x32xf32>
    %8 = vector.broadcast %7 : vector<1x32xf32> to vector<8x32xf32>
    %9 = arith.addf %6, %8 : vector<8x32xf32>
    %cst_9 = arith.constant 0.353553385 : f32
    %10 = vector.broadcast %cst_9 : f32 to vector<8x32xf32>
    %11 = arith.mulf %9, %10 : vector<8x32xf32>
    %12 = arith.truncf %3 : vector<10x32xf32> to vector<10x32xbf16>
    %c0_10 = arith.constant 0 : index
    %c0_11 = arith.constant 0 : index
    %13 = vector.load %arg6[%c0_10, %c0_11] : memref<32x64xbf16, #tpu.memory_space<vmem>>, vector<32x64xbf16>
    %cst_12 = arith.constant dense<0.000000e+00> : vector<10x64xf32>
    %14 = tpu.matmul %12, %13, %cst_12 {dimension_numbers = #tpu.dot_dimension_numbers<[1], [0], [0], [1], [0, 0, 1, 1], [], []>} : vector<10x32xbf16>, vector<32x64xbf16>, vector<10x64xf32> -> vector<10x64xf32>
    %c0_13 = arith.constant 0 : index
    %c0_14 = arith.constant 0 : index
    %15 = vector.load %arg7[%c0_13, %c0_14] : memref<1x64xf32, #tpu.memory_space<vmem>>, vector<1x64xf32>
    %16 = vector.broadcast %15 : vector<1x64xf32> to vector<10x64xf32>
    %17 = arith.addf %14, %16 : vector<10x64xf32>
    %cst_15 = arith.constant 0.000000e+00 : f32
    %18 = vector.broadcast %cst_15 : f32 to vector<8x32xf32>
    %19 = vector.extract_strided_slice %11 {offsets = [0, 0], sizes = [8, 8], strides = [1, 1]} : vector<8x32xf32> to vector<8x8xf32>
    %20 = vector.extract_strided_slice %17 {offsets = [0, 0], sizes = [10, 8], strides = [1, 1]} : vector<10x64xf32> to vector<10x8xf32>
    %21 = vector.extract_strided_slice %17 {offsets = [0, 32], sizes = [10, 8], strides = [1, 1]} : vector<10x64xf32> to vector<10x8xf32>
    %22 = arith.truncf %19 : vector<8x8xf32> to vector<8x8xbf16>
    %23 = arith.truncf %20 : vector<10x8xf32> to vector<10x8xbf16>
    %cst_16 = arith.constant dense<0.000000e+00> : vector<8x10xf32>
    %24 = tpu.matmul %22, %23, %cst_16 {dimension_numbers = #tpu.dot_dimension_numbers<[1], [1], [0], [0], [0, 0, 1, 0], [], []>} : vector<8x8xbf16>, vector<10x8xbf16>, vector<8x10xf32> -> vector<8x10xf32>
    %cst_17 = arith.constant dense<0xFF800000> : vector<8xf32>
    %25 = vector.multi_reduction <maximumf>, %24, %cst_17 [1] : vector<8x10xf32> to vector<8xf32>
    %26 = vector.shape_cast %25 : vector<8xf32> to vector<8x1xf32>
    %27 = vector.broadcast %26 : vector<8x1xf32> to vector<8x10xf32>
    %28 = arith.subf %24, %27 : vector<8x10xf32>
    %29 = math.exp %28 : vector<8x10xf32>
    %cst_18 = arith.constant dense<0.000000e+00> : vector<8xf32>
    %30 = vector.multi_reduction <add>, %29, %cst_18 [1] : vector<8x10xf32> to vector<8xf32>
    %31 = vector.shape_cast %30 : vector<8xf32> to vector<8x1xf32>
    %32 = arith.truncf %29 : vector<8x10xf32> to vector<8x10xbf16>
    %33 = arith.truncf %21 : vector<10x8xf32> to vector<10x8xbf16>
    %cst_19 = arith.constant dense<0.000000e+00> : vector<8x8xf32>
    %34 = tpu.matmul %32, %33, %cst_19 {dimension_numbers = #tpu.dot_dimension_numbers<[1], [0], [0], [1], [0, 0, 1, 1], [], []>} : vector<8x10xbf16>, vector<10x8xbf16>, vector<8x8xf32> -> vector<8x8xf32>
    %35 = tpu.reciprocal %31 {approx = true} : vector<8x1xf32> -> vector<8x1xf32>
    %36 = vector.broadcast %35 : vector<8x1xf32> to vector<8x8xf32>
    %37 = arith.mulf %34, %36 : vector<8x8xf32>
    %38 = arith.truncf %37 : vector<8x8xf32> to vector<8x8xbf16>
    %c0_20 = arith.constant 0 : index
    %c0_21 = arith.constant 0 : index
    %c0_22 = arith.constant 0 : index
    %39 = vector.load %arg8[%c0_20, %c0_21, %c0_22] : memref<4x8x32xbf16, #tpu.memory_space<vmem>>, vector<1x8x32xbf16>
    %40 = vector.shape_cast %39 : vector<1x8x32xbf16> to vector<8x32xbf16>
    %cst_23 = arith.constant dense<0.000000e+00> : vector<8x32xf32>
    %41 = tpu.matmul %38, %40, %cst_23 {dimension_numbers = #tpu.dot_dimension_numbers<[1], [0], [0], [1], [0, 0, 1, 1], [], []>} : vector<8x8xbf16>, vector<8x32xbf16>, vector<8x32xf32> -> vector<8x32xf32>
    %42 = arith.addf %18, %41 : vector<8x32xf32>
    %43 = vector.extract_strided_slice %11 {offsets = [0, 8], sizes = [8, 8], strides = [1, 1]} : vector<8x32xf32> to vector<8x8xf32>
    %44 = vector.extract_strided_slice %17 {offsets = [0, 8], sizes = [10, 8], strides = [1, 1]} : vector<10x64xf32> to vector<10x8xf32>
    %45 = vector.extract_strided_slice %17 {offsets = [0, 40], sizes = [10, 8], strides = [1, 1]} : vector<10x64xf32> to vector<10x8xf32>
    %46 = arith.truncf %43 : vector<8x8xf32> to vector<8x8xbf16>
    %47 = arith.truncf %44 : vector<10x8xf32> to vector<10x8xbf16>
    %cst_24 = arith.constant dense<0.000000e+00> : vector<8x10xf32>
    %48 = tpu.matmul %46, %47, %cst_24 {dimension_numbers = #tpu.dot_dimension_numbers<[1], [1], [0], [0], [0, 0, 1, 0], [], []>} : vector<8x8xbf16>, vector<10x8xbf16>, vector<8x10xf32> -> vector<8x10xf32>
    %cst_25 = arith.constant dense<0xFF800000> : vector<8xf32>
    %49 = vector.multi_reduction <maximumf>, %48, %cst_25 [1] : vector<8x10xf32> to vector<8xf32>
    %50 = vector.shape_cast %49 : vector<8xf32> to vector<8x1xf32>
    %51 = vector.broadcast %50 : vector<8x1xf32> to vector<8x10xf32>
    %52 = arith.subf %48, %51 : vector<8x10xf32>
    %53 = math.exp %52 : vector<8x10xf32>
    %cst_26 = arith.constant dense<0.000000e+00> : vector<8xf32>
    %54 = vector.multi_reduction <add>, %53, %cst_26 [1] : vector<8x10xf32> to vector<8xf32>
    %55 = vector.shape_cast %54 : vector<8xf32> to vector<8x1xf32>
    %56 = arith.truncf %53 : vector<8x10xf32> to vector<8x10xbf16>
    %57 = arith.truncf %45 : vector<10x8xf32> to vector<10x8xbf16>
    %cst_27 = arith.constant dense<0.000000e+00> : vector<8x8xf32>
    %58 = tpu.matmul %56, %57, %cst_27 {dimension_numbers = #tpu.dot_dimension_numbers<[1], [0], [0], [1], [0, 0, 1, 1], [], []>} : vector<8x10xbf16>, vector<10x8xbf16>, vector<8x8xf32> -> vector<8x8xf32>
    %59 = tpu.reciprocal %55 {approx = true} : vector<8x1xf32> -> vector<8x1xf32>
    %60 = vector.broadcast %59 : vector<8x1xf32> to vector<8x8xf32>
    %61 = arith.mulf %58, %60 : vector<8x8xf32>
    %62 = arith.truncf %61 : vector<8x8xf32> to vector<8x8xbf16>
    %c1 = arith.constant 1 : index
    %c0_28 = arith.constant 0 : index
    %c0_29 = arith.constant 0 : index
    %63 = vector.load %arg8[%c1, %c0_28, %c0_29] : memref<4x8x32xbf16, #tpu.memory_space<vmem>>, vector<1x8x32xbf16>
    %64 = vector.shape_cast %63 : vector<1x8x32xbf16> to vector<8x32xbf16>
    %cst_30 = arith.constant dense<0.000000e+00> : vector<8x32xf32>
    %65 = tpu.matmul %62, %64, %cst_30 {dimension_numbers = #tpu.dot_dimension_numbers<[1], [0], [0], [1], [0, 0, 1, 1], [], []>} : vector<8x8xbf16>, vector<8x32xbf16>, vector<8x32xf32> -> vector<8x32xf32>
    %66 = arith.addf %42, %65 : vector<8x32xf32>
    %67 = vector.extract_strided_slice %11 {offsets = [0, 16], sizes = [8, 8], strides = [1, 1]} : vector<8x32xf32> to vector<8x8xf32>
    %68 = vector.extract_strided_slice %17 {offsets = [0, 16], sizes = [10, 8], strides = [1, 1]} : vector<10x64xf32> to vector<10x8xf32>
    %69 = vector.extract_strided_slice %17 {offsets = [0, 48], sizes = [10, 8], strides = [1, 1]} : vector<10x64xf32> to vector<10x8xf32>
    %70 = arith.truncf %67 : vector<8x8xf32> to vector<8x8xbf16>
    %71 = arith.truncf %68 : vector<10x8xf32> to vector<10x8xbf16>
    %cst_31 = arith.constant dense<0.000000e+00> : vector<8x10xf32>
    %72 = tpu.matmul %70, %71, %cst_31 {dimension_numbers = #tpu.dot_dimension_numbers<[1], [1], [0], [0], [0, 0, 1, 0], [], []>} : vector<8x8xbf16>, vector<10x8xbf16>, vector<8x10xf32> -> vector<8x10xf32>
    %cst_32 = arith.constant dense<0xFF800000> : vector<8xf32>
    %73 = vector.multi_reduction <maximumf>, %72, %cst_32 [1] : vector<8x10xf32> to vector<8xf32>
    %74 = vector.shape_cast %73 : vector<8xf32> to vector<8x1xf32>
    %75 = vector.broadcast %74 : vector<8x1xf32> to vector<8x10xf32>
    %76 = arith.subf %72, %75 : vector<8x10xf32>
    %77 = math.exp %76 : vector<8x10xf32>
    %cst_33 = arith.constant dense<0.000000e+00> : vector<8xf32>
    %78 = vector.multi_reduction <add>, %77, %cst_33 [1] : vector<8x10xf32> to vector<8xf32>
    %79 = vector.shape_cast %78 : vector<8xf32> to vector<8x1xf32>
    %80 = arith.truncf %77 : vector<8x10xf32> to vector<8x10xbf16>
    %81 = arith.truncf %69 : vector<10x8xf32> to vector<10x8xbf16>
    %cst_34 = arith.constant dense<0.000000e+00> : vector<8x8xf32>
    %82 = tpu.matmul %80, %81, %cst_34 {dimension_numbers = #tpu.dot_dimension_numbers<[1], [0], [0], [1], [0, 0, 1, 1], [], []>} : vector<8x10xbf16>, vector<10x8xbf16>, vector<8x8xf32> -> vector<8x8xf32>
    %83 = tpu.reciprocal %79 {approx = true} : vector<8x1xf32> -> vector<8x1xf32>
    %84 = vector.broadcast %83 : vector<8x1xf32> to vector<8x8xf32>
    %85 = arith.mulf %82, %84 : vector<8x8xf32>
    %86 = arith.truncf %85 : vector<8x8xf32> to vector<8x8xbf16>
    %c2 = arith.constant 2 : index
    %c0_35 = arith.constant 0 : index
    %c0_36 = arith.constant 0 : index
    %87 = vector.load %arg8[%c2, %c0_35, %c0_36] : memref<4x8x32xbf16, #tpu.memory_space<vmem>>, vector<1x8x32xbf16>
    %88 = vector.shape_cast %87 : vector<1x8x32xbf16> to vector<8x32xbf16>
    %cst_37 = arith.constant dense<0.000000e+00> : vector<8x32xf32>
    %89 = tpu.matmul %86, %88, %cst_37 {dimension_numbers = #tpu.dot_dimension_numbers<[1], [0], [0], [1], [0, 0, 1, 1], [], []>} : vector<8x8xbf16>, vector<8x32xbf16>, vector<8x32xf32> -> vector<8x32xf32>
    %90 = arith.addf %66, %89 : vector<8x32xf32>
    %91 = vector.extract_strided_slice %11 {offsets = [0, 24], sizes = [8, 8], strides = [1, 1]} : vector<8x32xf32> to vector<8x8xf32>
    %92 = vector.extract_strided_slice %17 {offsets = [0, 24], sizes = [10, 8], strides = [1, 1]} : vector<10x64xf32> to vector<10x8xf32>
    %93 = vector.extract_strided_slice %17 {offsets = [0, 56], sizes = [10, 8], strides = [1, 1]} : vector<10x64xf32> to vector<10x8xf32>
    %94 = arith.truncf %91 : vector<8x8xf32> to vector<8x8xbf16>
    %95 = arith.truncf %92 : vector<10x8xf32> to vector<10x8xbf16>
    %cst_38 = arith.constant dense<0.000000e+00> : vector<8x10xf32>
    %96 = tpu.matmul %94, %95, %cst_38 {dimension_numbers = #tpu.dot_dimension_numbers<[1], [1], [0], [0], [0, 0, 1, 0], [], []>} : vector<8x8xbf16>, vector<10x8xbf16>, vector<8x10xf32> -> vector<8x10xf32>
    %cst_39 = arith.constant dense<0xFF800000> : vector<8xf32>
    %97 = vector.multi_reduction <maximumf>, %96, %cst_39 [1] : vector<8x10xf32> to vector<8xf32>
    %98 = vector.shape_cast %97 : vector<8xf32> to vector<8x1xf32>
    %99 = vector.broadcast %98 : vector<8x1xf32> to vector<8x10xf32>
    %100 = arith.subf %96, %99 : vector<8x10xf32>
    %101 = math.exp %100 : vector<8x10xf32>
    %cst_40 = arith.constant dense<0.000000e+00> : vector<8xf32>
    %102 = vector.multi_reduction <add>, %101, %cst_40 [1] : vector<8x10xf32> to vector<8xf32>
    %103 = vector.shape_cast %102 : vector<8xf32> to vector<8x1xf32>
    %104 = arith.truncf %101 : vector<8x10xf32> to vector<8x10xbf16>
    %105 = arith.truncf %93 : vector<10x8xf32> to vector<10x8xbf16>
    %cst_41 = arith.constant dense<0.000000e+00> : vector<8x8xf32>
    %106 = tpu.matmul %104, %105, %cst_41 {dimension_numbers = #tpu.dot_dimension_numbers<[1], [0], [0], [1], [0, 0, 1, 1], [], []>} : vector<8x10xbf16>, vector<10x8xbf16>, vector<8x8xf32> -> vector<8x8xf32>
    %107 = tpu.reciprocal %103 {approx = true} : vector<8x1xf32> -> vector<8x1xf32>
    %108 = vector.broadcast %107 : vector<8x1xf32> to vector<8x8xf32>
    %109 = arith.mulf %106, %108 : vector<8x8xf32>
    %110 = arith.truncf %109 : vector<8x8xf32> to vector<8x8xbf16>
    %c3 = arith.constant 3 : index
    %c0_42 = arith.constant 0 : index
    %c0_43 = arith.constant 0 : index
    %111 = vector.load %arg8[%c3, %c0_42, %c0_43] : memref<4x8x32xbf16, #tpu.memory_space<vmem>>, vector<1x8x32xbf16>
    %112 = vector.shape_cast %111 : vector<1x8x32xbf16> to vector<8x32xbf16>
    %cst_44 = arith.constant dense<0.000000e+00> : vector<8x32xf32>
    %113 = tpu.matmul %110, %112, %cst_44 {dimension_numbers = #tpu.dot_dimension_numbers<[1], [0], [0], [1], [0, 0, 1, 1], [], []>} : vector<8x8xbf16>, vector<8x32xbf16>, vector<8x32xf32> -> vector<8x32xf32>
    %114 = arith.addf %90, %113 : vector<8x32xf32>
    %115 = arith.addf %1, %114 : vector<8x32xf32>
    %c0_45 = arith.constant 0 : index
    %c0_46 = arith.constant 0 : index
    %116 = vector.load %arg9[%c0_45, %c0_46] : memref<1x32xf32, #tpu.memory_space<vmem>>, vector<1x32xf32>
    %117 = vector.broadcast %116 : vector<1x32xf32> to vector<8x32xf32>
    %118 = arith.addf %115, %117 : vector<8x32xf32>
    %c0_47 = arith.constant 0 : index
    %c0_48 = arith.constant 0 : index
    %119 = vector.load %arg10[%c0_47, %c0_48] : memref<1x32xf32, #tpu.memory_space<vmem>>, vector<1x32xf32>
    %c0_49 = arith.constant 0 : index
    %c0_50 = arith.constant 0 : index
    %120 = vector.load %arg11[%c0_49, %c0_50] : memref<1x32xf32, #tpu.memory_space<vmem>>, vector<1x32xf32>
    %cst_51 = arith.constant dense<0.000000e+00> : vector<8xf32>
    %121 = vector.multi_reduction <add>, %118, %cst_51 [1] : vector<8x32xf32> to vector<8xf32>
    %122 = vector.shape_cast %121 : vector<8xf32> to vector<8x1xf32>
    %cst_52 = arith.constant 3.200000e+01 : f32
    %123 = vector.broadcast %cst_52 : f32 to vector<8x1xf32>
    %124 = arith.divf %122, %123 : vector<8x1xf32>
    %125 = vector.broadcast %124 : vector<8x1xf32> to vector<8x32xf32>
    %126 = arith.subf %118, %125 : vector<8x32xf32>
    %127 = arith.mulf %126, %126 : vector<8x32xf32>
    %cst_53 = arith.constant dense<0.000000e+00> : vector<8xf32>
    %128 = vector.multi_reduction <add>, %127, %cst_53 [1] : vector<8x32xf32> to vector<8xf32>
    %129 = vector.shape_cast %128 : vector<8xf32> to vector<8x1xf32>
    %cst_54 = arith.constant 3.200000e+01 : f32
    %130 = vector.broadcast %cst_54 : f32 to vector<8x1xf32>
    %131 = arith.divf %129, %130 : vector<8x1xf32>
    %132 = vector.broadcast %124 : vector<8x1xf32> to vector<8x32xf32>
    %133 = arith.subf %118, %132 : vector<8x32xf32>
    %cst_55 = arith.constant 9.99999974E-6 : f32
    %134 = vector.broadcast %cst_55 : f32 to vector<8x1xf32>
    %135 = arith.addf %131, %134 : vector<8x1xf32>
    %136 = math.rsqrt %135 : vector<8x1xf32>
    %137 = vector.broadcast %136 : vector<8x1xf32> to vector<8x32xf32>
    %138 = arith.mulf %133, %137 : vector<8x32xf32>
    %139 = vector.broadcast %119 : vector<1x32xf32> to vector<8x32xf32>
    %140 = arith.mulf %138, %139 : vector<8x32xf32>
    %141 = vector.broadcast %120 : vector<1x32xf32> to vector<8x32xf32>
    %142 = arith.addf %140, %141 : vector<8x32xf32>
    %c0_56 = arith.constant 0 : index
    %c0_57 = arith.constant 0 : index
    %c0_58 = arith.constant 0 : index
    %143 = vector.load %arg12[%c0_56, %c0_57, %c0_58] : memref<1x8x32xf32, #tpu.memory_space<vmem>>, vector<1x8x32xf32>
    %144 = vector.shape_cast %143 : vector<1x8x32xf32> to vector<8x32xf32>
    %145 = vector.shape_cast %142 : vector<8x32xf32> to vector<1x8x32xf32>
    tpu.vector_store %arg12[%c0_56, %c0_57, %c0_58], %145 {strides = array<i32>} : memref<1x8x32xf32, #tpu.memory_space<vmem>>, vector<1x8x32xf32>,
    return
  }
  func.func @transform_0(%arg0: i32, %arg1: i32) -> (i32, i32, i32) {
    %c0_i32 = arith.constant 0 : i32
    %c0_i32_0 = arith.constant 0 : i32
    return %arg0, %arg1, %c0_i32 : i32, i32, i32
  }
  func.func @transform_1(%arg0: i32, %arg1: i32) -> (i32, i32, i32) {
    %c0_i32 = arith.constant 0 : i32
    %c0_i32_0 = arith.constant 0 : i32
    %c0_i32_1 = arith.constant 0 : i32
    return %arg0, %c0_i32, %c0_i32_0 : i32, i32, i32
  }
  func.func @transform_2(%arg0: i32, %arg1: i32) -> (i32, i32) {
    %c0_i32 = arith.constant 0 : i32
    %c0_i32_0 = arith.constant 0 : i32
    %c0_i32_1 = arith.constant 0 : i32
    return %c0_i32, %c0_i32_0 : i32, i32
  }
  func.func @transform_3(%arg0: i32, %arg1: i32) -> (i32, i32) {
    %c0_i32 = arith.constant 0 : i32
    %c0_i32_0 = arith.constant 0 : i32
    %c0_i32_1 = arith.constant 0 : i32
    return %c0_i32, %c0_i32_0 : i32, i32
  }
  func.func @transform_4(%arg0: i32, %arg1: i32) -> (i32, i32) {
    %c0_i32 = arith.constant 0 : i32
    %c0_i32_0 = arith.constant 0 : i32
    %c0_i32_1 = arith.constant 0 : i32
    return %c0_i32, %c0_i32_0 : i32, i32
  }
  func.func @transform_5(%arg0: i32, %arg1: i32) -> (i32, i32) {
    %c0_i32 = arith.constant 0 : i32
    %c0_i32_0 = arith.constant 0 : i32
    %c0_i32_1 = arith.constant 0 : i32
    return %c0_i32, %c0_i32_0 : i32, i32
  }
  func.func @transform_6(%arg0: i32, %arg1: i32) -> (i32, i32, i32) {
    %c0_i32 = arith.constant 0 : i32
    %c0_i32_0 = arith.constant 0 : i32
    %c0_i32_1 = arith.constant 0 : i32
    %c0_i32_2 = arith.constant 0 : i32
    return %c0_i32, %c0_i32_0, %c0_i32_1 : i32, i32, i32
  }
  func.func @transform_7(%arg0: i32, %arg1: i32) -> (i32, i32) {
    %c0_i32 = arith.constant 0 : i32
    %c0_i32_0 = arith.constant 0 : i32
    %c0_i32_1 = arith.constant 0 : i32
    return %c0_i32, %c0_i32_0 : i32, i32
  }
  func.func @transform_8(%arg0: i32, %arg1: i32) -> (i32, i32) {
    %c0_i32 = arith.constant 0 : i32
    %c0_i32_0 = arith.constant 0 : i32
    %c0_i32_1 = arith.constant 0 : i32
    return %c0_i32, %c0_i32_0 : i32, i32
  }
  func.func @transform_9(%arg0: i32, %arg1: i32) -> (i32, i32) {
    %c0_i32 = arith.constant 0 : i32
    %c0_i32_0 = arith.constant 0 : i32
    %c0_i32_1 = arith.constant 0 : i32
    return %c0_i32, %c0_i32_0 : i32, i32
  }
  func.func @transform_10(%arg0: i32, %arg1: i32) -> (i32, i32, i32) {
    %c0_i32 = arith.constant 0 : i32
    %c0_i32_0 = arith.constant 0 : i32
    return %arg0, %arg1, %c0_i32 : i32, i32, i32
  }
}

module attributes {stable_mosaic.version = 11 : i64} {
  func.func @_ffn_ln_kernel(%arg0: i32, %arg1: memref<16x32xf32, #tpu.memory_space<vmem>>, %arg2: memref<32x64xbf16, #tpu.memory_space<vmem>>, %arg3: memref<1x64xf32, #tpu.memory_space<vmem>>, %arg4: memref<64x32xbf16, #tpu.memory_space<vmem>>, %arg5: memref<1x32xf32, #tpu.memory_space<vmem>>, %arg6: memref<1x32xf32, #tpu.memory_space<vmem>>, %arg7: memref<1x32xf32, #tpu.memory_space<vmem>>, %arg8: memref<16x32xf32, #tpu.memory_space<vmem>>) attributes {dimension_semantics = [#tpu.dimension_semantics<parallel>], iteration_bounds = array<i64: 1>, scalar_prefetch = 0 : i64, scratch_operands = 0 : i64, tpu.core_type = #tpu.core_type<tc>, window_params = [{transform_indices = @transform_0, window_bounds = array<i64: 16, 32>}, {pipeline_mode = #tpu.pipeline_mode<synchronous>, transform_indices = @transform_1, window_bounds = array<i64: 32, 64>}, {pipeline_mode = #tpu.pipeline_mode<synchronous>, transform_indices = @transform_2, window_bounds = array<i64: 1, 64>}, {pipeline_mode = #tpu.pipeline_mode<synchronous>, transform_indices = @transform_3, window_bounds = array<i64: 64, 32>}, {pipeline_mode = #tpu.pipeline_mode<synchronous>, transform_indices = @transform_4, window_bounds = array<i64: 1, 32>}, {pipeline_mode = #tpu.pipeline_mode<synchronous>, transform_indices = @transform_5, window_bounds = array<i64: 1, 32>}, {pipeline_mode = #tpu.pipeline_mode<synchronous>, transform_indices = @transform_6, window_bounds = array<i64: 1, 32>}, {transform_indices = @transform_7, window_bounds = array<i64: 16, 32>}]} {
    %c0 = arith.constant 0 : index
    %c0_0 = arith.constant 0 : index
    %0 = vector.load %arg1[%c0, %c0_0] : memref<16x32xf32, #tpu.memory_space<vmem>>, vector<16x32xf32>
    %1 = arith.truncf %0 : vector<16x32xf32> to vector<16x32xbf16>
    %c0_1 = arith.constant 0 : index
    %c0_2 = arith.constant 0 : index
    %2 = vector.load %arg2[%c0_1, %c0_2] : memref<32x64xbf16, #tpu.memory_space<vmem>>, vector<32x64xbf16>
    %cst = arith.constant dense<0.000000e+00> : vector<16x64xf32>
    %3 = tpu.matmul %1, %2, %cst {dimension_numbers = #tpu.dot_dimension_numbers<[1], [0], [0], [1], [0, 0, 1, 1], [], []>} : vector<16x32xbf16>, vector<32x64xbf16>, vector<16x64xf32> -> vector<16x64xf32>
    %c0_3 = arith.constant 0 : index
    %c0_4 = arith.constant 0 : index
    %4 = vector.load %arg3[%c0_3, %c0_4] : memref<1x64xf32, #tpu.memory_space<vmem>>, vector<1x64xf32>
    %5 = vector.broadcast %4 : vector<1x64xf32> to vector<16x64xf32>
    %6 = arith.addf %3, %5 : vector<16x64xf32>
    %cst_5 = arith.constant 0.000000e+00 : f32
    %7 = vector.broadcast %cst_5 : f32 to vector<16x64xf32>
    %8 = arith.maximumf %6, %7 : vector<16x64xf32>
    %9 = arith.truncf %8 : vector<16x64xf32> to vector<16x64xbf16>
    %c0_6 = arith.constant 0 : index
    %c0_7 = arith.constant 0 : index
    %10 = vector.load %arg4[%c0_6, %c0_7] : memref<64x32xbf16, #tpu.memory_space<vmem>>, vector<64x32xbf16>
    %cst_8 = arith.constant dense<0.000000e+00> : vector<16x32xf32>
    %11 = tpu.matmul %9, %10, %cst_8 {dimension_numbers = #tpu.dot_dimension_numbers<[1], [0], [0], [1], [0, 0, 1, 1], [], []>} : vector<16x64xbf16>, vector<64x32xbf16>, vector<16x32xf32> -> vector<16x32xf32>
    %12 = arith.addf %0, %11 : vector<16x32xf32>
    %c0_9 = arith.constant 0 : index
    %c0_10 = arith.constant 0 : index
    %13 = vector.load %arg5[%c0_9, %c0_10] : memref<1x32xf32, #tpu.memory_space<vmem>>, vector<1x32xf32>
    %14 = vector.broadcast %13 : vector<1x32xf32> to vector<16x32xf32>
    %15 = arith.addf %12, %14 : vector<16x32xf32>
    %c0_11 = arith.constant 0 : index
    %c0_12 = arith.constant 0 : index
    %16 = vector.load %arg6[%c0_11, %c0_12] : memref<1x32xf32, #tpu.memory_space<vmem>>, vector<1x32xf32>
    %c0_13 = arith.constant 0 : index
    %c0_14 = arith.constant 0 : index
    %17 = vector.load %arg7[%c0_13, %c0_14] : memref<1x32xf32, #tpu.memory_space<vmem>>, vector<1x32xf32>
    %cst_15 = arith.constant dense<0.000000e+00> : vector<16xf32>
    %18 = vector.multi_reduction <add>, %15, %cst_15 [1] : vector<16x32xf32> to vector<16xf32>
    %19 = vector.shape_cast %18 : vector<16xf32> to vector<16x1xf32>
    %cst_16 = arith.constant 3.200000e+01 : f32
    %20 = vector.broadcast %cst_16 : f32 to vector<16x1xf32>
    %21 = arith.divf %19, %20 : vector<16x1xf32>
    %22 = vector.broadcast %21 : vector<16x1xf32> to vector<16x32xf32>
    %23 = arith.subf %15, %22 : vector<16x32xf32>
    %24 = arith.mulf %23, %23 : vector<16x32xf32>
    %cst_17 = arith.constant dense<0.000000e+00> : vector<16xf32>
    %25 = vector.multi_reduction <add>, %24, %cst_17 [1] : vector<16x32xf32> to vector<16xf32>
    %26 = vector.shape_cast %25 : vector<16xf32> to vector<16x1xf32>
    %cst_18 = arith.constant 3.200000e+01 : f32
    %27 = vector.broadcast %cst_18 : f32 to vector<16x1xf32>
    %28 = arith.divf %26, %27 : vector<16x1xf32>
    %29 = vector.broadcast %21 : vector<16x1xf32> to vector<16x32xf32>
    %30 = arith.subf %15, %29 : vector<16x32xf32>
    %cst_19 = arith.constant 9.99999974E-6 : f32
    %31 = vector.broadcast %cst_19 : f32 to vector<16x1xf32>
    %32 = arith.addf %28, %31 : vector<16x1xf32>
    %33 = math.rsqrt %32 : vector<16x1xf32>
    %34 = vector.broadcast %33 : vector<16x1xf32> to vector<16x32xf32>
    %35 = arith.mulf %30, %34 : vector<16x32xf32>
    %36 = vector.broadcast %16 : vector<1x32xf32> to vector<16x32xf32>
    %37 = arith.mulf %35, %36 : vector<16x32xf32>
    %38 = vector.broadcast %17 : vector<1x32xf32> to vector<16x32xf32>
    %39 = arith.addf %37, %38 : vector<16x32xf32>
    %c0_20 = arith.constant 0 : index
    %c0_21 = arith.constant 0 : index
    %40 = vector.load %arg8[%c0_20, %c0_21] : memref<16x32xf32, #tpu.memory_space<vmem>>, vector<16x32xf32>
    tpu.vector_store %arg8[%c0_20, %c0_21], %39 {strides = array<i32>} : memref<16x32xf32, #tpu.memory_space<vmem>>, vector<16x32xf32>,
    return
  }
  func.func @transform_0(%arg0: i32) -> (i32, i32) {
    %c0_i32 = arith.constant 0 : i32
    %c0_i32_0 = arith.constant 0 : i32
    return %arg0, %c0_i32 : i32, i32
  }
  func.func @transform_1(%arg0: i32) -> (i32, i32) {
    %c0_i32 = arith.constant 0 : i32
    %c0_i32_0 = arith.constant 0 : i32
    %c0_i32_1 = arith.constant 0 : i32
    return %c0_i32, %c0_i32_0 : i32, i32
  }
  func.func @transform_2(%arg0: i32) -> (i32, i32) {
    %c0_i32 = arith.constant 0 : i32
    %c0_i32_0 = arith.constant 0 : i32
    %c0_i32_1 = arith.constant 0 : i32
    return %c0_i32, %c0_i32_0 : i32, i32
  }
  func.func @transform_3(%arg0: i32) -> (i32, i32) {
    %c0_i32 = arith.constant 0 : i32
    %c0_i32_0 = arith.constant 0 : i32
    %c0_i32_1 = arith.constant 0 : i32
    return %c0_i32, %c0_i32_0 : i32, i32
  }
  func.func @transform_4(%arg0: i32) -> (i32, i32) {
    %c0_i32 = arith.constant 0 : i32
    %c0_i32_0 = arith.constant 0 : i32
    %c0_i32_1 = arith.constant 0 : i32
    return %c0_i32, %c0_i32_0 : i32, i32
  }
  func.func @transform_5(%arg0: i32) -> (i32, i32) {
    %c0_i32 = arith.constant 0 : i32
    %c0_i32_0 = arith.constant 0 : i32
    %c0_i32_1 = arith.constant 0 : i32
    return %c0_i32, %c0_i32_0 : i32, i32
  }
  func.func @transform_6(%arg0: i32) -> (i32, i32) {
    %c0_i32 = arith.constant 0 : i32
    %c0_i32_0 = arith.constant 0 : i32
    %c0_i32_1 = arith.constant 0 : i32
    return %c0_i32, %c0_i32_0 : i32, i32
  }
  func.func @transform_7(%arg0: i32) -> (i32, i32) {
    %c0_i32 = arith.constant 0 : i32
    %c0_i32_0 = arith.constant 0 : i32
    return %arg0, %c0_i32 : i32, i32
  }
}

module attributes {stable_mosaic.version = 11 : i64} {
  func.func @_layernorm_kernel(%arg0: i32, %arg1: memref<16x32xf32, #tpu.memory_space<vmem>>, %arg2: memref<1x32xf32, #tpu.memory_space<vmem>>, %arg3: memref<1x32xf32, #tpu.memory_space<vmem>>, %arg4: memref<16x32xf32, #tpu.memory_space<vmem>>) attributes {dimension_semantics = [#tpu.dimension_semantics<parallel>], iteration_bounds = array<i64: 1>, scalar_prefetch = 0 : i64, scratch_operands = 0 : i64, tpu.core_type = #tpu.core_type<tc>, window_params = [{transform_indices = @transform_0, window_bounds = array<i64: 16, 32>}, {pipeline_mode = #tpu.pipeline_mode<synchronous>, transform_indices = @transform_1, window_bounds = array<i64: 1, 32>}, {pipeline_mode = #tpu.pipeline_mode<synchronous>, transform_indices = @transform_2, window_bounds = array<i64: 1, 32>}, {transform_indices = @transform_3, window_bounds = array<i64: 16, 32>}]} {
    %c0 = arith.constant 0 : index
    %c0_0 = arith.constant 0 : index
    %0 = vector.load %arg1[%c0, %c0_0] : memref<16x32xf32, #tpu.memory_space<vmem>>, vector<16x32xf32>
    %c0_1 = arith.constant 0 : index
    %c0_2 = arith.constant 0 : index
    %1 = vector.load %arg2[%c0_1, %c0_2] : memref<1x32xf32, #tpu.memory_space<vmem>>, vector<1x32xf32>
    %c0_3 = arith.constant 0 : index
    %c0_4 = arith.constant 0 : index
    %2 = vector.load %arg3[%c0_3, %c0_4] : memref<1x32xf32, #tpu.memory_space<vmem>>, vector<1x32xf32>
    %cst = arith.constant dense<0.000000e+00> : vector<16xf32>
    %3 = vector.multi_reduction <add>, %0, %cst [1] : vector<16x32xf32> to vector<16xf32>
    %4 = vector.shape_cast %3 : vector<16xf32> to vector<16x1xf32>
    %cst_5 = arith.constant 3.200000e+01 : f32
    %5 = vector.broadcast %cst_5 : f32 to vector<16x1xf32>
    %6 = arith.divf %4, %5 : vector<16x1xf32>
    %7 = vector.broadcast %6 : vector<16x1xf32> to vector<16x32xf32>
    %8 = arith.subf %0, %7 : vector<16x32xf32>
    %9 = arith.mulf %8, %8 : vector<16x32xf32>
    %cst_6 = arith.constant dense<0.000000e+00> : vector<16xf32>
    %10 = vector.multi_reduction <add>, %9, %cst_6 [1] : vector<16x32xf32> to vector<16xf32>
    %11 = vector.shape_cast %10 : vector<16xf32> to vector<16x1xf32>
    %cst_7 = arith.constant 3.200000e+01 : f32
    %12 = vector.broadcast %cst_7 : f32 to vector<16x1xf32>
    %13 = arith.divf %11, %12 : vector<16x1xf32>
    %14 = vector.broadcast %6 : vector<16x1xf32> to vector<16x32xf32>
    %15 = arith.subf %0, %14 : vector<16x32xf32>
    %cst_8 = arith.constant 9.99999974E-6 : f32
    %16 = vector.broadcast %cst_8 : f32 to vector<16x1xf32>
    %17 = arith.addf %13, %16 : vector<16x1xf32>
    %18 = math.rsqrt %17 : vector<16x1xf32>
    %19 = vector.broadcast %18 : vector<16x1xf32> to vector<16x32xf32>
    %20 = arith.mulf %15, %19 : vector<16x32xf32>
    %21 = vector.broadcast %1 : vector<1x32xf32> to vector<16x32xf32>
    %22 = arith.mulf %20, %21 : vector<16x32xf32>
    %23 = vector.broadcast %2 : vector<1x32xf32> to vector<16x32xf32>
    %24 = arith.addf %22, %23 : vector<16x32xf32>
    %c0_9 = arith.constant 0 : index
    %c0_10 = arith.constant 0 : index
    %25 = vector.load %arg4[%c0_9, %c0_10] : memref<16x32xf32, #tpu.memory_space<vmem>>, vector<16x32xf32>
    tpu.vector_store %arg4[%c0_9, %c0_10], %24 {strides = array<i32>} : memref<16x32xf32, #tpu.memory_space<vmem>>, vector<16x32xf32>,
    return
  }
  func.func @transform_0(%arg0: i32) -> (i32, i32) {
    %c0_i32 = arith.constant 0 : i32
    %c0_i32_0 = arith.constant 0 : i32
    return %arg0, %c0_i32 : i32, i32
  }
  func.func @transform_1(%arg0: i32) -> (i32, i32) {
    %c0_i32 = arith.constant 0 : i32
    %c0_i32_0 = arith.constant 0 : i32
    %c0_i32_1 = arith.constant 0 : i32
    return %c0_i32, %c0_i32_0 : i32, i32
  }
  func.func @transform_2(%arg0: i32) -> (i32, i32) {
    %c0_i32 = arith.constant 0 : i32
    %c0_i32_0 = arith.constant 0 : i32
    %c0_i32_1 = arith.constant 0 : i32
    return %c0_i32, %c0_i32_0 : i32, i32
  }
  func.func @transform_3(%arg0: i32) -> (i32, i32) {
    %c0_i32 = arith.constant 0 : i32
    %c0_i32_0 = arith.constant 0 : i32
    return %arg0, %c0_i32 : i32, i32
  }
}

module attributes {stable_mosaic.version = 11 : i64} {
  func.func @_linear_kernel(%arg0: i32, %arg1: i32, %arg2: memref<16x32xf32, #tpu.memory_space<vmem>>, %arg3: memref<32x60xbf16, #tpu.memory_space<vmem>>, %arg4: memref<1x60xf32, #tpu.memory_space<vmem>>, %arg5: memref<16x60xf32, #tpu.memory_space<vmem>>) attributes {dimension_semantics = [#tpu.dimension_semantics<parallel>, #tpu.dimension_semantics<parallel>], iteration_bounds = array<i64: 1, 1>, scalar_prefetch = 0 : i64, scratch_operands = 0 : i64, tpu.core_type = #tpu.core_type<tc>, window_params = [{transform_indices = @transform_0, window_bounds = array<i64: 16, 32>}, {transform_indices = @transform_1, window_bounds = array<i64: 32, 60>}, {transform_indices = @transform_2, window_bounds = array<i64: 1, 60>}, {transform_indices = @transform_3, window_bounds = array<i64: 16, 60>}]} {
    %c0 = arith.constant 0 : index
    %c0_0 = arith.constant 0 : index
    %0 = vector.load %arg2[%c0, %c0_0] : memref<16x32xf32, #tpu.memory_space<vmem>>, vector<16x32xf32>
    %1 = arith.truncf %0 : vector<16x32xf32> to vector<16x32xbf16>
    %c0_1 = arith.constant 0 : index
    %c0_2 = arith.constant 0 : index
    %2 = vector.load %arg3[%c0_1, %c0_2] : memref<32x60xbf16, #tpu.memory_space<vmem>>, vector<32x60xbf16>
    %cst = arith.constant dense<0.000000e+00> : vector<16x60xf32>
    %3 = tpu.matmul %1, %2, %cst {dimension_numbers = #tpu.dot_dimension_numbers<[1], [0], [0], [1], [0, 0, 1, 1], [], []>} : vector<16x32xbf16>, vector<32x60xbf16>, vector<16x60xf32> -> vector<16x60xf32>
    %c0_3 = arith.constant 0 : index
    %c0_4 = arith.constant 0 : index
    %4 = vector.load %arg4[%c0_3, %c0_4] : memref<1x60xf32, #tpu.memory_space<vmem>>, vector<1x60xf32>
    %5 = vector.broadcast %4 : vector<1x60xf32> to vector<16x60xf32>
    %6 = arith.addf %3, %5 : vector<16x60xf32>
    %c0_5 = arith.constant 0 : index
    %c0_6 = arith.constant 0 : index
    %7 = vector.load %arg5[%c0_5, %c0_6] : memref<16x60xf32, #tpu.memory_space<vmem>>, vector<16x60xf32>
    tpu.vector_store %arg5[%c0_5, %c0_6], %6 {strides = array<i32>} : memref<16x60xf32, #tpu.memory_space<vmem>>, vector<16x60xf32>,
    return
  }
  func.func @transform_0(%arg0: i32, %arg1: i32) -> (i32, i32) {
    %c0_i32 = arith.constant 0 : i32
    %c0_i32_0 = arith.constant 0 : i32
    return %arg1, %c0_i32 : i32, i32
  }
  func.func @transform_1(%arg0: i32, %arg1: i32) -> (i32, i32) {
    %c0_i32 = arith.constant 0 : i32
    %c0_i32_0 = arith.constant 0 : i32
    return %c0_i32, %arg0 : i32, i32
  }
  func.func @transform_2(%arg0: i32, %arg1: i32) -> (i32, i32) {
    %c0_i32 = arith.constant 0 : i32
    %c0_i32_0 = arith.constant 0 : i32
    return %c0_i32, %arg0 : i32, i32
  }
  func.func @transform_3(%arg0: i32, %arg1: i32) -> (i32, i32) {
    %c0_i32 = arith.constant 0 : i32
    return %arg1, %arg0 : i32, i32
  }
}

</mosaic_0001>

<llo_original>
// kernel: transformer_forward.17
$region0: #{transformer_forward.17}
  #allocation0 [shape = 'u32[]', space=smem, size = 0x4, offset = 0x4, fixed_abs, tag = 'smem constant byte address 0x4 - core index']
  #allocation1 [shape = 'u32[144,128]{1,0:T(1,128)}', space=vmem, size = 0x12000, scoped, tag = 'internal scratch']
  %s0 = inlined_call_operand.vmem [shape: f32[20,32], index: 0, kind: input, shape index: {}]
  %s1 = inlined_call_operand.vmem [shape: f32[1,32], index: 1, kind: input, shape index: {}]
  %s2 = inlined_call_operand.vmem [shape: f32[1,32], index: 2, kind: input, shape index: {}]
  %s3 = inlined_call_operand.vmem [shape: f32[20,32], index: 3, kind: output, shape index: {}]
  %s4 = sld [smem:[#allocation0]]
  $region22: #{transformer_forward.17} parent=0
    _
  %s6 = ssub.s32 1, %s4
  %s7 = scalar_select 0, %s6, %s4
  // Predicated region
  $region2: #{transformer_forward.17} parent=0 // pred_check
    _
  $region3: #{transformer_forward.17} parent=0 // pred_check_branch
    %9 = sbr.rel (0) target = $region5
  $region4: #{transformer_forward.17} parent=0 // pred_region
    _
  $region5: #{transformer_forward.17} parent=0 // pred_fallthru
    _
  // Predicated region
  $region6: #{transformer_forward.17} parent=0 // pred_check
    _
  $region7: #{transformer_forward.17} parent=0 // pred_check_branch
    %11 = sbr.rel (0) target = $region9
  $region8: #{transformer_forward.17} parent=0 // pred_region
    _
  $region9: #{transformer_forward.17} parent=0 // pred_fallthru
    _
  // Predicated region
  $region10: #{transformer_forward.17} parent=0 // pred_check
    _
  $region11: #{transformer_forward.17} parent=0 // pred_check_branch
    %13 = sbr.rel (0) target = $region13
  $region12: #{transformer_forward.17} parent=0 // pred_region
    _
  $region13: #{transformer_forward.17} parent=0 // pred_fallthru
    _
  %v14 = vld [vmem:[%s0] sm:$0xff]
  %v15 = vld [vmem:[%s0 + $0x8] sm:$0xff]
  %v16 = vld [vmem:[%s0 + $0x10] sm:$0xf]
  %v17 = vld [vmem:[%s1] sm:$0x1]
  %v18 = vld [vmem:[%s2] sm:$0x1]
  %vm19 = vcmask 261120
  %v20 = vsel %vm19, %v14, 0.0
  %21 = vadd.xlane.f32.xlu0 %v20
  %v22 = vpop.xlane.xlu0 %21
  %v23 = vsel %vm19, %v15, 0.0
  %24 = vadd.xlane.f32.xlu0 %v23
  %v25 = vpop.xlane.xlu0 %24
  %vm26 = vcmask 257024
  %v27 = vsel %vm26, %v16, 0.0
  %28 = vadd.xlane.f32.xlu0 %v27
  %v29 = vpop.xlane.xlu0 %28
  %v30 = vrcp.pop 32.0
  %v31 = vmul.f32 %v22, %v30
  %v32 = vmul.f32 %v25, %v30
  %v33 = vmul.f32 %v29, %v30
  %v34 = vsub.f32 %v14, %v31
  %v35 = vsub.f32 %v15, %v32
  %v36 = vsub.f32 %v16, %v33
  %v37 = vmul.f32 %v34, %v34
  %v38 = vmul.f32 %v35, %v35
  %v39 = vmul.f32 %v36, %v36
  %v40 = vsel %vm19, %v37, 0.0
  %41 = vadd.xlane.f32.xlu0 %v40
  %v42 = vpop.xlane.xlu0 %41
  %v43 = vsel %vm19, %v38, 0.0
  %44 = vadd.xlane.f32.xlu0 %v43
  %v45 = vpop.xlane.xlu0 %44
  %v46 = vsel %vm26, %v39, 0.0
  %47 = vadd.xlane.f32.xlu0 %v46
  %v48 = vpop.xlane.xlu0 %47
  %v49 = vmul.f32 %v42, %v30
  %v50 = vmul.f32 %v45, %v30
  %v51 = vmul.f32 %v48, %v30
  %v52 = vadd.f32 %v49, 1e-05
  %v53 = vadd.f32 %v50, 1e-05
  %v54 = vadd.f32 %v51, 1e-05
  %v55 = vrsqrt.pop %v52
  %v56 = vrsqrt.pop %v53
  %v57 = vrsqrt.pop %v54
  %v58 = vmul.f32 %v34, %v55
  %v59 = vmul.f32 %v35, %v56
  %v60 = vmul.f32 %v36, %v57
  %v62 = vlaneseq
  %v63 = vshrl.u32 %v62, 7
  %v64 = vsub.s32 0, %v63
  %v65 = vrot.slane %v17, %v64
  %v67 = vmul.f32 %v58, %v65
  %v68 = vmul.f32 %v59, %v65
  %v69 = vmul.f32 %v60, %v65
  %v71 = vlaneseq
  %v72 = vshrl.u32 %v71, 7
  %v73 = vsub.s32 0, %v72
  %v74 = vrot.slane %v18, %v73
  %v76 = vadd.f32 %v67, %v74
  %v77 = vadd.f32 %v68, %v74
  %v78 = vadd.f32 %v69, %v74
  %79 = vst.msk [vmem:[%s3] sm:$0xff] %vm19, %v76
  %80 = vst.msk [vmem:[%s3 + $0x8] sm:$0xff] %vm19, %v77
  %81 = vst.msk [vmem:[%s3 + $0x10] sm:$0xf] %vm26, %v78
  // Predicated region
  $region14: #{transformer_forward.17} parent=0 // pred_check
    _
  $region15: #{transformer_forward.17} parent=0 // pred_check_branch
    %83 = sbr.rel (0) target = $region17
  $region16: #{transformer_forward.17} parent=0 // pred_region
    _
  $region17: #{transformer_forward.17} parent=0 // pred_fallthru
    _
  // Predicated region
  $region18: #{transformer_forward.17} parent=0 // pred_check
    _
  $region19: #{transformer_forward.17} parent=0 // pred_check_branch
    %85 = sbr.rel (0) target = $region21
  $region20: #{transformer_forward.17} parent=0 // pred_region
    _
  $region21: #{transformer_forward.17} parent=0 // pred_fallthru
    _

// kernel: transformer_forward.14
$region0: #{transformer_forward.14}
  #allocation0 [shape = 'u32[]', space=smem, size = 0x4, offset = 0x4, fixed_abs, tag = 'smem constant byte address 0x4 - core index']
  #allocation1 [shape = 'u32[144,128]{1,0:T(1,128)}', space=vmem, size = 0x12000, scoped, tag = 'internal scratch']
  %s0 = inlined_call_operand.vmem [shape: f32[20,32], index: 0, kind: input, shape index: {}]
  %s1 = inlined_call_operand.vmem [shape: bf16[32,64], index: 1, kind: input, shape index: {}]
  %s2 = inlined_call_operand.vmem [shape: f32[1,64], index: 2, kind: input, shape index: {}]
  %s3 = inlined_call_operand.vmem [shape: bf16[64,32], index: 3, kind: input, shape index: {}]
  %s4 = inlined_call_operand.vmem [shape: f32[1,32], index: 4, kind: input, shape index: {}]
  %s5 = inlined_call_operand.vmem [shape: f32[1,32], index: 5, kind: input, shape index: {}]
  %s6 = inlined_call_operand.vmem [shape: f32[1,32], index: 6, kind: input, shape index: {}]
  %s7 = inlined_call_operand.vmem [shape: f32[20,32], index: 7, kind: output, shape index: {}]
  %s8 = sld [smem:[#allocation0]]
  $region38: #{transformer_forward.14} parent=0
    _
  %s10 = ssub.s32 1, %s8
  %s11 = scalar_select 0, %s10, %s8
  // Predicated region
  $region2: #{transformer_forward.14} parent=0 // pred_check
    _
  $region3: #{transformer_forward.14} parent=0 // pred_check_branch
    %13 = sbr.rel (0) target = $region5
  $region4: #{transformer_forward.14} parent=0 // pred_region
    _
  $region5: #{transformer_forward.14} parent=0 // pred_fallthru
    _
  // Predicated region
  $region6: #{transformer_forward.14} parent=0 // pred_check
    _
  $region7: #{transformer_forward.14} parent=0 // pred_check_branch
    %15 = sbr.rel (0) target = $region9
  $region8: #{transformer_forward.14} parent=0 // pred_region
    _
  $region9: #{transformer_forward.14} parent=0 // pred_fallthru
    _
  // Predicated region
  $region10: #{transformer_forward.14} parent=0 // pred_check
    _
  $region11: #{transformer_forward.14} parent=0 // pred_check_branch
    %17 = sbr.rel (0) target = $region13
  $region12: #{transformer_forward.14} parent=0 // pred_region
    _
  $region13: #{transformer_forward.14} parent=0 // pred_fallthru
    _
  // Predicated region
  $region14: #{transformer_forward.14} parent=0 // pred_check
    _
  $region15: #{transformer_forward.14} parent=0 // pred_check_branch
    %19 = sbr.rel (0) target = $region17
  $region16: #{transformer_forward.14} parent=0 // pred_region
    _
  $region17: #{transformer_forward.14} parent=0 // pred_fallthru
    _
  // Predicated region
  $region18: #{transformer_forward.14} parent=0 // pred_check
    _
  $region19: #{transformer_forward.14} parent=0 // pred_check_branch
    %21 = sbr.rel (0) target = $region21
  $region20: #{transformer_forward.14} parent=0 // pred_region
    _
  $region21: #{transformer_forward.14} parent=0 // pred_fallthru
    _
  // Predicated region
  $region22: #{transformer_forward.14} parent=0 // pred_check
    _
  $region23: #{transformer_forward.14} parent=0 // pred_check_branch
    %23 = sbr.rel (0) target = $region25
  $region24: #{transformer_forward.14} parent=0 // pred_region
    _
  $region25: #{transformer_forward.14} parent=0 // pred_fallthru
    _
  // Predicated region
  $region26: #{transformer_forward.14} parent=0 // pred_check
    _
  $region27: #{transformer_forward.14} parent=0 // pred_check_branch
    %25 = sbr.rel (0) target = $region29
  $region28: #{transformer_forward.14} parent=0 // pred_region
    _
  $region29: #{transformer_forward.14} parent=0 // pred_fallthru
    _
  %v27 = vld [vmem:[%s0] sm:$0xff]
  %v28 = vld [vmem:[%s0 + $0x8] sm:$0xff]
  %v29 = vld [vmem:[%s0 + $0x10] sm:$0xf]
  %v30 = vpack.c.bf16 %v28, %v27
  %v31 = vpack.c.bf16 %v29, %v29
  %v32 = vld [vmem:[%s1] sm:$0xf]
  %v33 = vld [vmem:[%s1 + $0x4] sm:$0xf]
  %v34 = vld [vmem:[%s1 + $0x8] sm:$0xf]
  %v35 = vld [vmem:[%s1 + $0xc] sm:$0xf]
  %v36 = vld [vmem:[%s2] sm:$0x1]
  %v38 = vlaneseq
  %v39 = vshrl.u32 %v38, 7
  %v40 = vsub.s32 0, %v39
  %v41 = vrot.slane %v36, %v40
  %v47 = vunpack.c.l.b16 %v32
  %v48 = vunpack.c.l.b16 %v33
  %v49 = vunpack.c.l.b16 %v34
  %v50 = vunpack.c.l.b16 %v35
  %v51 = vpack.c.b16 %v48, %v47
  %v52 = vpack.c.b16 %v50, %v49
  %vm55 = vcmask 261120
  %v57 = vsel %vm55, %v30, 0
  %v60 = vsel %vm55, %v31, 0
  %62 = vmatprep.subr.bf16.mxu0 0
  %63 = vmatpush1.bf16.msra.mxu0 %v51
  %64 = vmatprep.subr.bf16.mxu0 0
  %65 = vmatpush1.bf16.msra.mxu0 %v52
  %66 = vmatprep.subr.bf16.mxu0 0
  %67 = vmatpush1.bf16.msra.mxu0 0
  %68 = vmatprep.subr.bf16.mxu0 0
  %69 = vmatpush1.bf16.msra.mxu0 0
  %70 = vmatprep.subr.bf16.mxu0 0
  %71 = vmatpush1.bf16.msra.mxu0 0
  %72 = vmatprep.subr.bf16.mxu0 0
  %73 = vmatpush1.bf16.msra.mxu0 0
  %74 = vmatprep.subr.bf16.mxu0 0
  %75 = vmatpush1.bf16.msra.mxu0 0
  %76 = vmatprep.subr.bf16.mxu0 0
  %77 = vmatpush1.bf16.msra.mxu0 0
  %78 = vmatprep.subr.bf16.mxu0 0
  %79 = vmatpush1.bf16.msra.mxu0 0
  %80 = vmatprep.subr.bf16.mxu0 0
  %81 = vmatpush1.bf16.msra.mxu0 0
  %82 = vmatprep.subr.bf16.mxu0 0
  %83 = vmatpush1.bf16.msra.mxu0 0
  %84 = vmatprep.subr.bf16.mxu0 0
  %85 = vmatpush1.bf16.msra.mxu0 0
  %86 = vmatprep.subr.bf16.mxu0 0
  %87 = vmatpush1.bf16.msra.mxu0 0
  %88 = vmatprep.subr.bf16.mxu0 0
  %89 = vmatpush1.bf16.msra.mxu0 0
  %90 = vmatprep.subr.bf16.mxu0 0
  %91 = vmatpush1.bf16.msra.mxu0 0
  %92 = vmatprep.subr.bf16.mxu0 0
  %93 = vmatpush1.bf16.msra.mxu0 0
  %94 = vmatprep.mubr.bf16.mxu0 0
  %95 = vmatmul.mubr.bf16.gmra.mrb[0].mxu0 %v57
  %v96 = vpop.f32.mrb[0].mxu0
  %v97 = vadd.f32 %v41, %v96
  %v98 = vpop.f32.mrb[0].mxu0
  %v99 = vpop.f32.mrb[0].mxu0
  %v100 = vadd.f32 %v41, %v99
  %v101 = vpop.f32.mrb[0].mxu0
  %102 = vmatprep.mubr.bf16.mxu0 0
  %103 = vmatmul.mubr.bf16.gmra.mrb[0].mxu0 %v60
  %v104 = vpop.f32.mrb[0].mxu0
  %v105 = vadd.f32 %v41, %v104
  %v106 = vpop.f32.mrb[0].mxu0
  %v107 = vpop.f32.mrb[0].mxu0
  %v108 = vpop.f32.mrb[0].mxu0
  %109 = vdwg.mxu0
  %v110 = vmax.f32 %v97, 0.0
  %v111 = vmax.f32 %v100, 0.0
  %v112 = vmax.f32 %v105, 0.0
  %v113 = vpack.c.bf16 %v111, %v110
  %v114 = vpack.c.bf16 %v112, %v112
  %v115 = vld [vmem:[%s3] sm:$0xf]
  %v116 = vld [vmem:[%s3 + $0x4] sm:$0xf]
  %v117 = vld [vmem:[%s3 + $0x8] sm:$0xf]
  %v118 = vld [vmem:[%s3 + $0xc] sm:$0xf]
  %v119 = vld [vmem:[%s3 + $0x10] sm:$0xf]
  %v120 = vld [vmem:[%s3 + $0x14] sm:$0xf]
  %v121 = vld [vmem:[%s3 + $0x18] sm:$0xf]
  %v122 = vld [vmem:[%s3 + $0x1c] sm:$0xf]
  %v131 = vunpack.c.l.b16 %v115
  %v132 = vunpack.c.l.b16 %v116
  %v133 = vunpack.c.l.b16 %v117
  %v134 = vunpack.c.l.b16 %v118
  %v135 = vunpack.c.l.b16 %v119
  %v136 = vunpack.c.l.b16 %v120
  %v137 = vunpack.c.l.b16 %v121
  %v138 = vunpack.c.l.b16 %v122
  %v139 = vpack.c.b16 %v132, %v131
  %v140 = vpack.c.b16 %v134, %v133
  %v141 = vpack.c.b16 %v136, %v135
  %v142 = vpack.c.b16 %v138, %v137
  %vm147 = vcmask 523264
  %v149 = vsel %vm147, %v113, 0
  %v152 = vsel %vm147, %v114, 0
  %154 = vmatprep.subr.bf16.mxu0 0
  %155 = vmatpush1.bf16.msra.mxu0 %v139
  %156 = vmatprep.subr.bf16.mxu0 0
  %157 = vmatpush1.bf16.msra.mxu0 %v140
  %158 = vmatprep.subr.bf16.mxu0 0
  %159 = vmatpush1.bf16.msra.mxu0 %v141
  %160 = vmatprep.subr.bf16.mxu0 0
  %161 = vmatpush1.bf16.msra.mxu0 %v142
  %162 = vmatprep.subr.bf16.mxu0 0
  %163 = vmatpush1.bf16.msra.mxu0 0
  %164 = vmatprep.subr.bf16.mxu0 0
  %165 = vmatpush1.bf16.msra.mxu0 0
  %166 = vmatprep.subr.bf16.mxu0 0
  %167 = vmatpush1.bf16.msra.mxu0 0
  %168 = vmatprep.subr.bf16.mxu0 0
  %169 = vmatpush1.bf16.msra.mxu0 0
  %170 = vmatprep.subr.bf16.mxu0 0
  %171 = vmatpush1.bf16.msra.mxu0 0
  %172 = vmatprep.subr.bf16.mxu0 0
  %173 = vmatpush1.bf16.msra.mxu0 0
  %174 = vmatprep.subr.bf16.mxu0 0
  %175 = vmatpush1.bf16.msra.mxu0 0
  %176 = vmatprep.subr.bf16.mxu0 0
  %177 = vmatpush1.bf16.msra.mxu0 0
  %178 = vmatprep.subr.bf16.mxu0 0
  %179 = vmatpush1.bf16.msra.mxu0 0
  %180 = vmatprep.subr.bf16.mxu0 0
  %181 = vmatpush1.bf16.msra.mxu0 0
  %182 = vmatprep.subr.bf16.mxu0 0
  %183 = vmatpush1.bf16.msra.mxu0 0
  %184 = vmatprep.subr.bf16.mxu0 0
  %185 = vmatpush1.bf16.msra.mxu0 0
  %186 = vmatprep.mubr.bf16.mxu0 0
  %187 = vmatmul.mubr.bf16.gmra.mrb[0].mxu0 %v149
  %v188 = vpop.f32.mrb[0].mxu0
  %v189 = vadd.f32 0.0, %v188
  %v190 = vpop.f32.mrb[0].mxu0
  %v191 = vpop.f32.mrb[0].mxu0
  %v192 = vadd.f32 0.0, %v191
  %v193 = vpop.f32.mrb[0].mxu0
  %194 = vmatprep.mubr.bf16.mxu0 0
  %195 = vmatmul.mubr.bf16.gmra.mrb[0].mxu0 %v152
  %v196 = vpop.f32.mrb[0].mxu0
  %v197 = vadd.f32 0.0, %v196
  %v198 = vpop.f32.mrb[0].mxu0
  %v199 = vpop.f32.mrb[0].mxu0
  %v200 = vpop.f32.mrb[0].mxu0
  %201 = vdwg.mxu0
  %v202 = vadd.f32 %v27, %v189
  %v203 = vadd.f32 %v28, %v192
  %v204 = vadd.f32 %v29, %v197
  %v205 = vld [vmem:[%s4] sm:$0x1]
  %v207 = vlaneseq
  %v208 = vshrl.u32 %v207, 7
  %v209 = vsub.s32 0, %v208
  %v210 = vrot.slane %v205, %v209
  %v212 = vadd.f32 %v202, %v210
  %v213 = vadd.f32 %v203, %v210
  %v214 = vadd.f32 %v204, %v210
  %v215 = vld [vmem:[%s5] sm:$0x1]
  %v216 = vld [vmem:[%s6] sm:$0x1]
  %v217 = vsel %vm55, %v212, 0.0
  %218 = vadd.xlane.f32.xlu0 %v217
  %v219 = vpop.xlane.xlu0 %218
  %v220 = vsel %vm55, %v213, 0.0
  %221 = vadd.xlane.f32.xlu0 %v220
  %v222 = vpop.xlane.xlu0 %221
  %vm223 = vcmask 257024
  %v224 = vsel %vm223, %v214, 0.0
  %225 = vadd.xlane.f32.xlu0 %v224
  %v226 = vpop.xlane.xlu0 %225
  %v227 = vrcp.pop 32.0
  %v228 = vmul.f32 %v219, %v227
  %v229 = vmul.f32 %v222, %v227
  %v230 = vmul.f32 %v226, %v227
  %v231 = vsub.f32 %v212, %v228
  %v232 = vsub.f32 %v213, %v229
  %v233 = vsub.f32 %v214, %v230
  %v234 = vmul.f32 %v231, %v231
  %v235 = vmul.f32 %v232, %v232
  %v236 = vmul.f32 %v233, %v233
  %v237 = vsel %vm55, %v234, 0.0
  %238 = vadd.xlane.f32.xlu0 %v237
  %v239 = vpop.xlane.xlu0 %238
  %v240 = vsel %vm55, %v235, 0.0
  %241 = vadd.xlane.f32.xlu0 %v240
  %v242 = vpop.xlane.xlu0 %241
  %v243 = vsel %vm223, %v236, 0.0
  %244 = vadd.xlane.f32.xlu0 %v243
  %v245 = vpop.xlane.xlu0 %244
  %v246 = vmul.f32 %v239, %v227
  %v247 = vmul.f32 %v242, %v227
  %v248 = vmul.f32 %v245, %v227
  %v249 = vadd.f32 %v246, 1e-05
  %v250 = vadd.f32 %v247, 1e-05
  %v251 = vadd.f32 %v248, 1e-05
  %v252 = vrsqrt.pop %v249
  %v253 = vrsqrt.pop %v250
  %v254 = vrsqrt.pop %v251
  %v255 = vmul.f32 %v231, %v252
  %v256 = vmul.f32 %v232, %v253
  %v257 = vmul.f32 %v233, %v254
  %v259 = vlaneseq
  %v260 = vshrl.u32 %v259, 7
  %v261 = vsub.s32 0, %v260
  %v262 = vrot.slane %v215, %v261
  %v264 = vmul.f32 %v255, %v262
  %v265 = vmul.f32 %v256, %v262
  %v266 = vmul.f32 %v257, %v262
  %v268 = vlaneseq
  %v269 = vshrl.u32 %v268, 7
  %v270 = vsub.s32 0, %v269
  %v271 = vrot.slane %v216, %v270
  %v273 = vadd.f32 %v264, %v271
  %v274 = vadd.f32 %v265, %v271
  %v275 = vadd.f32 %v266, %v271
  %276 = vst.msk [vmem:[%s7] sm:$0xff] %vm55, %v273
  %277 = vst.msk [vmem:[%s7 + $0x8] sm:$0xff] %vm55, %v274
  %278 = vst.msk [vmem:[%s7 + $0x10] sm:$0xf] %vm223, %v275
  // Predicated region
  $region30: #{transformer_forward.14} parent=0 // pred_check
    _
  $region31: #{transformer_forward.14} parent=0 // pred_check_branch
    %280 = sbr.rel (0) target = $region33
  $region32: #{transformer_forward.14} parent=0 // pred_region
    _
  $region33: #{transformer_forward.14} parent=0 // pred_fallthru
    _
  // Predicated region
  $region34: #{transformer_forward.14} parent=0 // pred_check
    _
  $region35: #{transformer_forward.14} parent=0 // pred_check_branch
    %282 = sbr.rel (0) target = $region37
  $region36: #{transformer_forward.14} parent=0 // pred_region
    _
  $region37: #{transformer_forward.14} parent=0 // pred_fallthru
    _

// kernel: transformer_forward.13
$region0: #{transformer_forward.13}
  #allocation0 [shape = 'u32[]', space=smem, size = 0x4, offset = 0x4, fixed_abs, tag = 'smem constant byte address 0x4 - core index']
  #allocation1 [shape = 'u32[144,128]{1,0:T(1,128)}', space=vmem, size = 0x12000, scoped, tag = 'internal scratch']
  %s0 = inlined_call_operand.vmem [shape: f32[2,10,32], index: 0, kind: input, shape index: {}, may-alias: {0,1}]
  %s1 = inlined_call_operand.vmem [shape: f32[2,10,32], index: 1, kind: input, shape index: {}, may-alias: {0,1}]
  %s2 = inlined_call_operand.vmem [shape: f32[2,1,10], index: 2, kind: input, shape index: {}]
  %s3 = inlined_call_operand.vmem [shape: bf16[32,32], index: 3, kind: input, shape index: {}]
  %s4 = inlined_call_operand.vmem [shape: f32[1,32], index: 4, kind: input, shape index: {}]
  %s5 = inlined_call_operand.vmem [shape: bf16[32,64], index: 5, kind: input, shape index: {}]
  %s6 = inlined_call_operand.vmem [shape: f32[1,64], index: 6, kind: input, shape index: {}]
  %s7 = inlined_call_operand.vmem [shape: bf16[4,8,32], index: 7, kind: input, shape index: {}]
  %s8 = inlined_call_operand.vmem [shape: f32[1,32], index: 8, kind: input, shape index: {}]
  %s9 = inlined_call_operand.vmem [shape: f32[1,32], index: 9, kind: input, shape index: {}]
  %s10 = inlined_call_operand.vmem [shape: f32[1,32], index: 10, kind: input, shape index: {}]
  %s11 = inlined_call_operand.vmem [shape: f32[2,10,32], index: 11, kind: output, shape index: {}]
  %s12 = sld [smem:[#allocation0]]
  $region77: #{transformer_forward.13} parent=0
    _
  %s14 = ssub.s32 1, %s12
  %s15 = scalar_select 0, %s14, %s12
  loop: start=0, step=1, limit=4
  $region2: #{transformer_forward.13} parent=0 // loop_pre_header
    _
  $region3: #{transformer_forward.13} parent=0 // loop_header
    %s17 = sphi 0, %s21
    %p18 = scmp.ge.s32.totalorder %s17, 4
    %s24 = sphi 0, %s36
    %s25 = sphi 0, %s32
    %s26 = sphi 0, %s24
    %s27 = sphi 0, %s25
    %s28 = sphi 0, %s26
    %s29 = sphi 0, %s27
    %s41 = sphi 0, %s43
    %s44 = sphi 0, %s41
    %s45 = sphi 0, %s44
    %s61 = sphi 0, %s45
    %s67 = sphi 0, %s69
    %s70 = sphi 0, %s67
    %s71 = sphi 0, %s70
    %s87 = sphi 0, %s71
    %s93 = sphi 0, %s95
    %s96 = sphi 0, %s93
    %s97 = sphi 0, %s96
    %s113 = sphi 0, %s97
    %s117 = sphi 0, %s117
    %s119 = sphi 0, %s117
    %s120 = sphi 0, %s119
    %s134 = sphi 0, %s120
    %s138 = sphi 0, %s138
    %s140 = sphi 0, %s138
    %s141 = sphi 0, %s140
    %s155 = sphi 0, %s141
    %s159 = sphi 0, %s159
    %s161 = sphi 0, %s159
    %s162 = sphi 0, %s161
    %s176 = sphi 0, %s162
    %s180 = sphi 0, %s180
    %s182 = sphi 0, %s180
    %s183 = sphi 0, %s182
    %s197 = sphi 0, %s183
    %s201 = sphi 0, %s201
    %s203 = sphi 0, %s201
    %s204 = sphi 0, %s203
    %s218 = sphi 0, %s204
    %s222 = sphi 0, %s222
    %s224 = sphi 0, %s222
    %s225 = sphi 0, %s224
    %s239 = sphi 0, %s225
    %s243 = sphi 0, %s243
    %s245 = sphi 0, %s243
    %s246 = sphi 0, %s245
    %s260 = sphi 0, %s246
    %s264 = sphi 0, %s264
    %s266 = sphi 0, %s264
    %s267 = sphi 0, %s266
    %s281 = sphi 0, %s267
    %s289 = sphi 0, %s291
    %s292 = sphi 0, %s289
    %s293 = sphi 0, %s292
    %s309 = sphi 0, %s293
  $region4: #{transformer_forward.13} parent=0 // loop_header_branch
    %20 = sbr.rel (%p18) target = $region8
  $region5: #{transformer_forward.13} parent=0 // loop_body
    %s22 = ssub.s32 %s17, 1
    %s23 = ssub.s32 %s17, 2
    %s30 = sadd.s32 1, %s25
    %p31 = scmp.ge.s32.totalorder %s30, 1
    %s32 = scalar_select %p31, 0, %s30
    %s33 = sadd.s32 1, %s24
    %s34 = scalar_select %p31, %s33, %s24
    %p35 = scmp.ge.s32.totalorder %s34, 2
    %s36 = scalar_select %p35, 0, %s34
    %s37 = ssub.s32 %s24, %s36
    %s38 = ssub.s32 %s25, %s32
    %s39 = sor.u32 %s37, %s38
    %p40 = scmp.eq.s32.totalorder %s39, 0
    %s42 = sadd.s32 %s41, 1
    %s43 = scalar_select %p40, %s41, %s42
    %p46 = pneg %p40
    %p47 = scmp.eq.s32.totalorder %s17, 1
    %p48 = por %p46, %p47
    %p49 = scmp.ne.s32.totalorder %s41, %s44
    %p50 = scmp.eq.s32.totalorder %s17, 0
    %p51 = por %p49, %p50
    %p52 = scmp.ne.s32.totalorder %s41, %s44
    %p53 = scmp.eq.s32.totalorder %s22, 1
    %p54 = por %p52, %p53
    %p55 = scmp.ne.s32.totalorder %s44, %s45
    %p56 = scmp.eq.s32.totalorder %s22, 0
    %p57 = por %p55, %p56
    %p58 = scmp.ne.s32.totalorder %s44, %s45
    %p59 = scmp.eq.s32.totalorder %s23, 1
    %p60 = por %p58, %p59
    %p62 = scmp.ne.s32.totalorder %s45, %s61
    %p63 = scmp.eq.s32.totalorder %s23, 0
    %p64 = por %p62, %p63
    %s65 = ssub.s32 %s24, %s36
    %p66 = scmp.eq.s32.totalorder %s65, 0
    %s68 = sadd.s32 %s67, 1
    %s69 = scalar_select %p66, %s67, %s68
    %p72 = pneg %p66
    %p73 = scmp.eq.s32.totalorder %s17, 1
    %p74 = por %p72, %p73
    %p75 = scmp.ne.s32.totalorder %s67, %s70
    %p76 = scmp.eq.s32.totalorder %s17, 0
    %p77 = por %p75, %p76
    %p78 = scmp.ne.s32.totalorder %s67, %s70
    %p79 = scmp.eq.s32.totalorder %s22, 1
    %p80 = por %p78, %p79
    %p81 = scmp.ne.s32.totalorder %s70, %s71
    %p82 = scmp.eq.s32.totalorder %s22, 0
    %p83 = por %p81, %p82
    %p84 = scmp.ne.s32.totalorder %s70, %s71
    %p85 = scmp.eq.s32.totalorder %s23, 1
    %p86 = por %p84, %p85
    %p88 = scmp.ne.s32.totalorder %s71, %s87
    %p89 = scmp.eq.s32.totalorder %s23, 0
    %p90 = por %p88, %p89
    %s91 = ssub.s32 %s24, %s36
    %p92 = scmp.eq.s32.totalorder %s91, 0
    %s94 = sadd.s32 %s93, 1
    %s95 = scalar_select %p92, %s93, %s94
    %p98 = pneg %p92
    %p99 = scmp.eq.s32.totalorder %s17, 1
    %p100 = por %p98, %p99
    %p101 = scmp.ne.s32.totalorder %s93, %s96
    %p102 = scmp.eq.s32.totalorder %s17, 0
    %p103 = por %p101, %p102
    %p104 = scmp.ne.s32.totalorder %s93, %s96
    %p105 = scmp.eq.s32.totalorder %s22, 1
    %p106 = por %p104, %p105
    %p107 = scmp.ne.s32.totalorder %s96, %s97
    %p108 = scmp.eq.s32.totalorder %s22, 0
    %p109 = por %p107, %p108
    %p110 = scmp.ne.s32.totalorder %s96, %s97
    %p111 = scmp.eq.s32.totalorder %s23, 1
    %p112 = por %p110, %p111
    %p114 = scmp.ne.s32.totalorder %s97, %s113
    %p115 = scmp.eq.s32.totalorder %s23, 0
    %p116 = por %p114, %p115
    %s118 = sadd.s32 %s117, 1
    %p121 = scmp.eq.s32.totalorder %s17, 1
    %p122 = scmp.ne.s32.totalorder %s117, %s119
    %p123 = scmp.eq.s32.totalorder %s17, 0
    %p124 = por %p122, %p123
    %p125 = scmp.ne.s32.totalorder %s117, %s119
    %p126 = scmp.eq.s32.totalorder %s22, 1
    %p127 = por %p125, %p126
    %p128 = scmp.ne.s32.totalorder %s119, %s120
    %p129 = scmp.eq.s32.totalorder %s22, 0
    %p130 = por %p128, %p129
    %p131 = scmp.ne.s32.totalorder %s119, %s120
    %p132 = scmp.eq.s32.totalorder %s23, 1
    %p133 = por %p131, %p132
    %p135 = scmp.ne.s32.totalorder %s120, %s134
    %p136 = scmp.eq.s32.totalorder %s23, 0
    %p137 = por %p135, %p136
    %s139 = sadd.s32 %s138, 1
    %p142 = scmp.eq.s32.totalorder %s17, 1
    %p143 = scmp.ne.s32.totalorder %s138, %s140
    %p144 = scmp.eq.s32.totalorder %s17, 0
    %p145 = por %p143, %p144
    %p146 = scmp.ne.s32.totalorder %s138, %s140
    %p147 = scmp.eq.s32.totalorder %s22, 1
    %p148 = por %p146, %p147
    %p149 = scmp.ne.s32.totalorder %s140, %s141
    %p150 = scmp.eq.s32.totalorder %s22, 0
    %p151 = por %p149, %p150
    %p152 = scmp.ne.s32.totalorder %s140, %s141
    %p153 = scmp.eq.s32.totalorder %s23, 1
    %p154 = por %p152, %p153
    %p156 = scmp.ne.s32.totalorder %s141, %s155
    %p157 = scmp.eq.s32.totalorder %s23, 0
    %p158 = por %p156, %p157
    %s160 = sadd.s32 %s159, 1
    %p163 = scmp.eq.s32.totalorder %s17, 1
    %p164 = scmp.ne.s32.totalorder %s159, %s161
    %p165 = scmp.eq.s32.totalorder %s17, 0
    %p166 = por %p164, %p165
    %p167 = scmp.ne.s32.totalorder %s159, %s161
    %p168 = scmp.eq.s32.totalorder %s22, 1
    %p169 = por %p167, %p168
    %p170 = scmp.ne.s32.totalorder %s161, %s162
    %p171 = scmp.eq.s32.totalorder %s22, 0
    %p172 = por %p170, %p171
    %p173 = scmp.ne.s32.totalorder %s161, %s162
    %p174 = scmp.eq.s32.totalorder %s23, 1
    %p175 = por %p173, %p174
    %p177 = scmp.ne.s32.totalorder %s162, %s176
    %p178 = scmp.eq.s32.totalorder %s23, 0
    %p179 = por %p177, %p178
    %s181 = sadd.s32 %s180, 1
    %p184 = scmp.eq.s32.totalorder %s17, 1
    %p185 = scmp.ne.s32.totalorder %s180, %s182
    %p186 = scmp.eq.s32.totalorder %s17, 0
    %p187 = por %p185, %p186
    %p188 = scmp.ne.s32.totalorder %s180, %s182
    %p189 = scmp.eq.s32.totalorder %s22, 1
    %p190 = por %p188, %p189
    %p191 = scmp.ne.s32.totalorder %s182, %s183
    %p192 = scmp.eq.s32.totalorder %s22, 0
    %p193 = por %p191, %p192
    %p194 = scmp.ne.s32.totalorder %s182, %s183
    %p195 = scmp.eq.s32.totalorder %s23, 1
    %p196 = por %p194, %p195
    %p198 = scmp.ne.s32.totalorder %s183, %s197
    %p199 = scmp.eq.s32.totalorder %s23, 0
    %p200 = por %p198, %p199
    %s202 = sadd.s32 %s201, 1
    %p205 = scmp.eq.s32.totalorder %s17, 1
    %p206 = scmp.ne.s32.totalorder %s201, %s203
    %p207 = scmp.eq.s32.totalorder %s17, 0
    %p208 = por %p206, %p207
    %p209 = scmp.ne.s32.totalorder %s201, %s203
    %p210 = scmp.eq.s32.totalorder %s22, 1
    %p211 = por %p209, %p210
    %p212 = scmp.ne.s32.totalorder %s203, %s204
    %p213 = scmp.eq.s32.totalorder %s22, 0
    %p214 = por %p212, %p213
    %p215 = scmp.ne.s32.totalorder %s203, %s204
    %p216 = scmp.eq.s32.totalorder %s23, 1
    %p217 = por %p215, %p216
    %p219 = scmp.ne.s32.totalorder %s204, %s218
    %p220 = scmp.eq.s32.totalorder %s23, 0
    %p221 = por %p219, %p220
    %s223 = sadd.s32 %s222, 1
    %p226 = scmp.eq.s32.totalorder %s17, 1
    %p227 = scmp.ne.s32.totalorder %s222, %s224
    %p228 = scmp.eq.s32.totalorder %s17, 0
    %p229 = por %p227, %p228
    %p230 = scmp.ne.s32.totalorder %s222, %s224
    %p231 = scmp.eq.s32.totalorder %s22, 1
    %p232 = por %p230, %p231
    %p233 = scmp.ne.s32.totalorder %s224, %s225
    %p234 = scmp.eq.s32.totalorder %s22, 0
    %p235 = por %p233, %p234
    %p236 = scmp.ne.s32.totalorder %s224, %s225
    %p237 = scmp.eq.s32.totalorder %s23, 1
    %p238 = por %p236, %p237
    %p240 = scmp.ne.s32.totalorder %s225, %s239
    %p241 = scmp.eq.s32.totalorder %s23, 0
    %p242 = por %p240, %p241
    %s244 = sadd.s32 %s243, 1
    %p247 = scmp.eq.s32.totalorder %s17, 1
    %p248 = scmp.ne.s32.totalorder %s243, %s245
    %p249 = scmp.eq.s32.totalorder %s17, 0
    %p250 = por %p248, %p249
    %p251 = scmp.ne.s32.totalorder %s243, %s245
    %p252 = scmp.eq.s32.totalorder %s22, 1
    %p253 = por %p251, %p252
    %p254 = scmp.ne.s32.totalorder %s245, %s246
    %p255 = scmp.eq.s32.totalorder %s22, 0
    %p256 = por %p254, %p255
    %p257 = scmp.ne.s32.totalorder %s245, %s246
    %p258 = scmp.eq.s32.totalorder %s23, 1
    %p259 = por %p257, %p258
    %p261 = scmp.ne.s32.totalorder %s246, %s260
    %p262 = scmp.eq.s32.totalorder %s23, 0
    %p263 = por %p261, %p262
    %s265 = sadd.s32 %s264, 1
    %p268 = scmp.eq.s32.totalorder %s17, 1
    %p269 = scmp.ne.s32.totalorder %s264, %s266
    %p270 = scmp.eq.s32.totalorder %s17, 0
    %p271 = por %p269, %p270
    %p272 = scmp.ne.s32.totalorder %s264, %s266
    %p273 = scmp.eq.s32.totalorder %s22, 1
    %p274 = por %p272, %p273
    %p275 = scmp.ne.s32.totalorder %s266, %s267
    %p276 = scmp.eq.s32.totalorder %s22, 0
    %p277 = por %p275, %p276
    %p278 = scmp.ne.s32.totalorder %s266, %s267
    %p279 = scmp.eq.s32.totalorder %s23, 1
    %p280 = por %p278, %p279
    %p282 = scmp.ne.s32.totalorder %s267, %s281
    %p283 = scmp.eq.s32.totalorder %s23, 0
    %p284 = por %p282, %p283
    %s285 = ssub.s32 %s24, %s36
    %s286 = ssub.s32 %s25, %s32
    %s287 = sor.u32 %s285, %s286
    %p288 = scmp.eq.s32.totalorder %s287, 0
    %s290 = sadd.s32 %s289, 1
    %s291 = scalar_select %p288, %s289, %s290
    %p294 = pneg %p288
    %p295 = scmp.eq.s32.totalorder %s17, 1
    %p296 = por %p294, %p295
    %p297 = scmp.ne.s32.totalorder %s289, %s292
    %p298 = scmp.eq.s32.totalorder %s17, 0
    %p299 = por %p297, %p298
    %p300 = scmp.ne.s32.totalorder %s289, %s292
    %p301 = scmp.eq.s32.totalorder %s22, 1
    %p302 = por %p300, %p301
    %p303 = scmp.ne.s32.totalorder %s292, %s293
    %p304 = scmp.eq.s32.totalorder %s22, 0
    %p305 = por %p303, %p304
    %p306 = scmp.ne.s32.totalorder %s292, %s293
    %p307 = scmp.eq.s32.totalorder %s23, 1
    %p308 = por %p306, %p307
    %p310 = scmp.ne.s32.totalorder %s293, %s309
    %p311 = scmp.eq.s32.totalorder %s23, 0
    %p312 = por %p310, %p311
    %p313 = scmp.le.s32.totalorder 1, %s17
    %p314 = scmp.lt.s32.totalorder %s17, 3
    %p315 = pnand %p313, %p314
    %p316 = pneg %p315
    // Predicated region
    $region9: #{transformer_forward.13} parent=5 // pred_check
      _
    $region10: #{transformer_forward.13} parent=5 // pred_check_branch
      %318 = sbr.rel (%p315) target = $region12
    $region11: #{transformer_forward.13} parent=5 // pred_region
      %s319 = ssub.s32 %s17, 1
      // Predicated region
      $region13: #{transformer_forward.13} parent=11 // pred_check
        %p320 = pneg %p130
      $region14: #{transformer_forward.13} parent=11 // pred_check_branch
        %322 = sbr.rel (%p320) target = $region16
      $region15: #{transformer_forward.13} parent=11 // pred_region
        _
      $region16: #{transformer_forward.13} parent=11 // pred_fallthru
        _
      // Predicated region
      $region17: #{transformer_forward.13} parent=11 // pred_check
        %p323 = pneg %p151
      $region18: #{transformer_forward.13} parent=11 // pred_check_branch
        %325 = sbr.rel (%p323) target = $region20
      $region19: #{transformer_forward.13} parent=11 // pred_region
        _
      $region20: #{transformer_forward.13} parent=11 // pred_fallthru
        _
      // Predicated region
      $region21: #{transformer_forward.13} parent=11 // pred_check
        %p326 = pneg %p172
      $region22: #{transformer_forward.13} parent=11 // pred_check_branch
        %328 = sbr.rel (%p326) target = $region24
      $region23: #{transformer_forward.13} parent=11 // pred_region
        _
      $region24: #{transformer_forward.13} parent=11 // pred_fallthru
        _
      // Predicated region
      $region25: #{transformer_forward.13} parent=11 // pred_check
        %p329 = pneg %p193
      $region26: #{transformer_forward.13} parent=11 // pred_check_branch
        %331 = sbr.rel (%p329) target = $region28
      $region27: #{transformer_forward.13} parent=11 // pred_region
        _
      $region28: #{transformer_forward.13} parent=11 // pred_fallthru
        _
      // Predicated region
      $region29: #{transformer_forward.13} parent=11 // pred_check
        %p332 = pneg %p214
      $region30: #{transformer_forward.13} parent=11 // pred_check_branch
        %334 = sbr.rel (%p332) target = $region32
      $region31: #{transformer_forward.13} parent=11 // pred_region
        _
      $region32: #{transformer_forward.13} parent=11 // pred_fallthru
        _
      // Predicated region
      $region33: #{transformer_forward.13} parent=11 // pred_check
        %p335 = pneg %p235
      $region34: #{transformer_forward.13} parent=11 // pred_check_branch
        %337 = sbr.rel (%p335) target = $region36
      $region35: #{transformer_forward.13} parent=11 // pred_region
        _
      $region36: #{transformer_forward.13} parent=11 // pred_fallthru
        _
      // Predicated region
      $region37: #{transformer_forward.13} parent=11 // pred_check
        %p338 = pneg %p256
      $region38: #{transformer_forward.13} parent=11 // pred_check_branch
        %340 = sbr.rel (%p338) target = $region40
      $region39: #{transformer_forward.13} parent=11 // pred_region
        _
      $region40: #{transformer_forward.13} parent=11 // pred_fallthru
        _
      // Predicated region
      $region41: #{transformer_forward.13} parent=11 // pred_check
        %p341 = pneg %p277
      $region42: #{transformer_forward.13} parent=11 // pred_check_branch
        %343 = sbr.rel (%p341) target = $region44
      $region43: #{transformer_forward.13} parent=11 // pred_region
        _
      $region44: #{transformer_forward.13} parent=11 // pred_fallthru
        _
    $region12: #{transformer_forward.13} parent=5 // pred_fallthru
      _
    %p344 = scmp.lt.s32.totalorder %s17, 2
    // Predicated region
    $region45: #{transformer_forward.13} parent=5 // pred_check
      %p345 = pneg %p344
    $region46: #{transformer_forward.13} parent=5 // pred_check_branch
      %347 = sbr.rel (%p345) target = $region48
    $region47: #{transformer_forward.13} parent=5 // pred_region
      // Predicated region
      $region49: #{transformer_forward.13} parent=47 // pred_check
        %p348 = pneg %p51
      $region50: #{transformer_forward.13} parent=47 // pred_check_branch
        %350 = sbr.rel (%p348) target = $region52
      $region51: #{transformer_forward.13} parent=47 // pred_region
        %s351 = smul.u32 2, %s25
        %p352 = scmp.lt.s32.totalorder %s24, 1
        %s353 = scalar_select %p352, %s24, 1
        %p354 = scmp.lt.s32.totalorder %s351, 1
        %s355 = scalar_select %p354, %s351, 1
        %s356 = smul.addr %s353, 2
        %s357 = sadd.s32 %s355, %s356
        %s358 = smul.addr %s357, 8
        %s359 = scalar_lea.vmem %s0, %s358
        %s360 = smul.u32 2, %s25
      $region52: #{transformer_forward.13} parent=47 // pred_fallthru
        _
      // Predicated region
      $region53: #{transformer_forward.13} parent=47 // pred_check
        %p361 = pneg %p77
      $region54: #{transformer_forward.13} parent=47 // pred_check_branch
        %363 = sbr.rel (%p361) target = $region56
      $region55: #{transformer_forward.13} parent=47 // pred_region
        %p364 = scmp.lt.s32.totalorder %s24, 1
        %s365 = scalar_select %p364, %s24, 1
        %s366 = smul.addr %s365, 2
        %s367 = smul.addr %s366, 8
        %s368 = scalar_lea.vmem %s1, %s367
      $region56: #{transformer_forward.13} parent=47 // pred_fallthru
        _
      // Predicated region
      $region57: #{transformer_forward.13} parent=47 // pred_check
        %p369 = pneg %p103
      $region58: #{transformer_forward.13} parent=47 // pred_check_branch
        %371 = sbr.rel (%p369) target = $region60
      $region59: #{transformer_forward.13} parent=47 // pred_region
        %p372 = scmp.lt.s32.totalorder %s24, 1
        %s373 = scalar_select %p372, %s24, 1
        %s374 = scalar_lea.vmem %s2, %s373
      $region60: #{transformer_forward.13} parent=47 // pred_fallthru
        _
    $region48: #{transformer_forward.13} parent=5 // pred_fallthru
      _
    %p375 = scmp.le.s32.totalorder 1, %s17
    %p376 = scmp.lt.s32.totalorder %s17, 3
    %p377 = pnand %p375, %p376
    %p378 = pneg %p377
    // Predicated region
    $region61: #{transformer_forward.13} parent=5 // pred_check
      _
    $region62: #{transformer_forward.13} parent=5 // pred_check_branch
      %380 = sbr.rel (%p377) target = $region64
    $region63: #{transformer_forward.13} parent=5 // pred_region
      %s381 = ssub.s32 %s17, 1
      %s382 = smul.u32 2, %s27
      %p383 = scmp.lt.s32.totalorder %s26, 1
      %s384 = scalar_select %p383, %s26, 1
      %p385 = scmp.lt.s32.totalorder %s382, 1
      %s386 = scalar_select %p385, %s382, 1
      %s387 = smul.addr %s384, 2
      %s388 = sadd.s32 %s386, %s387
      %s389 = smul.addr %s388, 8
      %s390 = scalar_lea.vmem %s0, %s389
      %p391 = pneg %p57
      %p392 = pneg %p54
      %p393 = scmp.lt.s32.totalorder %s26, 1
      %s394 = scalar_select %p393, %s26, 1
      %s395 = smul.addr %s394, 2
      %s396 = smul.addr %s395, 8
      %s397 = scalar_lea.vmem %s1, %s396
      %p398 = pneg %p83
      %p399 = pneg %p80
      %p400 = scmp.lt.s32.totalorder %s26, 1
      %s401 = scalar_select %p400, %s26, 1
      %s402 = scalar_lea.vmem %s2, %s401
      %p403 = pneg %p109
      %p404 = pneg %p106
      %p405 = pneg %p130
      %p406 = pneg %p127
      %p407 = pneg %p151
      %p408 = pneg %p148
      %p409 = pneg %p172
      %p410 = pneg %p169
      %p411 = pneg %p193
      %p412 = pneg %p190
      %p413 = pneg %p214
      %p414 = pneg %p211
      %p415 = pneg %p235
      %p416 = pneg %p232
      %p417 = pneg %p256
      %p418 = pneg %p253
      %p419 = pneg %p277
      %p420 = pneg %p274
      %p421 = pneg %p305
      %p422 = pneg %p302
      %s423 = smul.u32 2, %s27
      %p424 = scmp.lt.s32.totalorder %s26, 1
      %s425 = scalar_select %p424, %s26, 1
      %p426 = scmp.lt.s32.totalorder %s423, 1
      %s427 = scalar_select %p426, %s423, 1
      %s428 = smul.addr %s425, 2
      %s429 = sadd.s32 %s427, %s428
      %s430 = smul.addr %s429, 8
      %s431 = scalar_lea.vmem %s11, %s430
      %s432 = smul.u32 2, %s27
      %p433 = scmp.lt.s32.totalorder %s26, 1
      %s434 = scalar_select %p433, %s26, 1
      %p435 = scmp.lt.s32.totalorder %s432, 1
      %s436 = scalar_select %p435, %s432, 1
      %s437 = smul.addr %s434, 2
      %s438 = sadd.s32 %s436, %s437
      %s439 = smul.addr %s438, 8
      %s440 = scalar_lea.vmem %s0, %s439
      %s441 = smul.u32 2, %s27
      %p442 = scmp.lt.s32.totalorder %s26, 1
      %s443 = scalar_select %p442, %s26, 1
      %s444 = smul.addr %s443, 2
      %s445 = smul.addr %s444, 8
      %s446 = scalar_lea.vmem %s1, %s445
      %p447 = scmp.lt.s32.totalorder %s26, 1
      %s448 = scalar_select %p447, %s26, 1
      %s449 = scalar_lea.vmem %s2, %s448
      %s450 = smul.u32 2, %s27
      %p451 = scmp.lt.s32.totalorder %s26, 1
      %s452 = scalar_select %p451, %s26, 1
      %p453 = scmp.lt.s32.totalorder %s450, 1
      %s454 = scalar_select %p453, %s450, 1
      %s455 = smul.addr %s452, 2
      %s456 = sadd.s32 %s454, %s455
      %s457 = smul.addr %s456, 8
      %s458 = scalar_lea.vmem %s11, %s457
      %s459 = smul.u32 2, %s27
      %v461 = vld [vmem:[%s440] sm:$0xff]
      %v462 = vld [vmem:[%s440 + $0x8] sm:$0x3]
      %v463 = vld [vmem:[%s446] sm:$0xff]
      %v464 = vld [vmem:[%s446 + $0x8] sm:$0x3]
      %v465 = vpack.c.bf16 %v462, %v461
      %v466 = vld [vmem:[%s3] sm:$0xf]
      %v467 = vld [vmem:[%s3 + $0x4] sm:$0xf]
      %v468 = vld [vmem:[%s3 + $0x8] sm:$0xf]
      %v469 = vld [vmem:[%s3 + $0xc] sm:$0xf]
      %v470 = vld [vmem:[%s4] sm:$0x1]
      %v472 = vlaneseq
      %v473 = vshrl.u32 %v472, 7
      %v474 = vsub.s32 0, %v473
      %v475 = vrot.slane %v470, %v474
      %v481 = vunpack.c.l.b16 %v466
      %v482 = vunpack.c.l.b16 %v467
      %v483 = vunpack.c.l.b16 %v468
      %v484 = vunpack.c.l.b16 %v469
      %v485 = vpack.c.b16 %v482, %v481
      %v486 = vpack.c.b16 %v484, %v483
      %vm489 = vcmask 261120
      %v491 = vsel %vm489, %v465, 0
      %493 = vmatprep.subr.bf16.mxu0 0
      %494 = vmatpush1.bf16.msra.mxu0 %v485
      %495 = vmatprep.subr.bf16.mxu0 0
      %496 = vmatpush1.bf16.msra.mxu0 %v486
      %497 = vmatprep.subr.bf16.mxu0 0
      %498 = vmatpush1.bf16.msra.mxu0 0
      %499 = vmatprep.subr.bf16.mxu0 0
      %500 = vmatpush1.bf16.msra.mxu0 0
      %501 = vmatprep.subr.bf16.mxu0 0
      %502 = vmatpush1.bf16.msra.mxu0 0
      %503 = vmatprep.subr.bf16.mxu0 0
      %504 = vmatpush1.bf16.msra.mxu0 0
      %505 = vmatprep.subr.bf16.mxu0 0
      %506 = vmatpush1.bf16.msra.mxu0 0
      %507 = vmatprep.subr.bf16.mxu0 0
      %508 = vmatpush1.bf16.msra.mxu0 0
      %509 = vmatprep.subr.bf16.mxu0 0
      %510 = vmatpush1.bf16.msra.mxu0 0
      %511 = vmatprep.subr.bf16.mxu0 0
      %512 = vmatpush1.bf16.msra.mxu0 0
      %513 = vmatprep.subr.bf16.mxu0 0
      %514 = vmatpush1.bf16.msra.mxu0 0
      %515 = vmatprep.subr.bf16.mxu0 0
      %516 = vmatpush1.bf16.msra.mxu0 0
      %517 = vmatprep.subr.bf16.mxu0 0
      %518 = vmatpush1.bf16.msra.mxu0 0
      %519 = vmatprep.subr.bf16.mxu0 0
      %520 = vmatpush1.bf16.msra.mxu0 0
      %521 = vmatprep.subr.bf16.mxu0 0
      %522 = vmatpush1.bf16.msra.mxu0 0
      %523 = vmatprep.subr.bf16.mxu0 0
      %524 = vmatpush1.bf16.msra.mxu0 0
      %525 = vmatprep.mubr.bf16.mxu0 0
      %526 = vmatmul.mubr.bf16.gmra.mrb[0].mxu0 %v491
      %v527 = vpop.f32.mrb[0].mxu0
      %v528 = vadd.f32 %v475, %v527
      %v529 = vpop.f32.mrb[0].mxu0
      %v530 = vpop.f32.mrb[0].mxu0
      %v531 = vadd.f32 %v475, %v530
      %v532 = vpop.f32.mrb[0].mxu0
      %533 = vdwg.mxu0
      %v534 = vmul.f32 %v528, 0.35355338
      %v535 = vmul.f32 %v531, 0.35355338
      %v536 = vpack.c.bf16 %v464, %v463
      %v537 = vld [vmem:[%s5] sm:$0xf]
      %v538 = vld [vmem:[%s5 + $0x4] sm:$0xf]
      %v539 = vld [vmem:[%s5 + $0x8] sm:$0xf]
      %v540 = vld [vmem:[%s5 + $0xc] sm:$0xf]
      %v541 = vld [vmem:[%s6] sm:$0x1]
      %v543 = vlaneseq
      %v544 = vshrl.u32 %v543, 7
      %v545 = vsub.s32 0, %v544
      %v546 = vrot.slane %v541, %v545
      %v552 = vunpack.c.l.b16 %v537
      %v553 = vunpack.c.l.b16 %v538
      %v554 = vunpack.c.l.b16 %v539
      %v555 = vunpack.c.l.b16 %v540
      %v556 = vpack.c.b16 %v553, %v552
      %v557 = vpack.c.b16 %v555, %v554
      %v561 = vsel %vm489, %v536, 0
      %563 = vmatprep.subr.bf16.mxu0 0
      %564 = vmatpush1.bf16.msra.mxu0 %v556
      %565 = vmatprep.subr.bf16.mxu0 0
      %566 = vmatpush1.bf16.msra.mxu0 %v557
      %567 = vmatprep.subr.bf16.mxu0 0
      %568 = vmatpush1.bf16.msra.mxu0 0
      %569 = vmatprep.subr.bf16.mxu0 0
      %570 = vmatpush1.bf16.msra.mxu0 0
      %571 = vmatprep.subr.bf16.mxu0 0
      %572 = vmatpush1.bf16.msra.mxu0 0
      %573 = vmatprep.subr.bf16.mxu0 0
      %574 = vmatpush1.bf16.msra.mxu0 0
      %575 = vmatprep.subr.bf16.mxu0 0
      %576 = vmatpush1.bf16.msra.mxu0 0
      %577 = vmatprep.subr.bf16.mxu0 0
      %578 = vmatpush1.bf16.msra.mxu0 0
      %579 = vmatprep.subr.bf16.mxu0 0
      %580 = vmatpush1.bf16.msra.mxu0 0
      %581 = vmatprep.subr.bf16.mxu0 0
      %582 = vmatpush1.bf16.msra.mxu0 0
      %583 = vmatprep.subr.bf16.mxu0 0
      %584 = vmatpush1.bf16.msra.mxu0 0
      %585 = vmatprep.subr.bf16.mxu0 0
      %586 = vmatpush1.bf16.msra.mxu0 0
      %587 = vmatprep.subr.bf16.mxu0 0
      %588 = vmatpush1.bf16.msra.mxu0 0
      %589 = vmatprep.subr.bf16.mxu0 0
      %590 = vmatpush1.bf16.msra.mxu0 0
      %591 = vmatprep.subr.bf16.mxu0 0
      %592 = vmatpush1.bf16.msra.mxu0 0
      %593 = vmatprep.subr.bf16.mxu0 0
      %594 = vmatpush1.bf16.msra.mxu0 0
      %595 = vmatprep.mubr.bf16.mxu0 0
      %596 = vmatmul.mubr.bf16.gmra.mrb[0].mxu0 %v561
      %v597 = vpop.f32.mrb[0].mxu0
      %v598 = vadd.f32 %v546, %v597
      %v599 = vpop.f32.mrb[0].mxu0
      %v600 = vpop.f32.mrb[0].mxu0
      %v601 = vadd.f32 %v546, %v600
      %v602 = vpop.f32.mrb[0].mxu0
      %603 = vdwg.mxu0
      %v604 = vld [vmem:[%s449] sm:$0x1]
      %v605 = vpack.c.bf16 %v535, %v534
      %v606 = vpack.c.bf16 %v601, %v598
      %v608 = vlaneseq
      %v609 = vshrl.u32 %v608, 7
      %v610 = vsub.s32 0, %v609
      %v611 = vrot.slane %v604, %v610
      %vm613 = vcmask 64512
      %v615 = vsel %vm613, %v605, 0
      %v618 = vsel %vm613, %v606, 0
      %620 = vmatprep.subr.bf16.mxu0 0
      %621 = vmatpush1.bf16.xpose.msra.mxu0 %v618
      %622 = vmatprep.subr.bf16.mxu0 0
      %623 = vmatpush1.bf16.xpose.msra.mxu0 0
      %624 = vmatprep.subr.bf16.mxu0 0
      %625 = vmatpush1.bf16.xpose.msra.mxu0 0
      %626 = vmatprep.subr.bf16.mxu0 0
      %627 = vmatpush1.bf16.xpose.msra.mxu0 0
      %628 = vmatprep.subr.bf16.mxu0 0
      %629 = vmatpush1.bf16.xpose.msra.mxu0 0
      %630 = vmatprep.subr.bf16.mxu0 0
      %631 = vmatpush1.bf16.xpose.msra.mxu0 0
      %632 = vmatprep.subr.bf16.mxu0 0
      %633 = vmatpush1.bf16.xpose.msra.mxu0 0
      %634 = vmatprep.subr.bf16.mxu0 0
      %635 = vmatpush1.bf16.xpose.msra.mxu0 0
      %636 = vmatprep.subr.bf16.mxu0 0
      %637 = vmatpush1.bf16.xpose.msra.mxu0 0
      %638 = vmatprep.subr.bf16.mxu0 0
      %639 = vmatpush1.bf16.xpose.msra.mxu0 0
      %640 = vmatprep.subr.bf16.mxu0 0
      %641 = vmatpush1.bf16.xpose.msra.mxu0 0
      %642 = vmatprep.subr.bf16.mxu0 0
      %643 = vmatpush1.bf16.xpose.msra.mxu0 0
      %644 = vmatprep.subr.bf16.mxu0 0
      %645 = vmatpush1.bf16.xpose.msra.mxu0 0
      %646 = vmatprep.subr.bf16.mxu0 0
      %647 = vmatpush1.bf16.xpose.msra.mxu0 0
      %648 = vmatprep.subr.bf16.mxu0 0
      %649 = vmatpush1.bf16.xpose.msra.mxu0 0
      %650 = vmatprep.subr.bf16.mxu0 0
      %651 = vmatpush1.bf16.xpose.msra.mxu0 0
      %652 = vmatprep.mubr.bf16.mxu0 0
      %653 = vmatmul.mubr.bf16.gmra.mrb[0].mxu0 %v615
      %v654 = vpop.f32.mrb[0].mxu0
      %v655 = vadd.f32 %v611, %v654
      %v656 = vpop.f32.mrb[0].mxu0
      %v657 = vpop.f32.mrb[0].mxu0
      %v658 = vadd.f32 %v611, %v657
      %v659 = vpop.f32.mrb[0].mxu0
      %660 = vdwg.mxu0
      %vm661 = vcmask 80896
      %v662 = vsel %vm661, %v655, -inf
      %663 = vmax.xlane.f32.xlu0 %v662
      %v664 = vpop.xlane.xlu0 %663
      %vm665 = vcmask 74752
      %v666 = vsel %vm665, %v658, -inf
      %667 = vmax.xlane.f32.xlu0 %v666
      %v668 = vpop.xlane.xlu0 %667
      %v669 = vsub.f32 %v655, %v664
      %v670 = vsub.f32 %v658, %v668
      %v671 = vmul.f32 %v669, 1.442695
      %v672 = vpow.pop %v671
      %v673 = vmul.f32 %v670, 1.442695
      %v674 = vpow.pop %v673
      %v675 = vsel %vm661, %v672, 0.0
      %676 = vadd.xlane.f32.xlu0 %v675
      %v677 = vpop.xlane.xlu0 %676
      %v678 = vsel %vm665, %v674, 0.0
      %679 = vadd.xlane.f32.xlu0 %v678
      %v680 = vpop.xlane.xlu0 %679
      %v681 = vpack.c.bf16 %v674, %v672
      %683 = vrot.lane.b32.xlu0 %v606, 96
      %v684 = vpop.permute.xlu0 %683
      %v686 = vsel %vm661, %v681, 0
      %vm688 = vcmask 1044480
      %v690 = vsel %vm688, %v684, 0
      %692 = vmatprep.subr.bf16.mxu0 0
      %693 = vmatpush1.bf16.msra.mxu0 %v690
      %694 = vmatprep.subr.bf16.mxu0 0
      %695 = vmatpush1.bf16.msra.mxu0 0
      %696 = vmatprep.subr.bf16.mxu0 0
      %697 = vmatpush1.bf16.msra.mxu0 0
      %698 = vmatprep.subr.bf16.mxu0 0
      %699 = vmatpush1.bf16.msra.mxu0 0
      %700 = vmatprep.subr.bf16.mxu0 0
      %701 = vmatpush1.bf16.msra.mxu0 0
      %702 = vmatprep.subr.bf16.mxu0 0
      %703 = vmatpush1.bf16.msra.mxu0 0
      %704 = vmatprep.subr.bf16.mxu0 0
      %705 = vmatpush1.bf16.msra.mxu0 0
      %706 = vmatprep.subr.bf16.mxu0 0
      %707 = vmatpush1.bf16.msra.mxu0 0
      %708 = vmatprep.subr.bf16.mxu0 0
      %709 = vmatpush1.bf16.msra.mxu0 0
      %710 = vmatprep.subr.bf16.mxu0 0
      %711 = vmatpush1.bf16.msra.mxu0 0
      %712 = vmatprep.subr.bf16.mxu0 0
      %713 = vmatpush1.bf16.msra.mxu0 0
      %714 = vmatprep.subr.bf16.mxu0 0
      %715 = vmatpush1.bf16.msra.mxu0 0
      %716 = vmatprep.subr.bf16.mxu0 0
      %717 = vmatpush1.bf16.msra.mxu0 0
      %718 = vmatprep.subr.bf16.mxu0 0
      %719 = vmatpush1.bf16.msra.mxu0 0
      %720 = vmatprep.subr.bf16.mxu0 0
      %721 = vmatpush1.bf16.msra.mxu0 0
      %722 = vmatprep.subr.bf16.mxu0 0
      %723 = vmatpush1.bf16.msra.mxu0 0
      %724 = vmatprep.mubr.bf16.mxu0 0
      %725 = vmatmul.mubr.bf16.gmra.mrb[0].mxu0 %v686
      %v726 = vpop.f32.mrb[0].mxu0
      %v727 = vadd.f32 0.0, %v726
      %v728 = vpop.f32.mrb[0].mxu0
      %v729 = vpop.f32.mrb[0].mxu0
      %v730 = vadd.f32 0.0, %v729
      %v731 = vpop.f32.mrb[0].mxu0
      %732 = vdwg.mxu0
      %v733 = vrcp.pop %v677
      %v734 = vrcp.pop %v680
      %v735 = vmul.f32 %v727, %v733
      %v736 = vmul.f32 %v730, %v734
      %v737 = vpack.c.bf16 %v736, %v735
      %v738 = vld [vmem:[%s7] sm:$0xf]
      %740 = vrot.lane.b32.xlu0 %v605, 120
      %v741 = vpop.permute.xlu0 %740
      %742 = vrot.lane.b32.xlu0 %v606, 120
      %v743 = vpop.permute.xlu0 %742
      %v745 = vsel %vm613, %v741, 0
      %v748 = vsel %vm613, %v743, 0
      %750 = vmatprep.subr.bf16.mxu0 0
      %751 = vmatpush1.bf16.xpose.msra.mxu0 %v748
      %752 = vmatprep.subr.bf16.mxu0 0
      %753 = vmatpush1.bf16.xpose.msra.mxu0 0
      %754 = vmatprep.subr.bf16.mxu0 0
      %755 = vmatpush1.bf16.xpose.msra.mxu0 0
      %756 = vmatprep.subr.bf16.mxu0 0
      %757 = vmatpush1.bf16.xpose.msra.mxu0 0
      %758 = vmatprep.subr.bf16.mxu0 0
      %759 = vmatpush1.bf16.xpose.msra.mxu0 0
      %760 = vmatprep.subr.bf16.mxu0 0
      %761 = vmatpush1.bf16.xpose.msra.mxu0 0
      %762 = vmatprep.subr.bf16.mxu0 0
      %763 = vmatpush1.bf16.xpose.msra.mxu0 0
      %764 = vmatprep.subr.bf16.mxu0 0
      %765 = vmatpush1.bf16.xpose.msra.mxu0 0
      %766 = vmatprep.subr.bf16.mxu0 0
      %767 = vmatpush1.bf16.xpose.msra.mxu0 0
      %768 = vmatprep.subr.bf16.mxu0 0
      %769 = vmatpush1.bf16.xpose.msra.mxu0 0
      %770 = vmatprep.subr.bf16.mxu0 0
      %771 = vmatpush1.bf16.xpose.msra.mxu0 0
      %772 = vmatprep.subr.bf16.mxu0 0
      %773 = vmatpush1.bf16.xpose.msra.mxu0 0
      %774 = vmatprep.subr.bf16.mxu0 0
      %775 = vmatpush1.bf16.xpose.msra.mxu0 0
      %776 = vmatprep.subr.bf16.mxu0 0
      %777 = vmatpush1.bf16.xpose.msra.mxu0 0
      %778 = vmatprep.subr.bf16.mxu0 0
      %779 = vmatpush1.bf16.xpose.msra.mxu0 0
      %780 = vmatprep.subr.bf16.mxu0 0
      %781 = vmatpush1.bf16.xpose.msra.mxu0 0
      %782 = vmatprep.mubr.bf16.mxu0 0
      %783 = vmatmul.mubr.bf16.gmra.mrb[0].mxu0 %v745
      %v784 = vpop.f32.mrb[0].mxu0
      %v785 = vadd.f32 %v611, %v784
      %v786 = vpop.f32.mrb[0].mxu0
      %v787 = vpop.f32.mrb[0].mxu0
      %v788 = vadd.f32 %v611, %v787
      %v789 = vpop.f32.mrb[0].mxu0
      %790 = vdwg.mxu0
      %v791 = vsel %vm661, %v785, -inf
      %792 = vmax.xlane.f32.xlu0 %v791
      %v793 = vpop.xlane.xlu0 %792
      %v794 = vsel %vm665, %v788, -inf
      %795 = vmax.xlane.f32.xlu0 %v794
      %v796 = vpop.xlane.xlu0 %795
      %v797 = vsub.f32 %v785, %v793
      %v798 = vsub.f32 %v788, %v796
      %v799 = vmul.f32 %v797, 1.442695
      %v800 = vpow.pop %v799
      %v801 = vmul.f32 %v798, 1.442695
      %v802 = vpow.pop %v801
      %v803 = vsel %vm661, %v800, 0.0
      %804 = vadd.xlane.f32.xlu0 %v803
      %v805 = vpop.xlane.xlu0 %804
      %v806 = vsel %vm665, %v802, 0.0
      %807 = vadd.xlane.f32.xlu0 %v806
      %v808 = vpop.xlane.xlu0 %807
      %v809 = vpack.c.bf16 %v802, %v800
      %810 = vrot.lane.b32.xlu0 %v606, 88
      %v811 = vpop.permute.xlu0 %810
      %v813 = vsel %vm661, %v809, 0
      %v816 = vsel %vm688, %v811, 0
      %818 = vmatprep.subr.bf16.mxu0 0
      %819 = vmatpush1.bf16.msra.mxu0 %v816
      %820 = vmatprep.subr.bf16.mxu0 0
      %821 = vmatpush1.bf16.msra.mxu0 0
      %822 = vmatprep.subr.bf16.mxu0 0
      %823 = vmatpush1.bf16.msra.mxu0 0
      %824 = vmatprep.subr.bf16.mxu0 0
      %825 = vmatpush1.bf16.msra.mxu0 0
      %826 = vmatprep.subr.bf16.mxu0 0
      %827 = vmatpush1.bf16.msra.mxu0 0
      %828 = vmatprep.subr.bf16.mxu0 0
      %829 = vmatpush1.bf16.msra.mxu0 0
      %830 = vmatprep.subr.bf16.mxu0 0
      %831 = vmatpush1.bf16.msra.mxu0 0
      %832 = vmatprep.subr.bf16.mxu0 0
      %833 = vmatpush1.bf16.msra.mxu0 0
      %834 = vmatprep.subr.bf16.mxu0 0
      %835 = vmatpush1.bf16.msra.mxu0 0
      %836 = vmatprep.subr.bf16.mxu0 0
      %837 = vmatpush1.bf16.msra.mxu0 0
      %838 = vmatprep.subr.bf16.mxu0 0
      %839 = vmatpush1.bf16.msra.mxu0 0
      %840 = vmatprep.subr.bf16.mxu0 0
      %841 = vmatpush1.bf16.msra.mxu0 0
      %842 = vmatprep.subr.bf16.mxu0 0
      %843 = vmatpush1.bf16.msra.mxu0 0
      %844 = vmatprep.subr.bf16.mxu0 0
      %845 = vmatpush1.bf16.msra.mxu0 0
      %846 = vmatprep.subr.bf16.mxu0 0
      %847 = vmatpush1.bf16.msra.mxu0 0
      %848 = vmatprep.subr.bf16.mxu0 0
      %849 = vmatpush1.bf16.msra.mxu0 0
      %850 = vmatprep.mubr.bf16.mxu0 0
      %851 = vmatmul.mubr.bf16.gmra.mrb[0].mxu0 %v813
      %v852 = vpop.f32.mrb[0].mxu0
      %v853 = vadd.f32 0.0, %v852
      %v854 = vpop.f32.mrb[0].mxu0
      %v855 = vpop.f32.mrb[0].mxu0
      %v856 = vadd.f32 0.0, %v855
      %v857 = vpop.f32.mrb[0].mxu0
      %858 = vdwg.mxu0
      %v859 = vrcp.pop %v805
      %v860 = vrcp.pop %v808
      %v861 = vmul.f32 %v853, %v859
      %v862 = vmul.f32 %v856, %v860
      %v863 = vpack.c.bf16 %v862, %v861
      %s864 = scalar_lea.vmem %s7, 4
      %v865 = vld [vmem:[%s864] sm:$0xf]
      %v867 = vsel %vm613, %v863, 0
      %vm869 = vcmask 1043456
      %v871 = vsel %vm869, %v865, 0
      %873 = vmatprep.subr.bf16.mxu0 0
      %874 = vmatpush1.bf16.msra.mxu0 %v871
      %875 = vmatprep.subr.bf16.mxu0 0
      %876 = vmatpush1.bf16.msra.mxu0 0
      %877 = vmatprep.subr.bf16.mxu0 0
      %878 = vmatpush1.bf16.msra.mxu0 0
      %879 = vmatprep.subr.bf16.mxu0 0
      %880 = vmatpush1.bf16.msra.mxu0 0
      %881 = vmatprep.subr.bf16.mxu0 0
      %882 = vmatpush1.bf16.msra.mxu0 0
      %883 = vmatprep.subr.bf16.mxu0 0
      %884 = vmatpush1.bf16.msra.mxu0 0
      %885 = vmatprep.subr.bf16.mxu0 0
      %886 = vmatpush1.bf16.msra.mxu0 0
      %887 = vmatprep.subr.bf16.mxu0 0
      %888 = vmatpush1.bf16.msra.mxu0 0
      %889 = vmatprep.subr.bf16.mxu0 0
      %890 = vmatpush1.bf16.msra.mxu0 0
      %891 = vmatprep.subr.bf16.mxu0 0
      %892 = vmatpush1.bf16.msra.mxu0 0
      %893 = vmatprep.subr.bf16.mxu0 0
      %894 = vmatpush1.bf16.msra.mxu0 0
      %895 = vmatprep.subr.bf16.mxu0 0
      %896 = vmatpush1.bf16.msra.mxu0 0
      %897 = vmatprep.subr.bf16.mxu0 0
      %898 = vmatpush1.bf16.msra.mxu0 0
      %899 = vmatprep.subr.bf16.mxu0 0
      %900 = vmatpush1.bf16.msra.mxu0 0
      %901 = vmatprep.subr.bf16.mxu0 0
      %902 = vmatpush1.bf16.msra.mxu0 0
      %903 = vmatprep.subr.bf16.mxu0 0
      %904 = vmatpush1.bf16.msra.mxu0 0
      %905 = vmatprep.mubr.bf16.mxu0 0
      %906 = vmatmul.mubr.bf16.gmra.mrb[0].mxu0 %v867
      %v907 = vpop.f32.mrb[0].mxu0
      %v908 = vadd.f32 0.0, %v907
      %v909 = vpop.f32.mrb[0].mxu0
      %v910 = vpop.f32.mrb[0].mxu0
      %v911 = vadd.f32 0.0, %v910
      %v912 = vpop.f32.mrb[0].mxu0
      %913 = vdwg.mxu0
      %v915 = vsel %vm613, %v737, 0
      %v918 = vsel %vm869, %v738, 0
      %920 = vmatprep.subr.bf16.mxu0 0
      %921 = vmatpush1.bf16.msra.mxu0 %v918
      %922 = vmatprep.subr.bf16.mxu0 0
      %923 = vmatpush1.bf16.msra.mxu0 0
      %924 = vmatprep.subr.bf16.mxu0 0
      %925 = vmatpush1.bf16.msra.mxu0 0
      %926 = vmatprep.subr.bf16.mxu0 0
      %927 = vmatpush1.bf16.msra.mxu0 0
      %928 = vmatprep.subr.bf16.mxu0 0
      %929 = vmatpush1.bf16.msra.mxu0 0
      %930 = vmatprep.subr.bf16.mxu0 0
      %931 = vmatpush1.bf16.msra.mxu0 0
      %932 = vmatprep.subr.bf16.mxu0 0
      %933 = vmatpush1.bf16.msra.mxu0 0
      %934 = vmatprep.subr.bf16.mxu0 0
      %935 = vmatpush1.bf16.msra.mxu0 0
      %936 = vmatprep.subr.bf16.mxu0 0
      %937 = vmatpush1.bf16.msra.mxu0 0
      %938 = vmatprep.subr.bf16.mxu0 0
      %939 = vmatpush1.bf16.msra.mxu0 0
      %940 = vmatprep.subr.bf16.mxu0 0
      %941 = vmatpush1.bf16.msra.mxu0 0
      %942 = vmatprep.subr.bf16.mxu0 0
      %943 = vmatpush1.bf16.msra.mxu0 0
      %944 = vmatprep.subr.bf16.mxu0 0
      %945 = vmatpush1.bf16.msra.mxu0 0
      %946 = vmatprep.subr.bf16.mxu0 0
      %947 = vmatpush1.bf16.msra.mxu0 0
      %948 = vmatprep.subr.bf16.mxu0 0
      %949 = vmatpush1.bf16.msra.mxu0 0
      %950 = vmatprep.subr.bf16.mxu0 0
      %951 = vmatpush1.bf16.msra.mxu0 0
      %952 = vmatprep.mubr.bf16.mxu0 0
      %953 = vmatmul.mubr.bf16.gmra.mrb[0].mxu0 %v915
      %v954 = vpop.f32.mrb[0].mxu0
      %v955 = vadd.f32 %v908, %v954
      %v956 = vpop.f32.mrb[0].mxu0
      %v957 = vpop.f32.mrb[0].mxu0
      %v958 = vadd.f32 %v911, %v957
      %v959 = vpop.f32.mrb[0].mxu0
      %960 = vdwg.mxu0
      %961 = vrot.lane.b32.xlu0 %v605, 112
      %v962 = vpop.permute.xlu0 %961
      %963 = vrot.lane.b32.xlu0 %v606, 112
      %v964 = vpop.permute.xlu0 %963
      %v966 = vsel %vm613, %v962, 0
      %v969 = vsel %vm613, %v964, 0
      %971 = vmatprep.subr.bf16.mxu0 0
      %972 = vmatpush1.bf16.xpose.msra.mxu0 %v969
      %973 = vmatprep.subr.bf16.mxu0 0
      %974 = vmatpush1.bf16.xpose.msra.mxu0 0
      %975 = vmatprep.subr.bf16.mxu0 0
      %976 = vmatpush1.bf16.xpose.msra.mxu0 0
      %977 = vmatprep.subr.bf16.mxu0 0
      %978 = vmatpush1.bf16.xpose.msra.mxu0 0
      %979 = vmatprep.subr.bf16.mxu0 0
      %980 = vmatpush1.bf16.xpose.msra.mxu0 0
      %981 = vmatprep.subr.bf16.mxu0 0
      %982 = vmatpush1.bf16.xpose.msra.mxu0 0
      %983 = vmatprep.subr.bf16.mxu0 0
      %984 = vmatpush1.bf16.xpose.msra.mxu0 0
      %985 = vmatprep.subr.bf16.mxu0 0
      %986 = vmatpush1.bf16.xpose.msra.mxu0 0
      %987 = vmatprep.subr.bf16.mxu0 0
      %988 = vmatpush1.bf16.xpose.msra.mxu0 0
      %989 = vmatprep.subr.bf16.mxu0 0
      %990 = vmatpush1.bf16.xpose.msra.mxu0 0
      %991 = vmatprep.subr.bf16.mxu0 0
      %992 = vmatpush1.bf16.xpose.msra.mxu0 0
      %993 = vmatprep.subr.bf16.mxu0 0
      %994 = vmatpush1.bf16.xpose.msra.mxu0 0
      %995 = vmatprep.subr.bf16.mxu0 0
      %996 = vmatpush1.bf16.xpose.msra.mxu0 0
      %997 = vmatprep.subr.bf16.mxu0 0
      %998 = vmatpush1.bf16.xpose.msra.mxu0 0
      %999 = vmatprep.subr.bf16.mxu0 0
      %1000 = vmatpush1.bf16.xpose.msra.mxu0 0
      %1001 = vmatprep.subr.bf16.mxu0 0
      %1002 = vmatpush1.bf16.xpose.msra.mxu0 0
      %1003 = vmatprep.mubr.bf16.mxu0 0
      %1004 = vmatmul.mubr.bf16.gmra.mrb[0].mxu0 %v966
      %v1005 = vpop.f32.mrb[0].mxu0
      %v1006 = vadd.f32 %v611, %v1005
      %v1007 = vpop.f32.mrb[0].mxu0
      %v1008 = vpop.f32.mrb[0].mxu0
      %v1009 = vadd.f32 %v611, %v1008
      %v1010 = vpop.f32.mrb[0].mxu0
      %1011 = vdwg.mxu0
      %v1012 = vsel %vm661, %v1006, -inf
      %1013 = vmax.xlane.f32.xlu0 %v1012
      %v1014 = vpop.xlane.xlu0 %1013
      %v1015 = vsel %vm665, %v1009, -inf
      %1016 = vmax.xlane.f32.xlu0 %v1015
      %v1017 = vpop.xlane.xlu0 %1016
      %v1018 = vsub.f32 %v1006, %v1014
      %v1019 = vsub.f32 %v1009, %v1017
      %v1020 = vmul.f32 %v1018, 1.442695
      %v1021 = vpow.pop %v1020
      %v1022 = vmul.f32 %v1019, 1.442695
      %v1023 = vpow.pop %v1022
      %v1024 = vsel %vm661, %v1021, 0.0
      %1025 = vadd.xlane.f32.xlu0 %v1024
      %v1026 = vpop.xlane.xlu0 %1025
      %v1027 = vsel %vm665, %v1023, 0.0
      %1028 = vadd.xlane.f32.xlu0 %v1027
      %v1029 = vpop.xlane.xlu0 %1028
      %v1030 = vpack.c.bf16 %v1023, %v1021
      %1031 = vrot.lane.b32.xlu0 %v606, 80
      %v1032 = vpop.permute.xlu0 %1031
      %v1034 = vsel %vm661, %v1030, 0
      %v1037 = vsel %vm688, %v1032, 0
      %1039 = vmatprep.subr.bf16.mxu0 0
      %1040 = vmatpush1.bf16.msra.mxu0 %v1037
      %1041 = vmatprep.subr.bf16.mxu0 0
      %1042 = vmatpush1.bf16.msra.mxu0 0
      %1043 = vmatprep.subr.bf16.mxu0 0
      %1044 = vmatpush1.bf16.msra.mxu0 0
      %1045 = vmatprep.subr.bf16.mxu0 0
      %1046 = vmatpush1.bf16.msra.mxu0 0
      %1047 = vmatprep.subr.bf16.mxu0 0
      %1048 = vmatpush1.bf16.msra.mxu0 0
      %1049 = vmatprep.subr.bf16.mxu0 0
      %1050 = vmatpush1.bf16.msra.mxu0 0
      %1051 = vmatprep.subr.bf16.mxu0 0
      %1052 = vmatpush1.bf16.msra.mxu0 0
      %1053 = vmatprep.subr.bf16.mxu0 0
      %1054 = vmatpush1.bf16.msra.mxu0 0
      %1055 = vmatprep.subr.bf16.mxu0 0
      %1056 = vmatpush1.bf16.msra.mxu0 0
      %1057 = vmatprep.subr.bf16.mxu0 0
      %1058 = vmatpush1.bf16.msra.mxu0 0
      %1059 = vmatprep.subr.bf16.mxu0 0
      %1060 = vmatpush1.bf16.msra.mxu0 0
      %1061 = vmatprep.subr.bf16.mxu0 0
      %1062 = vmatpush1.bf16.msra.mxu0 0
      %1063 = vmatprep.subr.bf16.mxu0 0
      %1064 = vmatpush1.bf16.msra.mxu0 0
      %1065 = vmatprep.subr.bf16.mxu0 0
      %1066 = vmatpush1.bf16.msra.mxu0 0
      %1067 = vmatprep.subr.bf16.mxu0 0
      %1068 = vmatpush1.bf16.msra.mxu0 0
      %1069 = vmatprep.subr.bf16.mxu0 0
      %1070 = vmatpush1.bf16.msra.mxu0 0
      %1071 = vmatprep.mubr.bf16.mxu0 0
      %1072 = vmatmul.mubr.bf16.gmra.mrb[0].mxu0 %v1034
      %v1073 = vpop.f32.mrb[0].mxu0
      %v1074 = vadd.f32 0.0, %v1073
      %v1075 = vpop.f32.mrb[0].mxu0
      %v1076 = vpop.f32.mrb[0].mxu0
      %v1077 = vadd.f32 0.0, %v1076
      %v1078 = vpop.f32.mrb[0].mxu0
      %1079 = vdwg.mxu0
      %v1080 = vrcp.pop %v1026
      %v1081 = vrcp.pop %v1029
      %v1082 = vmul.f32 %v1074, %v1080
      %v1083 = vmul.f32 %v1077, %v1081
      %v1084 = vpack.c.bf16 %v1083, %v1082
      %s1085 = scalar_lea.vmem %s7, 8
      %v1086 = vld [vmem:[%s1085] sm:$0xf]
      %v1088 = vsel %vm613, %v1084, 0
      %v1091 = vsel %vm869, %v1086, 0
      %1093 = vmatprep.subr.bf16.mxu0 0
      %1094 = vmatpush1.bf16.msra.mxu0 %v1091
      %1095 = vmatprep.subr.bf16.mxu0 0
      %1096 = vmatpush1.bf16.msra.mxu0 0
      %1097 = vmatprep.subr.bf16.mxu0 0
      %1098 = vmatpush1.bf16.msra.mxu0 0
      %1099 = vmatprep.subr.bf16.mxu0 0
      %1100 = vmatpush1.bf16.msra.mxu0 0
      %1101 = vmatprep.subr.bf16.mxu0 0
      %1102 = vmatpush1.bf16.msra.mxu0 0
      %1103 = vmatprep.subr.bf16.mxu0 0
      %1104 = vmatpush1.bf16.msra.mxu0 0
      %1105 = vmatprep.subr.bf16.mxu0 0
      %1106 = vmatpush1.bf16.msra.mxu0 0
      %1107 = vmatprep.subr.bf16.mxu0 0
      %1108 = vmatpush1.bf16.msra.mxu0 0
      %1109 = vmatprep.subr.bf16.mxu0 0
      %1110 = vmatpush1.bf16.msra.mxu0 0
      %1111 = vmatprep.subr.bf16.mxu0 0
      %1112 = vmatpush1.bf16.msra.mxu0 0
      %1113 = vmatprep.subr.bf16.mxu0 0
      %1114 = vmatpush1.bf16.msra.mxu0 0
      %1115 = vmatprep.subr.bf16.mxu0 0
      %1116 = vmatpush1.bf16.msra.mxu0 0
      %1117 = vmatprep.subr.bf16.mxu0 0
      %1118 = vmatpush1.bf16.msra.mxu0 0
      %1119 = vmatprep.subr.bf16.mxu0 0
      %1120 = vmatpush1.bf16.msra.mxu0 0
      %1121 = vmatprep.subr.bf16.mxu0 0
      %1122 = vmatpush1.bf16.msra.mxu0 0
      %1123 = vmatprep.subr.bf16.mxu0 0
      %1124 = vmatpush1.bf16.msra.mxu0 0
      %1125 = vmatprep.mubr.bf16.mxu0 0
      %1126 = vmatmul.mubr.bf16.gmra.mrb[0].mxu0 %v1088
      %v1127 = vpop.f32.mrb[0].mxu0
      %v1128 = vadd.f32 0.0, %v1127
      %v1129 = vpop.f32.mrb[0].mxu0
      %v1130 = vpop.f32.mrb[0].mxu0
      %v1131 = vadd.f32 0.0, %v1130
      %v1132 = vpop.f32.mrb[0].mxu0
      %1133 = vdwg.mxu0
      %v1134 = vadd.f32 %v955, %v1128
      %v1135 = vadd.f32 %v958, %v1131
      %1136 = vrot.lane.b32.xlu0 %v605, 104
      %v1137 = vpop.permute.xlu0 %1136
      %1138 = vrot.lane.b32.xlu0 %v606, 104
      %v1139 = vpop.permute.xlu0 %1138
      %v1141 = vsel %vm613, %v1137, 0
      %v1144 = vsel %vm613, %v1139, 0
      %1146 = vmatprep.subr.bf16.mxu0 0
      %1147 = vmatpush1.bf16.xpose.msra.mxu0 %v1144
      %1148 = vmatprep.subr.bf16.mxu0 0
      %1149 = vmatpush1.bf16.xpose.msra.mxu0 0
      %1150 = vmatprep.subr.bf16.mxu0 0
      %1151 = vmatpush1.bf16.xpose.msra.mxu0 0
      %1152 = vmatprep.subr.bf16.mxu0 0
      %1153 = vmatpush1.bf16.xpose.msra.mxu0 0
      %1154 = vmatprep.subr.bf16.mxu0 0
      %1155 = vmatpush1.bf16.xpose.msra.mxu0 0
      %1156 = vmatprep.subr.bf16.mxu0 0
      %1157 = vmatpush1.bf16.xpose.msra.mxu0 0
      %1158 = vmatprep.subr.bf16.mxu0 0
      %1159 = vmatpush1.bf16.xpose.msra.mxu0 0
      %1160 = vmatprep.subr.bf16.mxu0 0
      %1161 = vmatpush1.bf16.xpose.msra.mxu0 0
      %1162 = vmatprep.subr.bf16.mxu0 0
      %1163 = vmatpush1.bf16.xpose.msra.mxu0 0
      %1164 = vmatprep.subr.bf16.mxu0 0
      %1165 = vmatpush1.bf16.xpose.msra.mxu0 0
      %1166 = vmatprep.subr.bf16.mxu0 0
      %1167 = vmatpush1.bf16.xpose.msra.mxu0 0
      %1168 = vmatprep.subr.bf16.mxu0 0
      %1169 = vmatpush1.bf16.xpose.msra.mxu0 0
      %1170 = vmatprep.subr.bf16.mxu0 0
      %1171 = vmatpush1.bf16.xpose.msra.mxu0 0
      %1172 = vmatprep.subr.bf16.mxu0 0
      %1173 = vmatpush1.bf16.xpose.msra.mxu0 0
      %1174 = vmatprep.subr.bf16.mxu0 0
      %1175 = vmatpush1.bf16.xpose.msra.mxu0 0
      %1176 = vmatprep.subr.bf16.mxu0 0
      %1177 = vmatpush1.bf16.xpose.msra.mxu0 0
      %1178 = vmatprep.mubr.bf16.mxu0 0
      %1179 = vmatmul.mubr.bf16.gmra.mrb[0].mxu0 %v1141
      %v1180 = vpop.f32.mrb[0].mxu0
      %v1181 = vadd.f32 %v611, %v1180
      %v1182 = vpop.f32.mrb[0].mxu0
      %v1183 = vpop.f32.mrb[0].mxu0
      %v1184 = vadd.f32 %v611, %v1183
      %v1185 = vpop.f32.mrb[0].mxu0
      %1186 = vdwg.mxu0
      %v1187 = vsel %vm661, %v1181, -inf
      %1188 = vmax.xlane.f32.xlu0 %v1187
      %v1189 = vpop.xlane.xlu0 %1188
      %v1190 = vsel %vm665, %v1184, -inf
      %1191 = vmax.xlane.f32.xlu0 %v1190
      %v1192 = vpop.xlane.xlu0 %1191
      %v1193 = vsub.f32 %v1181, %v1189
      %v1194 = vsub.f32 %v1184, %v1192
      %v1195 = vmul.f32 %v1193, 1.442695
      %v1196 = vpow.pop %v1195
      %v1197 = vmul.f32 %v1194, 1.442695
      %v1198 = vpow.pop %v1197
      %v1199 = vsel %vm661, %v1196, 0.0
      %1200 = vadd.xlane.f32.xlu0 %v1199
      %v1201 = vpop.xlane.xlu0 %1200
      %v1202 = vsel %vm665, %v1198, 0.0
      %1203 = vadd.xlane.f32.xlu0 %v1202
      %v1204 = vpop.xlane.xlu0 %1203
      %v1205 = vpack.c.bf16 %v1198, %v1196
      %1206 = vrot.lane.b32.xlu0 %v606, 72
      %v1207 = vpop.permute.xlu0 %1206
      %v1209 = vsel %vm661, %v1205, 0
      %v1212 = vsel %vm688, %v1207, 0
      %1214 = vmatprep.subr.bf16.mxu0 0
      %1215 = vmatpush1.bf16.msra.mxu0 %v1212
      %1216 = vmatprep.subr.bf16.mxu0 0
      %1217 = vmatpush1.bf16.msra.mxu0 0
      %1218 = vmatprep.subr.bf16.mxu0 0
      %1219 = vmatpush1.bf16.msra.mxu0 0
      %1220 = vmatprep.subr.bf16.mxu0 0
      %1221 = vmatpush1.bf16.msra.mxu0 0
      %1222 = vmatprep.subr.bf16.mxu0 0
      %1223 = vmatpush1.bf16.msra.mxu0 0
      %1224 = vmatprep.subr.bf16.mxu0 0
      %1225 = vmatpush1.bf16.msra.mxu0 0
      %1226 = vmatprep.subr.bf16.mxu0 0
      %1227 = vmatpush1.bf16.msra.mxu0 0
      %1228 = vmatprep.subr.bf16.mxu0 0
      %1229 = vmatpush1.bf16.msra.mxu0 0
      %1230 = vmatprep.subr.bf16.mxu0 0
      %1231 = vmatpush1.bf16.msra.mxu0 0
      %1232 = vmatprep.subr.bf16.mxu0 0
      %1233 = vmatpush1.bf16.msra.mxu0 0
      %1234 = vmatprep.subr.bf16.mxu0 0
      %1235 = vmatpush1.bf16.msra.mxu0 0
      %1236 = vmatprep.subr.bf16.mxu0 0
      %1237 = vmatpush1.bf16.msra.mxu0 0
      %1238 = vmatprep.subr.bf16.mxu0 0
      %1239 = vmatpush1.bf16.msra.mxu0 0
      %1240 = vmatprep.subr.bf16.mxu0 0
      %1241 = vmatpush1.bf16.msra.mxu0 0
      %1242 = vmatprep.subr.bf16.mxu0 0
      %1243 = vmatpush1.bf16.msra.mxu0 0
      %1244 = vmatprep.subr.bf16.mxu0 0
      %1245 = vmatpush1.bf16.msra.mxu0 0
      %1246 = vmatprep.mubr.bf16.mxu0 0
      %1247 = vmatmul.mubr.bf16.gmra.mrb[0].mxu0 %v1209
      %v1248 = vpop.f32.mrb[0].mxu0
      %v1249 = vadd.f32 0.0, %v1248
      %v1250 = vpop.f32.mrb[0].mxu0
      %v1251 = vpop.f32.mrb[0].mxu0
      %v1252 = vadd.f32 0.0, %v1251
      %v1253 = vpop.f32.mrb[0].mxu0
      %1254 = vdwg.mxu0
      %v1255 = vrcp.pop %v1201
      %v1256 = vrcp.pop %v1204
      %v1257 = vmul.f32 %v1249, %v1255
      %v1258 = vmul.f32 %v1252, %v1256
      %v1259 = vpack.c.bf16 %v1258, %v1257
      %s1260 = scalar_lea.vmem %s7, 12
      %v1261 = vld [vmem:[%s1260] sm:$0xf]
      %v1263 = vsel %vm613, %v1259, 0
      %v1266 = vsel %vm869, %v1261, 0
      %1268 = vmatprep.subr.bf16.mxu0 0
      %1269 = vmatpush1.bf16.msra.mxu0 %v1266
      %1270 = vmatprep.subr.bf16.mxu0 0
      %1271 = vmatpush1.bf16.msra.mxu0 0
      %1272 = vmatprep.subr.bf16.mxu0 0
      %1273 = vmatpush1.bf16.msra.mxu0 0
      %1274 = vmatprep.subr.bf16.mxu0 0
      %1275 = vmatpush1.bf16.msra.mxu0 0
      %1276 = vmatprep.subr.bf16.mxu0 0
      %1277 = vmatpush1.bf16.msra.mxu0 0
      %1278 = vmatprep.subr.bf16.mxu0 0
      %1279 = vmatpush1.bf16.msra.mxu0 0
      %1280 = vmatprep.subr.bf16.mxu0 0
      %1281 = vmatpush1.bf16.msra.mxu0 0
      %1282 = vmatprep.subr.bf16.mxu0 0
      %1283 = vmatpush1.bf16.msra.mxu0 0
      %1284 = vmatprep.subr.bf16.mxu0 0
      %1285 = vmatpush1.bf16.msra.mxu0 0
      %1286 = vmatprep.subr.bf16.mxu0 0
      %1287 = vmatpush1.bf16.msra.mxu0 0
      %1288 = vmatprep.subr.bf16.mxu0 0
      %1289 = vmatpush1.bf16.msra.mxu0 0
      %1290 = vmatprep.subr.bf16.mxu0 0
      %1291 = vmatpush1.bf16.msra.mxu0 0
      %1292 = vmatprep.subr.bf16.mxu0 0
      %1293 = vmatpush1.bf16.msra.mxu0 0
      %1294 = vmatprep.subr.bf16.mxu0 0
      %1295 = vmatpush1.bf16.msra.mxu0 0
      %1296 = vmatprep.subr.bf16.mxu0 0
      %1297 = vmatpush1.bf16.msra.mxu0 0
      %1298 = vmatprep.subr.bf16.mxu0 0
      %1299 = vmatpush1.bf16.msra.mxu0 0
      %1300 = vmatprep.mubr.bf16.mxu0 0
      %1301 = vmatmul.mubr.bf16.gmra.mrb[0].mxu0 %v1263
      %v1302 = vpop.f32.mrb[0].mxu0
      %v1303 = vadd.f32 0.0, %v1302
      %v1304 = vpop.f32.mrb[0].mxu0
      %v1305 = vpop.f32.mrb[0].mxu0
      %v1306 = vadd.f32 0.0, %v1305
      %v1307 = vpop.f32.mrb[0].mxu0
      %1308 = vdwg.mxu0
      %v1309 = vadd.f32 %v1134, %v1303
      %v1310 = vadd.f32 %v1135, %v1306
      %v1311 = vadd.f32 %v461, %v1309
      %v1312 = vadd.f32 %v462, %v1310
      %v1313 = vld [vmem:[%s8] sm:$0x1]
      %v1315 = vlaneseq
      %v1316 = vshrl.u32 %v1315, 7
      %v1317 = vsub.s32 0, %v1316
      %v1318 = vrot.slane %v1313, %v1317
      %v1320 = vadd.f32 %v1311, %v1318
      %v1321 = vadd.f32 %v1312, %v1318
      %v1322 = vld [vmem:[%s9] sm:$0x1]
      %v1323 = vld [vmem:[%s10] sm:$0x1]
      %v1324 = vsel %vm489, %v1320, 0.0
      %1325 = vadd.xlane.f32.xlu0 %v1324
      %v1326 = vpop.xlane.xlu0 %1325
      %vm1327 = vcmask 254976
      %v1328 = vsel %vm1327, %v1321, 0.0
      %1329 = vadd.xlane.f32.xlu0 %v1328
      %v1330 = vpop.xlane.xlu0 %1329
      %v1331 = vrcp.pop 32.0
      %v1332 = vmul.f32 %v1326, %v1331
      %v1333 = vmul.f32 %v1330, %v1331
      %v1334 = vsub.f32 %v1320, %v1332
      %v1335 = vsub.f32 %v1321, %v1333
      %v1336 = vmul.f32 %v1334, %v1334
      %v1337 = vmul.f32 %v1335, %v1335
      %v1338 = vsel %vm489, %v1336, 0.0
      %1339 = vadd.xlane.f32.xlu0 %v1338
      %v1340 = vpop.xlane.xlu0 %1339
      %v1341 = vsel %vm1327, %v1337, 0.0
      %1342 = vadd.xlane.f32.xlu0 %v1341
      %v1343 = vpop.xlane.xlu0 %1342
      %v1344 = vmul.f32 %v1340, %v1331
      %v1345 = vmul.f32 %v1343, %v1331
      %v1346 = vadd.f32 %v1344, 1e-05
      %v1347 = vadd.f32 %v1345, 1e-05
      %v1348 = vrsqrt.pop %v1346
      %v1349 = vrsqrt.pop %v1347
      %v1350 = vmul.f32 %v1334, %v1348
      %v1351 = vmul.f32 %v1335, %v1349
      %v1353 = vlaneseq
      %v1354 = vshrl.u32 %v1353, 7
      %v1355 = vsub.s32 0, %v1354
      %v1356 = vrot.slane %v1322, %v1355
      %v1358 = vmul.f32 %v1350, %v1356
      %v1359 = vmul.f32 %v1351, %v1356
      %v1361 = vlaneseq
      %v1362 = vshrl.u32 %v1361, 7
      %v1363 = vsub.s32 0, %v1362
      %v1364 = vrot.slane %v1323, %v1363
      %v1366 = vadd.f32 %v1358, %v1364
      %v1367 = vadd.f32 %v1359, %v1364
      %1368 = vst.msk [vmem:[%s458] sm:$0xff] %vm489, %v1366
      %1369 = vst.msk [vmem:[%s458 + $0x8] sm:$0x3] %vm1327, %v1367
      %s1370 = smul.u32 2, %s27
      %p1371 = scmp.lt.s32.totalorder %s26, 1
      %s1372 = scalar_select %p1371, %s26, 1
      %p1373 = scmp.lt.s32.totalorder %s1370, 1
      %s1374 = scalar_select %p1373, %s1370, 1
      %s1375 = smul.addr %s1372, 2
      %s1376 = sadd.s32 %s1374, %s1375
      %s1377 = smul.addr %s1376, 8
      %s1378 = scalar_lea.vmem %s11, %s1377
      // Predicated region
      $region65: #{transformer_forward.13} parent=63 // pred_check
        %p1379 = pneg %p302
      $region66: #{transformer_forward.13} parent=63 // pred_check_branch
        %1381 = sbr.rel (%p1379) target = $region68
      $region67: #{transformer_forward.13} parent=63 // pred_region
        %s1382 = smul.u32 2, %s27
      $region68: #{transformer_forward.13} parent=63 // pred_fallthru
        _
    $region64: #{transformer_forward.13} parent=5 // pred_fallthru
      _
    %p1383 = scmp.le.s32.totalorder 2, %s17
    // Predicated region
    $region69: #{transformer_forward.13} parent=5 // pred_check
      %p1384 = pneg %p1383
    $region70: #{transformer_forward.13} parent=5 // pred_check_branch
      %1386 = sbr.rel (%p1384) target = $region72
    $region71: #{transformer_forward.13} parent=5 // pred_region
      %s1387 = ssub.s32 %s17, 2
      // Predicated region
      $region73: #{transformer_forward.13} parent=71 // pred_check
        %p1388 = pneg %p308
      $region74: #{transformer_forward.13} parent=71 // pred_check_branch
        %1390 = sbr.rel (%p1388) target = $region76
      $region75: #{transformer_forward.13} parent=71 // pred_region
        %s1391 = smul.u32 2, %s29
        %p1392 = scmp.lt.s32.totalorder %s28, 1
        %s1393 = scalar_select %p1392, %s28, 1
        %p1394 = scmp.lt.s32.totalorder %s1391, 1
        %s1395 = scalar_select %p1394, %s1391, 1
        %s1396 = smul.addr %s1393, 2
        %s1397 = sadd.s32 %s1395, %s1396
        %s1398 = smul.addr %s1397, 8
        %s1399 = scalar_lea.vmem %s11, %s1398
      $region76: #{transformer_forward.13} parent=71 // pred_fallthru
        _
    $region72: #{transformer_forward.13} parent=5 // pred_fallthru
      _
  $region6: #{transformer_forward.13} parent=0 // loop_footer
    %s21 = sadd.s32 1, %s17
  $region7: #{transformer_forward.13} parent=0 // loop_footer_branch
    %16 = sbr.rel target = $region3
  $region8: #{transformer_forward.13} parent=0 // loop_exit
    _

// kernel: transformer_forward.18
$region0: #{transformer_forward.18}
  #allocation0 [shape = 'u32[]', space=smem, size = 0x4, offset = 0x4, fixed_abs, tag = 'smem constant byte address 0x4 - core index']
  #allocation1 [shape = 'u32[144,128]{1,0:T(1,128)}', space=vmem, size = 0x12000, scoped, tag = 'internal scratch']
  %s0 = inlined_call_operand.vmem [shape: f32[2,8,32], index: 0, kind: input, shape index: {}, may-alias: {0,1}]
  %s1 = inlined_call_operand.vmem [shape: f32[2,8,32], index: 1, kind: input, shape index: {}, may-alias: {0,1}]
  %s2 = inlined_call_operand.vmem [shape: bf16[32,32], index: 2, kind: input, shape index: {}]
  %s3 = inlined_call_operand.vmem [shape: f32[1,32], index: 3, kind: input, shape index: {}]
  %s4 = inlined_call_operand.vmem [shape: bf16[32,64], index: 4, kind: input, shape index: {}]
  %s5 = inlined_call_operand.vmem [shape: f32[1,64], index: 5, kind: input, shape index: {}]
  %s6 = inlined_call_operand.vmem [shape: bf16[4,8,32], index: 6, kind: input, shape index: {}]
  %s7 = inlined_call_operand.vmem [shape: f32[1,32], index: 7, kind: input, shape index: {}]
  %s8 = inlined_call_operand.vmem [shape: f32[1,32], index: 8, kind: input, shape index: {}]
  %s9 = inlined_call_operand.vmem [shape: f32[1,32], index: 9, kind: input, shape index: {}]
  %s10 = inlined_call_operand.vmem [shape: f32[2,8,32], index: 10, kind: output, shape index: {}]
  %s11 = sld [smem:[#allocation0]]
  $region73: #{transformer_forward.18} parent=0
    _
  %s13 = ssub.s32 1, %s11
  %s14 = scalar_select 0, %s13, %s11
  loop: start=0, step=1, limit=4
  $region2: #{transformer_forward.18} parent=0 // loop_pre_header
    _
  $region3: #{transformer_forward.18} parent=0 // loop_header
    %s16 = sphi 0, %s20
    %p17 = scmp.ge.s32.totalorder %s16, 4
    %s23 = sphi 0, %s35
    %s24 = sphi 0, %s31
    %s25 = sphi 0, %s23
    %s26 = sphi 0, %s24
    %s27 = sphi 0, %s25
    %s28 = sphi 0, %s26
    %s40 = sphi 0, %s42
    %s43 = sphi 0, %s40
    %s44 = sphi 0, %s43
    %s60 = sphi 0, %s44
    %s66 = sphi 0, %s68
    %s69 = sphi 0, %s66
    %s70 = sphi 0, %s69
    %s86 = sphi 0, %s70
    %s90 = sphi 0, %s90
    %s92 = sphi 0, %s90
    %s93 = sphi 0, %s92
    %s107 = sphi 0, %s93
    %s111 = sphi 0, %s111
    %s113 = sphi 0, %s111
    %s114 = sphi 0, %s113
    %s128 = sphi 0, %s114
    %s132 = sphi 0, %s132
    %s134 = sphi 0, %s132
    %s135 = sphi 0, %s134
    %s149 = sphi 0, %s135
    %s153 = sphi 0, %s153
    %s155 = sphi 0, %s153
    %s156 = sphi 0, %s155
    %s170 = sphi 0, %s156
    %s174 = sphi 0, %s174
    %s176 = sphi 0, %s174
    %s177 = sphi 0, %s176
    %s191 = sphi 0, %s177
    %s195 = sphi 0, %s195
    %s197 = sphi 0, %s195
    %s198 = sphi 0, %s197
    %s212 = sphi 0, %s198
    %s216 = sphi 0, %s216
    %s218 = sphi 0, %s216
    %s219 = sphi 0, %s218
    %s233 = sphi 0, %s219
    %s237 = sphi 0, %s237
    %s239 = sphi 0, %s237
    %s240 = sphi 0, %s239
    %s254 = sphi 0, %s240
    %s262 = sphi 0, %s264
    %s265 = sphi 0, %s262
    %s266 = sphi 0, %s265
    %s282 = sphi 0, %s266
  $region4: #{transformer_forward.18} parent=0 // loop_header_branch
    %19 = sbr.rel (%p17) target = $region8
  $region5: #{transformer_forward.18} parent=0 // loop_body
    %s21 = ssub.s32 %s16, 1
    %s22 = ssub.s32 %s16, 2
    %s29 = sadd.s32 1, %s24
    %p30 = scmp.ge.s32.totalorder %s29, 1
    %s31 = scalar_select %p30, 0, %s29
    %s32 = sadd.s32 1, %s23
    %s33 = scalar_select %p30, %s32, %s23
    %p34 = scmp.ge.s32.totalorder %s33, 2
    %s35 = scalar_select %p34, 0, %s33
    %s36 = ssub.s32 %s23, %s35
    %s37 = ssub.s32 %s24, %s31
    %s38 = sor.u32 %s36, %s37
    %p39 = scmp.eq.s32.totalorder %s38, 0
    %s41 = sadd.s32 %s40, 1
    %s42 = scalar_select %p39, %s40, %s41
    %p45 = pneg %p39
    %p46 = scmp.eq.s32.totalorder %s16, 1
    %p47 = por %p45, %p46
    %p48 = scmp.ne.s32.totalorder %s40, %s43
    %p49 = scmp.eq.s32.totalorder %s16, 0
    %p50 = por %p48, %p49
    %p51 = scmp.ne.s32.totalorder %s40, %s43
    %p52 = scmp.eq.s32.totalorder %s21, 1
    %p53 = por %p51, %p52
    %p54 = scmp.ne.s32.totalorder %s43, %s44
    %p55 = scmp.eq.s32.totalorder %s21, 0
    %p56 = por %p54, %p55
    %p57 = scmp.ne.s32.totalorder %s43, %s44
    %p58 = scmp.eq.s32.totalorder %s22, 1
    %p59 = por %p57, %p58
    %p61 = scmp.ne.s32.totalorder %s44, %s60
    %p62 = scmp.eq.s32.totalorder %s22, 0
    %p63 = por %p61, %p62
    %s64 = ssub.s32 %s23, %s35
    %p65 = scmp.eq.s32.totalorder %s64, 0
    %s67 = sadd.s32 %s66, 1
    %s68 = scalar_select %p65, %s66, %s67
    %p71 = pneg %p65
    %p72 = scmp.eq.s32.totalorder %s16, 1
    %p73 = por %p71, %p72
    %p74 = scmp.ne.s32.totalorder %s66, %s69
    %p75 = scmp.eq.s32.totalorder %s16, 0
    %p76 = por %p74, %p75
    %p77 = scmp.ne.s32.totalorder %s66, %s69
    %p78 = scmp.eq.s32.totalorder %s21, 1
    %p79 = por %p77, %p78
    %p80 = scmp.ne.s32.totalorder %s69, %s70
    %p81 = scmp.eq.s32.totalorder %s21, 0
    %p82 = por %p80, %p81
    %p83 = scmp.ne.s32.totalorder %s69, %s70
    %p84 = scmp.eq.s32.totalorder %s22, 1
    %p85 = por %p83, %p84
    %p87 = scmp.ne.s32.totalorder %s70, %s86
    %p88 = scmp.eq.s32.totalorder %s22, 0
    %p89 = por %p87, %p88
    %s91 = sadd.s32 %s90, 1
    %p94 = scmp.eq.s32.totalorder %s16, 1
    %p95 = scmp.ne.s32.totalorder %s90, %s92
    %p96 = scmp.eq.s32.totalorder %s16, 0
    %p97 = por %p95, %p96
    %p98 = scmp.ne.s32.totalorder %s90, %s92
    %p99 = scmp.eq.s32.totalorder %s21, 1
    %p100 = por %p98, %p99
    %p101 = scmp.ne.s32.totalorder %s92, %s93
    %p102 = scmp.eq.s32.totalorder %s21, 0
    %p103 = por %p101, %p102
    %p104 = scmp.ne.s32.totalorder %s92, %s93
    %p105 = scmp.eq.s32.totalorder %s22, 1
    %p106 = por %p104, %p105
    %p108 = scmp.ne.s32.totalorder %s93, %s107
    %p109 = scmp.eq.s32.totalorder %s22, 0
    %p110 = por %p108, %p109
    %s112 = sadd.s32 %s111, 1
    %p115 = scmp.eq.s32.totalorder %s16, 1
    %p116 = scmp.ne.s32.totalorder %s111, %s113
    %p117 = scmp.eq.s32.totalorder %s16, 0
    %p118 = por %p116, %p117
    %p119 = scmp.ne.s32.totalorder %s111, %s113
    %p120 = scmp.eq.s32.totalorder %s21, 1
    %p121 = por %p119, %p120
    %p122 = scmp.ne.s32.totalorder %s113, %s114
    %p123 = scmp.eq.s32.totalorder %s21, 0
    %p124 = por %p122, %p123
    %p125 = scmp.ne.s32.totalorder %s113, %s114
    %p126 = scmp.eq.s32.totalorder %s22, 1
    %p127 = por %p125, %p126
    %p129 = scmp.ne.s32.totalorder %s114, %s128
    %p130 = scmp.eq.s32.totalorder %s22, 0
    %p131 = por %p129, %p130
    %s133 = sadd.s32 %s132, 1
    %p136 = scmp.eq.s32.totalorder %s16, 1
    %p137 = scmp.ne.s32.totalorder %s132, %s134
    %p138 = scmp.eq.s32.totalorder %s16, 0
    %p139 = por %p137, %p138
    %p140 = scmp.ne.s32.totalorder %s132, %s134
    %p141 = scmp.eq.s32.totalorder %s21, 1
    %p142 = por %p140, %p141
    %p143 = scmp.ne.s32.totalorder %s134, %s135
    %p144 = scmp.eq.s32.totalorder %s21, 0
    %p145 = por %p143, %p144
    %p146 = scmp.ne.s32.totalorder %s134, %s135
    %p147 = scmp.eq.s32.totalorder %s22, 1
    %p148 = por %p146, %p147
    %p150 = scmp.ne.s32.totalorder %s135, %s149
    %p151 = scmp.eq.s32.totalorder %s22, 0
    %p152 = por %p150, %p151
    %s154 = sadd.s32 %s153, 1
    %p157 = scmp.eq.s32.totalorder %s16, 1
    %p158 = scmp.ne.s32.totalorder %s153, %s155
    %p159 = scmp.eq.s32.totalorder %s16, 0
    %p160 = por %p158, %p159
    %p161 = scmp.ne.s32.totalorder %s153, %s155
    %p162 = scmp.eq.s32.totalorder %s21, 1
    %p163 = por %p161, %p162
    %p164 = scmp.ne.s32.totalorder %s155, %s156
    %p165 = scmp.eq.s32.totalorder %s21, 0
    %p166 = por %p164, %p165
    %p167 = scmp.ne.s32.totalorder %s155, %s156
    %p168 = scmp.eq.s32.totalorder %s22, 1
    %p169 = por %p167, %p168
    %p171 = scmp.ne.s32.totalorder %s156, %s170
    %p172 = scmp.eq.s32.totalorder %s22, 0
    %p173 = por %p171, %p172
    %s175 = sadd.s32 %s174, 1
    %p178 = scmp.eq.s32.totalorder %s16, 1
    %p179 = scmp.ne.s32.totalorder %s174, %s176
    %p180 = scmp.eq.s32.totalorder %s16, 0
    %p181 = por %p179, %p180
    %p182 = scmp.ne.s32.totalorder %s174, %s176
    %p183 = scmp.eq.s32.totalorder %s21, 1
    %p184 = por %p182, %p183
    %p185 = scmp.ne.s32.totalorder %s176, %s177
    %p186 = scmp.eq.s32.totalorder %s21, 0
    %p187 = por %p185, %p186
    %p188 = scmp.ne.s32.totalorder %s176, %s177
    %p189 = scmp.eq.s32.totalorder %s22, 1
    %p190 = por %p188, %p189
    %p192 = scmp.ne.s32.totalorder %s177, %s191
    %p193 = scmp.eq.s32.totalorder %s22, 0
    %p194 = por %p192, %p193
    %s196 = sadd.s32 %s195, 1
    %p199 = scmp.eq.s32.totalorder %s16, 1
    %p200 = scmp.ne.s32.totalorder %s195, %s197
    %p201 = scmp.eq.s32.totalorder %s16, 0
    %p202 = por %p200, %p201
    %p203 = scmp.ne.s32.totalorder %s195, %s197
    %p204 = scmp.eq.s32.totalorder %s21, 1
    %p205 = por %p203, %p204
    %p206 = scmp.ne.s32.totalorder %s197, %s198
    %p207 = scmp.eq.s32.totalorder %s21, 0
    %p208 = por %p206, %p207
    %p209 = scmp.ne.s32.totalorder %s197, %s198
    %p210 = scmp.eq.s32.totalorder %s22, 1
    %p211 = por %p209, %p210
    %p213 = scmp.ne.s32.totalorder %s198, %s212
    %p214 = scmp.eq.s32.totalorder %s22, 0
    %p215 = por %p213, %p214
    %s217 = sadd.s32 %s216, 1
    %p220 = scmp.eq.s32.totalorder %s16, 1
    %p221 = scmp.ne.s32.totalorder %s216, %s218
    %p222 = scmp.eq.s32.totalorder %s16, 0
    %p223 = por %p221, %p222
    %p224 = scmp.ne.s32.totalorder %s216, %s218
    %p225 = scmp.eq.s32.totalorder %s21, 1
    %p226 = por %p224, %p225
    %p227 = scmp.ne.s32.totalorder %s218, %s219
    %p228 = scmp.eq.s32.totalorder %s21, 0
    %p229 = por %p227, %p228
    %p230 = scmp.ne.s32.totalorder %s218, %s219
    %p231 = scmp.eq.s32.totalorder %s22, 1
    %p232 = por %p230, %p231
    %p234 = scmp.ne.s32.totalorder %s219, %s233
    %p235 = scmp.eq.s32.totalorder %s22, 0
    %p236 = por %p234, %p235
    %s238 = sadd.s32 %s237, 1
    %p241 = scmp.eq.s32.totalorder %s16, 1
    %p242 = scmp.ne.s32.totalorder %s237, %s239
    %p243 = scmp.eq.s32.totalorder %s16, 0
    %p244 = por %p242, %p243
    %p245 = scmp.ne.s32.totalorder %s237, %s239
    %p246 = scmp.eq.s32.totalorder %s21, 1
    %p247 = por %p245, %p246
    %p248 = scmp.ne.s32.totalorder %s239, %s240
    %p249 = scmp.eq.s32.totalorder %s21, 0
    %p250 = por %p248, %p249
    %p251 = scmp.ne.s32.totalorder %s239, %s240
    %p252 = scmp.eq.s32.totalorder %s22, 1
    %p253 = por %p251, %p252
    %p255 = scmp.ne.s32.totalorder %s240, %s254
    %p256 = scmp.eq.s32.totalorder %s22, 0
    %p257 = por %p255, %p256
    %s258 = ssub.s32 %s23, %s35
    %s259 = ssub.s32 %s24, %s31
    %s260 = sor.u32 %s258, %s259
    %p261 = scmp.eq.s32.totalorder %s260, 0
    %s263 = sadd.s32 %s262, 1
    %s264 = scalar_select %p261, %s262, %s263
    %p267 = pneg %p261
    %p268 = scmp.eq.s32.totalorder %s16, 1
    %p269 = por %p267, %p268
    %p270 = scmp.ne.s32.totalorder %s262, %s265
    %p271 = scmp.eq.s32.totalorder %s16, 0
    %p272 = por %p270, %p271
    %p273 = scmp.ne.s32.totalorder %s262, %s265
    %p274 = scmp.eq.s32.totalorder %s21, 1
    %p275 = por %p273, %p274
    %p276 = scmp.ne.s32.totalorder %s265, %s266
    %p277 = scmp.eq.s32.totalorder %s21, 0
    %p278 = por %p276, %p277
    %p279 = scmp.ne.s32.totalorder %s265, %s266
    %p280 = scmp.eq.s32.totalorder %s22, 1
    %p281 = por %p279, %p280
    %p283 = scmp.ne.s32.totalorder %s266, %s282
    %p284 = scmp.eq.s32.totalorder %s22, 0
    %p285 = por %p283, %p284
    %p286 = scmp.le.s32.totalorder 1, %s16
    %p287 = scmp.lt.s32.totalorder %s16, 3
    %p288 = pnand %p286, %p287
    %p289 = pneg %p288
    // Predicated region
    $region9: #{transformer_forward.18} parent=5 // pred_check
      _
    $region10: #{transformer_forward.18} parent=5 // pred_check_branch
      %291 = sbr.rel (%p288) target = $region12
    $region11: #{transformer_forward.18} parent=5 // pred_region
      %s292 = ssub.s32 %s16, 1
      // Predicated region
      $region13: #{transformer_forward.18} parent=11 // pred_check
        %p293 = pneg %p103
      $region14: #{transformer_forward.18} parent=11 // pred_check_branch
        %295 = sbr.rel (%p293) target = $region16
      $region15: #{transformer_forward.18} parent=11 // pred_region
        _
      $region16: #{transformer_forward.18} parent=11 // pred_fallthru
        _
      // Predicated region
      $region17: #{transformer_forward.18} parent=11 // pred_check
        %p296 = pneg %p124
      $region18: #{transformer_forward.18} parent=11 // pred_check_branch
        %298 = sbr.rel (%p296) target = $region20
      $region19: #{transformer_forward.18} parent=11 // pred_region
        _
      $region20: #{transformer_forward.18} parent=11 // pred_fallthru
        _
      // Predicated region
      $region21: #{transformer_forward.18} parent=11 // pred_check
        %p299 = pneg %p145
      $region22: #{transformer_forward.18} parent=11 // pred_check_branch
        %301 = sbr.rel (%p299) target = $region24
      $region23: #{transformer_forward.18} parent=11 // pred_region
        _
      $region24: #{transformer_forward.18} parent=11 // pred_fallthru
        _
      // Predicated region
      $region25: #{transformer_forward.18} parent=11 // pred_check
        %p302 = pneg %p166
      $region26: #{transformer_forward.18} parent=11 // pred_check_branch
        %304 = sbr.rel (%p302) target = $region28
      $region27: #{transformer_forward.18} parent=11 // pred_region
        _
      $region28: #{transformer_forward.18} parent=11 // pred_fallthru
        _
      // Predicated region
      $region29: #{transformer_forward.18} parent=11 // pred_check
        %p305 = pneg %p187
      $region30: #{transformer_forward.18} parent=11 // pred_check_branch
        %307 = sbr.rel (%p305) target = $region32
      $region31: #{transformer_forward.18} parent=11 // pred_region
        _
      $region32: #{transformer_forward.18} parent=11 // pred_fallthru
        _
      // Predicated region
      $region33: #{transformer_forward.18} parent=11 // pred_check
        %p308 = pneg %p208
      $region34: #{transformer_forward.18} parent=11 // pred_check_branch
        %310 = sbr.rel (%p308) target = $region36
      $region35: #{transformer_forward.18} parent=11 // pred_region
        _
      $region36: #{transformer_forward.18} parent=11 // pred_fallthru
        _
      // Predicated region
      $region37: #{transformer_forward.18} parent=11 // pred_check
        %p311 = pneg %p229
      $region38: #{transformer_forward.18} parent=11 // pred_check_branch
        %313 = sbr.rel (%p311) target = $region40
      $region39: #{transformer_forward.18} parent=11 // pred_region
        _
      $region40: #{transformer_forward.18} parent=11 // pred_fallthru
        _
      // Predicated region
      $region41: #{transformer_forward.18} parent=11 // pred_check
        %p314 = pneg %p250
      $region42: #{transformer_forward.18} parent=11 // pred_check_branch
        %316 = sbr.rel (%p314) target = $region44
      $region43: #{transformer_forward.18} parent=11 // pred_region
        _
      $region44: #{transformer_forward.18} parent=11 // pred_fallthru
        _
    $region12: #{transformer_forward.18} parent=5 // pred_fallthru
      _
    %p317 = scmp.lt.s32.totalorder %s16, 2
    // Predicated region
    $region45: #{transformer_forward.18} parent=5 // pred_check
      %p318 = pneg %p317
    $region46: #{transformer_forward.18} parent=5 // pred_check_branch
      %320 = sbr.rel (%p318) target = $region48
    $region47: #{transformer_forward.18} parent=5 // pred_region
      // Predicated region
      $region49: #{transformer_forward.18} parent=47 // pred_check
        %p321 = pneg %p50
      $region50: #{transformer_forward.18} parent=47 // pred_check_branch
        %323 = sbr.rel (%p321) target = $region52
      $region51: #{transformer_forward.18} parent=47 // pred_region
        %p324 = scmp.lt.s32.totalorder %s23, 1
        %s325 = scalar_select %p324, %s23, 1
        %p326 = scmp.lt.s32.totalorder %s24, 0
        %s327 = scalar_select %p326, %s24, 0
        %s328 = sadd.s32 %s327, %s325
        %s329 = smul.addr %s328, 8
        %s330 = scalar_lea.vmem %s0, %s329
      $region52: #{transformer_forward.18} parent=47 // pred_fallthru
        _
      // Predicated region
      $region53: #{transformer_forward.18} parent=47 // pred_check
        %p331 = pneg %p76
      $region54: #{transformer_forward.18} parent=47 // pred_check_branch
        %333 = sbr.rel (%p331) target = $region56
      $region55: #{transformer_forward.18} parent=47 // pred_region
        %p334 = scmp.lt.s32.totalorder %s23, 1
        %s335 = scalar_select %p334, %s23, 1
        %s336 = smul.addr %s335, 8
        %s337 = scalar_lea.vmem %s1, %s336
      $region56: #{transformer_forward.18} parent=47 // pred_fallthru
        _
    $region48: #{transformer_forward.18} parent=5 // pred_fallthru
      _
    %p338 = scmp.le.s32.totalorder 1, %s16
    %p339 = scmp.lt.s32.totalorder %s16, 3
    %p340 = pnand %p338, %p339
    %p341 = pneg %p340
    // Predicated region
    $region57: #{transformer_forward.18} parent=5 // pred_check
      _
    $region58: #{transformer_forward.18} parent=5 // pred_check_branch
      %343 = sbr.rel (%p340) target = $region60
    $region59: #{transformer_forward.18} parent=5 // pred_region
      %s344 = ssub.s32 %s16, 1
      %p345 = scmp.lt.s32.totalorder %s25, 1
      %s346 = scalar_select %p345, %s25, 1
      %p347 = scmp.lt.s32.totalorder %s26, 0
      %s348 = scalar_select %p347, %s26, 0
      %s349 = sadd.s32 %s348, %s346
      %s350 = smul.addr %s349, 8
      %s351 = scalar_lea.vmem %s0, %s350
      %p352 = pneg %p56
      %p353 = pneg %p53
      %p354 = scmp.lt.s32.totalorder %s25, 1
      %s355 = scalar_select %p354, %s25, 1
      %s356 = smul.addr %s355, 8
      %s357 = scalar_lea.vmem %s1, %s356
      %p358 = pneg %p82
      %p359 = pneg %p79
      %p360 = pneg %p103
      %p361 = pneg %p100
      %p362 = pneg %p124
      %p363 = pneg %p121
      %p364 = pneg %p145
      %p365 = pneg %p142
      %p366 = pneg %p166
      %p367 = pneg %p163
      %p368 = pneg %p187
      %p369 = pneg %p184
      %p370 = pneg %p208
      %p371 = pneg %p205
      %p372 = pneg %p229
      %p373 = pneg %p226
      %p374 = pneg %p250
      %p375 = pneg %p247
      %p376 = pneg %p278
      %p377 = pneg %p275
      %p378 = scmp.lt.s32.totalorder %s25, 1
      %s379 = scalar_select %p378, %s25, 1
      %p380 = scmp.lt.s32.totalorder %s26, 0
      %s381 = scalar_select %p380, %s26, 0
      %s382 = sadd.s32 %s381, %s379
      %s383 = smul.addr %s382, 8
      %s384 = scalar_lea.vmem %s10, %s383
      %p385 = scmp.lt.s32.totalorder %s25, 1
      %s386 = scalar_select %p385, %s25, 1
      %p387 = scmp.lt.s32.totalorder %s26, 0
      %s388 = scalar_select %p387, %s26, 0
      %s389 = sadd.s32 %s388, %s386
      %s390 = smul.addr %s389, 8
      %s391 = scalar_lea.vmem %s0, %s390
      %p392 = scmp.lt.s32.totalorder %s25, 1
      %s393 = scalar_select %p392, %s25, 1
      %s394 = smul.addr %s393, 8
      %s395 = scalar_lea.vmem %s1, %s394
      %p396 = scmp.lt.s32.totalorder %s25, 1
      %s397 = scalar_select %p396, %s25, 1
      %p398 = scmp.lt.s32.totalorder %s26, 0
      %s399 = scalar_select %p398, %s26, 0
      %s400 = sadd.s32 %s399, %s397
      %s401 = smul.addr %s400, 8
      %s402 = scalar_lea.vmem %s10, %s401
      %v404 = vld [vmem:[%s391] sm:$0xff]
      %v405 = vld [vmem:[%s395] sm:$0xff]
      %v406 = vpack.c.bf16 %v404, %v404
      %v407 = vld [vmem:[%s2] sm:$0xf]
      %v408 = vld [vmem:[%s2 + $0x4] sm:$0xf]
      %v409 = vld [vmem:[%s2 + $0x8] sm:$0xf]
      %v410 = vld [vmem:[%s2 + $0xc] sm:$0xf]
      %v411 = vld [vmem:[%s3] sm:$0x1]
      %v413 = vlaneseq
      %v414 = vshrl.u32 %v413, 7
      %v415 = vsub.s32 0, %v414
      %v416 = vrot.slane %v411, %v415
      %v422 = vunpack.c.l.b16 %v407
      %v423 = vunpack.c.l.b16 %v408
      %v424 = vunpack.c.l.b16 %v409
      %v425 = vunpack.c.l.b16 %v410
      %v426 = vpack.c.b16 %v423, %v422
      %v427 = vpack.c.b16 %v425, %v424
      %vm430 = vcmask 261120
      %v432 = vsel %vm430, %v406, 0
      %434 = vmatprep.subr.bf16.mxu0 0
      %435 = vmatpush1.bf16.msra.mxu0 %v426
      %436 = vmatprep.subr.bf16.mxu0 0
      %437 = vmatpush1.bf16.msra.mxu0 %v427
      %438 = vmatprep.subr.bf16.mxu0 0
      %439 = vmatpush1.bf16.msra.mxu0 0
      %440 = vmatprep.subr.bf16.mxu0 0
      %441 = vmatpush1.bf16.msra.mxu0 0
      %442 = vmatprep.subr.bf16.mxu0 0
      %443 = vmatpush1.bf16.msra.mxu0 0
      %444 = vmatprep.subr.bf16.mxu0 0
      %445 = vmatpush1.bf16.msra.mxu0 0
      %446 = vmatprep.subr.bf16.mxu0 0
      %447 = vmatpush1.bf16.msra.mxu0 0
      %448 = vmatprep.subr.bf16.mxu0 0
      %449 = vmatpush1.bf16.msra.mxu0 0
      %450 = vmatprep.subr.bf16.mxu0 0
      %451 = vmatpush1.bf16.msra.mxu0 0
      %452 = vmatprep.subr.bf16.mxu0 0
      %453 = vmatpush1.bf16.msra.mxu0 0
      %454 = vmatprep.subr.bf16.mxu0 0
      %455 = vmatpush1.bf16.msra.mxu0 0
      %456 = vmatprep.subr.bf16.mxu0 0
      %457 = vmatpush1.bf16.msra.mxu0 0
      %458 = vmatprep.subr.bf16.mxu0 0
      %459 = vmatpush1.bf16.msra.mxu0 0
      %460 = vmatprep.subr.bf16.mxu0 0
      %461 = vmatpush1.bf16.msra.mxu0 0
      %462 = vmatprep.subr.bf16.mxu0 0
      %463 = vmatpush1.bf16.msra.mxu0 0
      %464 = vmatprep.subr.bf16.mxu0 0
      %465 = vmatpush1.bf16.msra.mxu0 0
      %466 = vmatprep.mubr.bf16.mxu0 0
      %467 = vmatmul.mubr.bf16.gmra.mrb[0].mxu0 %v432
      %v468 = vpop.f32.mrb[0].mxu0
      %v469 = vadd.f32 %v416, %v468
      %v470 = vpop.f32.mrb[0].mxu0
      %v471 = vpop.f32.mrb[0].mxu0
      %v472 = vpop.f32.mrb[0].mxu0
      %473 = vdwg.mxu0
      %v474 = vmul.f32 %v469, 0.35355338
      %v475 = vpack.c.bf16 %v405, %v405
      %v476 = vld [vmem:[%s4] sm:$0xf]
      %v477 = vld [vmem:[%s4 + $0x4] sm:$0xf]
      %v478 = vld [vmem:[%s4 + $0x8] sm:$0xf]
      %v479 = vld [vmem:[%s4 + $0xc] sm:$0xf]
      %v480 = vld [vmem:[%s5] sm:$0x1]
      %v482 = vlaneseq
      %v483 = vshrl.u32 %v482, 7
      %v484 = vsub.s32 0, %v483
      %v485 = vrot.slane %v480, %v484
      %v491 = vunpack.c.l.b16 %v476
      %v492 = vunpack.c.l.b16 %v477
      %v493 = vunpack.c.l.b16 %v478
      %v494 = vunpack.c.l.b16 %v479
      %v495 = vpack.c.b16 %v492, %v491
      %v496 = vpack.c.b16 %v494, %v493
      %v500 = vsel %vm430, %v475, 0
      %502 = vmatprep.subr.bf16.mxu0 0
      %503 = vmatpush1.bf16.msra.mxu0 %v495
      %504 = vmatprep.subr.bf16.mxu0 0
      %505 = vmatpush1.bf16.msra.mxu0 %v496
      %506 = vmatprep.subr.bf16.mxu0 0
      %507 = vmatpush1.bf16.msra.mxu0 0
      %508 = vmatprep.subr.bf16.mxu0 0
      %509 = vmatpush1.bf16.msra.mxu0 0
      %510 = vmatprep.subr.bf16.mxu0 0
      %511 = vmatpush1.bf16.msra.mxu0 0
      %512 = vmatprep.subr.bf16.mxu0 0
      %513 = vmatpush1.bf16.msra.mxu0 0
      %514 = vmatprep.subr.bf16.mxu0 0
      %515 = vmatpush1.bf16.msra.mxu0 0
      %516 = vmatprep.subr.bf16.mxu0 0
      %517 = vmatpush1.bf16.msra.mxu0 0
      %518 = vmatprep.subr.bf16.mxu0 0
      %519 = vmatpush1.bf16.msra.mxu0 0
      %520 = vmatprep.subr.bf16.mxu0 0
      %521 = vmatpush1.bf16.msra.mxu0 0
      %522 = vmatprep.subr.bf16.mxu0 0
      %523 = vmatpush1.bf16.msra.mxu0 0
      %524 = vmatprep.subr.bf16.mxu0 0
      %525 = vmatpush1.bf16.msra.mxu0 0
      %526 = vmatprep.subr.bf16.mxu0 0
      %527 = vmatpush1.bf16.msra.mxu0 0
      %528 = vmatprep.subr.bf16.mxu0 0
      %529 = vmatpush1.bf16.msra.mxu0 0
      %530 = vmatprep.subr.bf16.mxu0 0
      %531 = vmatpush1.bf16.msra.mxu0 0
      %532 = vmatprep.subr.bf16.mxu0 0
      %533 = vmatpush1.bf16.msra.mxu0 0
      %534 = vmatprep.mubr.bf16.mxu0 0
      %535 = vmatmul.mubr.bf16.gmra.mrb[0].mxu0 %v500
      %v536 = vpop.f32.mrb[0].mxu0
      %v537 = vadd.f32 %v485, %v536
      %v538 = vpop.f32.mrb[0].mxu0
      %v539 = vpop.f32.mrb[0].mxu0
      %v540 = vpop.f32.mrb[0].mxu0
      %541 = vdwg.mxu0
      %s542 = smul.u32 %s26, 8
      %v543 = vlaneseq
      %v544 = vshrl.u32 %v543, 7
      %v545 = vstv %s542
      %v546 = vadd.s32 %v544, %v545
      %v547 = vlaneseq
      %v548 = vand.u32 %v547, 127
      %vm549 = vcmp.gt.s32.totalorder %v548, %v546
      %v550 = vsel %vm549, -1e+09, 0.0
      %v551 = vpack.c.bf16 %v474, %v474
      %v552 = vpack.c.bf16 %v537, %v537
      %vm553 = vcmask 64512
      %v555 = vsel %vm553, %v551, 0
      %v558 = vsel %vm553, %v552, 0
      %560 = vmatprep.subr.bf16.mxu0 0
      %561 = vmatpush1.bf16.xpose.msra.mxu0 %v558
      %562 = vmatprep.subr.bf16.mxu0 0
      %563 = vmatpush1.bf16.xpose.msra.mxu0 0
      %564 = vmatprep.subr.bf16.mxu0 0
      %565 = vmatpush1.bf16.xpose.msra.mxu0 0
      %566 = vmatprep.subr.bf16.mxu0 0
      %567 = vmatpush1.bf16.xpose.msra.mxu0 0
      %568 = vmatprep.subr.bf16.mxu0 0
      %569 = vmatpush1.bf16.xpose.msra.mxu0 0
      %570 = vmatprep.subr.bf16.mxu0 0
      %571 = vmatpush1.bf16.xpose.msra.mxu0 0
      %572 = vmatprep.subr.bf16.mxu0 0
      %573 = vmatpush1.bf16.xpose.msra.mxu0 0
      %574 = vmatprep.subr.bf16.mxu0 0
      %575 = vmatpush1.bf16.xpose.msra.mxu0 0
      %576 = vmatprep.subr.bf16.mxu0 0
      %577 = vmatpush1.bf16.xpose.msra.mxu0 0
      %578 = vmatprep.subr.bf16.mxu0 0
      %579 = vmatpush1.bf16.xpose.msra.mxu0 0
      %580 = vmatprep.subr.bf16.mxu0 0
      %581 = vmatpush1.bf16.xpose.msra.mxu0 0
      %582 = vmatprep.subr.bf16.mxu0 0
      %583 = vmatpush1.bf16.xpose.msra.mxu0 0
      %584 = vmatprep.subr.bf16.mxu0 0
      %585 = vmatpush1.bf16.xpose.msra.mxu0 0
      %586 = vmatprep.subr.bf16.mxu0 0
      %587 = vmatpush1.bf16.xpose.msra.mxu0 0
      %588 = vmatprep.subr.bf16.mxu0 0
      %589 = vmatpush1.bf16.xpose.msra.mxu0 0
      %590 = vmatprep.subr.bf16.mxu0 0
      %591 = vmatpush1.bf16.xpose.msra.mxu0 0
      %592 = vmatprep.mubr.bf16.mxu0 0
      %593 = vmatmul.mubr.bf16.gmra.mrb[0].mxu0 %v555
      %v594 = vpop.f32.mrb[0].mxu0
      %v595 = vadd.f32 %v550, %v594
      %v596 = vpop.f32.mrb[0].mxu0
      %v597 = vpop.f32.mrb[0].mxu0
      %v598 = vpop.f32.mrb[0].mxu0
      %599 = vdwg.mxu0
      %v600 = vsel %vm553, %v595, -inf
      %601 = vmax.xlane.f32.xlu0 %v600
      %v602 = vpop.xlane.xlu0 %601
      %v603 = vsub.f32 %v595, %v602
      %v604 = vmul.f32 %v603, 1.442695
      %v605 = vpow.pop %v604
      %v606 = vsel %vm553, %v605, 0.0
      %607 = vadd.xlane.f32.xlu0 %v606
      %v608 = vpop.xlane.xlu0 %607
      %v609 = vpack.c.bf16 %v605, %v605
      %611 = vrot.lane.b32.xlu0 %v552, 96
      %v612 = vpop.permute.xlu0 %611
      %v614 = vsel %vm553, %v609, 0
      %vm616 = vcmask 1043456
      %v618 = vsel %vm616, %v612, 0
      %620 = vmatprep.subr.bf16.mxu0 0
      %621 = vmatpush1.bf16.msra.mxu0 %v618
      %622 = vmatprep.subr.bf16.mxu0 0
      %623 = vmatpush1.bf16.msra.mxu0 0
      %624 = vmatprep.subr.bf16.mxu0 0
      %625 = vmatpush1.bf16.msra.mxu0 0
      %626 = vmatprep.subr.bf16.mxu0 0
      %627 = vmatpush1.bf16.msra.mxu0 0
      %628 = vmatprep.subr.bf16.mxu0 0
      %629 = vmatpush1.bf16.msra.mxu0 0
      %630 = vmatprep.subr.bf16.mxu0 0
      %631 = vmatpush1.bf16.msra.mxu0 0
      %632 = vmatprep.subr.bf16.mxu0 0
      %633 = vmatpush1.bf16.msra.mxu0 0
      %634 = vmatprep.subr.bf16.mxu0 0
      %635 = vmatpush1.bf16.msra.mxu0 0
      %636 = vmatprep.subr.bf16.mxu0 0
      %637 = vmatpush1.bf16.msra.mxu0 0
      %638 = vmatprep.subr.bf16.mxu0 0
      %639 = vmatpush1.bf16.msra.mxu0 0
      %640 = vmatprep.subr.bf16.mxu0 0
      %641 = vmatpush1.bf16.msra.mxu0 0
      %642 = vmatprep.subr.bf16.mxu0 0
      %643 = vmatpush1.bf16.msra.mxu0 0
      %644 = vmatprep.subr.bf16.mxu0 0
      %645 = vmatpush1.bf16.msra.mxu0 0
      %646 = vmatprep.subr.bf16.mxu0 0
      %647 = vmatpush1.bf16.msra.mxu0 0
      %648 = vmatprep.subr.bf16.mxu0 0
      %649 = vmatpush1.bf16.msra.mxu0 0
      %650 = vmatprep.subr.bf16.mxu0 0
      %651 = vmatpush1.bf16.msra.mxu0 0
      %652 = vmatprep.mubr.bf16.mxu0 0
      %653 = vmatmul.mubr.bf16.gmra.mrb[0].mxu0 %v614
      %v654 = vpop.f32.mrb[0].mxu0
      %v655 = vadd.f32 0.0, %v654
      %v656 = vpop.f32.mrb[0].mxu0
      %v657 = vpop.f32.mrb[0].mxu0
      %v658 = vpop.f32.mrb[0].mxu0
      %659 = vdwg.mxu0
      %v660 = vrcp.pop %v608
      %v661 = vmul.f32 %v655, %v660
      %v662 = vpack.c.bf16 %v661, %v661
      %v663 = vld [vmem:[%s6] sm:$0xf]
      %665 = vrot.lane.b32.xlu0 %v551, 120
      %v666 = vpop.permute.xlu0 %665
      %667 = vrot.lane.b32.xlu0 %v552, 120
      %v668 = vpop.permute.xlu0 %667
      %v670 = vsel %vm553, %v666, 0
      %v673 = vsel %vm553, %v668, 0
      %675 = vmatprep.subr.bf16.mxu0 0
      %676 = vmatpush1.bf16.xpose.msra.mxu0 %v673
      %677 = vmatprep.subr.bf16.mxu0 0
      %678 = vmatpush1.bf16.xpose.msra.mxu0 0
      %679 = vmatprep.subr.bf16.mxu0 0
      %680 = vmatpush1.bf16.xpose.msra.mxu0 0
      %681 = vmatprep.subr.bf16.mxu0 0
      %682 = vmatpush1.bf16.xpose.msra.mxu0 0
      %683 = vmatprep.subr.bf16.mxu0 0
      %684 = vmatpush1.bf16.xpose.msra.mxu0 0
      %685 = vmatprep.subr.bf16.mxu0 0
      %686 = vmatpush1.bf16.xpose.msra.mxu0 0
      %687 = vmatprep.subr.bf16.mxu0 0
      %688 = vmatpush1.bf16.xpose.msra.mxu0 0
      %689 = vmatprep.subr.bf16.mxu0 0
      %690 = vmatpush1.bf16.xpose.msra.mxu0 0
      %691 = vmatprep.subr.bf16.mxu0 0
      %692 = vmatpush1.bf16.xpose.msra.mxu0 0
      %693 = vmatprep.subr.bf16.mxu0 0
      %694 = vmatpush1.bf16.xpose.msra.mxu0 0
      %695 = vmatprep.subr.bf16.mxu0 0
      %696 = vmatpush1.bf16.xpose.msra.mxu0 0
      %697 = vmatprep.subr.bf16.mxu0 0
      %698 = vmatpush1.bf16.xpose.msra.mxu0 0
      %699 = vmatprep.subr.bf16.mxu0 0
      %700 = vmatpush1.bf16.xpose.msra.mxu0 0
      %701 = vmatprep.subr.bf16.mxu0 0
      %702 = vmatpush1.bf16.xpose.msra.mxu0 0
      %703 = vmatprep.subr.bf16.mxu0 0
      %704 = vmatpush1.bf16.xpose.msra.mxu0 0
      %705 = vmatprep.subr.bf16.mxu0 0
      %706 = vmatpush1.bf16.xpose.msra.mxu0 0
      %707 = vmatprep.mubr.bf16.mxu0 0
      %708 = vmatmul.mubr.bf16.gmra.mrb[0].mxu0 %v670
      %v709 = vpop.f32.mrb[0].mxu0
      %v710 = vadd.f32 %v550, %v709
      %v711 = vpop.f32.mrb[0].mxu0
      %v712 = vpop.f32.mrb[0].mxu0
      %v713 = vpop.f32.mrb[0].mxu0
      %714 = vdwg.mxu0
      %v715 = vsel %vm553, %v710, -inf
      %716 = vmax.xlane.f32.xlu0 %v715
      %v717 = vpop.xlane.xlu0 %716
      %v718 = vsub.f32 %v710, %v717
      %v719 = vmul.f32 %v718, 1.442695
      %v720 = vpow.pop %v719
      %v721 = vsel %vm553, %v720, 0.0
      %722 = vadd.xlane.f32.xlu0 %v721
      %v723 = vpop.xlane.xlu0 %722
      %v724 = vpack.c.bf16 %v720, %v720
      %725 = vrot.lane.b32.xlu0 %v552, 88
      %v726 = vpop.permute.xlu0 %725
      %v728 = vsel %vm553, %v724, 0
      %v731 = vsel %vm616, %v726, 0
      %733 = vmatprep.subr.bf16.mxu0 0
      %734 = vmatpush1.bf16.msra.mxu0 %v731
      %735 = vmatprep.subr.bf16.mxu0 0
      %736 = vmatpush1.bf16.msra.mxu0 0
      %737 = vmatprep.subr.bf16.mxu0 0
      %738 = vmatpush1.bf16.msra.mxu0 0
      %739 = vmatprep.subr.bf16.mxu0 0
      %740 = vmatpush1.bf16.msra.mxu0 0
      %741 = vmatprep.subr.bf16.mxu0 0
      %742 = vmatpush1.bf16.msra.mxu0 0
      %743 = vmatprep.subr.bf16.mxu0 0
      %744 = vmatpush1.bf16.msra.mxu0 0
      %745 = vmatprep.subr.bf16.mxu0 0
      %746 = vmatpush1.bf16.msra.mxu0 0
      %747 = vmatprep.subr.bf16.mxu0 0
      %748 = vmatpush1.bf16.msra.mxu0 0
      %749 = vmatprep.subr.bf16.mxu0 0
      %750 = vmatpush1.bf16.msra.mxu0 0
      %751 = vmatprep.subr.bf16.mxu0 0
      %752 = vmatpush1.bf16.msra.mxu0 0
      %753 = vmatprep.subr.bf16.mxu0 0
      %754 = vmatpush1.bf16.msra.mxu0 0
      %755 = vmatprep.subr.bf16.mxu0 0
      %756 = vmatpush1.bf16.msra.mxu0 0
      %757 = vmatprep.subr.bf16.mxu0 0
      %758 = vmatpush1.bf16.msra.mxu0 0
      %759 = vmatprep.subr.bf16.mxu0 0
      %760 = vmatpush1.bf16.msra.mxu0 0
      %761 = vmatprep.subr.bf16.mxu0 0
      %762 = vmatpush1.bf16.msra.mxu0 0
      %763 = vmatprep.subr.bf16.mxu0 0
      %764 = vmatpush1.bf16.msra.mxu0 0
      %765 = vmatprep.mubr.bf16.mxu0 0
      %766 = vmatmul.mubr.bf16.gmra.mrb[0].mxu0 %v728
      %v767 = vpop.f32.mrb[0].mxu0
      %v768 = vadd.f32 0.0, %v767
      %v769 = vpop.f32.mrb[0].mxu0
      %v770 = vpop.f32.mrb[0].mxu0
      %v771 = vpop.f32.mrb[0].mxu0
      %772 = vdwg.mxu0
      %v773 = vrcp.pop %v723
      %v774 = vmul.f32 %v768, %v773
      %v775 = vpack.c.bf16 %v774, %v774
      %s776 = scalar_lea.vmem %s6, 4
      %v777 = vld [vmem:[%s776] sm:$0xf]
      %v779 = vsel %vm553, %v775, 0
      %v782 = vsel %vm616, %v777, 0
      %784 = vmatprep.subr.bf16.mxu0 0
      %785 = vmatpush1.bf16.msra.mxu0 %v782
      %786 = vmatprep.subr.bf16.mxu0 0
      %787 = vmatpush1.bf16.msra.mxu0 0
      %788 = vmatprep.subr.bf16.mxu0 0
      %789 = vmatpush1.bf16.msra.mxu0 0
      %790 = vmatprep.subr.bf16.mxu0 0
      %791 = vmatpush1.bf16.msra.mxu0 0
      %792 = vmatprep.subr.bf16.mxu0 0
      %793 = vmatpush1.bf16.msra.mxu0 0
      %794 = vmatprep.subr.bf16.mxu0 0
      %795 = vmatpush1.bf16.msra.mxu0 0
      %796 = vmatprep.subr.bf16.mxu0 0
      %797 = vmatpush1.bf16.msra.mxu0 0
      %798 = vmatprep.subr.bf16.mxu0 0
      %799 = vmatpush1.bf16.msra.mxu0 0
      %800 = vmatprep.subr.bf16.mxu0 0
      %801 = vmatpush1.bf16.msra.mxu0 0
      %802 = vmatprep.subr.bf16.mxu0 0
      %803 = vmatpush1.bf16.msra.mxu0 0
      %804 = vmatprep.subr.bf16.mxu0 0
      %805 = vmatpush1.bf16.msra.mxu0 0
      %806 = vmatprep.subr.bf16.mxu0 0
      %807 = vmatpush1.bf16.msra.mxu0 0
      %808 = vmatprep.subr.bf16.mxu0 0
      %809 = vmatpush1.bf16.msra.mxu0 0
      %810 = vmatprep.subr.bf16.mxu0 0
      %811 = vmatpush1.bf16.msra.mxu0 0
      %812 = vmatprep.subr.bf16.mxu0 0
      %813 = vmatpush1.bf16.msra.mxu0 0
      %814 = vmatprep.subr.bf16.mxu0 0
      %815 = vmatpush1.bf16.msra.mxu0 0
      %816 = vmatprep.mubr.bf16.mxu0 0
      %817 = vmatmul.mubr.bf16.gmra.mrb[0].mxu0 %v779
      %v818 = vpop.f32.mrb[0].mxu0
      %v819 = vadd.f32 0.0, %v818
      %v820 = vpop.f32.mrb[0].mxu0
      %v821 = vpop.f32.mrb[0].mxu0
      %v822 = vpop.f32.mrb[0].mxu0
      %823 = vdwg.mxu0
      %v825 = vsel %vm553, %v662, 0
      %v828 = vsel %vm616, %v663, 0
      %830 = vmatprep.subr.bf16.mxu0 0
      %831 = vmatpush1.bf16.msra.mxu0 %v828
      %832 = vmatprep.subr.bf16.mxu0 0
      %833 = vmatpush1.bf16.msra.mxu0 0
      %834 = vmatprep.subr.bf16.mxu0 0
      %835 = vmatpush1.bf16.msra.mxu0 0
      %836 = vmatprep.subr.bf16.mxu0 0
      %837 = vmatpush1.bf16.msra.mxu0 0
      %838 = vmatprep.subr.bf16.mxu0 0
      %839 = vmatpush1.bf16.msra.mxu0 0
      %840 = vmatprep.subr.bf16.mxu0 0
      %841 = vmatpush1.bf16.msra.mxu0 0
      %842 = vmatprep.subr.bf16.mxu0 0
      %843 = vmatpush1.bf16.msra.mxu0 0
      %844 = vmatprep.subr.bf16.mxu0 0
      %845 = vmatpush1.bf16.msra.mxu0 0
      %846 = vmatprep.subr.bf16.mxu0 0
      %847 = vmatpush1.bf16.msra.mxu0 0
      %848 = vmatprep.subr.bf16.mxu0 0
      %849 = vmatpush1.bf16.msra.mxu0 0
      %850 = vmatprep.subr.bf16.mxu0 0
      %851 = vmatpush1.bf16.msra.mxu0 0
      %852 = vmatprep.subr.bf16.mxu0 0
      %853 = vmatpush1.bf16.msra.mxu0 0
      %854 = vmatprep.subr.bf16.mxu0 0
      %855 = vmatpush1.bf16.msra.mxu0 0
      %856 = vmatprep.subr.bf16.mxu0 0
      %857 = vmatpush1.bf16.msra.mxu0 0
      %858 = vmatprep.subr.bf16.mxu0 0
      %859 = vmatpush1.bf16.msra.mxu0 0
      %860 = vmatprep.subr.bf16.mxu0 0
      %861 = vmatpush1.bf16.msra.mxu0 0
      %862 = vmatprep.mubr.bf16.mxu0 0
      %863 = vmatmul.mubr.bf16.gmra.mrb[0].mxu0 %v825
      %v864 = vpop.f32.mrb[0].mxu0
      %v865 = vadd.f32 %v819, %v864
      %v866 = vpop.f32.mrb[0].mxu0
      %v867 = vpop.f32.mrb[0].mxu0
      %v868 = vpop.f32.mrb[0].mxu0
      %869 = vdwg.mxu0
      %870 = vrot.lane.b32.xlu0 %v551, 112
      %v871 = vpop.permute.xlu0 %870
      %872 = vrot.lane.b32.xlu0 %v552, 112
      %v873 = vpop.permute.xlu0 %872
      %v875 = vsel %vm553, %v871, 0
      %v878 = vsel %vm553, %v873, 0
      %880 = vmatprep.subr.bf16.mxu0 0
      %881 = vmatpush1.bf16.xpose.msra.mxu0 %v878
      %882 = vmatprep.subr.bf16.mxu0 0
      %883 = vmatpush1.bf16.xpose.msra.mxu0 0
      %884 = vmatprep.subr.bf16.mxu0 0
      %885 = vmatpush1.bf16.xpose.msra.mxu0 0
      %886 = vmatprep.subr.bf16.mxu0 0
      %887 = vmatpush1.bf16.xpose.msra.mxu0 0
      %888 = vmatprep.subr.bf16.mxu0 0
      %889 = vmatpush1.bf16.xpose.msra.mxu0 0
      %890 = vmatprep.subr.bf16.mxu0 0
      %891 = vmatpush1.bf16.xpose.msra.mxu0 0
      %892 = vmatprep.subr.bf16.mxu0 0
      %893 = vmatpush1.bf16.xpose.msra.mxu0 0
      %894 = vmatprep.subr.bf16.mxu0 0
      %895 = vmatpush1.bf16.xpose.msra.mxu0 0
      %896 = vmatprep.subr.bf16.mxu0 0
      %897 = vmatpush1.bf16.xpose.msra.mxu0 0
      %898 = vmatprep.subr.bf16.mxu0 0
      %899 = vmatpush1.bf16.xpose.msra.mxu0 0
      %900 = vmatprep.subr.bf16.mxu0 0
      %901 = vmatpush1.bf16.xpose.msra.mxu0 0
      %902 = vmatprep.subr.bf16.mxu0 0
      %903 = vmatpush1.bf16.xpose.msra.mxu0 0
      %904 = vmatprep.subr.bf16.mxu0 0
      %905 = vmatpush1.bf16.xpose.msra.mxu0 0
      %906 = vmatprep.subr.bf16.mxu0 0
      %907 = vmatpush1.bf16.xpose.msra.mxu0 0
      %908 = vmatprep.subr.bf16.mxu0 0
      %909 = vmatpush1.bf16.xpose.msra.mxu0 0
      %910 = vmatprep.subr.bf16.mxu0 0
      %911 = vmatpush1.bf16.xpose.msra.mxu0 0
      %912 = vmatprep.mubr.bf16.mxu0 0
      %913 = vmatmul.mubr.bf16.gmra.mrb[0].mxu0 %v875
      %v914 = vpop.f32.mrb[0].mxu0
      %v915 = vadd.f32 %v550, %v914
      %v916 = vpop.f32.mrb[0].mxu0
      %v917 = vpop.f32.mrb[0].mxu0
      %v918 = vpop.f32.mrb[0].mxu0
      %919 = vdwg.mxu0
      %v920 = vsel %vm553, %v915, -inf
      %921 = vmax.xlane.f32.xlu0 %v920
      %v922 = vpop.xlane.xlu0 %921
      %v923 = vsub.f32 %v915, %v922
      %v924 = vmul.f32 %v923, 1.442695
      %v925 = vpow.pop %v924
      %v926 = vsel %vm553, %v925, 0.0
      %927 = vadd.xlane.f32.xlu0 %v926
      %v928 = vpop.xlane.xlu0 %927
      %v929 = vpack.c.bf16 %v925, %v925
      %930 = vrot.lane.b32.xlu0 %v552, 80
      %v931 = vpop.permute.xlu0 %930
      %v933 = vsel %vm553, %v929, 0
      %v936 = vsel %vm616, %v931, 0
      %938 = vmatprep.subr.bf16.mxu0 0
      %939 = vmatpush1.bf16.msra.mxu0 %v936
      %940 = vmatprep.subr.bf16.mxu0 0
      %941 = vmatpush1.bf16.msra.mxu0 0
      %942 = vmatprep.subr.bf16.mxu0 0
      %943 = vmatpush1.bf16.msra.mxu0 0
      %944 = vmatprep.subr.bf16.mxu0 0
      %945 = vmatpush1.bf16.msra.mxu0 0
      %946 = vmatprep.subr.bf16.mxu0 0
      %947 = vmatpush1.bf16.msra.mxu0 0
      %948 = vmatprep.subr.bf16.mxu0 0
      %949 = vmatpush1.bf16.msra.mxu0 0
      %950 = vmatprep.subr.bf16.mxu0 0
      %951 = vmatpush1.bf16.msra.mxu0 0
      %952 = vmatprep.subr.bf16.mxu0 0
      %953 = vmatpush1.bf16.msra.mxu0 0
      %954 = vmatprep.subr.bf16.mxu0 0
      %955 = vmatpush1.bf16.msra.mxu0 0
      %956 = vmatprep.subr.bf16.mxu0 0
      %957 = vmatpush1.bf16.msra.mxu0 0
      %958 = vmatprep.subr.bf16.mxu0 0
      %959 = vmatpush1.bf16.msra.mxu0 0
      %960 = vmatprep.subr.bf16.mxu0 0
      %961 = vmatpush1.bf16.msra.mxu0 0
      %962 = vmatprep.subr.bf16.mxu0 0
      %963 = vmatpush1.bf16.msra.mxu0 0
      %964 = vmatprep.subr.bf16.mxu0 0
      %965 = vmatpush1.bf16.msra.mxu0 0
      %966 = vmatprep.subr.bf16.mxu0 0
      %967 = vmatpush1.bf16.msra.mxu0 0
      %968 = vmatprep.subr.bf16.mxu0 0
      %969 = vmatpush1.bf16.msra.mxu0 0
      %970 = vmatprep.mubr.bf16.mxu0 0
      %971 = vmatmul.mubr.bf16.gmra.mrb[0].mxu0 %v933
      %v972 = vpop.f32.mrb[0].mxu0
      %v973 = vadd.f32 0.0, %v972
      %v974 = vpop.f32.mrb[0].mxu0
      %v975 = vpop.f32.mrb[0].mxu0
      %v976 = vpop.f32.mrb[0].mxu0
      %977 = vdwg.mxu0
      %v978 = vrcp.pop %v928
      %v979 = vmul.f32 %v973, %v978
      %v980 = vpack.c.bf16 %v979, %v979
      %s981 = scalar_lea.vmem %s6, 8
      %v982 = vld [vmem:[%s981] sm:$0xf]
      %v984 = vsel %vm553, %v980, 0
      %v987 = vsel %vm616, %v982, 0
      %989 = vmatprep.subr.bf16.mxu0 0
      %990 = vmatpush1.bf16.msra.mxu0 %v987
      %991 = vmatprep.subr.bf16.mxu0 0
      %992 = vmatpush1.bf16.msra.mxu0 0
      %993 = vmatprep.subr.bf16.mxu0 0
      %994 = vmatpush1.bf16.msra.mxu0 0
      %995 = vmatprep.subr.bf16.mxu0 0
      %996 = vmatpush1.bf16.msra.mxu0 0
      %997 = vmatprep.subr.bf16.mxu0 0
      %998 = vmatpush1.bf16.msra.mxu0 0
      %999 = vmatprep.subr.bf16.mxu0 0
      %1000 = vmatpush1.bf16.msra.mxu0 0
      %1001 = vmatprep.subr.bf16.mxu0 0
      %1002 = vmatpush1.bf16.msra.mxu0 0
      %1003 = vmatprep.subr.bf16.mxu0 0
      %1004 = vmatpush1.bf16.msra.mxu0 0
      %1005 = vmatprep.subr.bf16.mxu0 0
      %1006 = vmatpush1.bf16.msra.mxu0 0
      %1007 = vmatprep.subr.bf16.mxu0 0
      %1008 = vmatpush1.bf16.msra.mxu0 0
      %1009 = vmatprep.subr.bf16.mxu0 0
      %1010 = vmatpush1.bf16.msra.mxu0 0
      %1011 = vmatprep.subr.bf16.mxu0 0
      %1012 = vmatpush1.bf16.msra.mxu0 0
      %1013 = vmatprep.subr.bf16.mxu0 0
      %1014 = vmatpush1.bf16.msra.mxu0 0
      %1015 = vmatprep.subr.bf16.mxu0 0
      %1016 = vmatpush1.bf16.msra.mxu0 0
      %1017 = vmatprep.subr.bf16.mxu0 0
      %1018 = vmatpush1.bf16.msra.mxu0 0
      %1019 = vmatprep.subr.bf16.mxu0 0
      %1020 = vmatpush1.bf16.msra.mxu0 0
      %1021 = vmatprep.mubr.bf16.mxu0 0
      %1022 = vmatmul.mubr.bf16.gmra.mrb[0].mxu0 %v984
      %v1023 = vpop.f32.mrb[0].mxu0
      %v1024 = vadd.f32 0.0, %v1023
      %v1025 = vpop.f32.mrb[0].mxu0
      %v1026 = vpop.f32.mrb[0].mxu0
      %v1027 = vpop.f32.mrb[0].mxu0
      %1028 = vdwg.mxu0
      %v1029 = vadd.f32 %v865, %v1024
      %1030 = vrot.lane.b32.xlu0 %v551, 104
      %v1031 = vpop.permute.xlu0 %1030
      %1032 = vrot.lane.b32.xlu0 %v552, 104
      %v1033 = vpop.permute.xlu0 %1032
      %v1035 = vsel %vm553, %v1031, 0
      %v1038 = vsel %vm553, %v1033, 0
      %1040 = vmatprep.subr.bf16.mxu0 0
      %1041 = vmatpush1.bf16.xpose.msra.mxu0 %v1038
      %1042 = vmatprep.subr.bf16.mxu0 0
      %1043 = vmatpush1.bf16.xpose.msra.mxu0 0
      %1044 = vmatprep.subr.bf16.mxu0 0
      %1045 = vmatpush1.bf16.xpose.msra.mxu0 0
      %1046 = vmatprep.subr.bf16.mxu0 0
      %1047 = vmatpush1.bf16.xpose.msra.mxu0 0
      %1048 = vmatprep.subr.bf16.mxu0 0
      %1049 = vmatpush1.bf16.xpose.msra.mxu0 0
      %1050 = vmatprep.subr.bf16.mxu0 0
      %1051 = vmatpush1.bf16.xpose.msra.mxu0 0
      %1052 = vmatprep.subr.bf16.mxu0 0
      %1053 = vmatpush1.bf16.xpose.msra.mxu0 0
      %1054 = vmatprep.subr.bf16.mxu0 0
      %1055 = vmatpush1.bf16.xpose.msra.mxu0 0
      %1056 = vmatprep.subr.bf16.mxu0 0
      %1057 = vmatpush1.bf16.xpose.msra.mxu0 0
      %1058 = vmatprep.subr.bf16.mxu0 0
      %1059 = vmatpush1.bf16.xpose.msra.mxu0 0
      %1060 = vmatprep.subr.bf16.mxu0 0
      %1061 = vmatpush1.bf16.xpose.msra.mxu0 0
      %1062 = vmatprep.subr.bf16.mxu0 0
      %1063 = vmatpush1.bf16.xpose.msra.mxu0 0
      %1064 = vmatprep.subr.bf16.mxu0 0
      %1065 = vmatpush1.bf16.xpose.msra.mxu0 0
      %1066 = vmatprep.subr.bf16.mxu0 0
      %1067 = vmatpush1.bf16.xpose.msra.mxu0 0
      %1068 = vmatprep.subr.bf16.mxu0 0
      %1069 = vmatpush1.bf16.xpose.msra.mxu0 0
      %1070 = vmatprep.subr.bf16.mxu0 0
      %1071 = vmatpush1.bf16.xpose.msra.mxu0 0
      %1072 = vmatprep.mubr.bf16.mxu0 0
      %1073 = vmatmul.mubr.bf16.gmra.mrb[0].mxu0 %v1035
      %v1074 = vpop.f32.mrb[0].mxu0
      %v1075 = vadd.f32 %v550, %v1074
      %v1076 = vpop.f32.mrb[0].mxu0
      %v1077 = vpop.f32.mrb[0].mxu0
      %v1078 = vpop.f32.mrb[0].mxu0
      %1079 = vdwg.mxu0
      %v1080 = vsel %vm553, %v1075, -inf
      %1081 = vmax.xlane.f32.xlu0 %v1080
      %v1082 = vpop.xlane.xlu0 %1081
      %v1083 = vsub.f32 %v1075, %v1082
      %v1084 = vmul.f32 %v1083, 1.442695
      %v1085 = vpow.pop %v1084
      %v1086 = vsel %vm553, %v1085, 0.0
      %1087 = vadd.xlane.f32.xlu0 %v1086
      %v1088 = vpop.xlane.xlu0 %1087
      %v1089 = vpack.c.bf16 %v1085, %v1085
      %1090 = vrot.lane.b32.xlu0 %v552, 72
      %v1091 = vpop.permute.xlu0 %1090
      %v1093 = vsel %vm553, %v1089, 0
      %v1096 = vsel %vm616, %v1091, 0
      %1098 = vmatprep.subr.bf16.mxu0 0
      %1099 = vmatpush1.bf16.msra.mxu0 %v1096
      %1100 = vmatprep.subr.bf16.mxu0 0
      %1101 = vmatpush1.bf16.msra.mxu0 0
      %1102 = vmatprep.subr.bf16.mxu0 0
      %1103 = vmatpush1.bf16.msra.mxu0 0
      %1104 = vmatprep.subr.bf16.mxu0 0
      %1105 = vmatpush1.bf16.msra.mxu0 0
      %1106 = vmatprep.subr.bf16.mxu0 0
      %1107 = vmatpush1.bf16.msra.mxu0 0
      %1108 = vmatprep.subr.bf16.mxu0 0
      %1109 = vmatpush1.bf16.msra.mxu0 0
      %1110 = vmatprep.subr.bf16.mxu0 0
      %1111 = vmatpush1.bf16.msra.mxu0 0
      %1112 = vmatprep.subr.bf16.mxu0 0
      %1113 = vmatpush1.bf16.msra.mxu0 0
      %1114 = vmatprep.subr.bf16.mxu0 0
      %1115 = vmatpush1.bf16.msra.mxu0 0
      %1116 = vmatprep.subr.bf16.mxu0 0
      %1117 = vmatpush1.bf16.msra.mxu0 0
      %1118 = vmatprep.subr.bf16.mxu0 0
      %1119 = vmatpush1.bf16.msra.mxu0 0
      %1120 = vmatprep.subr.bf16.mxu0 0
      %1121 = vmatpush1.bf16.msra.mxu0 0
      %1122 = vmatprep.subr.bf16.mxu0 0
      %1123 = vmatpush1.bf16.msra.mxu0 0
      %1124 = vmatprep.subr.bf16.mxu0 0
      %1125 = vmatpush1.bf16.msra.mxu0 0
      %1126 = vmatprep.subr.bf16.mxu0 0
      %1127 = vmatpush1.bf16.msra.mxu0 0
      %1128 = vmatprep.subr.bf16.mxu0 0
      %1129 = vmatpush1.bf16.msra.mxu0 0
      %1130 = vmatprep.mubr.bf16.mxu0 0
      %1131 = vmatmul.mubr.bf16.gmra.mrb[0].mxu0 %v1093
      %v1132 = vpop.f32.mrb[0].mxu0
      %v1133 = vadd.f32 0.0, %v1132
      %v1134 = vpop.f32.mrb[0].mxu0
      %v1135 = vpop.f32.mrb[0].mxu0
      %v1136 = vpop.f32.mrb[0].mxu0
      %1137 = vdwg.mxu0
      %v1138 = vrcp.pop %v1088
      %v1139 = vmul.f32 %v1133, %v1138
      %v1140 = vpack.c.bf16 %v1139, %v1139
      %s1141 = scalar_lea.vmem %s6, 12
      %v1142 = vld [vmem:[%s1141] sm:$0xf]
      %v1144 = vsel %vm553, %v1140, 0
      %v1147 = vsel %vm616, %v1142, 0
      %1149 = vmatprep.subr.bf16.mxu0 0
      %1150 = vmatpush1.bf16.msra.mxu0 %v1147
      %1151 = vmatprep.subr.bf16.mxu0 0
      %1152 = vmatpush1.bf16.msra.mxu0 0
      %1153 = vmatprep.subr.bf16.mxu0 0
      %1154 = vmatpush1.bf16.msra.mxu0 0
      %1155 = vmatprep.subr.bf16.mxu0 0
      %1156 = vmatpush1.bf16.msra.mxu0 0
      %1157 = vmatprep.subr.bf16.mxu0 0
      %1158 = vmatpush1.bf16.msra.mxu0 0
      %1159 = vmatprep.subr.bf16.mxu0 0
      %1160 = vmatpush1.bf16.msra.mxu0 0
      %1161 = vmatprep.subr.bf16.mxu0 0
      %1162 = vmatpush1.bf16.msra.mxu0 0
      %1163 = vmatprep.subr.bf16.mxu0 0
      %1164 = vmatpush1.bf16.msra.mxu0 0
      %1165 = vmatprep.subr.bf16.mxu0 0
      %1166 = vmatpush1.bf16.msra.mxu0 0
      %1167 = vmatprep.subr.bf16.mxu0 0
      %1168 = vmatpush1.bf16.msra.mxu0 0
      %1169 = vmatprep.subr.bf16.mxu0 0
      %1170 = vmatpush1.bf16.msra.mxu0 0
      %1171 = vmatprep.subr.bf16.mxu0 0
      %1172 = vmatpush1.bf16.msra.mxu0 0
      %1173 = vmatprep.subr.bf16.mxu0 0
      %1174 = vmatpush1.bf16.msra.mxu0 0
      %1175 = vmatprep.subr.bf16.mxu0 0
      %1176 = vmatpush1.bf16.msra.mxu0 0
      %1177 = vmatprep.subr.bf16.mxu0 0
      %1178 = vmatpush1.bf16.msra.mxu0 0
      %1179 = vmatprep.subr.bf16.mxu0 0
      %1180 = vmatpush1.bf16.msra.mxu0 0
      %1181 = vmatprep.mubr.bf16.mxu0 0
      %1182 = vmatmul.mubr.bf16.gmra.mrb[0].mxu0 %v1144
      %v1183 = vpop.f32.mrb[0].mxu0
      %v1184 = vadd.f32 0.0, %v1183
      %v1185 = vpop.f32.mrb[0].mxu0
      %v1186 = vpop.f32.mrb[0].mxu0
      %v1187 = vpop.f32.mrb[0].mxu0
      %1188 = vdwg.mxu0
      %v1189 = vadd.f32 %v1029, %v1184
      %v1190 = vadd.f32 %v404, %v1189
      %v1191 = vld [vmem:[%s7] sm:$0x1]
      %v1193 = vlaneseq
      %v1194 = vshrl.u32 %v1193, 7
      %v1195 = vsub.s32 0, %v1194
      %v1196 = vrot.slane %v1191, %v1195
      %v1198 = vadd.f32 %v1190, %v1196
      %v1199 = vld [vmem:[%s8] sm:$0x1]
      %v1200 = vld [vmem:[%s9] sm:$0x1]
      %v1201 = vsel %vm430, %v1198, 0.0
      %1202 = vadd.xlane.f32.xlu0 %v1201
      %v1203 = vpop.xlane.xlu0 %1202
      %v1204 = vrcp.pop 32.0
      %v1205 = vmul.f32 %v1203, %v1204
      %v1206 = vsub.f32 %v1198, %v1205
      %v1207 = vmul.f32 %v1206, %v1206
      %v1208 = vsel %vm430, %v1207, 0.0
      %1209 = vadd.xlane.f32.xlu0 %v1208
      %v1210 = vpop.xlane.xlu0 %1209
      %v1211 = vmul.f32 %v1210, %v1204
      %v1212 = vadd.f32 %v1211, 1e-05
      %v1213 = vrsqrt.pop %v1212
      %v1214 = vmul.f32 %v1206, %v1213
      %v1216 = vlaneseq
      %v1217 = vshrl.u32 %v1216, 7
      %v1218 = vsub.s32 0, %v1217
      %v1219 = vrot.slane %v1199, %v1218
      %v1221 = vmul.f32 %v1214, %v1219
      %v1223 = vlaneseq
      %v1224 = vshrl.u32 %v1223, 7
      %v1225 = vsub.s32 0, %v1224
      %v1226 = vrot.slane %v1200, %v1225
      %v1228 = vadd.f32 %v1221, %v1226
      %1229 = vst.msk [vmem:[%s402] sm:$0xff] %vm430, %v1228
      %p1230 = scmp.lt.s32.totalorder %s25, 1
      %s1231 = scalar_select %p1230, %s25, 1
      %p1232 = scmp.lt.s32.totalorder %s26, 0
      %s1233 = scalar_select %p1232, %s26, 0
      %s1234 = sadd.s32 %s1233, %s1231
      %s1235 = smul.addr %s1234, 8
      %s1236 = scalar_lea.vmem %s10, %s1235
      // Predicated region
      $region61: #{transformer_forward.18} parent=59 // pred_check
        %p1237 = pneg %p275
      $region62: #{transformer_forward.18} parent=59 // pred_check_branch
        %1239 = sbr.rel (%p1237) target = $region64
      $region63: #{transformer_forward.18} parent=59 // pred_region
        _
      $region64: #{transformer_forward.18} parent=59 // pred_fallthru
        _
    $region60: #{transformer_forward.18} parent=5 // pred_fallthru
      _
    %p1240 = scmp.le.s32.totalorder 2, %s16
    // Predicated region
    $region65: #{transformer_forward.18} parent=5 // pred_check
      %p1241 = pneg %p1240
    $region66: #{transformer_forward.18} parent=5 // pred_check_branch
      %1243 = sbr.rel (%p1241) target = $region68
    $region67: #{transformer_forward.18} parent=5 // pred_region
      %s1244 = ssub.s32 %s16, 2
      // Predicated region
      $region69: #{transformer_forward.18} parent=67 // pred_check
        %p1245 = pneg %p281
      $region70: #{transformer_forward.18} parent=67 // pred_check_branch
        %1247 = sbr.rel (%p1245) target = $region72
      $region71: #{transformer_forward.18} parent=67 // pred_region
        %p1248 = scmp.lt.s32.totalorder %s27, 1
        %s1249 = scalar_select %p1248, %s27, 1
        %p1250 = scmp.lt.s32.totalorder %s28, 0
        %s1251 = scalar_select %p1250, %s28, 0
        %s1252 = sadd.s32 %s1251, %s1249
        %s1253 = smul.addr %s1252, 8
        %s1254 = scalar_lea.vmem %s10, %s1253
      $region72: #{transformer_forward.18} parent=67 // pred_fallthru
        _
    $region68: #{transformer_forward.18} parent=5 // pred_fallthru
      _
  $region6: #{transformer_forward.18} parent=0 // loop_footer
    %s20 = sadd.s32 1, %s16
  $region7: #{transformer_forward.18} parent=0 // loop_footer_branch
    %15 = sbr.rel target = $region3
  $region8: #{transformer_forward.18} parent=0 // loop_exit
    _

// kernel: transformer_forward.20
$region0: #{transformer_forward.20}
  #allocation0 [shape = 'u32[]', space=smem, size = 0x4, offset = 0x4, fixed_abs, tag = 'smem constant byte address 0x4 - core index']
  #allocation1 [shape = 'u32[144,128]{1,0:T(1,128)}', space=vmem, size = 0x12000, scoped, tag = 'internal scratch']
  %s0 = inlined_call_operand.vmem [shape: f32[16,32], index: 0, kind: input, shape index: {}]
  %s1 = inlined_call_operand.vmem [shape: bf16[32,64], index: 1, kind: input, shape index: {}]
  %s2 = inlined_call_operand.vmem [shape: f32[1,64], index: 2, kind: input, shape index: {}]
  %s3 = inlined_call_operand.vmem [shape: bf16[64,32], index: 3, kind: input, shape index: {}]
  %s4 = inlined_call_operand.vmem [shape: f32[1,32], index: 4, kind: input, shape index: {}]
  %s5 = inlined_call_operand.vmem [shape: f32[1,32], index: 5, kind: input, shape index: {}]
  %s6 = inlined_call_operand.vmem [shape: f32[1,32], index: 6, kind: input, shape index: {}]
  %s7 = inlined_call_operand.vmem [shape: f32[16,32], index: 7, kind: output, shape index: {}]
  %s8 = sld [smem:[#allocation0]]
  $region38: #{transformer_forward.20} parent=0
    _
  %s10 = ssub.s32 1, %s8
  %s11 = scalar_select 0, %s10, %s8
  // Predicated region
  $region2: #{transformer_forward.20} parent=0 // pred_check
    _
  $region3: #{transformer_forward.20} parent=0 // pred_check_branch
    %13 = sbr.rel (0) target = $region5
  $region4: #{transformer_forward.20} parent=0 // pred_region
    _
  $region5: #{transformer_forward.20} parent=0 // pred_fallthru
    _
  // Predicated region
  $region6: #{transformer_forward.20} parent=0 // pred_check
    _
  $region7: #{transformer_forward.20} parent=0 // pred_check_branch
    %15 = sbr.rel (0) target = $region9
  $region8: #{transformer_forward.20} parent=0 // pred_region
    _
  $region9: #{transformer_forward.20} parent=0 // pred_fallthru
    _
  // Predicated region
  $region10: #{transformer_forward.20} parent=0 // pred_check
    _
  $region11: #{transformer_forward.20} parent=0 // pred_check_branch
    %17 = sbr.rel (0) target = $region13
  $region12: #{transformer_forward.20} parent=0 // pred_region
    _
  $region13: #{transformer_forward.20} parent=0 // pred_fallthru
    _
  // Predicated region
  $region14: #{transformer_forward.20} parent=0 // pred_check
    _
  $region15: #{transformer_forward.20} parent=0 // pred_check_branch
    %19 = sbr.rel (0) target = $region17
  $region16: #{transformer_forward.20} parent=0 // pred_region
    _
  $region17: #{transformer_forward.20} parent=0 // pred_fallthru
    _
  // Predicated region
  $region18: #{transformer_forward.20} parent=0 // pred_check
    _
  $region19: #{transformer_forward.20} parent=0 // pred_check_branch
    %21 = sbr.rel (0) target = $region21
  $region20: #{transformer_forward.20} parent=0 // pred_region
    _
  $region21: #{transformer_forward.20} parent=0 // pred_fallthru
    _
  // Predicated region
  $region22: #{transformer_forward.20} parent=0 // pred_check
    _
  $region23: #{transformer_forward.20} parent=0 // pred_check_branch
    %23 = sbr.rel (0) target = $region25
  $region24: #{transformer_forward.20} parent=0 // pred_region
    _
  $region25: #{transformer_forward.20} parent=0 // pred_fallthru
    _
  // Predicated region
  $region26: #{transformer_forward.20} parent=0 // pred_check
    _
  $region27: #{transformer_forward.20} parent=0 // pred_check_branch
    %25 = sbr.rel (0) target = $region29
  $region28: #{transformer_forward.20} parent=0 // pred_region
    _
  $region29: #{transformer_forward.20} parent=0 // pred_fallthru
    _
  %v27 = vld [vmem:[%s0] sm:$0xff]
  %v28 = vld [vmem:[%s0 + $0x8] sm:$0xff]
  %v29 = vpack.c.bf16 %v28, %v27
  %v30 = vld [vmem:[%s1] sm:$0xf]
  %v31 = vld [vmem:[%s1 + $0x4] sm:$0xf]
  %v32 = vld [vmem:[%s1 + $0x8] sm:$0xf]
  %v33 = vld [vmem:[%s1 + $0xc] sm:$0xf]
  %v34 = vld [vmem:[%s2] sm:$0x1]
  %v36 = vlaneseq
  %v37 = vshrl.u32 %v36, 7
  %v38 = vsub.s32 0, %v37
  %v39 = vrot.slane %v34, %v38
  %v45 = vunpack.c.l.b16 %v30
  %v46 = vunpack.c.l.b16 %v31
  %v47 = vunpack.c.l.b16 %v32
  %v48 = vunpack.c.l.b16 %v33
  %v49 = vpack.c.b16 %v46, %v45
  %v50 = vpack.c.b16 %v48, %v47
  %vm53 = vcmask 261120
  %v55 = vsel %vm53, %v29, 0
  %57 = vmatprep.subr.bf16.mxu0 0
  %58 = vmatpush1.bf16.msra.mxu0 %v49
  %59 = vmatprep.subr.bf16.mxu0 0
  %60 = vmatpush1.bf16.msra.mxu0 %v50
  %61 = vmatprep.subr.bf16.mxu0 0
  %62 = vmatpush1.bf16.msra.mxu0 0
  %63 = vmatprep.subr.bf16.mxu0 0
  %64 = vmatpush1.bf16.msra.mxu0 0
  %65 = vmatprep.subr.bf16.mxu0 0
  %66 = vmatpush1.bf16.msra.mxu0 0
  %67 = vmatprep.subr.bf16.mxu0 0
  %68 = vmatpush1.bf16.msra.mxu0 0
  %69 = vmatprep.subr.bf16.mxu0 0
  %70 = vmatpush1.bf16.msra.mxu0 0
  %71 = vmatprep.subr.bf16.mxu0 0
  %72 = vmatpush1.bf16.msra.mxu0 0
  %73 = vmatprep.subr.bf16.mxu0 0
  %74 = vmatpush1.bf16.msra.mxu0 0
  %75 = vmatprep.subr.bf16.mxu0 0
  %76 = vmatpush1.bf16.msra.mxu0 0
  %77 = vmatprep.subr.bf16.mxu0 0
  %78 = vmatpush1.bf16.msra.mxu0 0
  %79 = vmatprep.subr.bf16.mxu0 0
  %80 = vmatpush1.bf16.msra.mxu0 0
  %81 = vmatprep.subr.bf16.mxu0 0
  %82 = vmatpush1.bf16.msra.mxu0 0
  %83 = vmatprep.subr.bf16.mxu0 0
  %84 = vmatpush1.bf16.msra.mxu0 0
  %85 = vmatprep.subr.bf16.mxu0 0
  %86 = vmatpush1.bf16.msra.mxu0 0
  %87 = vmatprep.subr.bf16.mxu0 0
  %88 = vmatpush1.bf16.msra.mxu0 0
  %89 = vmatprep.mubr.bf16.mxu0 0
  %90 = vmatmul.mubr.bf16.gmra.mrb[0].mxu0 %v55
  %v91 = vpop.f32.mrb[0].mxu0
  %v92 = vadd.f32 %v39, %v91
  %v93 = vpop.f32.mrb[0].mxu0
  %v94 = vpop.f32.mrb[0].mxu0
  %v95 = vadd.f32 %v39, %v94
  %v96 = vpop.f32.mrb[0].mxu0
  %97 = vdwg.mxu0
  %v98 = vmax.f32 %v92, 0.0
  %v99 = vmax.f32 %v95, 0.0
  %v100 = vpack.c.bf16 %v99, %v98
  %v101 = vld [vmem:[%s3] sm:$0xf]
  %v102 = vld [vmem:[%s3 + $0x4] sm:$0xf]
  %v103 = vld [vmem:[%s3 + $0x8] sm:$0xf]
  %v104 = vld [vmem:[%s3 + $0xc] sm:$0xf]
  %v105 = vld [vmem:[%s3 + $0x10] sm:$0xf]
  %v106 = vld [vmem:[%s3 + $0x14] sm:$0xf]
  %v107 = vld [vmem:[%s3 + $0x18] sm:$0xf]
  %v108 = vld [vmem:[%s3 + $0x1c] sm:$0xf]
  %v117 = vunpack.c.l.b16 %v101
  %v118 = vunpack.c.l.b16 %v102
  %v119 = vunpack.c.l.b16 %v103
  %v120 = vunpack.c.l.b16 %v104
  %v121 = vunpack.c.l.b16 %v105
  %v122 = vunpack.c.l.b16 %v106
  %v123 = vunpack.c.l.b16 %v107
  %v124 = vunpack.c.l.b16 %v108
  %v125 = vpack.c.b16 %v118, %v117
  %v126 = vpack.c.b16 %v120, %v119
  %v127 = vpack.c.b16 %v122, %v121
  %v128 = vpack.c.b16 %v124, %v123
  %vm133 = vcmask 523264
  %v135 = vsel %vm133, %v100, 0
  %137 = vmatprep.subr.bf16.mxu0 0
  %138 = vmatpush1.bf16.msra.mxu0 %v125
  %139 = vmatprep.subr.bf16.mxu0 0
  %140 = vmatpush1.bf16.msra.mxu0 %v126
  %141 = vmatprep.subr.bf16.mxu0 0
  %142 = vmatpush1.bf16.msra.mxu0 %v127
  %143 = vmatprep.subr.bf16.mxu0 0
  %144 = vmatpush1.bf16.msra.mxu0 %v128
  %145 = vmatprep.subr.bf16.mxu0 0
  %146 = vmatpush1.bf16.msra.mxu0 0
  %147 = vmatprep.subr.bf16.mxu0 0
  %148 = vmatpush1.bf16.msra.mxu0 0
  %149 = vmatprep.subr.bf16.mxu0 0
  %150 = vmatpush1.bf16.msra.mxu0 0
  %151 = vmatprep.subr.bf16.mxu0 0
  %152 = vmatpush1.bf16.msra.mxu0 0
  %153 = vmatprep.subr.bf16.mxu0 0
  %154 = vmatpush1.bf16.msra.mxu0 0
  %155 = vmatprep.subr.bf16.mxu0 0
  %156 = vmatpush1.bf16.msra.mxu0 0
  %157 = vmatprep.subr.bf16.mxu0 0
  %158 = vmatpush1.bf16.msra.mxu0 0
  %159 = vmatprep.subr.bf16.mxu0 0
  %160 = vmatpush1.bf16.msra.mxu0 0
  %161 = vmatprep.subr.bf16.mxu0 0
  %162 = vmatpush1.bf16.msra.mxu0 0
  %163 = vmatprep.subr.bf16.mxu0 0
  %164 = vmatpush1.bf16.msra.mxu0 0
  %165 = vmatprep.subr.bf16.mxu0 0
  %166 = vmatpush1.bf16.msra.mxu0 0
  %167 = vmatprep.subr.bf16.mxu0 0
  %168 = vmatpush1.bf16.msra.mxu0 0
  %169 = vmatprep.mubr.bf16.mxu0 0
  %170 = vmatmul.mubr.bf16.gmra.mrb[0].mxu0 %v135
  %v171 = vpop.f32.mrb[0].mxu0
  %v172 = vadd.f32 0.0, %v171
  %v173 = vpop.f32.mrb[0].mxu0
  %v174 = vpop.f32.mrb[0].mxu0
  %v175 = vadd.f32 0.0, %v174
  %v176 = vpop.f32.mrb[0].mxu0
  %177 = vdwg.mxu0
  %v178 = vadd.f32 %v27, %v172
  %v179 = vadd.f32 %v28, %v175
  %v180 = vld [vmem:[%s4] sm:$0x1]
  %v182 = vlaneseq
  %v183 = vshrl.u32 %v182, 7
  %v184 = vsub.s32 0, %v183
  %v185 = vrot.slane %v180, %v184
  %v187 = vadd.f32 %v178, %v185
  %v188 = vadd.f32 %v179, %v185
  %v189 = vld [vmem:[%s5] sm:$0x1]
  %v190 = vld [vmem:[%s6] sm:$0x1]
  %v191 = vsel %vm53, %v187, 0.0
  %192 = vadd.xlane.f32.xlu0 %v191
  %v193 = vpop.xlane.xlu0 %192
  %v194 = vsel %vm53, %v188, 0.0
  %195 = vadd.xlane.f32.xlu0 %v194
  %v196 = vpop.xlane.xlu0 %195
  %v197 = vrcp.pop 32.0
  %v198 = vmul.f32 %v193, %v197
  %v199 = vmul.f32 %v196, %v197
  %v200 = vsub.f32 %v187, %v198
  %v201 = vsub.f32 %v188, %v199
  %v202 = vmul.f32 %v200, %v200
  %v203 = vmul.f32 %v201, %v201
  %v204 = vsel %vm53, %v202, 0.0
  %205 = vadd.xlane.f32.xlu0 %v204
  %v206 = vpop.xlane.xlu0 %205
  %v207 = vsel %vm53, %v203, 0.0
  %208 = vadd.xlane.f32.xlu0 %v207
  %v209 = vpop.xlane.xlu0 %208
  %v210 = vmul.f32 %v206, %v197
  %v211 = vmul.f32 %v209, %v197
  %v212 = vadd.f32 %v210, 1e-05
  %v213 = vadd.f32 %v211, 1e-05
  %v214 = vrsqrt.pop %v212
  %v215 = vrsqrt.pop %v213
  %v216 = vmul.f32 %v200, %v214
  %v217 = vmul.f32 %v201, %v215
  %v219 = vlaneseq
  %v220 = vshrl.u32 %v219, 7
  %v221 = vsub.s32 0, %v220
  %v222 = vrot.slane %v189, %v221
  %v224 = vmul.f32 %v216, %v222
  %v225 = vmul.f32 %v217, %v222
  %v227 = vlaneseq
  %v228 = vshrl.u32 %v227, 7
  %v229 = vsub.s32 0, %v228
  %v230 = vrot.slane %v190, %v229
  %v232 = vadd.f32 %v224, %v230
  %v233 = vadd.f32 %v225, %v230
  %234 = vst.msk [vmem:[%s7] sm:$0xff] %vm53, %v232
  %235 = vst.msk [vmem:[%s7 + $0x8] sm:$0xff] %vm53, %v233
  // Predicated region
  $region30: #{transformer_forward.20} parent=0 // pred_check
    _
  $region31: #{transformer_forward.20} parent=0 // pred_check_branch
    %237 = sbr.rel (0) target = $region33
  $region32: #{transformer_forward.20} parent=0 // pred_region
    _
  $region33: #{transformer_forward.20} parent=0 // pred_fallthru
    _
  // Predicated region
  $region34: #{transformer_forward.20} parent=0 // pred_check
    _
  $region35: #{transformer_forward.20} parent=0 // pred_check_branch
    %239 = sbr.rel (0) target = $region37
  $region36: #{transformer_forward.20} parent=0 // pred_region
    _
  $region37: #{transformer_forward.20} parent=0 // pred_fallthru
    _

// kernel: transformer_forward.24
$region0: #{transformer_forward.24}
  #allocation0 [shape = 'u32[]', space=smem, size = 0x4, offset = 0x4, fixed_abs, tag = 'smem constant byte address 0x4 - core index']
  #allocation1 [shape = 'u32[144,128]{1,0:T(1,128)}', space=vmem, size = 0x12000, scoped, tag = 'internal scratch']
  %s0 = inlined_call_operand.vmem [shape: f32[16,32], index: 0, kind: input, shape index: {}]
  %s1 = inlined_call_operand.vmem [shape: f32[1,32], index: 1, kind: input, shape index: {}]
  %s2 = inlined_call_operand.vmem [shape: f32[1,32], index: 2, kind: input, shape index: {}]
  %s3 = inlined_call_operand.vmem [shape: f32[16,32], index: 3, kind: output, shape index: {}]
  %s4 = sld [smem:[#allocation0]]
  $region22: #{transformer_forward.24} parent=0
    _
  %s6 = ssub.s32 1, %s4
  %s7 = scalar_select 0, %s6, %s4
  // Predicated region
  $region2: #{transformer_forward.24} parent=0 // pred_check
    _
  $region3: #{transformer_forward.24} parent=0 // pred_check_branch
    %9 = sbr.rel (0) target = $region5
  $region4: #{transformer_forward.24} parent=0 // pred_region
    _
  $region5: #{transformer_forward.24} parent=0 // pred_fallthru
    _
  // Predicated region
  $region6: #{transformer_forward.24} parent=0 // pred_check
    _
  $region7: #{transformer_forward.24} parent=0 // pred_check_branch
    %11 = sbr.rel (0) target = $region9
  $region8: #{transformer_forward.24} parent=0 // pred_region
    _
  $region9: #{transformer_forward.24} parent=0 // pred_fallthru
    _
  // Predicated region
  $region10: #{transformer_forward.24} parent=0 // pred_check
    _
  $region11: #{transformer_forward.24} parent=0 // pred_check_branch
    %13 = sbr.rel (0) target = $region13
  $region12: #{transformer_forward.24} parent=0 // pred_region
    _
  $region13: #{transformer_forward.24} parent=0 // pred_fallthru
    _
  %v14 = vld [vmem:[%s0] sm:$0xff]
  %v15 = vld [vmem:[%s0 + $0x8] sm:$0xff]
  %v16 = vld [vmem:[%s1] sm:$0x1]
  %v17 = vld [vmem:[%s2] sm:$0x1]
  %vm18 = vcmask 261120
  %v19 = vsel %vm18, %v14, 0.0
  %20 = vadd.xlane.f32.xlu0 %v19
  %v21 = vpop.xlane.xlu0 %20
  %v22 = vsel %vm18, %v15, 0.0
  %23 = vadd.xlane.f32.xlu0 %v22
  %v24 = vpop.xlane.xlu0 %23
  %v25 = vrcp.pop 32.0
  %v26 = vmul.f32 %v21, %v25
  %v27 = vmul.f32 %v24, %v25
  %v28 = vsub.f32 %v14, %v26
  %v29 = vsub.f32 %v15, %v27
  %v30 = vmul.f32 %v28, %v28
  %v31 = vmul.f32 %v29, %v29
  %v32 = vsel %vm18, %v30, 0.0
  %33 = vadd.xlane.f32.xlu0 %v32
  %v34 = vpop.xlane.xlu0 %33
  %v35 = vsel %vm18, %v31, 0.0
  %36 = vadd.xlane.f32.xlu0 %v35
  %v37 = vpop.xlane.xlu0 %36
  %v38 = vmul.f32 %v34, %v25
  %v39 = vmul.f32 %v37, %v25
  %v40 = vadd.f32 %v38, 1e-05
  %v41 = vadd.f32 %v39, 1e-05
  %v42 = vrsqrt.pop %v40
  %v43 = vrsqrt.pop %v41
  %v44 = vmul.f32 %v28, %v42
  %v45 = vmul.f32 %v29, %v43
  %v47 = vlaneseq
  %v48 = vshrl.u32 %v47, 7
  %v49 = vsub.s32 0, %v48
  %v50 = vrot.slane %v16, %v49
  %v52 = vmul.f32 %v44, %v50
  %v53 = vmul.f32 %v45, %v50
  %v55 = vlaneseq
  %v56 = vshrl.u32 %v55, 7
  %v57 = vsub.s32 0, %v56
  %v58 = vrot.slane %v17, %v57
  %v60 = vadd.f32 %v52, %v58
  %v61 = vadd.f32 %v53, %v58
  %62 = vst.msk [vmem:[%s3] sm:$0xff] %vm18, %v60
  %63 = vst.msk [vmem:[%s3 + $0x8] sm:$0xff] %vm18, %v61
  // Predicated region
  $region14: #{transformer_forward.24} parent=0 // pred_check
    _
  $region15: #{transformer_forward.24} parent=0 // pred_check_branch
    %65 = sbr.rel (0) target = $region17
  $region16: #{transformer_forward.24} parent=0 // pred_region
    _
  $region17: #{transformer_forward.24} parent=0 // pred_fallthru
    _
  // Predicated region
  $region18: #{transformer_forward.24} parent=0 // pred_check
    _
  $region19: #{transformer_forward.24} parent=0 // pred_check_branch
    %67 = sbr.rel (0) target = $region21
  $region20: #{transformer_forward.24} parent=0 // pred_region
    _
  $region21: #{transformer_forward.24} parent=0 // pred_fallthru
    _

// kernel: transformer_forward.19
$region0: #{transformer_forward.19}
  #allocation0 [shape = 'u32[]', space=smem, size = 0x4, offset = 0x4, fixed_abs, tag = 'smem constant byte address 0x4 - core index']
  #allocation1 [shape = 'u32[144,128]{1,0:T(1,128)}', space=vmem, size = 0x12000, scoped, tag = 'internal scratch']
  %s0 = inlined_call_operand.vmem [shape: f32[2,8,32], index: 0, kind: input, shape index: {}]
  %s1 = inlined_call_operand.vmem [shape: f32[2,10,32], index: 1, kind: input, shape index: {}]
  %s2 = inlined_call_operand.vmem [shape: bf16[32,32], index: 2, kind: input, shape index: {}]
  %s3 = inlined_call_operand.vmem [shape: f32[1,32], index: 3, kind: input, shape index: {}]
  %s4 = inlined_call_operand.vmem [shape: bf16[32,64], index: 4, kind: input, shape index: {}]
  %s5 = inlined_call_operand.vmem [shape: f32[1,64], index: 5, kind: input, shape index: {}]
  %s6 = inlined_call_operand.vmem [shape: bf16[4,8,32], index: 6, kind: input, shape index: {}]
  %s7 = inlined_call_operand.vmem [shape: f32[1,32], index: 7, kind: input, shape index: {}]
  %s8 = inlined_call_operand.vmem [shape: f32[1,32], index: 8, kind: input, shape index: {}]
  %s9 = inlined_call_operand.vmem [shape: f32[1,32], index: 9, kind: input, shape index: {}]
  %s10 = inlined_call_operand.vmem [shape: f32[2,8,32], index: 10, kind: output, shape index: {}]
  %s11 = sld [smem:[#allocation0]]
  $region73: #{transformer_forward.19} parent=0
    _
  %s13 = ssub.s32 1, %s11
  %s14 = scalar_select 0, %s13, %s11
  loop: start=0, step=1, limit=4
  $region2: #{transformer_forward.19} parent=0 // loop_pre_header
    _
  $region3: #{transformer_forward.19} parent=0 // loop_header
    %s16 = sphi 0, %s20
    %p17 = scmp.ge.s32.totalorder %s16, 4
    %s23 = sphi 0, %s35
    %s24 = sphi 0, %s31
    %s25 = sphi 0, %s23
    %s26 = sphi 0, %s24
    %s27 = sphi 0, %s25
    %s28 = sphi 0, %s26
    %s40 = sphi 0, %s42
    %s43 = sphi 0, %s40
    %s44 = sphi 0, %s43
    %s60 = sphi 0, %s44
    %s66 = sphi 0, %s68
    %s69 = sphi 0, %s66
    %s70 = sphi 0, %s69
    %s86 = sphi 0, %s70
    %s90 = sphi 0, %s90
    %s92 = sphi 0, %s90
    %s93 = sphi 0, %s92
    %s107 = sphi 0, %s93
    %s111 = sphi 0, %s111
    %s113 = sphi 0, %s111
    %s114 = sphi 0, %s113
    %s128 = sphi 0, %s114
    %s132 = sphi 0, %s132
    %s134 = sphi 0, %s132
    %s135 = sphi 0, %s134
    %s149 = sphi 0, %s135
    %s153 = sphi 0, %s153
    %s155 = sphi 0, %s153
    %s156 = sphi 0, %s155
    %s170 = sphi 0, %s156
    %s174 = sphi 0, %s174
    %s176 = sphi 0, %s174
    %s177 = sphi 0, %s176
    %s191 = sphi 0, %s177
    %s195 = sphi 0, %s195
    %s197 = sphi 0, %s195
    %s198 = sphi 0, %s197
    %s212 = sphi 0, %s198
    %s216 = sphi 0, %s216
    %s218 = sphi 0, %s216
    %s219 = sphi 0, %s218
    %s233 = sphi 0, %s219
    %s237 = sphi 0, %s237
    %s239 = sphi 0, %s237
    %s240 = sphi 0, %s239
    %s254 = sphi 0, %s240
    %s262 = sphi 0, %s264
    %s265 = sphi 0, %s262
    %s266 = sphi 0, %s265
    %s282 = sphi 0, %s266
  $region4: #{transformer_forward.19} parent=0 // loop_header_branch
    %19 = sbr.rel (%p17) target = $region8
  $region5: #{transformer_forward.19} parent=0 // loop_body
    %s21 = ssub.s32 %s16, 1
    %s22 = ssub.s32 %s16, 2
    %s29 = sadd.s32 1, %s24
    %p30 = scmp.ge.s32.totalorder %s29, 1
    %s31 = scalar_select %p30, 0, %s29
    %s32 = sadd.s32 1, %s23
    %s33 = scalar_select %p30, %s32, %s23
    %p34 = scmp.ge.s32.totalorder %s33, 2
    %s35 = scalar_select %p34, 0, %s33
    %s36 = ssub.s32 %s23, %s35
    %s37 = ssub.s32 %s24, %s31
    %s38 = sor.u32 %s36, %s37
    %p39 = scmp.eq.s32.totalorder %s38, 0
    %s41 = sadd.s32 %s40, 1
    %s42 = scalar_select %p39, %s40, %s41
    %p45 = pneg %p39
    %p46 = scmp.eq.s32.totalorder %s16, 1
    %p47 = por %p45, %p46
    %p48 = scmp.ne.s32.totalorder %s40, %s43
    %p49 = scmp.eq.s32.totalorder %s16, 0
    %p50 = por %p48, %p49
    %p51 = scmp.ne.s32.totalorder %s40, %s43
    %p52 = scmp.eq.s32.totalorder %s21, 1
    %p53 = por %p51, %p52
    %p54 = scmp.ne.s32.totalorder %s43, %s44
    %p55 = scmp.eq.s32.totalorder %s21, 0
    %p56 = por %p54, %p55
    %p57 = scmp.ne.s32.totalorder %s43, %s44
    %p58 = scmp.eq.s32.totalorder %s22, 1
    %p59 = por %p57, %p58
    %p61 = scmp.ne.s32.totalorder %s44, %s60
    %p62 = scmp.eq.s32.totalorder %s22, 0
    %p63 = por %p61, %p62
    %s64 = ssub.s32 %s23, %s35
    %p65 = scmp.eq.s32.totalorder %s64, 0
    %s67 = sadd.s32 %s66, 1
    %s68 = scalar_select %p65, %s66, %s67
    %p71 = pneg %p65
    %p72 = scmp.eq.s32.totalorder %s16, 1
    %p73 = por %p71, %p72
    %p74 = scmp.ne.s32.totalorder %s66, %s69
    %p75 = scmp.eq.s32.totalorder %s16, 0
    %p76 = por %p74, %p75
    %p77 = scmp.ne.s32.totalorder %s66, %s69
    %p78 = scmp.eq.s32.totalorder %s21, 1
    %p79 = por %p77, %p78
    %p80 = scmp.ne.s32.totalorder %s69, %s70
    %p81 = scmp.eq.s32.totalorder %s21, 0
    %p82 = por %p80, %p81
    %p83 = scmp.ne.s32.totalorder %s69, %s70
    %p84 = scmp.eq.s32.totalorder %s22, 1
    %p85 = por %p83, %p84
    %p87 = scmp.ne.s32.totalorder %s70, %s86
    %p88 = scmp.eq.s32.totalorder %s22, 0
    %p89 = por %p87, %p88
    %s91 = sadd.s32 %s90, 1
    %p94 = scmp.eq.s32.totalorder %s16, 1
    %p95 = scmp.ne.s32.totalorder %s90, %s92
    %p96 = scmp.eq.s32.totalorder %s16, 0
    %p97 = por %p95, %p96
    %p98 = scmp.ne.s32.totalorder %s90, %s92
    %p99 = scmp.eq.s32.totalorder %s21, 1
    %p100 = por %p98, %p99
    %p101 = scmp.ne.s32.totalorder %s92, %s93
    %p102 = scmp.eq.s32.totalorder %s21, 0
    %p103 = por %p101, %p102
    %p104 = scmp.ne.s32.totalorder %s92, %s93
    %p105 = scmp.eq.s32.totalorder %s22, 1
    %p106 = por %p104, %p105
    %p108 = scmp.ne.s32.totalorder %s93, %s107
    %p109 = scmp.eq.s32.totalorder %s22, 0
    %p110 = por %p108, %p109
    %s112 = sadd.s32 %s111, 1
    %p115 = scmp.eq.s32.totalorder %s16, 1
    %p116 = scmp.ne.s32.totalorder %s111, %s113
    %p117 = scmp.eq.s32.totalorder %s16, 0
    %p118 = por %p116, %p117
    %p119 = scmp.ne.s32.totalorder %s111, %s113
    %p120 = scmp.eq.s32.totalorder %s21, 1
    %p121 = por %p119, %p120
    %p122 = scmp.ne.s32.totalorder %s113, %s114
    %p123 = scmp.eq.s32.totalorder %s21, 0
    %p124 = por %p122, %p123
    %p125 = scmp.ne.s32.totalorder %s113, %s114
    %p126 = scmp.eq.s32.totalorder %s22, 1
    %p127 = por %p125, %p126
    %p129 = scmp.ne.s32.totalorder %s114, %s128
    %p130 = scmp.eq.s32.totalorder %s22, 0
    %p131 = por %p129, %p130
    %s133 = sadd.s32 %s132, 1
    %p136 = scmp.eq.s32.totalorder %s16, 1
    %p137 = scmp.ne.s32.totalorder %s132, %s134
    %p138 = scmp.eq.s32.totalorder %s16, 0
    %p139 = por %p137, %p138
    %p140 = scmp.ne.s32.totalorder %s132, %s134
    %p141 = scmp.eq.s32.totalorder %s21, 1
    %p142 = por %p140, %p141
    %p143 = scmp.ne.s32.totalorder %s134, %s135
    %p144 = scmp.eq.s32.totalorder %s21, 0
    %p145 = por %p143, %p144
    %p146 = scmp.ne.s32.totalorder %s134, %s135
    %p147 = scmp.eq.s32.totalorder %s22, 1
    %p148 = por %p146, %p147
    %p150 = scmp.ne.s32.totalorder %s135, %s149
    %p151 = scmp.eq.s32.totalorder %s22, 0
    %p152 = por %p150, %p151
    %s154 = sadd.s32 %s153, 1
    %p157 = scmp.eq.s32.totalorder %s16, 1
    %p158 = scmp.ne.s32.totalorder %s153, %s155
    %p159 = scmp.eq.s32.totalorder %s16, 0
    %p160 = por %p158, %p159
    %p161 = scmp.ne.s32.totalorder %s153, %s155
    %p162 = scmp.eq.s32.totalorder %s21, 1
    %p163 = por %p161, %p162
    %p164 = scmp.ne.s32.totalorder %s155, %s156
    %p165 = scmp.eq.s32.totalorder %s21, 0
    %p166 = por %p164, %p165
    %p167 = scmp.ne.s32.totalorder %s155, %s156
    %p168 = scmp.eq.s32.totalorder %s22, 1
    %p169 = por %p167, %p168
    %p171 = scmp.ne.s32.totalorder %s156, %s170
    %p172 = scmp.eq.s32.totalorder %s22, 0
    %p173 = por %p171, %p172
    %s175 = sadd.s32 %s174, 1
    %p178 = scmp.eq.s32.totalorder %s16, 1
    %p179 = scmp.ne.s32.totalorder %s174, %s176
    %p180 = scmp.eq.s32.totalorder %s16, 0
    %p181 = por %p179, %p180
    %p182 = scmp.ne.s32.totalorder %s174, %s176
    %p183 = scmp.eq.s32.totalorder %s21, 1
    %p184 = por %p182, %p183
    %p185 = scmp.ne.s32.totalorder %s176, %s177
    %p186 = scmp.eq.s32.totalorder %s21, 0
    %p187 = por %p185, %p186
    %p188 = scmp.ne.s32.totalorder %s176, %s177
    %p189 = scmp.eq.s32.totalorder %s22, 1
    %p190 = por %p188, %p189
    %p192 = scmp.ne.s32.totalorder %s177, %s191
    %p193 = scmp.eq.s32.totalorder %s22, 0
    %p194 = por %p192, %p193
    %s196 = sadd.s32 %s195, 1
    %p199 = scmp.eq.s32.totalorder %s16, 1
    %p200 = scmp.ne.s32.totalorder %s195, %s197
    %p201 = scmp.eq.s32.totalorder %s16, 0
    %p202 = por %p200, %p201
    %p203 = scmp.ne.s32.totalorder %s195, %s197
    %p204 = scmp.eq.s32.totalorder %s21, 1
    %p205 = por %p203, %p204
    %p206 = scmp.ne.s32.totalorder %s197, %s198
    %p207 = scmp.eq.s32.totalorder %s21, 0
    %p208 = por %p206, %p207
    %p209 = scmp.ne.s32.totalorder %s197, %s198
    %p210 = scmp.eq.s32.totalorder %s22, 1
    %p211 = por %p209, %p210
    %p213 = scmp.ne.s32.totalorder %s198, %s212
    %p214 = scmp.eq.s32.totalorder %s22, 0
    %p215 = por %p213, %p214
    %s217 = sadd.s32 %s216, 1
    %p220 = scmp.eq.s32.totalorder %s16, 1
    %p221 = scmp.ne.s32.totalorder %s216, %s218
    %p222 = scmp.eq.s32.totalorder %s16, 0
    %p223 = por %p221, %p222
    %p224 = scmp.ne.s32.totalorder %s216, %s218
    %p225 = scmp.eq.s32.totalorder %s21, 1
    %p226 = por %p224, %p225
    %p227 = scmp.ne.s32.totalorder %s218, %s219
    %p228 = scmp.eq.s32.totalorder %s21, 0
    %p229 = por %p227, %p228
    %p230 = scmp.ne.s32.totalorder %s218, %s219
    %p231 = scmp.eq.s32.totalorder %s22, 1
    %p232 = por %p230, %p231
    %p234 = scmp.ne.s32.totalorder %s219, %s233
    %p235 = scmp.eq.s32.totalorder %s22, 0
    %p236 = por %p234, %p235
    %s238 = sadd.s32 %s237, 1
    %p241 = scmp.eq.s32.totalorder %s16, 1
    %p242 = scmp.ne.s32.totalorder %s237, %s239
    %p243 = scmp.eq.s32.totalorder %s16, 0
    %p244 = por %p242, %p243
    %p245 = scmp.ne.s32.totalorder %s237, %s239
    %p246 = scmp.eq.s32.totalorder %s21, 1
    %p247 = por %p245, %p246
    %p248 = scmp.ne.s32.totalorder %s239, %s240
    %p249 = scmp.eq.s32.totalorder %s21, 0
    %p250 = por %p248, %p249
    %p251 = scmp.ne.s32.totalorder %s239, %s240
    %p252 = scmp.eq.s32.totalorder %s22, 1
    %p253 = por %p251, %p252
    %p255 = scmp.ne.s32.totalorder %s240, %s254
    %p256 = scmp.eq.s32.totalorder %s22, 0
    %p257 = por %p255, %p256
    %s258 = ssub.s32 %s23, %s35
    %s259 = ssub.s32 %s24, %s31
    %s260 = sor.u32 %s258, %s259
    %p261 = scmp.eq.s32.totalorder %s260, 0
    %s263 = sadd.s32 %s262, 1
    %s264 = scalar_select %p261, %s262, %s263
    %p267 = pneg %p261
    %p268 = scmp.eq.s32.totalorder %s16, 1
    %p269 = por %p267, %p268
    %p270 = scmp.ne.s32.totalorder %s262, %s265
    %p271 = scmp.eq.s32.totalorder %s16, 0
    %p272 = por %p270, %p271
    %p273 = scmp.ne.s32.totalorder %s262, %s265
    %p274 = scmp.eq.s32.totalorder %s21, 1
    %p275 = por %p273, %p274
    %p276 = scmp.ne.s32.totalorder %s265, %s266
    %p277 = scmp.eq.s32.totalorder %s21, 0
    %p278 = por %p276, %p277
    %p279 = scmp.ne.s32.totalorder %s265, %s266
    %p280 = scmp.eq.s32.totalorder %s22, 1
    %p281 = por %p279, %p280
    %p283 = scmp.ne.s32.totalorder %s266, %s282
    %p284 = scmp.eq.s32.totalorder %s22, 0
    %p285 = por %p283, %p284
    %p286 = scmp.le.s32.totalorder 1, %s16
    %p287 = scmp.lt.s32.totalorder %s16, 3
    %p288 = pnand %p286, %p287
    %p289 = pneg %p288
    // Predicated region
    $region9: #{transformer_forward.19} parent=5 // pred_check
      _
    $region10: #{transformer_forward.19} parent=5 // pred_check_branch
      %291 = sbr.rel (%p288) target = $region12
    $region11: #{transformer_forward.19} parent=5 // pred_region
      %s292 = ssub.s32 %s16, 1
      // Predicated region
      $region13: #{transformer_forward.19} parent=11 // pred_check
        %p293 = pneg %p103
      $region14: #{transformer_forward.19} parent=11 // pred_check_branch
        %295 = sbr.rel (%p293) target = $region16
      $region15: #{transformer_forward.19} parent=11 // pred_region
        _
      $region16: #{transformer_forward.19} parent=11 // pred_fallthru
        _
      // Predicated region
      $region17: #{transformer_forward.19} parent=11 // pred_check
        %p296 = pneg %p124
      $region18: #{transformer_forward.19} parent=11 // pred_check_branch
        %298 = sbr.rel (%p296) target = $region20
      $region19: #{transformer_forward.19} parent=11 // pred_region
        _
      $region20: #{transformer_forward.19} parent=11 // pred_fallthru
        _
      // Predicated region
      $region21: #{transformer_forward.19} parent=11 // pred_check
        %p299 = pneg %p145
      $region22: #{transformer_forward.19} parent=11 // pred_check_branch
        %301 = sbr.rel (%p299) target = $region24
      $region23: #{transformer_forward.19} parent=11 // pred_region
        _
      $region24: #{transformer_forward.19} parent=11 // pred_fallthru
        _
      // Predicated region
      $region25: #{transformer_forward.19} parent=11 // pred_check
        %p302 = pneg %p166
      $region26: #{transformer_forward.19} parent=11 // pred_check_branch
        %304 = sbr.rel (%p302) target = $region28
      $region27: #{transformer_forward.19} parent=11 // pred_region
        _
      $region28: #{transformer_forward.19} parent=11 // pred_fallthru
        _
      // Predicated region
      $region29: #{transformer_forward.19} parent=11 // pred_check
        %p305 = pneg %p187
      $region30: #{transformer_forward.19} parent=11 // pred_check_branch
        %307 = sbr.rel (%p305) target = $region32
      $region31: #{transformer_forward.19} parent=11 // pred_region
        _
      $region32: #{transformer_forward.19} parent=11 // pred_fallthru
        _
      // Predicated region
      $region33: #{transformer_forward.19} parent=11 // pred_check
        %p308 = pneg %p208
      $region34: #{transformer_forward.19} parent=11 // pred_check_branch
        %310 = sbr.rel (%p308) target = $region36
      $region35: #{transformer_forward.19} parent=11 // pred_region
        _
      $region36: #{transformer_forward.19} parent=11 // pred_fallthru
        _
      // Predicated region
      $region37: #{transformer_forward.19} parent=11 // pred_check
        %p311 = pneg %p229
      $region38: #{transformer_forward.19} parent=11 // pred_check_branch
        %313 = sbr.rel (%p311) target = $region40
      $region39: #{transformer_forward.19} parent=11 // pred_region
        _
      $region40: #{transformer_forward.19} parent=11 // pred_fallthru
        _
      // Predicated region
      $region41: #{transformer_forward.19} parent=11 // pred_check
        %p314 = pneg %p250
      $region42: #{transformer_forward.19} parent=11 // pred_check_branch
        %316 = sbr.rel (%p314) target = $region44
      $region43: #{transformer_forward.19} parent=11 // pred_region
        _
      $region44: #{transformer_forward.19} parent=11 // pred_fallthru
        _
    $region12: #{transformer_forward.19} parent=5 // pred_fallthru
      _
    %p317 = scmp.lt.s32.totalorder %s16, 2
    // Predicated region
    $region45: #{transformer_forward.19} parent=5 // pred_check
      %p318 = pneg %p317
    $region46: #{transformer_forward.19} parent=5 // pred_check_branch
      %320 = sbr.rel (%p318) target = $region48
    $region47: #{transformer_forward.19} parent=5 // pred_region
      // Predicated region
      $region49: #{transformer_forward.19} parent=47 // pred_check
        %p321 = pneg %p50
      $region50: #{transformer_forward.19} parent=47 // pred_check_branch
        %323 = sbr.rel (%p321) target = $region52
      $region51: #{transformer_forward.19} parent=47 // pred_region
        %p324 = scmp.lt.s32.totalorder %s23, 1
        %s325 = scalar_select %p324, %s23, 1
        %p326 = scmp.lt.s32.totalorder %s24, 0
        %s327 = scalar_select %p326, %s24, 0
        %s328 = sadd.s32 %s327, %s325
        %s329 = smul.addr %s328, 8
        %s330 = scalar_lea.vmem %s0, %s329
      $region52: #{transformer_forward.19} parent=47 // pred_fallthru
        _
      // Predicated region
      $region53: #{transformer_forward.19} parent=47 // pred_check
        %p331 = pneg %p76
      $region54: #{transformer_forward.19} parent=47 // pred_check_branch
        %333 = sbr.rel (%p331) target = $region56
      $region55: #{transformer_forward.19} parent=47 // pred_region
        %p334 = scmp.lt.s32.totalorder %s23, 1
        %s335 = scalar_select %p334, %s23, 1
        %s336 = smul.addr %s335, 2
        %s337 = smul.addr %s336, 8
        %s338 = scalar_lea.vmem %s1, %s337
      $region56: #{transformer_forward.19} parent=47 // pred_fallthru
        _
    $region48: #{transformer_forward.19} parent=5 // pred_fallthru
      _
    %p339 = scmp.le.s32.totalorder 1, %s16
    %p340 = scmp.lt.s32.totalorder %s16, 3
    %p341 = pnand %p339, %p340
    %p342 = pneg %p341
    // Predicated region
    $region57: #{transformer_forward.19} parent=5 // pred_check
      _
    $region58: #{transformer_forward.19} parent=5 // pred_check_branch
      %344 = sbr.rel (%p341) target = $region60
    $region59: #{transformer_forward.19} parent=5 // pred_region
      %s345 = ssub.s32 %s16, 1
      %p346 = scmp.lt.s32.totalorder %s25, 1
      %s347 = scalar_select %p346, %s25, 1
      %p348 = scmp.lt.s32.totalorder %s26, 0
      %s349 = scalar_select %p348, %s26, 0
      %s350 = sadd.s32 %s349, %s347
      %s351 = smul.addr %s350, 8
      %s352 = scalar_lea.vmem %s0, %s351
      %p353 = pneg %p56
      %p354 = pneg %p53
      %p355 = scmp.lt.s32.totalorder %s25, 1
      %s356 = scalar_select %p355, %s25, 1
      %s357 = smul.addr %s356, 2
      %s358 = smul.addr %s357, 8
      %s359 = scalar_lea.vmem %s1, %s358
      %p360 = pneg %p82
      %p361 = pneg %p79
      %p362 = pneg %p103
      %p363 = pneg %p100
      %p364 = pneg %p124
      %p365 = pneg %p121
      %p366 = pneg %p145
      %p367 = pneg %p142
      %p368 = pneg %p166
      %p369 = pneg %p163
      %p370 = pneg %p187
      %p371 = pneg %p184
      %p372 = pneg %p208
      %p373 = pneg %p205
      %p374 = pneg %p229
      %p375 = pneg %p226
      %p376 = pneg %p250
      %p377 = pneg %p247
      %p378 = pneg %p278
      %p379 = pneg %p275
      %p380 = scmp.lt.s32.totalorder %s25, 1
      %s381 = scalar_select %p380, %s25, 1
      %p382 = scmp.lt.s32.totalorder %s26, 0
      %s383 = scalar_select %p382, %s26, 0
      %s384 = sadd.s32 %s383, %s381
      %s385 = smul.addr %s384, 8
      %s386 = scalar_lea.vmem %s10, %s385
      %p387 = scmp.lt.s32.totalorder %s25, 1
      %s388 = scalar_select %p387, %s25, 1
      %p389 = scmp.lt.s32.totalorder %s26, 0
      %s390 = scalar_select %p389, %s26, 0
      %s391 = sadd.s32 %s390, %s388
      %s392 = smul.addr %s391, 8
      %s393 = scalar_lea.vmem %s0, %s392
      %p394 = scmp.lt.s32.totalorder %s25, 1
      %s395 = scalar_select %p394, %s25, 1
      %s396 = smul.addr %s395, 2
      %s397 = smul.addr %s396, 8
      %s398 = scalar_lea.vmem %s1, %s397
      %p399 = scmp.lt.s32.totalorder %s25, 1
      %s400 = scalar_select %p399, %s25, 1
      %p401 = scmp.lt.s32.totalorder %s26, 0
      %s402 = scalar_select %p401, %s26, 0
      %s403 = sadd.s32 %s402, %s400
      %s404 = smul.addr %s403, 8
      %s405 = scalar_lea.vmem %s10, %s404
      %v407 = vld [vmem:[%s393] sm:$0xff]
      %v408 = vld [vmem:[%s398] sm:$0xff]
      %v409 = vld [vmem:[%s398 + $0x8] sm:$0x3]
      %v410 = vpack.c.bf16 %v407, %v407
      %v411 = vld [vmem:[%s2] sm:$0xf]
      %v412 = vld [vmem:[%s2 + $0x4] sm:$0xf]
      %v413 = vld [vmem:[%s2 + $0x8] sm:$0xf]
      %v414 = vld [vmem:[%s2 + $0xc] sm:$0xf]
      %v415 = vld [vmem:[%s3] sm:$0x1]
      %v417 = vlaneseq
      %v418 = vshrl.u32 %v417, 7
      %v419 = vsub.s32 0, %v418
      %v420 = vrot.slane %v415, %v419
      %v426 = vunpack.c.l.b16 %v411
      %v427 = vunpack.c.l.b16 %v412
      %v428 = vunpack.c.l.b16 %v413
      %v429 = vunpack.c.l.b16 %v414
      %v430 = vpack.c.b16 %v427, %v426
      %v431 = vpack.c.b16 %v429, %v428
      %vm434 = vcmask 261120
      %v436 = vsel %vm434, %v410, 0
      %438 = vmatprep.subr.bf16.mxu0 0
      %439 = vmatpush1.bf16.msra.mxu0 %v430
      %440 = vmatprep.subr.bf16.mxu0 0
      %441 = vmatpush1.bf16.msra.mxu0 %v431
      %442 = vmatprep.subr.bf16.mxu0 0
      %443 = vmatpush1.bf16.msra.mxu0 0
      %444 = vmatprep.subr.bf16.mxu0 0
      %445 = vmatpush1.bf16.msra.mxu0 0
      %446 = vmatprep.subr.bf16.mxu0 0
      %447 = vmatpush1.bf16.msra.mxu0 0
      %448 = vmatprep.subr.bf16.mxu0 0
      %449 = vmatpush1.bf16.msra.mxu0 0
      %450 = vmatprep.subr.bf16.mxu0 0
      %451 = vmatpush1.bf16.msra.mxu0 0
      %452 = vmatprep.subr.bf16.mxu0 0
      %453 = vmatpush1.bf16.msra.mxu0 0
      %454 = vmatprep.subr.bf16.mxu0 0
      %455 = vmatpush1.bf16.msra.mxu0 0
      %456 = vmatprep.subr.bf16.mxu0 0
      %457 = vmatpush1.bf16.msra.mxu0 0
      %458 = vmatprep.subr.bf16.mxu0 0
      %459 = vmatpush1.bf16.msra.mxu0 0
      %460 = vmatprep.subr.bf16.mxu0 0
      %461 = vmatpush1.bf16.msra.mxu0 0
      %462 = vmatprep.subr.bf16.mxu0 0
      %463 = vmatpush1.bf16.msra.mxu0 0
      %464 = vmatprep.subr.bf16.mxu0 0
      %465 = vmatpush1.bf16.msra.mxu0 0
      %466 = vmatprep.subr.bf16.mxu0 0
      %467 = vmatpush1.bf16.msra.mxu0 0
      %468 = vmatprep.subr.bf16.mxu0 0
      %469 = vmatpush1.bf16.msra.mxu0 0
      %470 = vmatprep.mubr.bf16.mxu0 0
      %471 = vmatmul.mubr.bf16.gmra.mrb[0].mxu0 %v436
      %v472 = vpop.f32.mrb[0].mxu0
      %v473 = vadd.f32 %v420, %v472
      %v474 = vpop.f32.mrb[0].mxu0
      %v475 = vpop.f32.mrb[0].mxu0
      %v476 = vpop.f32.mrb[0].mxu0
      %477 = vdwg.mxu0
      %v478 = vmul.f32 %v473, 0.35355338
      %v479 = vpack.c.bf16 %v409, %v408
      %v480 = vld [vmem:[%s4] sm:$0xf]
      %v481 = vld [vmem:[%s4 + $0x4] sm:$0xf]
      %v482 = vld [vmem:[%s4 + $0x8] sm:$0xf]
      %v483 = vld [vmem:[%s4 + $0xc] sm:$0xf]
      %v484 = vld [vmem:[%s5] sm:$0x1]
      %v486 = vlaneseq
      %v487 = vshrl.u32 %v486, 7
      %v488 = vsub.s32 0, %v487
      %v489 = vrot.slane %v484, %v488
      %v495 = vunpack.c.l.b16 %v480
      %v496 = vunpack.c.l.b16 %v481
      %v497 = vunpack.c.l.b16 %v482
      %v498 = vunpack.c.l.b16 %v483
      %v499 = vpack.c.b16 %v496, %v495
      %v500 = vpack.c.b16 %v498, %v497
      %v504 = vsel %vm434, %v479, 0
      %506 = vmatprep.subr.bf16.mxu0 0
      %507 = vmatpush1.bf16.msra.mxu0 %v499
      %508 = vmatprep.subr.bf16.mxu0 0
      %509 = vmatpush1.bf16.msra.mxu0 %v500
      %510 = vmatprep.subr.bf16.mxu0 0
      %511 = vmatpush1.bf16.msra.mxu0 0
      %512 = vmatprep.subr.bf16.mxu0 0
      %513 = vmatpush1.bf16.msra.mxu0 0
      %514 = vmatprep.subr.bf16.mxu0 0
      %515 = vmatpush1.bf16.msra.mxu0 0
      %516 = vmatprep.subr.bf16.mxu0 0
      %517 = vmatpush1.bf16.msra.mxu0 0
      %518 = vmatprep.subr.bf16.mxu0 0
      %519 = vmatpush1.bf16.msra.mxu0 0
      %520 = vmatprep.subr.bf16.mxu0 0
      %521 = vmatpush1.bf16.msra.mxu0 0
      %522 = vmatprep.subr.bf16.mxu0 0
      %523 = vmatpush1.bf16.msra.mxu0 0
      %524 = vmatprep.subr.bf16.mxu0 0
      %525 = vmatpush1.bf16.msra.mxu0 0
      %526 = vmatprep.subr.bf16.mxu0 0
      %527 = vmatpush1.bf16.msra.mxu0 0
      %528 = vmatprep.subr.bf16.mxu0 0
      %529 = vmatpush1.bf16.msra.mxu0 0
      %530 = vmatprep.subr.bf16.mxu0 0
      %531 = vmatpush1.bf16.msra.mxu0 0
      %532 = vmatprep.subr.bf16.mxu0 0
      %533 = vmatpush1.bf16.msra.mxu0 0
      %534 = vmatprep.subr.bf16.mxu0 0
      %535 = vmatpush1.bf16.msra.mxu0 0
      %536 = vmatprep.subr.bf16.mxu0 0
      %537 = vmatpush1.bf16.msra.mxu0 0
      %538 = vmatprep.mubr.bf16.mxu0 0
      %539 = vmatmul.mubr.bf16.gmra.mrb[0].mxu0 %v504
      %v540 = vpop.f32.mrb[0].mxu0
      %v541 = vadd.f32 %v489, %v540
      %v542 = vpop.f32.mrb[0].mxu0
      %v543 = vpop.f32.mrb[0].mxu0
      %v544 = vadd.f32 %v489, %v543
      %v545 = vpop.f32.mrb[0].mxu0
      %546 = vdwg.mxu0
      %v547 = vpack.c.bf16 %v478, %v478
      %v548 = vpack.c.bf16 %v544, %v541
      %vm549 = vcmask 64512
      %v551 = vsel %vm549, %v547, 0
      %v554 = vsel %vm549, %v548, 0
      %556 = vmatprep.subr.bf16.mxu0 0
      %557 = vmatpush1.bf16.xpose.msra.mxu0 %v554
      %558 = vmatprep.subr.bf16.mxu0 0
      %559 = vmatpush1.bf16.xpose.msra.mxu0 0
      %560 = vmatprep.subr.bf16.mxu0 0
      %561 = vmatpush1.bf16.xpose.msra.mxu0 0
      %562 = vmatprep.subr.bf16.mxu0 0
      %563 = vmatpush1.bf16.xpose.msra.mxu0 0
      %564 = vmatprep.subr.bf16.mxu0 0
      %565 = vmatpush1.bf16.xpose.msra.mxu0 0
      %566 = vmatprep.subr.bf16.mxu0 0
      %567 = vmatpush1.bf16.xpose.msra.mxu0 0
      %568 = vmatprep.subr.bf16.mxu0 0
      %569 = vmatpush1.bf16.xpose.msra.mxu0 0
      %570 = vmatprep.subr.bf16.mxu0 0
      %571 = vmatpush1.bf16.xpose.msra.mxu0 0
      %572 = vmatprep.subr.bf16.mxu0 0
      %573 = vmatpush1.bf16.xpose.msra.mxu0 0
      %574 = vmatprep.subr.bf16.mxu0 0
      %575 = vmatpush1.bf16.xpose.msra.mxu0 0
      %576 = vmatprep.subr.bf16.mxu0 0
      %577 = vmatpush1.bf16.xpose.msra.mxu0 0
      %578 = vmatprep.subr.bf16.mxu0 0
      %579 = vmatpush1.bf16.xpose.msra.mxu0 0
      %580 = vmatprep.subr.bf16.mxu0 0
      %581 = vmatpush1.bf16.xpose.msra.mxu0 0
      %582 = vmatprep.subr.bf16.mxu0 0
      %583 = vmatpush1.bf16.xpose.msra.mxu0 0
      %584 = vmatprep.subr.bf16.mxu0 0
      %585 = vmatpush1.bf16.xpose.msra.mxu0 0
      %586 = vmatprep.subr.bf16.mxu0 0
      %587 = vmatpush1.bf16.xpose.msra.mxu0 0
      %588 = vmatprep.mubr.bf16.mxu0 0
      %589 = vmatmul.mubr.bf16.gmra.mrb[0].mxu0 %v551
      %v590 = vpop.f32.mrb[0].mxu0
      %v591 = vadd.f32 0.0, %v590
      %v592 = vpop.f32.mrb[0].mxu0
      %v593 = vpop.f32.mrb[0].mxu0
      %v594 = vpop.f32.mrb[0].mxu0
      %595 = vdwg.mxu0
      %vm596 = vcmask 80896
      %v597 = vsel %vm596, %v591, -inf
      %598 = vmax.xlane.f32.xlu0 %v597
      %v599 = vpop.xlane.xlu0 %598
      %v600 = vsub.f32 %v591, %v599
      %v601 = vmul.f32 %v600, 1.442695
      %v602 = vpow.pop %v601
      %v603 = vsel %vm596, %v602, 0.0
      %604 = vadd.xlane.f32.xlu0 %v603
      %v605 = vpop.xlane.xlu0 %604
      %v606 = vpack.c.bf16 %v602, %v602
      %608 = vrot.lane.b32.xlu0 %v548, 96
      %v609 = vpop.permute.xlu0 %608
      %v611 = vsel %vm596, %v606, 0
      %vm613 = vcmask 1044480
      %v615 = vsel %vm613, %v609, 0
      %617 = vmatprep.subr.bf16.mxu0 0
      %618 = vmatpush1.bf16.msra.mxu0 %v615
      %619 = vmatprep.subr.bf16.mxu0 0
      %620 = vmatpush1.bf16.msra.mxu0 0
      %621 = vmatprep.subr.bf16.mxu0 0
      %622 = vmatpush1.bf16.msra.mxu0 0
      %623 = vmatprep.subr.bf16.mxu0 0
      %624 = vmatpush1.bf16.msra.mxu0 0
      %625 = vmatprep.subr.bf16.mxu0 0
      %626 = vmatpush1.bf16.msra.mxu0 0
      %627 = vmatprep.subr.bf16.mxu0 0
      %628 = vmatpush1.bf16.msra.mxu0 0
      %629 = vmatprep.subr.bf16.mxu0 0
      %630 = vmatpush1.bf16.msra.mxu0 0
      %631 = vmatprep.subr.bf16.mxu0 0
      %632 = vmatpush1.bf16.msra.mxu0 0
      %633 = vmatprep.subr.bf16.mxu0 0
      %634 = vmatpush1.bf16.msra.mxu0 0
      %635 = vmatprep.subr.bf16.mxu0 0
      %636 = vmatpush1.bf16.msra.mxu0 0
      %637 = vmatprep.subr.bf16.mxu0 0
      %638 = vmatpush1.bf16.msra.mxu0 0
      %639 = vmatprep.subr.bf16.mxu0 0
      %640 = vmatpush1.bf16.msra.mxu0 0
      %641 = vmatprep.subr.bf16.mxu0 0
      %642 = vmatpush1.bf16.msra.mxu0 0
      %643 = vmatprep.subr.bf16.mxu0 0
      %644 = vmatpush1.bf16.msra.mxu0 0
      %645 = vmatprep.subr.bf16.mxu0 0
      %646 = vmatpush1.bf16.msra.mxu0 0
      %647 = vmatprep.subr.bf16.mxu0 0
      %648 = vmatpush1.bf16.msra.mxu0 0
      %649 = vmatprep.mubr.bf16.mxu0 0
      %650 = vmatmul.mubr.bf16.gmra.mrb[0].mxu0 %v611
      %v651 = vpop.f32.mrb[0].mxu0
      %v652 = vadd.f32 0.0, %v651
      %v653 = vpop.f32.mrb[0].mxu0
      %v654 = vpop.f32.mrb[0].mxu0
      %v655 = vpop.f32.mrb[0].mxu0
      %656 = vdwg.mxu0
      %v657 = vrcp.pop %v605
      %v658 = vmul.f32 %v652, %v657
      %v659 = vpack.c.bf16 %v658, %v658
      %v660 = vld [vmem:[%s6] sm:$0xf]
      %662 = vrot.lane.b32.xlu0 %v547, 120
      %v663 = vpop.permute.xlu0 %662
      %664 = vrot.lane.b32.xlu0 %v548, 120
      %v665 = vpop.permute.xlu0 %664
      %v667 = vsel %vm549, %v663, 0
      %v670 = vsel %vm549, %v665, 0
      %672 = vmatprep.subr.bf16.mxu0 0
      %673 = vmatpush1.bf16.xpose.msra.mxu0 %v670
      %674 = vmatprep.subr.bf16.mxu0 0
      %675 = vmatpush1.bf16.xpose.msra.mxu0 0
      %676 = vmatprep.subr.bf16.mxu0 0
      %677 = vmatpush1.bf16.xpose.msra.mxu0 0
      %678 = vmatprep.subr.bf16.mxu0 0
      %679 = vmatpush1.bf16.xpose.msra.mxu0 0
      %680 = vmatprep.subr.bf16.mxu0 0
      %681 = vmatpush1.bf16.xpose.msra.mxu0 0
      %682 = vmatprep.subr.bf16.mxu0 0
      %683 = vmatpush1.bf16.xpose.msra.mxu0 0
      %684 = vmatprep.subr.bf16.mxu0 0
      %685 = vmatpush1.bf16.xpose.msra.mxu0 0
      %686 = vmatprep.subr.bf16.mxu0 0
      %687 = vmatpush1.bf16.xpose.msra.mxu0 0
      %688 = vmatprep.subr.bf16.mxu0 0
      %689 = vmatpush1.bf16.xpose.msra.mxu0 0
      %690 = vmatprep.subr.bf16.mxu0 0
      %691 = vmatpush1.bf16.xpose.msra.mxu0 0
      %692 = vmatprep.subr.bf16.mxu0 0
      %693 = vmatpush1.bf16.xpose.msra.mxu0 0
      %694 = vmatprep.subr.bf16.mxu0 0
      %695 = vmatpush1.bf16.xpose.msra.mxu0 0
      %696 = vmatprep.subr.bf16.mxu0 0
      %697 = vmatpush1.bf16.xpose.msra.mxu0 0
      %698 = vmatprep.subr.bf16.mxu0 0
      %699 = vmatpush1.bf16.xpose.msra.mxu0 0
      %700 = vmatprep.subr.bf16.mxu0 0
      %701 = vmatpush1.bf16.xpose.msra.mxu0 0
      %702 = vmatprep.subr.bf16.mxu0 0
      %703 = vmatpush1.bf16.xpose.msra.mxu0 0
      %704 = vmatprep.mubr.bf16.mxu0 0
      %705 = vmatmul.mubr.bf16.gmra.mrb[0].mxu0 %v667
      %v706 = vpop.f32.mrb[0].mxu0
      %v707 = vadd.f32 0.0, %v706
      %v708 = vpop.f32.mrb[0].mxu0
      %v709 = vpop.f32.mrb[0].mxu0
      %v710 = vpop.f32.mrb[0].mxu0
      %711 = vdwg.mxu0
      %v712 = vsel %vm596, %v707, -inf
      %713 = vmax.xlane.f32.xlu0 %v712
      %v714 = vpop.xlane.xlu0 %713
      %v715 = vsub.f32 %v707, %v714
      %v716 = vmul.f32 %v715, 1.442695
      %v717 = vpow.pop %v716
      %v718 = vsel %vm596, %v717, 0.0
      %719 = vadd.xlane.f32.xlu0 %v718
      %v720 = vpop.xlane.xlu0 %719
      %v721 = vpack.c.bf16 %v717, %v717
      %722 = vrot.lane.b32.xlu0 %v548, 88
      %v723 = vpop.permute.xlu0 %722
      %v725 = vsel %vm596, %v721, 0
      %v728 = vsel %vm613, %v723, 0
      %730 = vmatprep.subr.bf16.mxu0 0
      %731 = vmatpush1.bf16.msra.mxu0 %v728
      %732 = vmatprep.subr.bf16.mxu0 0
      %733 = vmatpush1.bf16.msra.mxu0 0
      %734 = vmatprep.subr.bf16.mxu0 0
      %735 = vmatpush1.bf16.msra.mxu0 0
      %736 = vmatprep.subr.bf16.mxu0 0
      %737 = vmatpush1.bf16.msra.mxu0 0
      %738 = vmatprep.subr.bf16.mxu0 0
      %739 = vmatpush1.bf16.msra.mxu0 0
      %740 = vmatprep.subr.bf16.mxu0 0
      %741 = vmatpush1.bf16.msra.mxu0 0
      %742 = vmatprep.subr.bf16.mxu0 0
      %743 = vmatpush1.bf16.msra.mxu0 0
      %744 = vmatprep.subr.bf16.mxu0 0
      %745 = vmatpush1.bf16.msra.mxu0 0
      %746 = vmatprep.subr.bf16.mxu0 0
      %747 = vmatpush1.bf16.msra.mxu0 0
      %748 = vmatprep.subr.bf16.mxu0 0
      %749 = vmatpush1.bf16.msra.mxu0 0
      %750 = vmatprep.subr.bf16.mxu0 0
      %751 = vmatpush1.bf16.msra.mxu0 0
      %752 = vmatprep.subr.bf16.mxu0 0
      %753 = vmatpush1.bf16.msra.mxu0 0
      %754 = vmatprep.subr.bf16.mxu0 0
      %755 = vmatpush1.bf16.msra.mxu0 0
      %756 = vmatprep.subr.bf16.mxu0 0
      %757 = vmatpush1.bf16.msra.mxu0 0
      %758 = vmatprep.subr.bf16.mxu0 0
      %759 = vmatpush1.bf16.msra.mxu0 0
      %760 = vmatprep.subr.bf16.mxu0 0
      %761 = vmatpush1.bf16.msra.mxu0 0
      %762 = vmatprep.mubr.bf16.mxu0 0
      %763 = vmatmul.mubr.bf16.gmra.mrb[0].mxu0 %v725
      %v764 = vpop.f32.mrb[0].mxu0
      %v765 = vadd.f32 0.0, %v764
      %v766 = vpop.f32.mrb[0].mxu0
      %v767 = vpop.f32.mrb[0].mxu0
      %v768 = vpop.f32.mrb[0].mxu0
      %769 = vdwg.mxu0
      %v770 = vrcp.pop %v720
      %v771 = vmul.f32 %v765, %v770
      %v772 = vpack.c.bf16 %v771, %v771
      %s773 = scalar_lea.vmem %s6, 4
      %v774 = vld [vmem:[%s773] sm:$0xf]
      %v776 = vsel %vm549, %v772, 0
      %vm778 = vcmask 1043456
      %v780 = vsel %vm778, %v774, 0
      %782 = vmatprep.subr.bf16.mxu0 0
      %783 = vmatpush1.bf16.msra.mxu0 %v780
      %784 = vmatprep.subr.bf16.mxu0 0
      %785 = vmatpush1.bf16.msra.mxu0 0
      %786 = vmatprep.subr.bf16.mxu0 0
      %787 = vmatpush1.bf16.msra.mxu0 0
      %788 = vmatprep.subr.bf16.mxu0 0
      %789 = vmatpush1.bf16.msra.mxu0 0
      %790 = vmatprep.subr.bf16.mxu0 0
      %791 = vmatpush1.bf16.msra.mxu0 0
      %792 = vmatprep.subr.bf16.mxu0 0
      %793 = vmatpush1.bf16.msra.mxu0 0
      %794 = vmatprep.subr.bf16.mxu0 0
      %795 = vmatpush1.bf16.msra.mxu0 0
      %796 = vmatprep.subr.bf16.mxu0 0
      %797 = vmatpush1.bf16.msra.mxu0 0
      %798 = vmatprep.subr.bf16.mxu0 0
      %799 = vmatpush1.bf16.msra.mxu0 0
      %800 = vmatprep.subr.bf16.mxu0 0
      %801 = vmatpush1.bf16.msra.mxu0 0
      %802 = vmatprep.subr.bf16.mxu0 0
      %803 = vmatpush1.bf16.msra.mxu0 0
      %804 = vmatprep.subr.bf16.mxu0 0
      %805 = vmatpush1.bf16.msra.mxu0 0
      %806 = vmatprep.subr.bf16.mxu0 0
      %807 = vmatpush1.bf16.msra.mxu0 0
      %808 = vmatprep.subr.bf16.mxu0 0
      %809 = vmatpush1.bf16.msra.mxu0 0
      %810 = vmatprep.subr.bf16.mxu0 0
      %811 = vmatpush1.bf16.msra.mxu0 0
      %812 = vmatprep.subr.bf16.mxu0 0
      %813 = vmatpush1.bf16.msra.mxu0 0
      %814 = vmatprep.mubr.bf16.mxu0 0
      %815 = vmatmul.mubr.bf16.gmra.mrb[0].mxu0 %v776
      %v816 = vpop.f32.mrb[0].mxu0
      %v817 = vadd.f32 0.0, %v816
      %v818 = vpop.f32.mrb[0].mxu0
      %v819 = vpop.f32.mrb[0].mxu0
      %v820 = vpop.f32.mrb[0].mxu0
      %821 = vdwg.mxu0
      %v823 = vsel %vm549, %v659, 0
      %v826 = vsel %vm778, %v660, 0
      %828 = vmatprep.subr.bf16.mxu0 0
      %829 = vmatpush1.bf16.msra.mxu0 %v826
      %830 = vmatprep.subr.bf16.mxu0 0
      %831 = vmatpush1.bf16.msra.mxu0 0
      %832 = vmatprep.subr.bf16.mxu0 0
      %833 = vmatpush1.bf16.msra.mxu0 0
      %834 = vmatprep.subr.bf16.mxu0 0
      %835 = vmatpush1.bf16.msra.mxu0 0
      %836 = vmatprep.subr.bf16.mxu0 0
      %837 = vmatpush1.bf16.msra.mxu0 0
      %838 = vmatprep.subr.bf16.mxu0 0
      %839 = vmatpush1.bf16.msra.mxu0 0
      %840 = vmatprep.subr.bf16.mxu0 0
      %841 = vmatpush1.bf16.msra.mxu0 0
      %842 = vmatprep.subr.bf16.mxu0 0
      %843 = vmatpush1.bf16.msra.mxu0 0
      %844 = vmatprep.subr.bf16.mxu0 0
      %845 = vmatpush1.bf16.msra.mxu0 0
      %846 = vmatprep.subr.bf16.mxu0 0
      %847 = vmatpush1.bf16.msra.mxu0 0
      %848 = vmatprep.subr.bf16.mxu0 0
      %849 = vmatpush1.bf16.msra.mxu0 0
      %850 = vmatprep.subr.bf16.mxu0 0
      %851 = vmatpush1.bf16.msra.mxu0 0
      %852 = vmatprep.subr.bf16.mxu0 0
      %853 = vmatpush1.bf16.msra.mxu0 0
      %854 = vmatprep.subr.bf16.mxu0 0
      %855 = vmatpush1.bf16.msra.mxu0 0
      %856 = vmatprep.subr.bf16.mxu0 0
      %857 = vmatpush1.bf16.msra.mxu0 0
      %858 = vmatprep.subr.bf16.mxu0 0
      %859 = vmatpush1.bf16.msra.mxu0 0
      %860 = vmatprep.mubr.bf16.mxu0 0
      %861 = vmatmul.mubr.bf16.gmra.mrb[0].mxu0 %v823
      %v862 = vpop.f32.mrb[0].mxu0
      %v863 = vadd.f32 %v817, %v862
      %v864 = vpop.f32.mrb[0].mxu0
      %v865 = vpop.f32.mrb[0].mxu0
      %v866 = vpop.f32.mrb[0].mxu0
      %867 = vdwg.mxu0
      %868 = vrot.lane.b32.xlu0 %v547, 112
      %v869 = vpop.permute.xlu0 %868
      %870 = vrot.lane.b32.xlu0 %v548, 112
      %v871 = vpop.permute.xlu0 %870
      %v873 = vsel %vm549, %v869, 0
      %v876 = vsel %vm549, %v871, 0
      %878 = vmatprep.subr.bf16.mxu0 0
      %879 = vmatpush1.bf16.xpose.msra.mxu0 %v876
      %880 = vmatprep.subr.bf16.mxu0 0
      %881 = vmatpush1.bf16.xpose.msra.mxu0 0
      %882 = vmatprep.subr.bf16.mxu0 0
      %883 = vmatpush1.bf16.xpose.msra.mxu0 0
      %884 = vmatprep.subr.bf16.mxu0 0
      %885 = vmatpush1.bf16.xpose.msra.mxu0 0
      %886 = vmatprep.subr.bf16.mxu0 0
      %887 = vmatpush1.bf16.xpose.msra.mxu0 0
      %888 = vmatprep.subr.bf16.mxu0 0
      %889 = vmatpush1.bf16.xpose.msra.mxu0 0
      %890 = vmatprep.subr.bf16.mxu0 0
      %891 = vmatpush1.bf16.xpose.msra.mxu0 0
      %892 = vmatprep.subr.bf16.mxu0 0
      %893 = vmatpush1.bf16.xpose.msra.mxu0 0
      %894 = vmatprep.subr.bf16.mxu0 0
      %895 = vmatpush1.bf16.xpose.msra.mxu0 0
      %896 = vmatprep.subr.bf16.mxu0 0
      %897 = vmatpush1.bf16.xpose.msra.mxu0 0
      %898 = vmatprep.subr.bf16.mxu0 0
      %899 = vmatpush1.bf16.xpose.msra.mxu0 0
      %900 = vmatprep.subr.bf16.mxu0 0
      %901 = vmatpush1.bf16.xpose.msra.mxu0 0
      %902 = vmatprep.subr.bf16.mxu0 0
      %903 = vmatpush1.bf16.xpose.msra.mxu0 0
      %904 = vmatprep.subr.bf16.mxu0 0
      %905 = vmatpush1.bf16.xpose.msra.mxu0 0
      %906 = vmatprep.subr.bf16.mxu0 0
      %907 = vmatpush1.bf16.xpose.msra.mxu0 0
      %908 = vmatprep.subr.bf16.mxu0 0
      %909 = vmatpush1.bf16.xpose.msra.mxu0 0
      %910 = vmatprep.mubr.bf16.mxu0 0
      %911 = vmatmul.mubr.bf16.gmra.mrb[0].mxu0 %v873
      %v912 = vpop.f32.mrb[0].mxu0
      %v913 = vadd.f32 0.0, %v912
      %v914 = vpop.f32.mrb[0].mxu0
      %v915 = vpop.f32.mrb[0].mxu0
      %v916 = vpop.f32.mrb[0].mxu0
      %917 = vdwg.mxu0
      %v918 = vsel %vm596, %v913, -inf
      %919 = vmax.xlane.f32.xlu0 %v918
      %v920 = vpop.xlane.xlu0 %919
      %v921 = vsub.f32 %v913, %v920
      %v922 = vmul.f32 %v921, 1.442695
      %v923 = vpow.pop %v922
      %v924 = vsel %vm596, %v923, 0.0
      %925 = vadd.xlane.f32.xlu0 %v924
      %v926 = vpop.xlane.xlu0 %925
      %v927 = vpack.c.bf16 %v923, %v923
      %928 = vrot.lane.b32.xlu0 %v548, 80
      %v929 = vpop.permute.xlu0 %928
      %v931 = vsel %vm596, %v927, 0
      %v934 = vsel %vm613, %v929, 0
      %936 = vmatprep.subr.bf16.mxu0 0
      %937 = vmatpush1.bf16.msra.mxu0 %v934
      %938 = vmatprep.subr.bf16.mxu0 0
      %939 = vmatpush1.bf16.msra.mxu0 0
      %940 = vmatprep.subr.bf16.mxu0 0
      %941 = vmatpush1.bf16.msra.mxu0 0
      %942 = vmatprep.subr.bf16.mxu0 0
      %943 = vmatpush1.bf16.msra.mxu0 0
      %944 = vmatprep.subr.bf16.mxu0 0
      %945 = vmatpush1.bf16.msra.mxu0 0
      %946 = vmatprep.subr.bf16.mxu0 0
      %947 = vmatpush1.bf16.msra.mxu0 0
      %948 = vmatprep.subr.bf16.mxu0 0
      %949 = vmatpush1.bf16.msra.mxu0 0
      %950 = vmatprep.subr.bf16.mxu0 0
      %951 = vmatpush1.bf16.msra.mxu0 0
      %952 = vmatprep.subr.bf16.mxu0 0
      %953 = vmatpush1.bf16.msra.mxu0 0
      %954 = vmatprep.subr.bf16.mxu0 0
      %955 = vmatpush1.bf16.msra.mxu0 0
      %956 = vmatprep.subr.bf16.mxu0 0
      %957 = vmatpush1.bf16.msra.mxu0 0
      %958 = vmatprep.subr.bf16.mxu0 0
      %959 = vmatpush1.bf16.msra.mxu0 0
      %960 = vmatprep.subr.bf16.mxu0 0
      %961 = vmatpush1.bf16.msra.mxu0 0
      %962 = vmatprep.subr.bf16.mxu0 0
      %963 = vmatpush1.bf16.msra.mxu0 0
      %964 = vmatprep.subr.bf16.mxu0 0
      %965 = vmatpush1.bf16.msra.mxu0 0
      %966 = vmatprep.subr.bf16.mxu0 0
      %967 = vmatpush1.bf16.msra.mxu0 0
      %968 = vmatprep.mubr.bf16.mxu0 0
      %969 = vmatmul.mubr.bf16.gmra.mrb[0].mxu0 %v931
      %v970 = vpop.f32.mrb[0].mxu0
      %v971 = vadd.f32 0.0, %v970
      %v972 = vpop.f32.mrb[0].mxu0
      %v973 = vpop.f32.mrb[0].mxu0
      %v974 = vpop.f32.mrb[0].mxu0
      %975 = vdwg.mxu0
      %v976 = vrcp.pop %v926
      %v977 = vmul.f32 %v971, %v976
      %v978 = vpack.c.bf16 %v977, %v977
      %s979 = scalar_lea.vmem %s6, 8
      %v980 = vld [vmem:[%s979] sm:$0xf]
      %v982 = vsel %vm549, %v978, 0
      %v985 = vsel %vm778, %v980, 0
      %987 = vmatprep.subr.bf16.mxu0 0
      %988 = vmatpush1.bf16.msra.mxu0 %v985
      %989 = vmatprep.subr.bf16.mxu0 0
      %990 = vmatpush1.bf16.msra.mxu0 0
      %991 = vmatprep.subr.bf16.mxu0 0
      %992 = vmatpush1.bf16.msra.mxu0 0
      %993 = vmatprep.subr.bf16.mxu0 0
      %994 = vmatpush1.bf16.msra.mxu0 0
      %995 = vmatprep.subr.bf16.mxu0 0
      %996 = vmatpush1.bf16.msra.mxu0 0
      %997 = vmatprep.subr.bf16.mxu0 0
      %998 = vmatpush1.bf16.msra.mxu0 0
      %999 = vmatprep.subr.bf16.mxu0 0
      %1000 = vmatpush1.bf16.msra.mxu0 0
      %1001 = vmatprep.subr.bf16.mxu0 0
      %1002 = vmatpush1.bf16.msra.mxu0 0
      %1003 = vmatprep.subr.bf16.mxu0 0
      %1004 = vmatpush1.bf16.msra.mxu0 0
      %1005 = vmatprep.subr.bf16.mxu0 0
      %1006 = vmatpush1.bf16.msra.mxu0 0
      %1007 = vmatprep.subr.bf16.mxu0 0
      %1008 = vmatpush1.bf16.msra.mxu0 0
      %1009 = vmatprep.subr.bf16.mxu0 0
      %1010 = vmatpush1.bf16.msra.mxu0 0
      %1011 = vmatprep.subr.bf16.mxu0 0
      %1012 = vmatpush1.bf16.msra.mxu0 0
      %1013 = vmatprep.subr.bf16.mxu0 0
      %1014 = vmatpush1.bf16.msra.mxu0 0
      %1015 = vmatprep.subr.bf16.mxu0 0
      %1016 = vmatpush1.bf16.msra.mxu0 0
      %1017 = vmatprep.subr.bf16.mxu0 0
      %1018 = vmatpush1.bf16.msra.mxu0 0
      %1019 = vmatprep.mubr.bf16.mxu0 0
      %1020 = vmatmul.mubr.bf16.gmra.mrb[0].mxu0 %v982
      %v1021 = vpop.f32.mrb[0].mxu0
      %v1022 = vadd.f32 0.0, %v1021
      %v1023 = vpop.f32.mrb[0].mxu0
      %v1024 = vpop.f32.mrb[0].mxu0
      %v1025 = vpop.f32.mrb[0].mxu0
      %1026 = vdwg.mxu0
      %v1027 = vadd.f32 %v863, %v1022
      %1028 = vrot.lane.b32.xlu0 %v547, 104
      %v1029 = vpop.permute.xlu0 %1028
      %1030 = vrot.lane.b32.xlu0 %v548, 104
      %v1031 = vpop.permute.xlu0 %1030
      %v1033 = vsel %vm549, %v1029, 0
      %v1036 = vsel %vm549, %v1031, 0
      %1038 = vmatprep.subr.bf16.mxu0 0
      %1039 = vmatpush1.bf16.xpose.msra.mxu0 %v1036
      %1040 = vmatprep.subr.bf16.mxu0 0
      %1041 = vmatpush1.bf16.xpose.msra.mxu0 0
      %1042 = vmatprep.subr.bf16.mxu0 0
      %1043 = vmatpush1.bf16.xpose.msra.mxu0 0
      %1044 = vmatprep.subr.bf16.mxu0 0
      %1045 = vmatpush1.bf16.xpose.msra.mxu0 0
      %1046 = vmatprep.subr.bf16.mxu0 0
      %1047 = vmatpush1.bf16.xpose.msra.mxu0 0
      %1048 = vmatprep.subr.bf16.mxu0 0
      %1049 = vmatpush1.bf16.xpose.msra.mxu0 0
      %1050 = vmatprep.subr.bf16.mxu0 0
      %1051 = vmatpush1.bf16.xpose.msra.mxu0 0
      %1052 = vmatprep.subr.bf16.mxu0 0
      %1053 = vmatpush1.bf16.xpose.msra.mxu0 0
      %1054 = vmatprep.subr.bf16.mxu0 0
      %1055 = vmatpush1.bf16.xpose.msra.mxu0 0
      %1056 = vmatprep.subr.bf16.mxu0 0
      %1057 = vmatpush1.bf16.xpose.msra.mxu0 0
      %1058 = vmatprep.subr.bf16.mxu0 0
      %1059 = vmatpush1.bf16.xpose.msra.mxu0 0
      %1060 = vmatprep.subr.bf16.mxu0 0
      %1061 = vmatpush1.bf16.xpose.msra.mxu0 0
      %1062 = vmatprep.subr.bf16.mxu0 0
      %1063 = vmatpush1.bf16.xpose.msra.mxu0 0
      %1064 = vmatprep.subr.bf16.mxu0 0
      %1065 = vmatpush1.bf16.xpose.msra.mxu0 0
      %1066 = vmatprep.subr.bf16.mxu0 0
      %1067 = vmatpush1.bf16.xpose.msra.mxu0 0
      %1068 = vmatprep.subr.bf16.mxu0 0
      %1069 = vmatpush1.bf16.xpose.msra.mxu0 0
      %1070 = vmatprep.mubr.bf16.mxu0 0
      %1071 = vmatmul.mubr.bf16.gmra.mrb[0].mxu0 %v1033
      %v1072 = vpop.f32.mrb[0].mxu0
      %v1073 = vadd.f32 0.0, %v1072
      %v1074 = vpop.f32.mrb[0].mxu0
      %v1075 = vpop.f32.mrb[0].mxu0
      %v1076 = vpop.f32.mrb[0].mxu0
      %1077 = vdwg.mxu0
      %v1078 = vsel %vm596, %v1073, -inf
      %1079 = vmax.xlane.f32.xlu0 %v1078
      %v1080 = vpop.xlane.xlu0 %1079
      %v1081 = vsub.f32 %v1073, %v1080
      %v1082 = vmul.f32 %v1081, 1.442695
      %v1083 = vpow.pop %v1082
      %v1084 = vsel %vm596, %v1083, 0.0
      %1085 = vadd.xlane.f32.xlu0 %v1084
      %v1086 = vpop.xlane.xlu0 %1085
      %v1087 = vpack.c.bf16 %v1083, %v1083
      %1088 = vrot.lane.b32.xlu0 %v548, 72
      %v1089 = vpop.permute.xlu0 %1088
      %v1091 = vsel %vm596, %v1087, 0
      %v1094 = vsel %vm613, %v1089, 0
      %1096 = vmatprep.subr.bf16.mxu0 0
      %1097 = vmatpush1.bf16.msra.mxu0 %v1094
      %1098 = vmatprep.subr.bf16.mxu0 0
      %1099 = vmatpush1.bf16.msra.mxu0 0
      %1100 = vmatprep.subr.bf16.mxu0 0
      %1101 = vmatpush1.bf16.msra.mxu0 0
      %1102 = vmatprep.subr.bf16.mxu0 0
      %1103 = vmatpush1.bf16.msra.mxu0 0
      %1104 = vmatprep.subr.bf16.mxu0 0
      %1105 = vmatpush1.bf16.msra.mxu0 0
      %1106 = vmatprep.subr.bf16.mxu0 0
      %1107 = vmatpush1.bf16.msra.mxu0 0
      %1108 = vmatprep.subr.bf16.mxu0 0
      %1109 = vmatpush1.bf16.msra.mxu0 0
      %1110 = vmatprep.subr.bf16.mxu0 0
      %1111 = vmatpush1.bf16.msra.mxu0 0
      %1112 = vmatprep.subr.bf16.mxu0 0
      %1113 = vmatpush1.bf16.msra.mxu0 0
      %1114 = vmatprep.subr.bf16.mxu0 0
      %1115 = vmatpush1.bf16.msra.mxu0 0
      %1116 = vmatprep.subr.bf16.mxu0 0
      %1117 = vmatpush1.bf16.msra.mxu0 0
      %1118 = vmatprep.subr.bf16.mxu0 0
      %1119 = vmatpush1.bf16.msra.mxu0 0
      %1120 = vmatprep.subr.bf16.mxu0 0
      %1121 = vmatpush1.bf16.msra.mxu0 0
      %1122 = vmatprep.subr.bf16.mxu0 0
      %1123 = vmatpush1.bf16.msra.mxu0 0
      %1124 = vmatprep.subr.bf16.mxu0 0
      %1125 = vmatpush1.bf16.msra.mxu0 0
      %1126 = vmatprep.subr.bf16.mxu0 0
      %1127 = vmatpush1.bf16.msra.mxu0 0
      %1128 = vmatprep.mubr.bf16.mxu0 0
      %1129 = vmatmul.mubr.bf16.gmra.mrb[0].mxu0 %v1091
      %v1130 = vpop.f32.mrb[0].mxu0
      %v1131 = vadd.f32 0.0, %v1130
      %v1132 = vpop.f32.mrb[0].mxu0
      %v1133 = vpop.f32.mrb[0].mxu0
      %v1134 = vpop.f32.mrb[0].mxu0
      %1135 = vdwg.mxu0
      %v1136 = vrcp.pop %v1086
      %v1137 = vmul.f32 %v1131, %v1136
      %v1138 = vpack.c.bf16 %v1137, %v1137
      %s1139 = scalar_lea.vmem %s6, 12
      %v1140 = vld [vmem:[%s1139] sm:$0xf]
      %v1142 = vsel %vm549, %v1138, 0
      %v1145 = vsel %vm778, %v1140, 0
      %1147 = vmatprep.subr.bf16.mxu0 0
      %1148 = vmatpush1.bf16.msra.mxu0 %v1145
      %1149 = vmatprep.subr.bf16.mxu0 0
      %1150 = vmatpush1.bf16.msra.mxu0 0
      %1151 = vmatprep.subr.bf16.mxu0 0
      %1152 = vmatpush1.bf16.msra.mxu0 0
      %1153 = vmatprep.subr.bf16.mxu0 0
      %1154 = vmatpush1.bf16.msra.mxu0 0
      %1155 = vmatprep.subr.bf16.mxu0 0
      %1156 = vmatpush1.bf16.msra.mxu0 0
      %1157 = vmatprep.subr.bf16.mxu0 0
      %1158 = vmatpush1.bf16.msra.mxu0 0
      %1159 = vmatprep.subr.bf16.mxu0 0
      %1160 = vmatpush1.bf16.msra.mxu0 0
      %1161 = vmatprep.subr.bf16.mxu0 0
      %1162 = vmatpush1.bf16.msra.mxu0 0
      %1163 = vmatprep.subr.bf16.mxu0 0
      %1164 = vmatpush1.bf16.msra.mxu0 0
      %1165 = vmatprep.subr.bf16.mxu0 0
      %1166 = vmatpush1.bf16.msra.mxu0 0
      %1167 = vmatprep.subr.bf16.mxu0 0
      %1168 = vmatpush1.bf16.msra.mxu0 0
      %1169 = vmatprep.subr.bf16.mxu0 0
      %1170 = vmatpush1.bf16.msra.mxu0 0
      %1171 = vmatprep.subr.bf16.mxu0 0
      %1172 = vmatpush1.bf16.msra.mxu0 0
      %1173 = vmatprep.subr.bf16.mxu0 0
      %1174 = vmatpush1.bf16.msra.mxu0 0
      %1175 = vmatprep.subr.bf16.mxu0 0
      %1176 = vmatpush1.bf16.msra.mxu0 0
      %1177 = vmatprep.subr.bf16.mxu0 0
      %1178 = vmatpush1.bf16.msra.mxu0 0
      %1179 = vmatprep.mubr.bf16.mxu0 0
      %1180 = vmatmul.mubr.bf16.gmra.mrb[0].mxu0 %v1142
      %v1181 = vpop.f32.mrb[0].mxu0
      %v1182 = vadd.f32 0.0, %v1181
      %v1183 = vpop.f32.mrb[0].mxu0
      %v1184 = vpop.f32.mrb[0].mxu0
      %v1185 = vpop.f32.mrb[0].mxu0
      %1186 = vdwg.mxu0
      %v1187 = vadd.f32 %v1027, %v1182
      %v1188 = vadd.f32 %v407, %v1187
      %v1189 = vld [vmem:[%s7] sm:$0x1]
      %v1191 = vlaneseq
      %v1192 = vshrl.u32 %v1191, 7
      %v1193 = vsub.s32 0, %v1192
      %v1194 = vrot.slane %v1189, %v1193
      %v1196 = vadd.f32 %v1188, %v1194
      %v1197 = vld [vmem:[%s8] sm:$0x1]
      %v1198 = vld [vmem:[%s9] sm:$0x1]
      %v1199 = vsel %vm434, %v1196, 0.0
      %1200 = vadd.xlane.f32.xlu0 %v1199
      %v1201 = vpop.xlane.xlu0 %1200
      %v1202 = vrcp.pop 32.0
      %v1203 = vmul.f32 %v1201, %v1202
      %v1204 = vsub.f32 %v1196, %v1203
      %v1205 = vmul.f32 %v1204, %v1204
      %v1206 = vsel %vm434, %v1205, 0.0
      %1207 = vadd.xlane.f32.xlu0 %v1206
      %v1208 = vpop.xlane.xlu0 %1207
      %v1209 = vmul.f32 %v1208, %v1202
      %v1210 = vadd.f32 %v1209, 1e-05
      %v1211 = vrsqrt.pop %v1210
      %v1212 = vmul.f32 %v1204, %v1211
      %v1214 = vlaneseq
      %v1215 = vshrl.u32 %v1214, 7
      %v1216 = vsub.s32 0, %v1215
      %v1217 = vrot.slane %v1197, %v1216
      %v1219 = vmul.f32 %v1212, %v1217
      %v1221 = vlaneseq
      %v1222 = vshrl.u32 %v1221, 7
      %v1223 = vsub.s32 0, %v1222
      %v1224 = vrot.slane %v1198, %v1223
      %v1226 = vadd.f32 %v1219, %v1224
      %1227 = vst.msk [vmem:[%s405] sm:$0xff] %vm434, %v1226
      %p1228 = scmp.lt.s32.totalorder %s25, 1
      %s1229 = scalar_select %p1228, %s25, 1
      %p1230 = scmp.lt.s32.totalorder %s26, 0
      %s1231 = scalar_select %p1230, %s26, 0
      %s1232 = sadd.s32 %s1231, %s1229
      %s1233 = smul.addr %s1232, 8
      %s1234 = scalar_lea.vmem %s10, %s1233
      // Predicated region
      $region61: #{transformer_forward.19} parent=59 // pred_check
        %p1235 = pneg %p275
      $region62: #{transformer_forward.19} parent=59 // pred_check_branch
        %1237 = sbr.rel (%p1235) target = $region64
      $region63: #{transformer_forward.19} parent=59 // pred_region
        _
      $region64: #{transformer_forward.19} parent=59 // pred_fallthru
        _
    $region60: #{transformer_forward.19} parent=5 // pred_fallthru
      _
    %p1238 = scmp.le.s32.totalorder 2, %s16
    // Predicated region
    $region65: #{transformer_forward.19} parent=5 // pred_check
      %p1239 = pneg %p1238
    $region66: #{transformer_forward.19} parent=5 // pred_check_branch
      %1241 = sbr.rel (%p1239) target = $region68
    $region67: #{transformer_forward.19} parent=5 // pred_region
      %s1242 = ssub.s32 %s16, 2
      // Predicated region
      $region69: #{transformer_forward.19} parent=67 // pred_check
        %p1243 = pneg %p281
      $region70: #{transformer_forward.19} parent=67 // pred_check_branch
        %1245 = sbr.rel (%p1243) target = $region72
      $region71: #{transformer_forward.19} parent=67 // pred_region
        %p1246 = scmp.lt.s32.totalorder %s27, 1
        %s1247 = scalar_select %p1246, %s27, 1
        %p1248 = scmp.lt.s32.totalorder %s28, 0
        %s1249 = scalar_select %p1248, %s28, 0
        %s1250 = sadd.s32 %s1249, %s1247
        %s1251 = smul.addr %s1250, 8
        %s1252 = scalar_lea.vmem %s10, %s1251
      $region72: #{transformer_forward.19} parent=67 // pred_fallthru
        _
    $region68: #{transformer_forward.19} parent=5 // pred_fallthru
      _
  $region6: #{transformer_forward.19} parent=0 // loop_footer
    %s20 = sadd.s32 1, %s16
  $region7: #{transformer_forward.19} parent=0 // loop_footer_branch
    %15 = sbr.rel target = $region3
  $region8: #{transformer_forward.19} parent=0 // loop_exit
    _

// kernel: transformer_forward.25
$region0: #{transformer_forward.25}
  #allocation0 [shape = 'u32[]', space=smem, size = 0x4, offset = 0x4, fixed_abs, tag = 'smem constant byte address 0x4 - core index']
  #allocation1 [shape = 'u32[144,128]{1,0:T(1,128)}', space=vmem, size = 0x12000, scoped, tag = 'internal scratch']
  %s0 = inlined_call_operand.vmem [shape: f32[16,32], index: 0, kind: input, shape index: {}]
  %s1 = inlined_call_operand.vmem [shape: bf16[32,60], index: 1, kind: input, shape index: {}]
  %s2 = inlined_call_operand.vmem [shape: f32[1,60], index: 2, kind: input, shape index: {}]
  %s3 = inlined_call_operand.hbm [shape: f32[16,60], index: 3, kind: output, shape index: {}]
  %s4 = sld [smem:[#allocation0]]
  $region22: #{transformer_forward.25} parent=0
    _
  %s6 = ssub.s32 1, %s4
  %s7 = scalar_select 0, %s6, %s4
  $region1: #{transformer_forward.25} parent=0
    #allocation2 [shape = 'u8[8192]{0}', space=vmem, size = 0x2000, scoped, tag = 'output window, operand 0, single buffered']
    #allocation3 [shape = 's32[1]{0}', space=sflag, size = 0x4, scoped, tag = 'scoped memory for transformer_forward.25']
    %8 = vsyncpa [#allocation3], 0
    // Predicated region
    $region2: #{transformer_forward.25} parent=1 // pred_check
      _
    $region3: #{transformer_forward.25} parent=1 // pred_check_branch
      %10 = sbr.rel (0) target = $region5
    $region4: #{transformer_forward.25} parent=1 // pred_region
      _
    $region5: #{transformer_forward.25} parent=1 // pred_fallthru
      _
    // Predicated region
    $region6: #{transformer_forward.25} parent=1 // pred_check
      _
    $region7: #{transformer_forward.25} parent=1 // pred_check_branch
      %12 = sbr.rel (0) target = $region9
    $region8: #{transformer_forward.25} parent=1 // pred_region
      _
    $region9: #{transformer_forward.25} parent=1 // pred_fallthru
      _
    // Predicated region
    $region10: #{transformer_forward.25} parent=1 // pred_check
      _
    $region11: #{transformer_forward.25} parent=1 // pred_check_branch
      %14 = sbr.rel (0) target = $region13
    $region12: #{transformer_forward.25} parent=1 // pred_region
      _
    $region13: #{transformer_forward.25} parent=1 // pred_fallthru
      _
    %v16 = vld [vmem:[%s0] sm:$0xff]
    %v17 = vld [vmem:[%s0 + $0x8] sm:$0xff]
    %v18 = vpack.c.bf16 %v17, %v16
    %v19 = vld [vmem:[%s1] sm:$0xf]
    %v20 = vld [vmem:[%s1 + $0x4] sm:$0xf]
    %v21 = vld [vmem:[%s1 + $0x8] sm:$0xf]
    %v22 = vld [vmem:[%s1 + $0xc] sm:$0xf]
    %v23 = vld [vmem:[%s2] sm:$0x1]
    %v25 = vlaneseq
    %v26 = vshrl.u32 %v25, 7
    %v27 = vsub.s32 0, %v26
    %v28 = vrot.slane %v23, %v27
    %v34 = vunpack.c.l.b16 %v19
    %v35 = vunpack.c.l.b16 %v20
    %v36 = vunpack.c.l.b16 %v21
    %v37 = vunpack.c.l.b16 %v22
    %v38 = vpack.c.b16 %v35, %v34
    %v39 = vpack.c.b16 %v37, %v36
    %vm42 = vcmask 261120
    %v44 = vsel %vm42, %v18, 0
    %46 = vmatprep.subr.bf16.mxu0 0
    %47 = vmatpush1.bf16.msra.mxu0 %v38
    %48 = vmatprep.subr.bf16.mxu0 0
    %49 = vmatpush1.bf16.msra.mxu0 %v39
    %50 = vmatprep.subr.bf16.mxu0 0
    %51 = vmatpush1.bf16.msra.mxu0 0
    %52 = vmatprep.subr.bf16.mxu0 0
    %53 = vmatpush1.bf16.msra.mxu0 0
    %54 = vmatprep.subr.bf16.mxu0 0
    %55 = vmatpush1.bf16.msra.mxu0 0
    %56 = vmatprep.subr.bf16.mxu0 0
    %57 = vmatpush1.bf16.msra.mxu0 0
    %58 = vmatprep.subr.bf16.mxu0 0
    %59 = vmatpush1.bf16.msra.mxu0 0
    %60 = vmatprep.subr.bf16.mxu0 0
    %61 = vmatpush1.bf16.msra.mxu0 0
    %62 = vmatprep.subr.bf16.mxu0 0
    %63 = vmatpush1.bf16.msra.mxu0 0
    %64 = vmatprep.subr.bf16.mxu0 0
    %65 = vmatpush1.bf16.msra.mxu0 0
    %66 = vmatprep.subr.bf16.mxu0 0
    %67 = vmatpush1.bf16.msra.mxu0 0
    %68 = vmatprep.subr.bf16.mxu0 0
    %69 = vmatpush1.bf16.msra.mxu0 0
    %70 = vmatprep.subr.bf16.mxu0 0
    %71 = vmatpush1.bf16.msra.mxu0 0
    %72 = vmatprep.subr.bf16.mxu0 0
    %73 = vmatpush1.bf16.msra.mxu0 0
    %74 = vmatprep.subr.bf16.mxu0 0
    %75 = vmatpush1.bf16.msra.mxu0 0
    %76 = vmatprep.subr.bf16.mxu0 0
    %77 = vmatpush1.bf16.msra.mxu0 0
    %78 = vmatprep.mubr.bf16.mxu0 0
    %79 = vmatmul.mubr.bf16.gmra.mrb[0].mxu0 %v44
    %v80 = vpop.f32.mrb[0].mxu0
    %v81 = vadd.f32 %v28, %v80
    %v82 = vpop.f32.mrb[0].mxu0
    %v83 = vpop.f32.mrb[0].mxu0
    %v84 = vadd.f32 %v28, %v83
    %v85 = vpop.f32.mrb[0].mxu0
    %86 = vdwg.mxu0
    %vm87 = vcmask 490496
    %88 = vst.msk [vmem:[#allocation2] sm:$0xff] %vm87, %v81
    %89 = vst.msk [vmem:[#allocation2 + $0x8] sm:$0xff] %vm87, %v84
    // Predicated region
    $region14: #{transformer_forward.25} parent=1 // pred_check
      _
    $region15: #{transformer_forward.25} parent=1 // pred_check_branch
      %91 = sbr.rel (0) target = $region17
    $region16: #{transformer_forward.25} parent=1 // pred_region
      %s93 = ssub.s32 256, 256
      %94 = vsyncadd [#allocation3], %s93
      %s95 = sshll.u32 [#allocation2], 4
      %s96 = int_to_ptr.vmem [resolvable:$true] %s95
      %101 = dma.vmem_to_hbm [thread:$0]  %s96, 256, %s3, [#allocation3], 128, 128, 8
    $region17: #{transformer_forward.25} parent=1 // pred_fallthru
      _
    // Predicated region
    $region18: #{transformer_forward.25} parent=1 // pred_check
      _
    $region19: #{transformer_forward.25} parent=1 // pred_check_branch
      %103 = sbr.rel (0) target = $region21
    $region20: #{transformer_forward.25} parent=1 // pred_region
      %104 = dma.done [#allocation3], 256
    $region21: #{transformer_forward.25} parent=1 // pred_fallthru
      _
    %105 = vsyncpa [#allocation3], 1

</llo_original>
